<compile_context>
chip_gen: v6e
topology: v6e:2x2x1
jax: 0.10.0
libtpu: 0.0.40
codegen_flags: <defaults>
</compile_context>

<pallas_src>
import functools

import jax
import jax.numpy as jnp
from jax import lax
from jax.experimental import pallas as pl
from jax.experimental.pallas import tpu as pltpu

BIG = 1e30
BN_EPS = 1e-5


# ----------------------------------------------------------------------------
# In-kernel building blocks
# ----------------------------------------------------------------------------
def _edge_conv(x, w1, b1, w2, b2, t2, k):
    """One DynamicEdgeConv on a single graph.  x: (N, C) f32 -> (N, H) f32.

    w1 = [W1a - W1b | W1b]  (C, 2H), f32.
    w2 has BN1 (post-ReLU affine) and the BN2 scale folded in, bf16.
    b2 = (t1 @ w2_raw + b2_raw) * s2 ; t2 = BN2 shift (applied after ReLU).
    Requires s2 > 0 per channel so bias/ReLU/BN2 hoist past the neighbour max.
    """
    n, _ = x.shape
    h = w2.shape[1]

    # ---- pairwise squared distances (kept f32 so the kNN stays faithful) ----
    sq = jnp.sum(x * x, axis=-1, keepdims=True)                       # (N, 1)
    gram = lax.dot_general(x, x, (((1,), (1,)), ((), ())),
                           preferred_element_type=jnp.float32)        # (N, N)
    dist = sq + sq.T - 2.0 * gram                                     # (N, N)

    # ---- layer-1 per-point terms: one lane-dense (N, 2H) dot, split once ----
    # [x_i, x_j - x_i] @ W1 + b1 == (x_i @ (W1a - W1b) + b1) + x_j @ W1b
    r = jnp.dot(x, w1, preferred_element_type=jnp.float32)            # (N, 2H)
    p = r[:, :h] + b1[None, :]        # per-point (query) half, b1 folded in
    q = r[:, h:]                      # per-neighbour half (gathered below)

    col = lax.broadcasted_iota(jnp.int32, (n, n), 1)

    # ---- flash-style k-NN + edge MLP + running max ---------------------------
    def body(_, carry):
        d, acc = carry
        # Row-wise argmin as a one-hot (ties -> lowest index); O(N^2) only.
        mn = jnp.min(d, axis=1, keepdims=True)                        # (N, 1)
        cand = jnp.where(d <= mn, col, n)                             # (N, N)
        first = jnp.min(cand, axis=1, keepdims=True)                  # (N, 1)
        sel = col == first                                            # (N, N)
        onehot = sel.astype(jnp.float32)
        # Gather the selected neighbour's layer-1 term via a tiny MXU matmul.
        qj = jnp.dot(onehot, q, preferred_element_type=jnp.float32)   # (N, H)
        h1 = jnp.maximum(p + qj, 0.0)                                 # (N, H)
        pre2 = jnp.dot(h1.astype(jnp.bfloat16), w2,
                       preferred_element_type=jnp.float32)            # (N, H)
        acc = jnp.maximum(acc, pre2)
        d = jnp.where(sel, BIG, d)          # exclude this neighbour next step
        return d, acc

    acc0 = jnp.full((n, h), -BIG, jnp.float32)
    _, acc = lax.fori_loop(0, k, body, (dist, acc0), unroll=True)

    # ---- bias / ReLU / BN2 hoisted past the max (scale already in w2/b2) ----
    return jnp.maximum(acc + b2[None, :], 0.0) + t2[None, :]


def fused_kernel(x0_ref,
                 w1_1, b1_1, w2_1, b2_1, t2_1,
                 w1_2, b1_2, w2_2, b2_2, t2_2,
                 w1_3, b1_3, w2_3, b2_3, t2_3,
                 lw_ref, lb_ref, lt_ref,
                 o_ref, *, k):
    """Whole Feature_extractor forward for one graph."""
    x0 = x0_ref[0].astype(jnp.float32)                                # (N, 6)

    x1 = _edge_conv(x0, w1_1[...], b1_1[0], w2_1[...], b2_1[0], t2_1[0], k)
    x2 = _edge_conv(x1, w1_2[...], b1_2[0], w2_2[...], b2_2[0], t2_2[0], k)
    x3 = _edge_conv(x2, w1_3[...], b1_3[0], w2_3[...], b2_3[0], t2_3[0], k)

    # lin1 on cat([x1, x2, x3], -1): three accumulating (N,H)@(H,1024) dots,
    # so the 192-wide concat never materializes; output is lane-dense (1024).
    # BN scale is pre-folded into lw/lb (requires scale > 0); shift lt is
    # applied after the ReLU.
    hid = x1.shape[1]
    acc = jnp.dot(x1.astype(jnp.bfloat16), lw_ref[pl.ds(0, hid), :],
                  preferred_element_type=jnp.float32)
    acc = acc + jnp.dot(x2.astype(jnp.bfloat16), lw_ref[pl.ds(hid, hid), :],
                        preferred_element_type=jnp.float32)
    acc = acc + jnp.dot(x3.astype(jnp.bfloat16), lw_ref[pl.ds(2 * hid, hid), :],
                        preferred_element_type=jnp.float32)
    out = jnp.maximum(acc + lb_ref[0][None, :], 0.0) + lt_ref[0][None, :]
    o_ref[0] = out.astype(o_ref.dtype)


# ----------------------------------------------------------------------------
# Wrapper
# ----------------------------------------------------------------------------
def _full_spec(shape):
    return pl.BlockSpec(shape, lambda b, _nd=len(shape): (0,) * _nd)


_CONV_KEYS = ("w1", "b1", "w2", "b2", "t2")
_LIN_KEYS = ("w", "b", "t")


def feature_extractor(pos, normal, params, k):
    """pos, normal: (B, N, 3) -> (B, N, 1024), one fused pallas_call."""
    x0 = jnp.concatenate([pos, normal], axis=-1)                      # (B, N, 6)
    bsz, n, c0 = x0.shape
    assert k <= n, "k-NN with k > points-per-graph is not supported"
    cout = params["lin1"]["w"].shape[1]

    args = [x0]
    in_specs = [pl.BlockSpec((1, n, c0), lambda b: (b, 0, 0))]
    for conv in ("conv1", "conv2", "conv3"):
        for name in _CONV_KEYS:
            arr = params[conv][name]
            args.append(arr)
            in_specs.append(_full_spec(arr.shape))
    for name in _LIN_KEYS:
        arr = params["lin1"][name]
        args.append(arr)
        in_specs.append(_full_spec(arr.shape))

    kern = functools.partial(fused_kernel, k=k)
    return pl.pallas_call(
        kern,
        out_shape=jax.ShapeDtypeStruct((bsz, n, cout), jnp.float32),
        grid=(bsz,),
        in_specs=in_specs,
        out_specs=pl.BlockSpec((1, n, cout), lambda b: (b, 0, 0)),
        compiler_params=pltpu.CompilerParams(
            dimension_semantics=("parallel",)),
    )(*args)


# ----------------------------------------------------------------------------
# Parameter construction (deterministic, synthetic) + host-side folding
# ----------------------------------------------------------------------------
def _bn_scale_shift(ch):
    # gamma=1, beta=0, running_mean=0, running_var=1 (fresh BatchNorm1d init).
    scale = jnp.full((1, ch), 1.0 / jnp.sqrt(1.0 + BN_EPS), jnp.float32)
    shift = jnp.zeros((1, ch), jnp.float32)
    return scale, shift


def _linear(key, fan_in, fan_out):
    kw, kb = jax.random.split(key)
    lim = 1.0 / jnp.sqrt(float(fan_in))
    w = jax.random.uniform(kw, (fan_in, fan_out), jnp.float32, -lim, lim)
    b = jax.random.uniform(kb, (1, fan_out), jnp.float32, -lim, lim)
    return w, b


def make_edge_conv_params(key, cin, hidden):
    """MLP([2*cin, hidden, hidden]) params with all affine folds done host-side.

    Folds (all exact, require BN scales > 0, true for fresh BN init):
      * layer 1: [x_i, x_j - x_i] @ W1 == x_i @ (W1a - W1b) + x_j @ W1b, fused
        into one lane-dense (cin, 2*hidden) weight,
      * BN1 (applied after ReLU in this module's MLP) folded into layer 2,
      * BN2 scale folded into layer 2 / bias so it commutes with the max.
    """
    k1, k2 = jax.random.split(key)
    w1, b1 = _linear(k1, 2 * cin, hidden)
    w2, b2 = _linear(k2, hidden, hidden)
    s1, t1 = _bn_scale_shift(hidden)
    s2, t2 = _bn_scale_shift(hidden)
    w1a, w1b = w1[:cin, :], w1[cin:, :]
    w1cat = jnp.concatenate([w1a - w1b, w1b], axis=1)                 # (cin, 2H)
    w2f = (s1.reshape(-1, 1) * w2) * s2.reshape(1, -1)
    b2f = (t1 @ w2 + b2) * s2
    return dict(w1=w1cat, b1=b1, w2=w2f.astype(jnp.bfloat16), b2=b2f, t2=t2)


def make_lin_params(key, cin, cout):
    w, b = _linear(key, cin, cout)
    s, t = _bn_scale_shift(cout)
    # BN scale (> 0) commutes with ReLU -> fold into w/b; shift stays separate.
    return dict(w=(w * s).astype(jnp.bfloat16), b=b * s, t=t)


# ----------------------------------------------------------------------------
if __name__ == "__main__":
    B, N, K = 2, 32, 8            # 2 graphs, 32 points each, k=8 neighbours
    HIDDEN, OUT = 64, 1024

    root = jax.random.PRNGKey(0)
    k_pos, k_nrm, k_c1, k_c2, k_c3, k_l1 = jax.random.split(root, 6)

    pos = jax.random.normal(k_pos, (B, N, 3), jnp.float32)
    normal = jax.random.normal(k_nrm, (B, N, 3), jnp.float32)

    params = dict(
        conv1=make_edge_conv_params(k_c1, 6, HIDDEN),
        conv2=make_edge_conv_params(k_c2, HIDDEN, HIDDEN),
        conv3=make_edge_conv_params(k_c3, HIDDEN, HIDDEN),
        lin1=make_lin_params(k_l1, 3 * HIDDEN, OUT),
    )

    out = feature_extractor(pos, normal, params, K)
    out = jax.block_until_ready(out)
    assert out.shape == (B, N, OUT) and out.dtype == jnp.float32
    print("KERNEL_OK")
</pallas_src>

<mosaic_0001>
module attributes {stable_mosaic.version = 11 : i64} {
  func.func @fused_kernel(%arg0: i32, %arg1: memref<1x32x6xf32, #tpu.memory_space<vmem>>, %arg2: memref<6x128xf32, #tpu.memory_space<vmem>>, %arg3: memref<1x64xf32, #tpu.memory_space<vmem>>, %arg4: memref<64x64xbf16, #tpu.memory_space<vmem>>, %arg5: memref<1x64xf32, #tpu.memory_space<vmem>>, %arg6: memref<1x64xf32, #tpu.memory_space<vmem>>, %arg7: memref<64x128xf32, #tpu.memory_space<vmem>>, %arg8: memref<1x64xf32, #tpu.memory_space<vmem>>, %arg9: memref<64x64xbf16, #tpu.memory_space<vmem>>, %arg10: memref<1x64xf32, #tpu.memory_space<vmem>>, %arg11: memref<1x64xf32, #tpu.memory_space<vmem>>, %arg12: memref<64x128xf32, #tpu.memory_space<vmem>>, %arg13: memref<1x64xf32, #tpu.memory_space<vmem>>, %arg14: memref<64x64xbf16, #tpu.memory_space<vmem>>, %arg15: memref<1x64xf32, #tpu.memory_space<vmem>>, %arg16: memref<1x64xf32, #tpu.memory_space<vmem>>, %arg17: memref<192x1024xbf16, #tpu.memory_space<vmem>>, %arg18: memref<1x1024xf32, #tpu.memory_space<vmem>>, %arg19: memref<1x1024xf32, #tpu.memory_space<vmem>>, %arg20: memref<1x32x1024xf32, #tpu.memory_space<vmem>>) attributes {dimension_semantics = [#tpu.dimension_semantics<parallel>], iteration_bounds = array<i64: 2>, scalar_prefetch = 0 : i64, scratch_operands = 0 : i64, tpu.core_type = #tpu.core_type<tc>, window_params = [{transform_indices = @transform_0, window_bounds = array<i64: 1, 32, 6>}, {pipeline_mode = #tpu.pipeline_mode<synchronous>, transform_indices = @transform_1, window_bounds = array<i64: 6, 128>}, {pipeline_mode = #tpu.pipeline_mode<synchronous>, transform_indices = @transform_2, window_bounds = array<i64: 1, 64>}, {pipeline_mode = #tpu.pipeline_mode<synchronous>, transform_indices = @transform_3, window_bounds = array<i64: 64, 64>}, {pipeline_mode = #tpu.pipeline_mode<synchronous>, transform_indices = @transform_4, window_bounds = array<i64: 1, 64>}, {pipeline_mode = #tpu.pipeline_mode<synchronous>, transform_indices = @transform_5, window_bounds = array<i64: 1, 64>}, {pipeline_mode = #tpu.pipeline_mode<synchronous>, transform_indices = @transform_6, window_bounds = array<i64: 64, 128>}, {pipeline_mode = #tpu.pipeline_mode<synchronous>, transform_indices = @transform_7, window_bounds = array<i64: 1, 64>}, {pipeline_mode = #tpu.pipeline_mode<synchronous>, transform_indices = @transform_8, window_bounds = array<i64: 64, 64>}, {pipeline_mode = #tpu.pipeline_mode<synchronous>, transform_indices = @transform_9, window_bounds = array<i64: 1, 64>}, {pipeline_mode = #tpu.pipeline_mode<synchronous>, transform_indices = @transform_10, window_bounds = array<i64: 1, 64>}, {pipeline_mode = #tpu.pipeline_mode<synchronous>, transform_indices = @transform_11, window_bounds = array<i64: 64, 128>}, {pipeline_mode = #tpu.pipeline_mode<synchronous>, transform_indices = @transform_12, window_bounds = array<i64: 1, 64>}, {pipeline_mode = #tpu.pipeline_mode<synchronous>, transform_indices = @transform_13, window_bounds = array<i64: 64, 64>}, {pipeline_mode = #tpu.pipeline_mode<synchronous>, transform_indices = @transform_14, window_bounds = array<i64: 1, 64>}, {pipeline_mode = #tpu.pipeline_mode<synchronous>, transform_indices = @transform_15, window_bounds = array<i64: 1, 64>}, {pipeline_mode = #tpu.pipeline_mode<synchronous>, transform_indices = @transform_16, window_bounds = array<i64: 192, 1024>}, {pipeline_mode = #tpu.pipeline_mode<synchronous>, transform_indices = @transform_17, window_bounds = array<i64: 1, 1024>}, {pipeline_mode = #tpu.pipeline_mode<synchronous>, transform_indices = @transform_18, window_bounds = array<i64: 1, 1024>}, {transform_indices = @transform_19, window_bounds = array<i64: 1, 32, 1024>}]} {
    %c0 = arith.constant 0 : index
    %c0_0 = arith.constant 0 : index
    %c0_1 = arith.constant 0 : index
    %0 = vector.load %arg1[%c0, %c0_0, %c0_1] : memref<1x32x6xf32, #tpu.memory_space<vmem>>, vector<1x32x6xf32>
    %1 = vector.shape_cast %0 : vector<1x32x6xf32> to vector<32x6xf32>
    %c0_2 = arith.constant 0 : index
    %c0_3 = arith.constant 0 : index
    %2 = vector.load %arg2[%c0_2, %c0_3] : memref<6x128xf32, #tpu.memory_space<vmem>>, vector<6x128xf32>
    %c0_4 = arith.constant 0 : index
    %c0_5 = arith.constant 0 : index
    %3 = vector.load %arg3[%c0_4, %c0_5] : memref<1x64xf32, #tpu.memory_space<vmem>>, vector<1x64xf32>
    %4 = vector.shape_cast %3 : vector<1x64xf32> to vector<64xf32>
    %c0_6 = arith.constant 0 : index
    %c0_7 = arith.constant 0 : index
    %5 = vector.load %arg4[%c0_6, %c0_7] : memref<64x64xbf16, #tpu.memory_space<vmem>>, vector<64x64xbf16>
    %c0_8 = arith.constant 0 : index
    %c0_9 = arith.constant 0 : index
    %6 = vector.load %arg5[%c0_8, %c0_9] : memref<1x64xf32, #tpu.memory_space<vmem>>, vector<1x64xf32>
    %7 = vector.shape_cast %6 : vector<1x64xf32> to vector<64xf32>
    %c0_10 = arith.constant 0 : index
    %c0_11 = arith.constant 0 : index
    %8 = vector.load %arg6[%c0_10, %c0_11] : memref<1x64xf32, #tpu.memory_space<vmem>>, vector<1x64xf32>
    %9 = vector.shape_cast %8 : vector<1x64xf32> to vector<64xf32>
    %10 = arith.mulf %1, %1 : vector<32x6xf32>
    %cst = arith.constant dense<0.000000e+00> : vector<32xf32>
    %11 = vector.multi_reduction <add>, %10, %cst [1] : vector<32x6xf32> to vector<32xf32>
    %12 = vector.shape_cast %11 : vector<32xf32> to vector<32x1xf32>
    %cst_12 = arith.constant dense<0.000000e+00> : vector<32x32xf32>
    %13 = tpu.matmul %1, %1, %cst_12 {dimension_numbers = #tpu.dot_dimension_numbers<[1], [1], [0], [0], [0, 0, 1, 0], [], []>} : vector<32x6xf32>, vector<32x6xf32>, vector<32x32xf32> -> vector<32x32xf32>
    %14 = tpu.transpose %12, [1, 0] : vector<32x1xf32> -> vector<1x32xf32>
    %15 = vector.broadcast %12 : vector<32x1xf32> to vector<32x32xf32>
    %16 = vector.broadcast %14 : vector<1x32xf32> to vector<32x32xf32>
    %17 = arith.addf %15, %16 : vector<32x32xf32>
    %cst_13 = arith.constant 2.000000e+00 : f32
    %18 = vector.broadcast %cst_13 : f32 to vector<32x32xf32>
    %19 = arith.mulf %18, %13 : vector<32x32xf32>
    %20 = arith.subf %17, %19 : vector<32x32xf32>
    %cst_14 = arith.constant dense<0.000000e+00> : vector<32x128xf32>
    %21 = tpu.matmul %1, %2, %cst_14 {dimension_numbers = #tpu.dot_dimension_numbers<[1], [0], [0], [1], [0, 0, 1, 1], [], []>} : vector<32x6xf32>, vector<6x128xf32>, vector<32x128xf32> -> vector<32x128xf32>
    %22 = vector.extract_strided_slice %21 {offsets = [0, 0], sizes = [32, 64], strides = [1, 1]} : vector<32x128xf32> to vector<32x64xf32>
    %23 = vector.shape_cast %4 : vector<64xf32> to vector<1x64xf32>
    %24 = vector.broadcast %23 : vector<1x64xf32> to vector<32x64xf32>
    %25 = arith.addf %22, %24 : vector<32x64xf32>
    %26 = vector.extract_strided_slice %21 {offsets = [0, 64], sizes = [32, 64], strides = [1, 1]} : vector<32x128xf32> to vector<32x64xf32>
    %27 = tpu.iota {dimensions = array<i32: 1>} : vector<32x32xi32>
    %cst_15 = arith.constant -1.000000e+30 : f32
    %28 = vector.broadcast %cst_15 : f32 to vector<32x64xf32>
    %c0_i32 = arith.constant 0 : i32
    %cst_16 = arith.constant dense<0x7F800000> : vector<32xf32>
    %29 = vector.multi_reduction <minimumf>, %20, %cst_16 [1] : vector<32x32xf32> to vector<32xf32>
    %30 = vector.shape_cast %29 : vector<32xf32> to vector<32x1xf32>
    %31 = vector.broadcast %30 : vector<32x1xf32> to vector<32x32xf32>
    %32 = arith.cmpf ole, %20, %31 : vector<32x32xf32>
    %c32_i32 = arith.constant 32 : i32
    %33 = vector.broadcast %c32_i32 : i32 to vector<32x32xi32>
    %34 = arith.select %32, %27, %33 : vector<32x32xi1>, vector<32x32xi32>
    %cst_17 = arith.constant dense<2147483647> : vector<32xi32>
    %35 = vector.multi_reduction <minsi>, %34, %cst_17 [1] : vector<32x32xi32> to vector<32xi32>
    %36 = vector.shape_cast %35 : vector<32xi32> to vector<32x1xi32>
    %37 = vector.broadcast %36 : vector<32x1xi32> to vector<32x32xi32>
    %38 = arith.cmpi eq, %27, %37 : vector<32x32xi32>
    %39 = arith.extui %38 : vector<32x32xi1> to vector<32x32xi32>
    %40 = arith.sitofp %39 : vector<32x32xi32> to vector<32x32xf32>
    %cst_18 = arith.constant dense<0.000000e+00> : vector<32x64xf32>
    %41 = tpu.matmul %40, %26, %cst_18 {dimension_numbers = #tpu.dot_dimension_numbers<[1], [0], [0], [1], [0, 0, 1, 1], [], []>} : vector<32x32xf32>, vector<32x64xf32>, vector<32x64xf32> -> vector<32x64xf32>
    %42 = arith.addf %25, %41 : vector<32x64xf32>
    %cst_19 = arith.constant 0.000000e+00 : f32
    %43 = vector.broadcast %cst_19 : f32 to vector<32x64xf32>
    %44 = arith.maximumf %42, %43 : vector<32x64xf32>
    %45 = arith.truncf %44 : vector<32x64xf32> to vector<32x64xbf16>
    %cst_20 = arith.constant dense<0.000000e+00> : vector<32x64xf32>
    %46 = tpu.matmul %45, %5, %cst_20 {dimension_numbers = #tpu.dot_dimension_numbers<[1], [0], [0], [1], [0, 0, 1, 1], [], []>} : vector<32x64xbf16>, vector<64x64xbf16>, vector<32x64xf32> -> vector<32x64xf32>
    %47 = arith.maximumf %28, %46 : vector<32x64xf32>
    %cst_21 = arith.constant 1.000000e+30 : f32
    %48 = vector.broadcast %cst_21 : f32 to vector<32x32xf32>
    %49 = arith.select %38, %48, %20 : vector<32x32xi1>, vector<32x32xf32>
    %c1_i32 = arith.constant 1 : i32
    %cst_22 = arith.constant dense<0x7F800000> : vector<32xf32>
    %50 = vector.multi_reduction <minimumf>, %49, %cst_22 [1] : vector<32x32xf32> to vector<32xf32>
    %51 = vector.shape_cast %50 : vector<32xf32> to vector<32x1xf32>
    %52 = vector.broadcast %51 : vector<32x1xf32> to vector<32x32xf32>
    %53 = arith.cmpf ole, %49, %52 : vector<32x32xf32>
    %c32_i32_23 = arith.constant 32 : i32
    %54 = vector.broadcast %c32_i32_23 : i32 to vector<32x32xi32>
    %55 = arith.select %53, %27, %54 : vector<32x32xi1>, vector<32x32xi32>
    %cst_24 = arith.constant dense<2147483647> : vector<32xi32>
    %56 = vector.multi_reduction <minsi>, %55, %cst_24 [1] : vector<32x32xi32> to vector<32xi32>
    %57 = vector.shape_cast %56 : vector<32xi32> to vector<32x1xi32>
    %58 = vector.broadcast %57 : vector<32x1xi32> to vector<32x32xi32>
    %59 = arith.cmpi eq, %27, %58 : vector<32x32xi32>
    %60 = arith.extui %59 : vector<32x32xi1> to vector<32x32xi32>
    %61 = arith.sitofp %60 : vector<32x32xi32> to vector<32x32xf32>
    %cst_25 = arith.constant dense<0.000000e+00> : vector<32x64xf32>
    %62 = tpu.matmul %61, %26, %cst_25 {dimension_numbers = #tpu.dot_dimension_numbers<[1], [0], [0], [1], [0, 0, 1, 1], [], []>} : vector<32x32xf32>, vector<32x64xf32>, vector<32x64xf32> -> vector<32x64xf32>
    %63 = arith.addf %25, %62 : vector<32x64xf32>
    %cst_26 = arith.constant 0.000000e+00 : f32
    %64 = vector.broadcast %cst_26 : f32 to vector<32x64xf32>
    %65 = arith.maximumf %63, %64 : vector<32x64xf32>
    %66 = arith.truncf %65 : vector<32x64xf32> to vector<32x64xbf16>
    %cst_27 = arith.constant dense<0.000000e+00> : vector<32x64xf32>
    %67 = tpu.matmul %66, %5, %cst_27 {dimension_numbers = #tpu.dot_dimension_numbers<[1], [0], [0], [1], [0, 0, 1, 1], [], []>} : vector<32x64xbf16>, vector<64x64xbf16>, vector<32x64xf32> -> vector<32x64xf32>
    %68 = arith.maximumf %47, %67 : vector<32x64xf32>
    %cst_28 = arith.constant 1.000000e+30 : f32
    %69 = vector.broadcast %cst_28 : f32 to vector<32x32xf32>
    %70 = arith.select %59, %69, %49 : vector<32x32xi1>, vector<32x32xf32>
    %c2_i32 = arith.constant 2 : i32
    %cst_29 = arith.constant dense<0x7F800000> : vector<32xf32>
    %71 = vector.multi_reduction <minimumf>, %70, %cst_29 [1] : vector<32x32xf32> to vector<32xf32>
    %72 = vector.shape_cast %71 : vector<32xf32> to vector<32x1xf32>
    %73 = vector.broadcast %72 : vector<32x1xf32> to vector<32x32xf32>
    %74 = arith.cmpf ole, %70, %73 : vector<32x32xf32>
    %c32_i32_30 = arith.constant 32 : i32
    %75 = vector.broadcast %c32_i32_30 : i32 to vector<32x32xi32>
    %76 = arith.select %74, %27, %75 : vector<32x32xi1>, vector<32x32xi32>
    %cst_31 = arith.constant dense<2147483647> : vector<32xi32>
    %77 = vector.multi_reduction <minsi>, %76, %cst_31 [1] : vector<32x32xi32> to vector<32xi32>
    %78 = vector.shape_cast %77 : vector<32xi32> to vector<32x1xi32>
    %79 = vector.broadcast %78 : vector<32x1xi32> to vector<32x32xi32>
    %80 = arith.cmpi eq, %27, %79 : vector<32x32xi32>
    %81 = arith.extui %80 : vector<32x32xi1> to vector<32x32xi32>
    %82 = arith.sitofp %81 : vector<32x32xi32> to vector<32x32xf32>
    %cst_32 = arith.constant dense<0.000000e+00> : vector<32x64xf32>
    %83 = tpu.matmul %82, %26, %cst_32 {dimension_numbers = #tpu.dot_dimension_numbers<[1], [0], [0], [1], [0, 0, 1, 1], [], []>} : vector<32x32xf32>, vector<32x64xf32>, vector<32x64xf32> -> vector<32x64xf32>
    %84 = arith.addf %25, %83 : vector<32x64xf32>
    %cst_33 = arith.constant 0.000000e+00 : f32
    %85 = vector.broadcast %cst_33 : f32 to vector<32x64xf32>
    %86 = arith.maximumf %84, %85 : vector<32x64xf32>
    %87 = arith.truncf %86 : vector<32x64xf32> to vector<32x64xbf16>
    %cst_34 = arith.constant dense<0.000000e+00> : vector<32x64xf32>
    %88 = tpu.matmul %87, %5, %cst_34 {dimension_numbers = #tpu.dot_dimension_numbers<[1], [0], [0], [1], [0, 0, 1, 1], [], []>} : vector<32x64xbf16>, vector<64x64xbf16>, vector<32x64xf32> -> vector<32x64xf32>
    %89 = arith.maximumf %68, %88 : vector<32x64xf32>
    %cst_35 = arith.constant 1.000000e+30 : f32
    %90 = vector.broadcast %cst_35 : f32 to vector<32x32xf32>
    %91 = arith.select %80, %90, %70 : vector<32x32xi1>, vector<32x32xf32>
    %c3_i32 = arith.constant 3 : i32
    %cst_36 = arith.constant dense<0x7F800000> : vector<32xf32>
    %92 = vector.multi_reduction <minimumf>, %91, %cst_36 [1] : vector<32x32xf32> to vector<32xf32>
    %93 = vector.shape_cast %92 : vector<32xf32> to vector<32x1xf32>
    %94 = vector.broadcast %93 : vector<32x1xf32> to vector<32x32xf32>
    %95 = arith.cmpf ole, %91, %94 : vector<32x32xf32>
    %c32_i32_37 = arith.constant 32 : i32
    %96 = vector.broadcast %c32_i32_37 : i32 to vector<32x32xi32>
    %97 = arith.select %95, %27, %96 : vector<32x32xi1>, vector<32x32xi32>
    %cst_38 = arith.constant dense<2147483647> : vector<32xi32>
    %98 = vector.multi_reduction <minsi>, %97, %cst_38 [1] : vector<32x32xi32> to vector<32xi32>
    %99 = vector.shape_cast %98 : vector<32xi32> to vector<32x1xi32>
    %100 = vector.broadcast %99 : vector<32x1xi32> to vector<32x32xi32>
    %101 = arith.cmpi eq, %27, %100 : vector<32x32xi32>
    %102 = arith.extui %101 : vector<32x32xi1> to vector<32x32xi32>
    %103 = arith.sitofp %102 : vector<32x32xi32> to vector<32x32xf32>
    %cst_39 = arith.constant dense<0.000000e+00> : vector<32x64xf32>
    %104 = tpu.matmul %103, %26, %cst_39 {dimension_numbers = #tpu.dot_dimension_numbers<[1], [0], [0], [1], [0, 0, 1, 1], [], []>} : vector<32x32xf32>, vector<32x64xf32>, vector<32x64xf32> -> vector<32x64xf32>
    %105 = arith.addf %25, %104 : vector<32x64xf32>
    %cst_40 = arith.constant 0.000000e+00 : f32
    %106 = vector.broadcast %cst_40 : f32 to vector<32x64xf32>
    %107 = arith.maximumf %105, %106 : vector<32x64xf32>
    %108 = arith.truncf %107 : vector<32x64xf32> to vector<32x64xbf16>
    %cst_41 = arith.constant dense<0.000000e+00> : vector<32x64xf32>
    %109 = tpu.matmul %108, %5, %cst_41 {dimension_numbers = #tpu.dot_dimension_numbers<[1], [0], [0], [1], [0, 0, 1, 1], [], []>} : vector<32x64xbf16>, vector<64x64xbf16>, vector<32x64xf32> -> vector<32x64xf32>
    %110 = arith.maximumf %89, %109 : vector<32x64xf32>
    %cst_42 = arith.constant 1.000000e+30 : f32
    %111 = vector.broadcast %cst_42 : f32 to vector<32x32xf32>
    %112 = arith.select %101, %111, %91 : vector<32x32xi1>, vector<32x32xf32>
    %c4_i32 = arith.constant 4 : i32
    %cst_43 = arith.constant dense<0x7F800000> : vector<32xf32>
    %113 = vector.multi_reduction <minimumf>, %112, %cst_43 [1] : vector<32x32xf32> to vector<32xf32>
    %114 = vector.shape_cast %113 : vector<32xf32> to vector<32x1xf32>
    %115 = vector.broadcast %114 : vector<32x1xf32> to vector<32x32xf32>
    %116 = arith.cmpf ole, %112, %115 : vector<32x32xf32>
    %c32_i32_44 = arith.constant 32 : i32
    %117 = vector.broadcast %c32_i32_44 : i32 to vector<32x32xi32>
    %118 = arith.select %116, %27, %117 : vector<32x32xi1>, vector<32x32xi32>
    %cst_45 = arith.constant dense<2147483647> : vector<32xi32>
    %119 = vector.multi_reduction <minsi>, %118, %cst_45 [1] : vector<32x32xi32> to vector<32xi32>
    %120 = vector.shape_cast %119 : vector<32xi32> to vector<32x1xi32>
    %121 = vector.broadcast %120 : vector<32x1xi32> to vector<32x32xi32>
    %122 = arith.cmpi eq, %27, %121 : vector<32x32xi32>
    %123 = arith.extui %122 : vector<32x32xi1> to vector<32x32xi32>
    %124 = arith.sitofp %123 : vector<32x32xi32> to vector<32x32xf32>
    %cst_46 = arith.constant dense<0.000000e+00> : vector<32x64xf32>
    %125 = tpu.matmul %124, %26, %cst_46 {dimension_numbers = #tpu.dot_dimension_numbers<[1], [0], [0], [1], [0, 0, 1, 1], [], []>} : vector<32x32xf32>, vector<32x64xf32>, vector<32x64xf32> -> vector<32x64xf32>
    %126 = arith.addf %25, %125 : vector<32x64xf32>
    %cst_47 = arith.constant 0.000000e+00 : f32
    %127 = vector.broadcast %cst_47 : f32 to vector<32x64xf32>
    %128 = arith.maximumf %126, %127 : vector<32x64xf32>
    %129 = arith.truncf %128 : vector<32x64xf32> to vector<32x64xbf16>
    %cst_48 = arith.constant dense<0.000000e+00> : vector<32x64xf32>
    %130 = tpu.matmul %129, %5, %cst_48 {dimension_numbers = #tpu.dot_dimension_numbers<[1], [0], [0], [1], [0, 0, 1, 1], [], []>} : vector<32x64xbf16>, vector<64x64xbf16>, vector<32x64xf32> -> vector<32x64xf32>
    %131 = arith.maximumf %110, %130 : vector<32x64xf32>
    %cst_49 = arith.constant 1.000000e+30 : f32
    %132 = vector.broadcast %cst_49 : f32 to vector<32x32xf32>
    %133 = arith.select %122, %132, %112 : vector<32x32xi1>, vector<32x32xf32>
    %c5_i32 = arith.constant 5 : i32
    %cst_50 = arith.constant dense<0x7F800000> : vector<32xf32>
    %134 = vector.multi_reduction <minimumf>, %133, %cst_50 [1] : vector<32x32xf32> to vector<32xf32>
    %135 = vector.shape_cast %134 : vector<32xf32> to vector<32x1xf32>
    %136 = vector.broadcast %135 : vector<32x1xf32> to vector<32x32xf32>
    %137 = arith.cmpf ole, %133, %136 : vector<32x32xf32>
    %c32_i32_51 = arith.constant 32 : i32
    %138 = vector.broadcast %c32_i32_51 : i32 to vector<32x32xi32>
    %139 = arith.select %137, %27, %138 : vector<32x32xi1>, vector<32x32xi32>
    %cst_52 = arith.constant dense<2147483647> : vector<32xi32>
    %140 = vector.multi_reduction <minsi>, %139, %cst_52 [1] : vector<32x32xi32> to vector<32xi32>
    %141 = vector.shape_cast %140 : vector<32xi32> to vector<32x1xi32>
    %142 = vector.broadcast %141 : vector<32x1xi32> to vector<32x32xi32>
    %143 = arith.cmpi eq, %27, %142 : vector<32x32xi32>
    %144 = arith.extui %143 : vector<32x32xi1> to vector<32x32xi32>
    %145 = arith.sitofp %144 : vector<32x32xi32> to vector<32x32xf32>
    %cst_53 = arith.constant dense<0.000000e+00> : vector<32x64xf32>
    %146 = tpu.matmul %145, %26, %cst_53 {dimension_numbers = #tpu.dot_dimension_numbers<[1], [0], [0], [1], [0, 0, 1, 1], [], []>} : vector<32x32xf32>, vector<32x64xf32>, vector<32x64xf32> -> vector<32x64xf32>
    %147 = arith.addf %25, %146 : vector<32x64xf32>
    %cst_54 = arith.constant 0.000000e+00 : f32
    %148 = vector.broadcast %cst_54 : f32 to vector<32x64xf32>
    %149 = arith.maximumf %147, %148 : vector<32x64xf32>
    %150 = arith.truncf %149 : vector<32x64xf32> to vector<32x64xbf16>
    %cst_55 = arith.constant dense<0.000000e+00> : vector<32x64xf32>
    %151 = tpu.matmul %150, %5, %cst_55 {dimension_numbers = #tpu.dot_dimension_numbers<[1], [0], [0], [1], [0, 0, 1, 1], [], []>} : vector<32x64xbf16>, vector<64x64xbf16>, vector<32x64xf32> -> vector<32x64xf32>
    %152 = arith.maximumf %131, %151 : vector<32x64xf32>
    %cst_56 = arith.constant 1.000000e+30 : f32
    %153 = vector.broadcast %cst_56 : f32 to vector<32x32xf32>
    %154 = arith.select %143, %153, %133 : vector<32x32xi1>, vector<32x32xf32>
    %c6_i32 = arith.constant 6 : i32
    %cst_57 = arith.constant dense<0x7F800000> : vector<32xf32>
    %155 = vector.multi_reduction <minimumf>, %154, %cst_57 [1] : vector<32x32xf32> to vector<32xf32>
    %156 = vector.shape_cast %155 : vector<32xf32> to vector<32x1xf32>
    %157 = vector.broadcast %156 : vector<32x1xf32> to vector<32x32xf32>
    %158 = arith.cmpf ole, %154, %157 : vector<32x32xf32>
    %c32_i32_58 = arith.constant 32 : i32
    %159 = vector.broadcast %c32_i32_58 : i32 to vector<32x32xi32>
    %160 = arith.select %158, %27, %159 : vector<32x32xi1>, vector<32x32xi32>
    %cst_59 = arith.constant dense<2147483647> : vector<32xi32>
    %161 = vector.multi_reduction <minsi>, %160, %cst_59 [1] : vector<32x32xi32> to vector<32xi32>
    %162 = vector.shape_cast %161 : vector<32xi32> to vector<32x1xi32>
    %163 = vector.broadcast %162 : vector<32x1xi32> to vector<32x32xi32>
    %164 = arith.cmpi eq, %27, %163 : vector<32x32xi32>
    %165 = arith.extui %164 : vector<32x32xi1> to vector<32x32xi32>
    %166 = arith.sitofp %165 : vector<32x32xi32> to vector<32x32xf32>
    %cst_60 = arith.constant dense<0.000000e+00> : vector<32x64xf32>
    %167 = tpu.matmul %166, %26, %cst_60 {dimension_numbers = #tpu.dot_dimension_numbers<[1], [0], [0], [1], [0, 0, 1, 1], [], []>} : vector<32x32xf32>, vector<32x64xf32>, vector<32x64xf32> -> vector<32x64xf32>
    %168 = arith.addf %25, %167 : vector<32x64xf32>
    %cst_61 = arith.constant 0.000000e+00 : f32
    %169 = vector.broadcast %cst_61 : f32 to vector<32x64xf32>
    %170 = arith.maximumf %168, %169 : vector<32x64xf32>
    %171 = arith.truncf %170 : vector<32x64xf32> to vector<32x64xbf16>
    %cst_62 = arith.constant dense<0.000000e+00> : vector<32x64xf32>
    %172 = tpu.matmul %171, %5, %cst_62 {dimension_numbers = #tpu.dot_dimension_numbers<[1], [0], [0], [1], [0, 0, 1, 1], [], []>} : vector<32x64xbf16>, vector<64x64xbf16>, vector<32x64xf32> -> vector<32x64xf32>
    %173 = arith.maximumf %152, %172 : vector<32x64xf32>
    %cst_63 = arith.constant 1.000000e+30 : f32
    %174 = vector.broadcast %cst_63 : f32 to vector<32x32xf32>
    %175 = arith.select %164, %174, %154 : vector<32x32xi1>, vector<32x32xf32>
    %c7_i32 = arith.constant 7 : i32
    %cst_64 = arith.constant dense<0x7F800000> : vector<32xf32>
    %176 = vector.multi_reduction <minimumf>, %175, %cst_64 [1] : vector<32x32xf32> to vector<32xf32>
    %177 = vector.shape_cast %176 : vector<32xf32> to vector<32x1xf32>
    %178 = vector.broadcast %177 : vector<32x1xf32> to vector<32x32xf32>
    %179 = arith.cmpf ole, %175, %178 : vector<32x32xf32>
    %c32_i32_65 = arith.constant 32 : i32
    %180 = vector.broadcast %c32_i32_65 : i32 to vector<32x32xi32>
    %181 = arith.select %179, %27, %180 : vector<32x32xi1>, vector<32x32xi32>
    %cst_66 = arith.constant dense<2147483647> : vector<32xi32>
    %182 = vector.multi_reduction <minsi>, %181, %cst_66 [1] : vector<32x32xi32> to vector<32xi32>
    %183 = vector.shape_cast %182 : vector<32xi32> to vector<32x1xi32>
    %184 = vector.broadcast %183 : vector<32x1xi32> to vector<32x32xi32>
    %185 = arith.cmpi eq, %27, %184 : vector<32x32xi32>
    %186 = arith.extui %185 : vector<32x32xi1> to vector<32x32xi32>
    %187 = arith.sitofp %186 : vector<32x32xi32> to vector<32x32xf32>
    %cst_67 = arith.constant dense<0.000000e+00> : vector<32x64xf32>
    %188 = tpu.matmul %187, %26, %cst_67 {dimension_numbers = #tpu.dot_dimension_numbers<[1], [0], [0], [1], [0, 0, 1, 1], [], []>} : vector<32x32xf32>, vector<32x64xf32>, vector<32x64xf32> -> vector<32x64xf32>
    %189 = arith.addf %25, %188 : vector<32x64xf32>
    %cst_68 = arith.constant 0.000000e+00 : f32
    %190 = vector.broadcast %cst_68 : f32 to vector<32x64xf32>
    %191 = arith.maximumf %189, %190 : vector<32x64xf32>
    %192 = arith.truncf %191 : vector<32x64xf32> to vector<32x64xbf16>
    %cst_69 = arith.constant dense<0.000000e+00> : vector<32x64xf32>
    %193 = tpu.matmul %192, %5, %cst_69 {dimension_numbers = #tpu.dot_dimension_numbers<[1], [0], [0], [1], [0, 0, 1, 1], [], []>} : vector<32x64xbf16>, vector<64x64xbf16>, vector<32x64xf32> -> vector<32x64xf32>
    %194 = arith.maximumf %173, %193 : vector<32x64xf32>
    %cst_70 = arith.constant 1.000000e+30 : f32
    %195 = vector.broadcast %cst_70 : f32 to vector<32x32xf32>
    %196 = arith.select %185, %195, %175 : vector<32x32xi1>, vector<32x32xf32>
    %197 = vector.shape_cast %7 : vector<64xf32> to vector<1x64xf32>
    %198 = vector.broadcast %197 : vector<1x64xf32> to vector<32x64xf32>
    %199 = arith.addf %194, %198 : vector<32x64xf32>
    %cst_71 = arith.constant 0.000000e+00 : f32
    %200 = vector.broadcast %cst_71 : f32 to vector<32x64xf32>
    %201 = arith.maximumf %199, %200 : vector<32x64xf32>
    %202 = vector.shape_cast %9 : vector<64xf32> to vector<1x64xf32>
    %203 = vector.broadcast %202 : vector<1x64xf32> to vector<32x64xf32>
    %204 = arith.addf %201, %203 : vector<32x64xf32>
    %c0_72 = arith.constant 0 : index
    %c0_73 = arith.constant 0 : index
    %205 = vector.load %arg7[%c0_72, %c0_73] : memref<64x128xf32, #tpu.memory_space<vmem>>, vector<64x128xf32>
    %c0_74 = arith.constant 0 : index
    %c0_75 = arith.constant 0 : index
    %206 = vector.load %arg8[%c0_74, %c0_75] : memref<1x64xf32, #tpu.memory_space<vmem>>, vector<1x64xf32>
    %207 = vector.shape_cast %206 : vector<1x64xf32> to vector<64xf32>
    %c0_76 = arith.constant 0 : index
    %c0_77 = arith.constant 0 : index
    %208 = vector.load %arg9[%c0_76, %c0_77] : memref<64x64xbf16, #tpu.memory_space<vmem>>, vector<64x64xbf16>
    %c0_78 = arith.constant 0 : index
    %c0_79 = arith.constant 0 : index
    %209 = vector.load %arg10[%c0_78, %c0_79] : memref<1x64xf32, #tpu.memory_space<vmem>>, vector<1x64xf32>
    %210 = vector.shape_cast %209 : vector<1x64xf32> to vector<64xf32>
    %c0_80 = arith.constant 0 : index
    %c0_81 = arith.constant 0 : index
    %211 = vector.load %arg11[%c0_80, %c0_81] : memref<1x64xf32, #tpu.memory_space<vmem>>, vector<1x64xf32>
    %212 = vector.shape_cast %211 : vector<1x64xf32> to vector<64xf32>
    %213 = arith.mulf %204, %204 : vector<32x64xf32>
    %cst_82 = arith.constant dense<0.000000e+00> : vector<32xf32>
    %214 = vector.multi_reduction <add>, %213, %cst_82 [1] : vector<32x64xf32> to vector<32xf32>
    %215 = vector.shape_cast %214 : vector<32xf32> to vector<32x1xf32>
    %cst_83 = arith.constant dense<0.000000e+00> : vector<32x32xf32>
    %216 = tpu.matmul %204, %204, %cst_83 {dimension_numbers = #tpu.dot_dimension_numbers<[1], [1], [0], [0], [0, 0, 1, 0], [], []>} : vector<32x64xf32>, vector<32x64xf32>, vector<32x32xf32> -> vector<32x32xf32>
    %217 = tpu.transpose %215, [1, 0] : vector<32x1xf32> -> vector<1x32xf32>
    %218 = vector.broadcast %215 : vector<32x1xf32> to vector<32x32xf32>
    %219 = vector.broadcast %217 : vector<1x32xf32> to vector<32x32xf32>
    %220 = arith.addf %218, %219 : vector<32x32xf32>
    %cst_84 = arith.constant 2.000000e+00 : f32
    %221 = vector.broadcast %cst_84 : f32 to vector<32x32xf32>
    %222 = arith.mulf %221, %216 : vector<32x32xf32>
    %223 = arith.subf %220, %222 : vector<32x32xf32>
    %cst_85 = arith.constant dense<0.000000e+00> : vector<32x128xf32>
    %224 = tpu.matmul %204, %205, %cst_85 {dimension_numbers = #tpu.dot_dimension_numbers<[1], [0], [0], [1], [0, 0, 1, 1], [], []>} : vector<32x64xf32>, vector<64x128xf32>, vector<32x128xf32> -> vector<32x128xf32>
    %225 = vector.extract_strided_slice %224 {offsets = [0, 0], sizes = [32, 64], strides = [1, 1]} : vector<32x128xf32> to vector<32x64xf32>
    %226 = vector.shape_cast %207 : vector<64xf32> to vector<1x64xf32>
    %227 = vector.broadcast %226 : vector<1x64xf32> to vector<32x64xf32>
    %228 = arith.addf %225, %227 : vector<32x64xf32>
    %229 = vector.extract_strided_slice %224 {offsets = [0, 64], sizes = [32, 64], strides = [1, 1]} : vector<32x128xf32> to vector<32x64xf32>
    %230 = tpu.iota {dimensions = array<i32: 1>} : vector<32x32xi32>
    %cst_86 = arith.constant -1.000000e+30 : f32
    %231 = vector.broadcast %cst_86 : f32 to vector<32x64xf32>
    %c0_i32_87 = arith.constant 0 : i32
    %cst_88 = arith.constant dense<0x7F800000> : vector<32xf32>
    %232 = vector.multi_reduction <minimumf>, %223, %cst_88 [1] : vector<32x32xf32> to vector<32xf32>
    %233 = vector.shape_cast %232 : vector<32xf32> to vector<32x1xf32>
    %234 = vector.broadcast %233 : vector<32x1xf32> to vector<32x32xf32>
    %235 = arith.cmpf ole, %223, %234 : vector<32x32xf32>
    %c32_i32_89 = arith.constant 32 : i32
    %236 = vector.broadcast %c32_i32_89 : i32 to vector<32x32xi32>
    %237 = arith.select %235, %230, %236 : vector<32x32xi1>, vector<32x32xi32>
    %cst_90 = arith.constant dense<2147483647> : vector<32xi32>
    %238 = vector.multi_reduction <minsi>, %237, %cst_90 [1] : vector<32x32xi32> to vector<32xi32>
    %239 = vector.shape_cast %238 : vector<32xi32> to vector<32x1xi32>
    %240 = vector.broadcast %239 : vector<32x1xi32> to vector<32x32xi32>
    %241 = arith.cmpi eq, %230, %240 : vector<32x32xi32>
    %242 = arith.extui %241 : vector<32x32xi1> to vector<32x32xi32>
    %243 = arith.sitofp %242 : vector<32x32xi32> to vector<32x32xf32>
    %cst_91 = arith.constant dense<0.000000e+00> : vector<32x64xf32>
    %244 = tpu.matmul %243, %229, %cst_91 {dimension_numbers = #tpu.dot_dimension_numbers<[1], [0], [0], [1], [0, 0, 1, 1], [], []>} : vector<32x32xf32>, vector<32x64xf32>, vector<32x64xf32> -> vector<32x64xf32>
    %245 = arith.addf %228, %244 : vector<32x64xf32>
    %cst_92 = arith.constant 0.000000e+00 : f32
    %246 = vector.broadcast %cst_92 : f32 to vector<32x64xf32>
    %247 = arith.maximumf %245, %246 : vector<32x64xf32>
    %248 = arith.truncf %247 : vector<32x64xf32> to vector<32x64xbf16>
    %cst_93 = arith.constant dense<0.000000e+00> : vector<32x64xf32>
    %249 = tpu.matmul %248, %208, %cst_93 {dimension_numbers = #tpu.dot_dimension_numbers<[1], [0], [0], [1], [0, 0, 1, 1], [], []>} : vector<32x64xbf16>, vector<64x64xbf16>, vector<32x64xf32> -> vector<32x64xf32>
    %250 = arith.maximumf %231, %249 : vector<32x64xf32>
    %cst_94 = arith.constant 1.000000e+30 : f32
    %251 = vector.broadcast %cst_94 : f32 to vector<32x32xf32>
    %252 = arith.select %241, %251, %223 : vector<32x32xi1>, vector<32x32xf32>
    %c1_i32_95 = arith.constant 1 : i32
    %cst_96 = arith.constant dense<0x7F800000> : vector<32xf32>
    %253 = vector.multi_reduction <minimumf>, %252, %cst_96 [1] : vector<32x32xf32> to vector<32xf32>
    %254 = vector.shape_cast %253 : vector<32xf32> to vector<32x1xf32>
    %255 = vector.broadcast %254 : vector<32x1xf32> to vector<32x32xf32>
    %256 = arith.cmpf ole, %252, %255 : vector<32x32xf32>
    %c32_i32_97 = arith.constant 32 : i32
    %257 = vector.broadcast %c32_i32_97 : i32 to vector<32x32xi32>
    %258 = arith.select %256, %230, %257 : vector<32x32xi1>, vector<32x32xi32>
    %cst_98 = arith.constant dense<2147483647> : vector<32xi32>
    %259 = vector.multi_reduction <minsi>, %258, %cst_98 [1] : vector<32x32xi32> to vector<32xi32>
    %260 = vector.shape_cast %259 : vector<32xi32> to vector<32x1xi32>
    %261 = vector.broadcast %260 : vector<32x1xi32> to vector<32x32xi32>
    %262 = arith.cmpi eq, %230, %261 : vector<32x32xi32>
    %263 = arith.extui %262 : vector<32x32xi1> to vector<32x32xi32>
    %264 = arith.sitofp %263 : vector<32x32xi32> to vector<32x32xf32>
    %cst_99 = arith.constant dense<0.000000e+00> : vector<32x64xf32>
    %265 = tpu.matmul %264, %229, %cst_99 {dimension_numbers = #tpu.dot_dimension_numbers<[1], [0], [0], [1], [0, 0, 1, 1], [], []>} : vector<32x32xf32>, vector<32x64xf32>, vector<32x64xf32> -> vector<32x64xf32>
    %266 = arith.addf %228, %265 : vector<32x64xf32>
    %cst_100 = arith.constant 0.000000e+00 : f32
    %267 = vector.broadcast %cst_100 : f32 to vector<32x64xf32>
    %268 = arith.maximumf %266, %267 : vector<32x64xf32>
    %269 = arith.truncf %268 : vector<32x64xf32> to vector<32x64xbf16>
    %cst_101 = arith.constant dense<0.000000e+00> : vector<32x64xf32>
    %270 = tpu.matmul %269, %208, %cst_101 {dimension_numbers = #tpu.dot_dimension_numbers<[1], [0], [0], [1], [0, 0, 1, 1], [], []>} : vector<32x64xbf16>, vector<64x64xbf16>, vector<32x64xf32> -> vector<32x64xf32>
    %271 = arith.maximumf %250, %270 : vector<32x64xf32>
    %cst_102 = arith.constant 1.000000e+30 : f32
    %272 = vector.broadcast %cst_102 : f32 to vector<32x32xf32>
    %273 = arith.select %262, %272, %252 : vector<32x32xi1>, vector<32x32xf32>
    %c2_i32_103 = arith.constant 2 : i32
    %cst_104 = arith.constant dense<0x7F800000> : vector<32xf32>
    %274 = vector.multi_reduction <minimumf>, %273, %cst_104 [1] : vector<32x32xf32> to vector<32xf32>
    %275 = vector.shape_cast %274 : vector<32xf32> to vector<32x1xf32>
    %276 = vector.broadcast %275 : vector<32x1xf32> to vector<32x32xf32>
    %277 = arith.cmpf ole, %273, %276 : vector<32x32xf32>
    %c32_i32_105 = arith.constant 32 : i32
    %278 = vector.broadcast %c32_i32_105 : i32 to vector<32x32xi32>
    %279 = arith.select %277, %230, %278 : vector<32x32xi1>, vector<32x32xi32>
    %cst_106 = arith.constant dense<2147483647> : vector<32xi32>
    %280 = vector.multi_reduction <minsi>, %279, %cst_106 [1] : vector<32x32xi32> to vector<32xi32>
    %281 = vector.shape_cast %280 : vector<32xi32> to vector<32x1xi32>
    %282 = vector.broadcast %281 : vector<32x1xi32> to vector<32x32xi32>
    %283 = arith.cmpi eq, %230, %282 : vector<32x32xi32>
    %284 = arith.extui %283 : vector<32x32xi1> to vector<32x32xi32>
    %285 = arith.sitofp %284 : vector<32x32xi32> to vector<32x32xf32>
    %cst_107 = arith.constant dense<0.000000e+00> : vector<32x64xf32>
    %286 = tpu.matmul %285, %229, %cst_107 {dimension_numbers = #tpu.dot_dimension_numbers<[1], [0], [0], [1], [0, 0, 1, 1], [], []>} : vector<32x32xf32>, vector<32x64xf32>, vector<32x64xf32> -> vector<32x64xf32>
    %287 = arith.addf %228, %286 : vector<32x64xf32>
    %cst_108 = arith.constant 0.000000e+00 : f32
    %288 = vector.broadcast %cst_108 : f32 to vector<32x64xf32>
    %289 = arith.maximumf %287, %288 : vector<32x64xf32>
    %290 = arith.truncf %289 : vector<32x64xf32> to vector<32x64xbf16>
    %cst_109 = arith.constant dense<0.000000e+00> : vector<32x64xf32>
    %291 = tpu.matmul %290, %208, %cst_109 {dimension_numbers = #tpu.dot_dimension_numbers<[1], [0], [0], [1], [0, 0, 1, 1], [], []>} : vector<32x64xbf16>, vector<64x64xbf16>, vector<32x64xf32> -> vector<32x64xf32>
    %292 = arith.maximumf %271, %291 : vector<32x64xf32>
    %cst_110 = arith.constant 1.000000e+30 : f32
    %293 = vector.broadcast %cst_110 : f32 to vector<32x32xf32>
    %294 = arith.select %283, %293, %273 : vector<32x32xi1>, vector<32x32xf32>
    %c3_i32_111 = arith.constant 3 : i32
    %cst_112 = arith.constant dense<0x7F800000> : vector<32xf32>
    %295 = vector.multi_reduction <minimumf>, %294, %cst_112 [1] : vector<32x32xf32> to vector<32xf32>
    %296 = vector.shape_cast %295 : vector<32xf32> to vector<32x1xf32>
    %297 = vector.broadcast %296 : vector<32x1xf32> to vector<32x32xf32>
    %298 = arith.cmpf ole, %294, %297 : vector<32x32xf32>
    %c32_i32_113 = arith.constant 32 : i32
    %299 = vector.broadcast %c32_i32_113 : i32 to vector<32x32xi32>
    %300 = arith.select %298, %230, %299 : vector<32x32xi1>, vector<32x32xi32>
    %cst_114 = arith.constant dense<2147483647> : vector<32xi32>
    %301 = vector.multi_reduction <minsi>, %300, %cst_114 [1] : vector<32x32xi32> to vector<32xi32>
    %302 = vector.shape_cast %301 : vector<32xi32> to vector<32x1xi32>
    %303 = vector.broadcast %302 : vector<32x1xi32> to vector<32x32xi32>
    %304 = arith.cmpi eq, %230, %303 : vector<32x32xi32>
    %305 = arith.extui %304 : vector<32x32xi1> to vector<32x32xi32>
    %306 = arith.sitofp %305 : vector<32x32xi32> to vector<32x32xf32>
    %cst_115 = arith.constant dense<0.000000e+00> : vector<32x64xf32>
    %307 = tpu.matmul %306, %229, %cst_115 {dimension_numbers = #tpu.dot_dimension_numbers<[1], [0], [0], [1], [0, 0, 1, 1], [], []>} : vector<32x32xf32>, vector<32x64xf32>, vector<32x64xf32> -> vector<32x64xf32>
    %308 = arith.addf %228, %307 : vector<32x64xf32>
    %cst_116 = arith.constant 0.000000e+00 : f32
    %309 = vector.broadcast %cst_116 : f32 to vector<32x64xf32>
    %310 = arith.maximumf %308, %309 : vector<32x64xf32>
    %311 = arith.truncf %310 : vector<32x64xf32> to vector<32x64xbf16>
    %cst_117 = arith.constant dense<0.000000e+00> : vector<32x64xf32>
    %312 = tpu.matmul %311, %208, %cst_117 {dimension_numbers = #tpu.dot_dimension_numbers<[1], [0], [0], [1], [0, 0, 1, 1], [], []>} : vector<32x64xbf16>, vector<64x64xbf16>, vector<32x64xf32> -> vector<32x64xf32>
    %313 = arith.maximumf %292, %312 : vector<32x64xf32>
    %cst_118 = arith.constant 1.000000e+30 : f32
    %314 = vector.broadcast %cst_118 : f32 to vector<32x32xf32>
    %315 = arith.select %304, %314, %294 : vector<32x32xi1>, vector<32x32xf32>
    %c4_i32_119 = arith.constant 4 : i32
    %cst_120 = arith.constant dense<0x7F800000> : vector<32xf32>
    %316 = vector.multi_reduction <minimumf>, %315, %cst_120 [1] : vector<32x32xf32> to vector<32xf32>
    %317 = vector.shape_cast %316 : vector<32xf32> to vector<32x1xf32>
    %318 = vector.broadcast %317 : vector<32x1xf32> to vector<32x32xf32>
    %319 = arith.cmpf ole, %315, %318 : vector<32x32xf32>
    %c32_i32_121 = arith.constant 32 : i32
    %320 = vector.broadcast %c32_i32_121 : i32 to vector<32x32xi32>
    %321 = arith.select %319, %230, %320 : vector<32x32xi1>, vector<32x32xi32>
    %cst_122 = arith.constant dense<2147483647> : vector<32xi32>
    %322 = vector.multi_reduction <minsi>, %321, %cst_122 [1] : vector<32x32xi32> to vector<32xi32>
    %323 = vector.shape_cast %322 : vector<32xi32> to vector<32x1xi32>
    %324 = vector.broadcast %323 : vector<32x1xi32> to vector<32x32xi32>
    %325 = arith.cmpi eq, %230, %324 : vector<32x32xi32>
    %326 = arith.extui %325 : vector<32x32xi1> to vector<32x32xi32>
    %327 = arith.sitofp %326 : vector<32x32xi32> to vector<32x32xf32>
    %cst_123 = arith.constant dense<0.000000e+00> : vector<32x64xf32>
    %328 = tpu.matmul %327, %229, %cst_123 {dimension_numbers = #tpu.dot_dimension_numbers<[1], [0], [0], [1], [0, 0, 1, 1], [], []>} : vector<32x32xf32>, vector<32x64xf32>, vector<32x64xf32> -> vector<32x64xf32>
    %329 = arith.addf %228, %328 : vector<32x64xf32>
    %cst_124 = arith.constant 0.000000e+00 : f32
    %330 = vector.broadcast %cst_124 : f32 to vector<32x64xf32>
    %331 = arith.maximumf %329, %330 : vector<32x64xf32>
    %332 = arith.truncf %331 : vector<32x64xf32> to vector<32x64xbf16>
    %cst_125 = arith.constant dense<0.000000e+00> : vector<32x64xf32>
    %333 = tpu.matmul %332, %208, %cst_125 {dimension_numbers = #tpu.dot_dimension_numbers<[1], [0], [0], [1], [0, 0, 1, 1], [], []>} : vector<32x64xbf16>, vector<64x64xbf16>, vector<32x64xf32> -> vector<32x64xf32>
    %334 = arith.maximumf %313, %333 : vector<32x64xf32>
    %cst_126 = arith.constant 1.000000e+30 : f32
    %335 = vector.broadcast %cst_126 : f32 to vector<32x32xf32>
    %336 = arith.select %325, %335, %315 : vector<32x32xi1>, vector<32x32xf32>
    %c5_i32_127 = arith.constant 5 : i32
    %cst_128 = arith.constant dense<0x7F800000> : vector<32xf32>
    %337 = vector.multi_reduction <minimumf>, %336, %cst_128 [1] : vector<32x32xf32> to vector<32xf32>
    %338 = vector.shape_cast %337 : vector<32xf32> to vector<32x1xf32>
    %339 = vector.broadcast %338 : vector<32x1xf32> to vector<32x32xf32>
    %340 = arith.cmpf ole, %336, %339 : vector<32x32xf32>
    %c32_i32_129 = arith.constant 32 : i32
    %341 = vector.broadcast %c32_i32_129 : i32 to vector<32x32xi32>
    %342 = arith.select %340, %230, %341 : vector<32x32xi1>, vector<32x32xi32>
    %cst_130 = arith.constant dense<2147483647> : vector<32xi32>
    %343 = vector.multi_reduction <minsi>, %342, %cst_130 [1] : vector<32x32xi32> to vector<32xi32>
    %344 = vector.shape_cast %343 : vector<32xi32> to vector<32x1xi32>
    %345 = vector.broadcast %344 : vector<32x1xi32> to vector<32x32xi32>
    %346 = arith.cmpi eq, %230, %345 : vector<32x32xi32>
    %347 = arith.extui %346 : vector<32x32xi1> to vector<32x32xi32>
    %348 = arith.sitofp %347 : vector<32x32xi32> to vector<32x32xf32>
    %cst_131 = arith.constant dense<0.000000e+00> : vector<32x64xf32>
    %349 = tpu.matmul %348, %229, %cst_131 {dimension_numbers = #tpu.dot_dimension_numbers<[1], [0], [0], [1], [0, 0, 1, 1], [], []>} : vector<32x32xf32>, vector<32x64xf32>, vector<32x64xf32> -> vector<32x64xf32>
    %350 = arith.addf %228, %349 : vector<32x64xf32>
    %cst_132 = arith.constant 0.000000e+00 : f32
    %351 = vector.broadcast %cst_132 : f32 to vector<32x64xf32>
    %352 = arith.maximumf %350, %351 : vector<32x64xf32>
    %353 = arith.truncf %352 : vector<32x64xf32> to vector<32x64xbf16>
    %cst_133 = arith.constant dense<0.000000e+00> : vector<32x64xf32>
    %354 = tpu.matmul %353, %208, %cst_133 {dimension_numbers = #tpu.dot_dimension_numbers<[1], [0], [0], [1], [0, 0, 1, 1], [], []>} : vector<32x64xbf16>, vector<64x64xbf16>, vector<32x64xf32> -> vector<32x64xf32>
    %355 = arith.maximumf %334, %354 : vector<32x64xf32>
    %cst_134 = arith.constant 1.000000e+30 : f32
    %356 = vector.broadcast %cst_134 : f32 to vector<32x32xf32>
    %357 = arith.select %346, %356, %336 : vector<32x32xi1>, vector<32x32xf32>
    %c6_i32_135 = arith.constant 6 : i32
    %cst_136 = arith.constant dense<0x7F800000> : vector<32xf32>
    %358 = vector.multi_reduction <minimumf>, %357, %cst_136 [1] : vector<32x32xf32> to vector<32xf32>
    %359 = vector.shape_cast %358 : vector<32xf32> to vector<32x1xf32>
    %360 = vector.broadcast %359 : vector<32x1xf32> to vector<32x32xf32>
    %361 = arith.cmpf ole, %357, %360 : vector<32x32xf32>
    %c32_i32_137 = arith.constant 32 : i32
    %362 = vector.broadcast %c32_i32_137 : i32 to vector<32x32xi32>
    %363 = arith.select %361, %230, %362 : vector<32x32xi1>, vector<32x32xi32>
    %cst_138 = arith.constant dense<2147483647> : vector<32xi32>
    %364 = vector.multi_reduction <minsi>, %363, %cst_138 [1] : vector<32x32xi32> to vector<32xi32>
    %365 = vector.shape_cast %364 : vector<32xi32> to vector<32x1xi32>
    %366 = vector.broadcast %365 : vector<32x1xi32> to vector<32x32xi32>
    %367 = arith.cmpi eq, %230, %366 : vector<32x32xi32>
    %368 = arith.extui %367 : vector<32x32xi1> to vector<32x32xi32>
    %369 = arith.sitofp %368 : vector<32x32xi32> to vector<32x32xf32>
    %cst_139 = arith.constant dense<0.000000e+00> : vector<32x64xf32>
    %370 = tpu.matmul %369, %229, %cst_139 {dimension_numbers = #tpu.dot_dimension_numbers<[1], [0], [0], [1], [0, 0, 1, 1], [], []>} : vector<32x32xf32>, vector<32x64xf32>, vector<32x64xf32> -> vector<32x64xf32>
    %371 = arith.addf %228, %370 : vector<32x64xf32>
    %cst_140 = arith.constant 0.000000e+00 : f32
    %372 = vector.broadcast %cst_140 : f32 to vector<32x64xf32>
    %373 = arith.maximumf %371, %372 : vector<32x64xf32>
    %374 = arith.truncf %373 : vector<32x64xf32> to vector<32x64xbf16>
    %cst_141 = arith.constant dense<0.000000e+00> : vector<32x64xf32>
    %375 = tpu.matmul %374, %208, %cst_141 {dimension_numbers = #tpu.dot_dimension_numbers<[1], [0], [0], [1], [0, 0, 1, 1], [], []>} : vector<32x64xbf16>, vector<64x64xbf16>, vector<32x64xf32> -> vector<32x64xf32>
    %376 = arith.maximumf %355, %375 : vector<32x64xf32>
    %cst_142 = arith.constant 1.000000e+30 : f32
    %377 = vector.broadcast %cst_142 : f32 to vector<32x32xf32>
    %378 = arith.select %367, %377, %357 : vector<32x32xi1>, vector<32x32xf32>
    %c7_i32_143 = arith.constant 7 : i32
    %cst_144 = arith.constant dense<0x7F800000> : vector<32xf32>
    %379 = vector.multi_reduction <minimumf>, %378, %cst_144 [1] : vector<32x32xf32> to vector<32xf32>
    %380 = vector.shape_cast %379 : vector<32xf32> to vector<32x1xf32>
    %381 = vector.broadcast %380 : vector<32x1xf32> to vector<32x32xf32>
    %382 = arith.cmpf ole, %378, %381 : vector<32x32xf32>
    %c32_i32_145 = arith.constant 32 : i32
    %383 = vector.broadcast %c32_i32_145 : i32 to vector<32x32xi32>
    %384 = arith.select %382, %230, %383 : vector<32x32xi1>, vector<32x32xi32>
    %cst_146 = arith.constant dense<2147483647> : vector<32xi32>
    %385 = vector.multi_reduction <minsi>, %384, %cst_146 [1] : vector<32x32xi32> to vector<32xi32>
    %386 = vector.shape_cast %385 : vector<32xi32> to vector<32x1xi32>
    %387 = vector.broadcast %386 : vector<32x1xi32> to vector<32x32xi32>
    %388 = arith.cmpi eq, %230, %387 : vector<32x32xi32>
    %389 = arith.extui %388 : vector<32x32xi1> to vector<32x32xi32>
    %390 = arith.sitofp %389 : vector<32x32xi32> to vector<32x32xf32>
    %cst_147 = arith.constant dense<0.000000e+00> : vector<32x64xf32>
    %391 = tpu.matmul %390, %229, %cst_147 {dimension_numbers = #tpu.dot_dimension_numbers<[1], [0], [0], [1], [0, 0, 1, 1], [], []>} : vector<32x32xf32>, vector<32x64xf32>, vector<32x64xf32> -> vector<32x64xf32>
    %392 = arith.addf %228, %391 : vector<32x64xf32>
    %cst_148 = arith.constant 0.000000e+00 : f32
    %393 = vector.broadcast %cst_148 : f32 to vector<32x64xf32>
    %394 = arith.maximumf %392, %393 : vector<32x64xf32>
    %395 = arith.truncf %394 : vector<32x64xf32> to vector<32x64xbf16>
    %cst_149 = arith.constant dense<0.000000e+00> : vector<32x64xf32>
    %396 = tpu.matmul %395, %208, %cst_149 {dimension_numbers = #tpu.dot_dimension_numbers<[1], [0], [0], [1], [0, 0, 1, 1], [], []>} : vector<32x64xbf16>, vector<64x64xbf16>, vector<32x64xf32> -> vector<32x64xf32>
    %397 = arith.maximumf %376, %396 : vector<32x64xf32>
    %cst_150 = arith.constant 1.000000e+30 : f32
    %398 = vector.broadcast %cst_150 : f32 to vector<32x32xf32>
    %399 = arith.select %388, %398, %378 : vector<32x32xi1>, vector<32x32xf32>
    %400 = vector.shape_cast %210 : vector<64xf32> to vector<1x64xf32>
    %401 = vector.broadcast %400 : vector<1x64xf32> to vector<32x64xf32>
    %402 = arith.addf %397, %401 : vector<32x64xf32>
    %cst_151 = arith.constant 0.000000e+00 : f32
    %403 = vector.broadcast %cst_151 : f32 to vector<32x64xf32>
    %404 = arith.maximumf %402, %403 : vector<32x64xf32>
    %405 = vector.shape_cast %212 : vector<64xf32> to vector<1x64xf32>
    %406 = vector.broadcast %405 : vector<1x64xf32> to vector<32x64xf32>
    %407 = arith.addf %404, %406 : vector<32x64xf32>
    %c0_152 = arith.constant 0 : index
    %c0_153 = arith.constant 0 : index
    %408 = vector.load %arg12[%c0_152, %c0_153] : memref<64x128xf32, #tpu.memory_space<vmem>>, vector<64x128xf32>
    %c0_154 = arith.constant 0 : index
    %c0_155 = arith.constant 0 : index
    %409 = vector.load %arg13[%c0_154, %c0_155] : memref<1x64xf32, #tpu.memory_space<vmem>>, vector<1x64xf32>
    %410 = vector.shape_cast %409 : vector<1x64xf32> to vector<64xf32>
    %c0_156 = arith.constant 0 : index
    %c0_157 = arith.constant 0 : index
    %411 = vector.load %arg14[%c0_156, %c0_157] : memref<64x64xbf16, #tpu.memory_space<vmem>>, vector<64x64xbf16>
    %c0_158 = arith.constant 0 : index
    %c0_159 = arith.constant 0 : index
    %412 = vector.load %arg15[%c0_158, %c0_159] : memref<1x64xf32, #tpu.memory_space<vmem>>, vector<1x64xf32>
    %413 = vector.shape_cast %412 : vector<1x64xf32> to vector<64xf32>
    %c0_160 = arith.constant 0 : index
    %c0_161 = arith.constant 0 : index
    %414 = vector.load %arg16[%c0_160, %c0_161] : memref<1x64xf32, #tpu.memory_space<vmem>>, vector<1x64xf32>
    %415 = vector.shape_cast %414 : vector<1x64xf32> to vector<64xf32>
    %416 = arith.mulf %407, %407 : vector<32x64xf32>
    %cst_162 = arith.constant dense<0.000000e+00> : vector<32xf32>
    %417 = vector.multi_reduction <add>, %416, %cst_162 [1] : vector<32x64xf32> to vector<32xf32>
    %418 = vector.shape_cast %417 : vector<32xf32> to vector<32x1xf32>
    %cst_163 = arith.constant dense<0.000000e+00> : vector<32x32xf32>
    %419 = tpu.matmul %407, %407, %cst_163 {dimension_numbers = #tpu.dot_dimension_numbers<[1], [1], [0], [0], [0, 0, 1, 0], [], []>} : vector<32x64xf32>, vector<32x64xf32>, vector<32x32xf32> -> vector<32x32xf32>
    %420 = tpu.transpose %418, [1, 0] : vector<32x1xf32> -> vector<1x32xf32>
    %421 = vector.broadcast %418 : vector<32x1xf32> to vector<32x32xf32>
    %422 = vector.broadcast %420 : vector<1x32xf32> to vector<32x32xf32>
    %423 = arith.addf %421, %422 : vector<32x32xf32>
    %cst_164 = arith.constant 2.000000e+00 : f32
    %424 = vector.broadcast %cst_164 : f32 to vector<32x32xf32>
    %425 = arith.mulf %424, %419 : vector<32x32xf32>
    %426 = arith.subf %423, %425 : vector<32x32xf32>
    %cst_165 = arith.constant dense<0.000000e+00> : vector<32x128xf32>
    %427 = tpu.matmul %407, %408, %cst_165 {dimension_numbers = #tpu.dot_dimension_numbers<[1], [0], [0], [1], [0, 0, 1, 1], [], []>} : vector<32x64xf32>, vector<64x128xf32>, vector<32x128xf32> -> vector<32x128xf32>
    %428 = vector.extract_strided_slice %427 {offsets = [0, 0], sizes = [32, 64], strides = [1, 1]} : vector<32x128xf32> to vector<32x64xf32>
    %429 = vector.shape_cast %410 : vector<64xf32> to vector<1x64xf32>
    %430 = vector.broadcast %429 : vector<1x64xf32> to vector<32x64xf32>
    %431 = arith.addf %428, %430 : vector<32x64xf32>
    %432 = vector.extract_strided_slice %427 {offsets = [0, 64], sizes = [32, 64], strides = [1, 1]} : vector<32x128xf32> to vector<32x64xf32>
    %433 = tpu.iota {dimensions = array<i32: 1>} : vector<32x32xi32>
    %cst_166 = arith.constant -1.000000e+30 : f32
    %434 = vector.broadcast %cst_166 : f32 to vector<32x64xf32>
    %c0_i32_167 = arith.constant 0 : i32
    %cst_168 = arith.constant dense<0x7F800000> : vector<32xf32>
    %435 = vector.multi_reduction <minimumf>, %426, %cst_168 [1] : vector<32x32xf32> to vector<32xf32>
    %436 = vector.shape_cast %435 : vector<32xf32> to vector<32x1xf32>
    %437 = vector.broadcast %436 : vector<32x1xf32> to vector<32x32xf32>
    %438 = arith.cmpf ole, %426, %437 : vector<32x32xf32>
    %c32_i32_169 = arith.constant 32 : i32
    %439 = vector.broadcast %c32_i32_169 : i32 to vector<32x32xi32>
    %440 = arith.select %438, %433, %439 : vector<32x32xi1>, vector<32x32xi32>
    %cst_170 = arith.constant dense<2147483647> : vector<32xi32>
    %441 = vector.multi_reduction <minsi>, %440, %cst_170 [1] : vector<32x32xi32> to vector<32xi32>
    %442 = vector.shape_cast %441 : vector<32xi32> to vector<32x1xi32>
    %443 = vector.broadcast %442 : vector<32x1xi32> to vector<32x32xi32>
    %444 = arith.cmpi eq, %433, %443 : vector<32x32xi32>
    %445 = arith.extui %444 : vector<32x32xi1> to vector<32x32xi32>
    %446 = arith.sitofp %445 : vector<32x32xi32> to vector<32x32xf32>
    %cst_171 = arith.constant dense<0.000000e+00> : vector<32x64xf32>
    %447 = tpu.matmul %446, %432, %cst_171 {dimension_numbers = #tpu.dot_dimension_numbers<[1], [0], [0], [1], [0, 0, 1, 1], [], []>} : vector<32x32xf32>, vector<32x64xf32>, vector<32x64xf32> -> vector<32x64xf32>
    %448 = arith.addf %431, %447 : vector<32x64xf32>
    %cst_172 = arith.constant 0.000000e+00 : f32
    %449 = vector.broadcast %cst_172 : f32 to vector<32x64xf32>
    %450 = arith.maximumf %448, %449 : vector<32x64xf32>
    %451 = arith.truncf %450 : vector<32x64xf32> to vector<32x64xbf16>
    %cst_173 = arith.constant dense<0.000000e+00> : vector<32x64xf32>
    %452 = tpu.matmul %451, %411, %cst_173 {dimension_numbers = #tpu.dot_dimension_numbers<[1], [0], [0], [1], [0, 0, 1, 1], [], []>} : vector<32x64xbf16>, vector<64x64xbf16>, vector<32x64xf32> -> vector<32x64xf32>
    %453 = arith.maximumf %434, %452 : vector<32x64xf32>
    %cst_174 = arith.constant 1.000000e+30 : f32
    %454 = vector.broadcast %cst_174 : f32 to vector<32x32xf32>
    %455 = arith.select %444, %454, %426 : vector<32x32xi1>, vector<32x32xf32>
    %c1_i32_175 = arith.constant 1 : i32
    %cst_176 = arith.constant dense<0x7F800000> : vector<32xf32>
    %456 = vector.multi_reduction <minimumf>, %455, %cst_176 [1] : vector<32x32xf32> to vector<32xf32>
    %457 = vector.shape_cast %456 : vector<32xf32> to vector<32x1xf32>
    %458 = vector.broadcast %457 : vector<32x1xf32> to vector<32x32xf32>
    %459 = arith.cmpf ole, %455, %458 : vector<32x32xf32>
    %c32_i32_177 = arith.constant 32 : i32
    %460 = vector.broadcast %c32_i32_177 : i32 to vector<32x32xi32>
    %461 = arith.select %459, %433, %460 : vector<32x32xi1>, vector<32x32xi32>
    %cst_178 = arith.constant dense<2147483647> : vector<32xi32>
    %462 = vector.multi_reduction <minsi>, %461, %cst_178 [1] : vector<32x32xi32> to vector<32xi32>
    %463 = vector.shape_cast %462 : vector<32xi32> to vector<32x1xi32>
    %464 = vector.broadcast %463 : vector<32x1xi32> to vector<32x32xi32>
    %465 = arith.cmpi eq, %433, %464 : vector<32x32xi32>
    %466 = arith.extui %465 : vector<32x32xi1> to vector<32x32xi32>
    %467 = arith.sitofp %466 : vector<32x32xi32> to vector<32x32xf32>
    %cst_179 = arith.constant dense<0.000000e+00> : vector<32x64xf32>
    %468 = tpu.matmul %467, %432, %cst_179 {dimension_numbers = #tpu.dot_dimension_numbers<[1], [0], [0], [1], [0, 0, 1, 1], [], []>} : vector<32x32xf32>, vector<32x64xf32>, vector<32x64xf32> -> vector<32x64xf32>
    %469 = arith.addf %431, %468 : vector<32x64xf32>
    %cst_180 = arith.constant 0.000000e+00 : f32
    %470 = vector.broadcast %cst_180 : f32 to vector<32x64xf32>
    %471 = arith.maximumf %469, %470 : vector<32x64xf32>
    %472 = arith.truncf %471 : vector<32x64xf32> to vector<32x64xbf16>
    %cst_181 = arith.constant dense<0.000000e+00> : vector<32x64xf32>
    %473 = tpu.matmul %472, %411, %cst_181 {dimension_numbers = #tpu.dot_dimension_numbers<[1], [0], [0], [1], [0, 0, 1, 1], [], []>} : vector<32x64xbf16>, vector<64x64xbf16>, vector<32x64xf32> -> vector<32x64xf32>
    %474 = arith.maximumf %453, %473 : vector<32x64xf32>
    %cst_182 = arith.constant 1.000000e+30 : f32
    %475 = vector.broadcast %cst_182 : f32 to vector<32x32xf32>
    %476 = arith.select %465, %475, %455 : vector<32x32xi1>, vector<32x32xf32>
    %c2_i32_183 = arith.constant 2 : i32
    %cst_184 = arith.constant dense<0x7F800000> : vector<32xf32>
    %477 = vector.multi_reduction <minimumf>, %476, %cst_184 [1] : vector<32x32xf32> to vector<32xf32>
    %478 = vector.shape_cast %477 : vector<32xf32> to vector<32x1xf32>
    %479 = vector.broadcast %478 : vector<32x1xf32> to vector<32x32xf32>
    %480 = arith.cmpf ole, %476, %479 : vector<32x32xf32>
    %c32_i32_185 = arith.constant 32 : i32
    %481 = vector.broadcast %c32_i32_185 : i32 to vector<32x32xi32>
    %482 = arith.select %480, %433, %481 : vector<32x32xi1>, vector<32x32xi32>
    %cst_186 = arith.constant dense<2147483647> : vector<32xi32>
    %483 = vector.multi_reduction <minsi>, %482, %cst_186 [1] : vector<32x32xi32> to vector<32xi32>
    %484 = vector.shape_cast %483 : vector<32xi32> to vector<32x1xi32>
    %485 = vector.broadcast %484 : vector<32x1xi32> to vector<32x32xi32>
    %486 = arith.cmpi eq, %433, %485 : vector<32x32xi32>
    %487 = arith.extui %486 : vector<32x32xi1> to vector<32x32xi32>
    %488 = arith.sitofp %487 : vector<32x32xi32> to vector<32x32xf32>
    %cst_187 = arith.constant dense<0.000000e+00> : vector<32x64xf32>
    %489 = tpu.matmul %488, %432, %cst_187 {dimension_numbers = #tpu.dot_dimension_numbers<[1], [0], [0], [1], [0, 0, 1, 1], [], []>} : vector<32x32xf32>, vector<32x64xf32>, vector<32x64xf32> -> vector<32x64xf32>
    %490 = arith.addf %431, %489 : vector<32x64xf32>
    %cst_188 = arith.constant 0.000000e+00 : f32
    %491 = vector.broadcast %cst_188 : f32 to vector<32x64xf32>
    %492 = arith.maximumf %490, %491 : vector<32x64xf32>
    %493 = arith.truncf %492 : vector<32x64xf32> to vector<32x64xbf16>
    %cst_189 = arith.constant dense<0.000000e+00> : vector<32x64xf32>
    %494 = tpu.matmul %493, %411, %cst_189 {dimension_numbers = #tpu.dot_dimension_numbers<[1], [0], [0], [1], [0, 0, 1, 1], [], []>} : vector<32x64xbf16>, vector<64x64xbf16>, vector<32x64xf32> -> vector<32x64xf32>
    %495 = arith.maximumf %474, %494 : vector<32x64xf32>
    %cst_190 = arith.constant 1.000000e+30 : f32
    %496 = vector.broadcast %cst_190 : f32 to vector<32x32xf32>
    %497 = arith.select %486, %496, %476 : vector<32x32xi1>, vector<32x32xf32>
    %c3_i32_191 = arith.constant 3 : i32
    %cst_192 = arith.constant dense<0x7F800000> : vector<32xf32>
    %498 = vector.multi_reduction <minimumf>, %497, %cst_192 [1] : vector<32x32xf32> to vector<32xf32>
    %499 = vector.shape_cast %498 : vector<32xf32> to vector<32x1xf32>
    %500 = vector.broadcast %499 : vector<32x1xf32> to vector<32x32xf32>
    %501 = arith.cmpf ole, %497, %500 : vector<32x32xf32>
    %c32_i32_193 = arith.constant 32 : i32
    %502 = vector.broadcast %c32_i32_193 : i32 to vector<32x32xi32>
    %503 = arith.select %501, %433, %502 : vector<32x32xi1>, vector<32x32xi32>
    %cst_194 = arith.constant dense<2147483647> : vector<32xi32>
    %504 = vector.multi_reduction <minsi>, %503, %cst_194 [1] : vector<32x32xi32> to vector<32xi32>
    %505 = vector.shape_cast %504 : vector<32xi32> to vector<32x1xi32>
    %506 = vector.broadcast %505 : vector<32x1xi32> to vector<32x32xi32>
    %507 = arith.cmpi eq, %433, %506 : vector<32x32xi32>
    %508 = arith.extui %507 : vector<32x32xi1> to vector<32x32xi32>
    %509 = arith.sitofp %508 : vector<32x32xi32> to vector<32x32xf32>
    %cst_195 = arith.constant dense<0.000000e+00> : vector<32x64xf32>
    %510 = tpu.matmul %509, %432, %cst_195 {dimension_numbers = #tpu.dot_dimension_numbers<[1], [0], [0], [1], [0, 0, 1, 1], [], []>} : vector<32x32xf32>, vector<32x64xf32>, vector<32x64xf32> -> vector<32x64xf32>
    %511 = arith.addf %431, %510 : vector<32x64xf32>
    %cst_196 = arith.constant 0.000000e+00 : f32
    %512 = vector.broadcast %cst_196 : f32 to vector<32x64xf32>
    %513 = arith.maximumf %511, %512 : vector<32x64xf32>
    %514 = arith.truncf %513 : vector<32x64xf32> to vector<32x64xbf16>
    %cst_197 = arith.constant dense<0.000000e+00> : vector<32x64xf32>
    %515 = tpu.matmul %514, %411, %cst_197 {dimension_numbers = #tpu.dot_dimension_numbers<[1], [0], [0], [1], [0, 0, 1, 1], [], []>} : vector<32x64xbf16>, vector<64x64xbf16>, vector<32x64xf32> -> vector<32x64xf32>
    %516 = arith.maximumf %495, %515 : vector<32x64xf32>
    %cst_198 = arith.constant 1.000000e+30 : f32
    %517 = vector.broadcast %cst_198 : f32 to vector<32x32xf32>
    %518 = arith.select %507, %517, %497 : vector<32x32xi1>, vector<32x32xf32>
    %c4_i32_199 = arith.constant 4 : i32
    %cst_200 = arith.constant dense<0x7F800000> : vector<32xf32>
    %519 = vector.multi_reduction <minimumf>, %518, %cst_200 [1] : vector<32x32xf32> to vector<32xf32>
    %520 = vector.shape_cast %519 : vector<32xf32> to vector<32x1xf32>
    %521 = vector.broadcast %520 : vector<32x1xf32> to vector<32x32xf32>
    %522 = arith.cmpf ole, %518, %521 : vector<32x32xf32>
    %c32_i32_201 = arith.constant 32 : i32
    %523 = vector.broadcast %c32_i32_201 : i32 to vector<32x32xi32>
    %524 = arith.select %522, %433, %523 : vector<32x32xi1>, vector<32x32xi32>
    %cst_202 = arith.constant dense<2147483647> : vector<32xi32>
    %525 = vector.multi_reduction <minsi>, %524, %cst_202 [1] : vector<32x32xi32> to vector<32xi32>
    %526 = vector.shape_cast %525 : vector<32xi32> to vector<32x1xi32>
    %527 = vector.broadcast %526 : vector<32x1xi32> to vector<32x32xi32>
    %528 = arith.cmpi eq, %433, %527 : vector<32x32xi32>
    %529 = arith.extui %528 : vector<32x32xi1> to vector<32x32xi32>
    %530 = arith.sitofp %529 : vector<32x32xi32> to vector<32x32xf32>
    %cst_203 = arith.constant dense<0.000000e+00> : vector<32x64xf32>
    %531 = tpu.matmul %530, %432, %cst_203 {dimension_numbers = #tpu.dot_dimension_numbers<[1], [0], [0], [1], [0, 0, 1, 1], [], []>} : vector<32x32xf32>, vector<32x64xf32>, vector<32x64xf32> -> vector<32x64xf32>
    %532 = arith.addf %431, %531 : vector<32x64xf32>
    %cst_204 = arith.constant 0.000000e+00 : f32
    %533 = vector.broadcast %cst_204 : f32 to vector<32x64xf32>
    %534 = arith.maximumf %532, %533 : vector<32x64xf32>
    %535 = arith.truncf %534 : vector<32x64xf32> to vector<32x64xbf16>
    %cst_205 = arith.constant dense<0.000000e+00> : vector<32x64xf32>
    %536 = tpu.matmul %535, %411, %cst_205 {dimension_numbers = #tpu.dot_dimension_numbers<[1], [0], [0], [1], [0, 0, 1, 1], [], []>} : vector<32x64xbf16>, vector<64x64xbf16>, vector<32x64xf32> -> vector<32x64xf32>
    %537 = arith.maximumf %516, %536 : vector<32x64xf32>
    %cst_206 = arith.constant 1.000000e+30 : f32
    %538 = vector.broadcast %cst_206 : f32 to vector<32x32xf32>
    %539 = arith.select %528, %538, %518 : vector<32x32xi1>, vector<32x32xf32>
    %c5_i32_207 = arith.constant 5 : i32
    %cst_208 = arith.constant dense<0x7F800000> : vector<32xf32>
    %540 = vector.multi_reduction <minimumf>, %539, %cst_208 [1] : vector<32x32xf32> to vector<32xf32>
    %541 = vector.shape_cast %540 : vector<32xf32> to vector<32x1xf32>
    %542 = vector.broadcast %541 : vector<32x1xf32> to vector<32x32xf32>
    %543 = arith.cmpf ole, %539, %542 : vector<32x32xf32>
    %c32_i32_209 = arith.constant 32 : i32
    %544 = vector.broadcast %c32_i32_209 : i32 to vector<32x32xi32>
    %545 = arith.select %543, %433, %544 : vector<32x32xi1>, vector<32x32xi32>
    %cst_210 = arith.constant dense<2147483647> : vector<32xi32>
    %546 = vector.multi_reduction <minsi>, %545, %cst_210 [1] : vector<32x32xi32> to vector<32xi32>
    %547 = vector.shape_cast %546 : vector<32xi32> to vector<32x1xi32>
    %548 = vector.broadcast %547 : vector<32x1xi32> to vector<32x32xi32>
    %549 = arith.cmpi eq, %433, %548 : vector<32x32xi32>
    %550 = arith.extui %549 : vector<32x32xi1> to vector<32x32xi32>
    %551 = arith.sitofp %550 : vector<32x32xi32> to vector<32x32xf32>
    %cst_211 = arith.constant dense<0.000000e+00> : vector<32x64xf32>
    %552 = tpu.matmul %551, %432, %cst_211 {dimension_numbers = #tpu.dot_dimension_numbers<[1], [0], [0], [1], [0, 0, 1, 1], [], []>} : vector<32x32xf32>, vector<32x64xf32>, vector<32x64xf32> -> vector<32x64xf32>
    %553 = arith.addf %431, %552 : vector<32x64xf32>
    %cst_212 = arith.constant 0.000000e+00 : f32
    %554 = vector.broadcast %cst_212 : f32 to vector<32x64xf32>
    %555 = arith.maximumf %553, %554 : vector<32x64xf32>
    %556 = arith.truncf %555 : vector<32x64xf32> to vector<32x64xbf16>
    %cst_213 = arith.constant dense<0.000000e+00> : vector<32x64xf32>
    %557 = tpu.matmul %556, %411, %cst_213 {dimension_numbers = #tpu.dot_dimension_numbers<[1], [0], [0], [1], [0, 0, 1, 1], [], []>} : vector<32x64xbf16>, vector<64x64xbf16>, vector<32x64xf32> -> vector<32x64xf32>
    %558 = arith.maximumf %537, %557 : vector<32x64xf32>
    %cst_214 = arith.constant 1.000000e+30 : f32
    %559 = vector.broadcast %cst_214 : f32 to vector<32x32xf32>
    %560 = arith.select %549, %559, %539 : vector<32x32xi1>, vector<32x32xf32>
    %c6_i32_215 = arith.constant 6 : i32
    %cst_216 = arith.constant dense<0x7F800000> : vector<32xf32>
    %561 = vector.multi_reduction <minimumf>, %560, %cst_216 [1] : vector<32x32xf32> to vector<32xf32>
    %562 = vector.shape_cast %561 : vector<32xf32> to vector<32x1xf32>
    %563 = vector.broadcast %562 : vector<32x1xf32> to vector<32x32xf32>
    %564 = arith.cmpf ole, %560, %563 : vector<32x32xf32>
    %c32_i32_217 = arith.constant 32 : i32
    %565 = vector.broadcast %c32_i32_217 : i32 to vector<32x32xi32>
    %566 = arith.select %564, %433, %565 : vector<32x32xi1>, vector<32x32xi32>
    %cst_218 = arith.constant dense<2147483647> : vector<32xi32>
    %567 = vector.multi_reduction <minsi>, %566, %cst_218 [1] : vector<32x32xi32> to vector<32xi32>
    %568 = vector.shape_cast %567 : vector<32xi32> to vector<32x1xi32>
    %569 = vector.broadcast %568 : vector<32x1xi32> to vector<32x32xi32>
    %570 = arith.cmpi eq, %433, %569 : vector<32x32xi32>
    %571 = arith.extui %570 : vector<32x32xi1> to vector<32x32xi32>
    %572 = arith.sitofp %571 : vector<32x32xi32> to vector<32x32xf32>
    %cst_219 = arith.constant dense<0.000000e+00> : vector<32x64xf32>
    %573 = tpu.matmul %572, %432, %cst_219 {dimension_numbers = #tpu.dot_dimension_numbers<[1], [0], [0], [1], [0, 0, 1, 1], [], []>} : vector<32x32xf32>, vector<32x64xf32>, vector<32x64xf32> -> vector<32x64xf32>
    %574 = arith.addf %431, %573 : vector<32x64xf32>
    %cst_220 = arith.constant 0.000000e+00 : f32
    %575 = vector.broadcast %cst_220 : f32 to vector<32x64xf32>
    %576 = arith.maximumf %574, %575 : vector<32x64xf32>
    %577 = arith.truncf %576 : vector<32x64xf32> to vector<32x64xbf16>
    %cst_221 = arith.constant dense<0.000000e+00> : vector<32x64xf32>
    %578 = tpu.matmul %577, %411, %cst_221 {dimension_numbers = #tpu.dot_dimension_numbers<[1], [0], [0], [1], [0, 0, 1, 1], [], []>} : vector<32x64xbf16>, vector<64x64xbf16>, vector<32x64xf32> -> vector<32x64xf32>
    %579 = arith.maximumf %558, %578 : vector<32x64xf32>
    %cst_222 = arith.constant 1.000000e+30 : f32
    %580 = vector.broadcast %cst_222 : f32 to vector<32x32xf32>
    %581 = arith.select %570, %580, %560 : vector<32x32xi1>, vector<32x32xf32>
    %c7_i32_223 = arith.constant 7 : i32
    %cst_224 = arith.constant dense<0x7F800000> : vector<32xf32>
    %582 = vector.multi_reduction <minimumf>, %581, %cst_224 [1] : vector<32x32xf32> to vector<32xf32>
    %583 = vector.shape_cast %582 : vector<32xf32> to vector<32x1xf32>
    %584 = vector.broadcast %583 : vector<32x1xf32> to vector<32x32xf32>
    %585 = arith.cmpf ole, %581, %584 : vector<32x32xf32>
    %c32_i32_225 = arith.constant 32 : i32
    %586 = vector.broadcast %c32_i32_225 : i32 to vector<32x32xi32>
    %587 = arith.select %585, %433, %586 : vector<32x32xi1>, vector<32x32xi32>
    %cst_226 = arith.constant dense<2147483647> : vector<32xi32>
    %588 = vector.multi_reduction <minsi>, %587, %cst_226 [1] : vector<32x32xi32> to vector<32xi32>
    %589 = vector.shape_cast %588 : vector<32xi32> to vector<32x1xi32>
    %590 = vector.broadcast %589 : vector<32x1xi32> to vector<32x32xi32>
    %591 = arith.cmpi eq, %433, %590 : vector<32x32xi32>
    %592 = arith.extui %591 : vector<32x32xi1> to vector<32x32xi32>
    %593 = arith.sitofp %592 : vector<32x32xi32> to vector<32x32xf32>
    %cst_227 = arith.constant dense<0.000000e+00> : vector<32x64xf32>
    %594 = tpu.matmul %593, %432, %cst_227 {dimension_numbers = #tpu.dot_dimension_numbers<[1], [0], [0], [1], [0, 0, 1, 1], [], []>} : vector<32x32xf32>, vector<32x64xf32>, vector<32x64xf32> -> vector<32x64xf32>
    %595 = arith.addf %431, %594 : vector<32x64xf32>
    %cst_228 = arith.constant 0.000000e+00 : f32
    %596 = vector.broadcast %cst_228 : f32 to vector<32x64xf32>
    %597 = arith.maximumf %595, %596 : vector<32x64xf32>
    %598 = arith.truncf %597 : vector<32x64xf32> to vector<32x64xbf16>
    %cst_229 = arith.constant dense<0.000000e+00> : vector<32x64xf32>
    %599 = tpu.matmul %598, %411, %cst_229 {dimension_numbers = #tpu.dot_dimension_numbers<[1], [0], [0], [1], [0, 0, 1, 1], [], []>} : vector<32x64xbf16>, vector<64x64xbf16>, vector<32x64xf32> -> vector<32x64xf32>
    %600 = arith.maximumf %579, %599 : vector<32x64xf32>
    %cst_230 = arith.constant 1.000000e+30 : f32
    %601 = vector.broadcast %cst_230 : f32 to vector<32x32xf32>
    %602 = arith.select %591, %601, %581 : vector<32x32xi1>, vector<32x32xf32>
    %603 = vector.shape_cast %413 : vector<64xf32> to vector<1x64xf32>
    %604 = vector.broadcast %603 : vector<1x64xf32> to vector<32x64xf32>
    %605 = arith.addf %600, %604 : vector<32x64xf32>
    %cst_231 = arith.constant 0.000000e+00 : f32
    %606 = vector.broadcast %cst_231 : f32 to vector<32x64xf32>
    %607 = arith.maximumf %605, %606 : vector<32x64xf32>
    %608 = vector.shape_cast %415 : vector<64xf32> to vector<1x64xf32>
    %609 = vector.broadcast %608 : vector<1x64xf32> to vector<32x64xf32>
    %610 = arith.addf %607, %609 : vector<32x64xf32>
    %611 = arith.truncf %204 : vector<32x64xf32> to vector<32x64xbf16>
    %c0_232 = arith.constant 0 : index
    %c0_233 = arith.constant 0 : index
    %612 = vector.load %arg17[%c0_232, %c0_233] : memref<192x1024xbf16, #tpu.memory_space<vmem>>, vector<64x1024xbf16>
    %cst_234 = arith.constant dense<0.000000e+00> : vector<32x1024xf32>
    %613 = tpu.matmul %611, %612, %cst_234 {dimension_numbers = #tpu.dot_dimension_numbers<[1], [0], [0], [1], [0, 0, 1, 1], [], []>} : vector<32x64xbf16>, vector<64x1024xbf16>, vector<32x1024xf32> -> vector<32x1024xf32>
    %614 = arith.truncf %407 : vector<32x64xf32> to vector<32x64xbf16>
    %c64 = arith.constant 64 : index
    %c0_235 = arith.constant 0 : index
    %615 = vector.load %arg17[%c64, %c0_235] : memref<192x1024xbf16, #tpu.memory_space<vmem>>, vector<64x1024xbf16>
    %cst_236 = arith.constant dense<0.000000e+00> : vector<32x1024xf32>
    %616 = tpu.matmul %614, %615, %cst_236 {dimension_numbers = #tpu.dot_dimension_numbers<[1], [0], [0], [1], [0, 0, 1, 1], [], []>} : vector<32x64xbf16>, vector<64x1024xbf16>, vector<32x1024xf32> -> vector<32x1024xf32>
    %617 = arith.addf %613, %616 : vector<32x1024xf32>
    %618 = arith.truncf %610 : vector<32x64xf32> to vector<32x64xbf16>
    %c128 = arith.constant 128 : index
    %c0_237 = arith.constant 0 : index
    %619 = vector.load %arg17[%c128, %c0_237] : memref<192x1024xbf16, #tpu.memory_space<vmem>>, vector<64x1024xbf16>
    %cst_238 = arith.constant dense<0.000000e+00> : vector<32x1024xf32>
    %620 = tpu.matmul %618, %619, %cst_238 {dimension_numbers = #tpu.dot_dimension_numbers<[1], [0], [0], [1], [0, 0, 1, 1], [], []>} : vector<32x64xbf16>, vector<64x1024xbf16>, vector<32x1024xf32> -> vector<32x1024xf32>
    %621 = arith.addf %617, %620 : vector<32x1024xf32>
    %c0_239 = arith.constant 0 : index
    %c0_240 = arith.constant 0 : index
    %622 = vector.load %arg18[%c0_239, %c0_240] : memref<1x1024xf32, #tpu.memory_space<vmem>>, vector<1x1024xf32>
    %623 = vector.shape_cast %622 : vector<1x1024xf32> to vector<1024xf32>
    %624 = vector.shape_cast %623 : vector<1024xf32> to vector<1x1024xf32>
    %625 = vector.broadcast %624 : vector<1x1024xf32> to vector<32x1024xf32>
    %626 = arith.addf %621, %625 : vector<32x1024xf32>
    %cst_241 = arith.constant 0.000000e+00 : f32
    %627 = vector.broadcast %cst_241 : f32 to vector<32x1024xf32>
    %628 = arith.maximumf %626, %627 : vector<32x1024xf32>
    %c0_242 = arith.constant 0 : index
    %c0_243 = arith.constant 0 : index
    %629 = vector.load %arg19[%c0_242, %c0_243] : memref<1x1024xf32, #tpu.memory_space<vmem>>, vector<1x1024xf32>
    %630 = vector.shape_cast %629 : vector<1x1024xf32> to vector<1024xf32>
    %631 = vector.shape_cast %630 : vector<1024xf32> to vector<1x1024xf32>
    %632 = vector.broadcast %631 : vector<1x1024xf32> to vector<32x1024xf32>
    %633 = arith.addf %628, %632 : vector<32x1024xf32>
    %c0_244 = arith.constant 0 : index
    %c0_245 = arith.constant 0 : index
    %c0_246 = arith.constant 0 : index
    %634 = vector.load %arg20[%c0_244, %c0_245, %c0_246] : memref<1x32x1024xf32, #tpu.memory_space<vmem>>, vector<1x32x1024xf32>
    %635 = vector.shape_cast %634 : vector<1x32x1024xf32> to vector<32x1024xf32>
    %636 = vector.shape_cast %633 : vector<32x1024xf32> to vector<1x32x1024xf32>
    tpu.vector_store %arg20[%c0_244, %c0_245, %c0_246], %636 {strides = array<i32>} : memref<1x32x1024xf32, #tpu.memory_space<vmem>>, vector<1x32x1024xf32>,
    return
  }
  func.func @transform_0(%arg0: i32) -> (i32, i32, i32) {
    %c0_i32 = arith.constant 0 : i32
    %c0_i32_0 = arith.constant 0 : i32
    %c0_i32_1 = arith.constant 0 : i32
    return %arg0, %c0_i32, %c0_i32_0 : i32, i32, i32
  }
  func.func @transform_1(%arg0: i32) -> (i32, i32) {
    %c0_i32 = arith.constant 0 : i32
    %c0_i32_0 = arith.constant 0 : i32
    %c0_i32_1 = arith.constant 0 : i32
    return %c0_i32, %c0_i32_0 : i32, i32
  }
  func.func @transform_2(%arg0: i32) -> (i32, i32) {
    %c0_i32 = arith.constant 0 : i32
    %c0_i32_0 = arith.constant 0 : i32
    %c0_i32_1 = arith.constant 0 : i32
    return %c0_i32, %c0_i32_0 : i32, i32
  }
  func.func @transform_3(%arg0: i32) -> (i32, i32) {
    %c0_i32 = arith.constant 0 : i32
    %c0_i32_0 = arith.constant 0 : i32
    %c0_i32_1 = arith.constant 0 : i32
    return %c0_i32, %c0_i32_0 : i32, i32
  }
  func.func @transform_4(%arg0: i32) -> (i32, i32) {
    %c0_i32 = arith.constant 0 : i32
    %c0_i32_0 = arith.constant 0 : i32
    %c0_i32_1 = arith.constant 0 : i32
    return %c0_i32, %c0_i32_0 : i32, i32
  }
  func.func @transform_5(%arg0: i32) -> (i32, i32) {
    %c0_i32 = arith.constant 0 : i32
    %c0_i32_0 = arith.constant 0 : i32
    %c0_i32_1 = arith.constant 0 : i32
    return %c0_i32, %c0_i32_0 : i32, i32
  }
  func.func @transform_6(%arg0: i32) -> (i32, i32) {
    %c0_i32 = arith.constant 0 : i32
    %c0_i32_0 = arith.constant 0 : i32
    %c0_i32_1 = arith.constant 0 : i32
    return %c0_i32, %c0_i32_0 : i32, i32
  }
  func.func @transform_7(%arg0: i32) -> (i32, i32) {
    %c0_i32 = arith.constant 0 : i32
    %c0_i32_0 = arith.constant 0 : i32
    %c0_i32_1 = arith.constant 0 : i32
    return %c0_i32, %c0_i32_0 : i32, i32
  }
  func.func @transform_8(%arg0: i32) -> (i32, i32) {
    %c0_i32 = arith.constant 0 : i32
    %c0_i32_0 = arith.constant 0 : i32
    %c0_i32_1 = arith.constant 0 : i32
    return %c0_i32, %c0_i32_0 : i32, i32
  }
  func.func @transform_9(%arg0: i32) -> (i32, i32) {
    %c0_i32 = arith.constant 0 : i32
    %c0_i32_0 = arith.constant 0 : i32
    %c0_i32_1 = arith.constant 0 : i32
    return %c0_i32, %c0_i32_0 : i32, i32
  }
  func.func @transform_10(%arg0: i32) -> (i32, i32) {
    %c0_i32 = arith.constant 0 : i32
    %c0_i32_0 = arith.constant 0 : i32
    %c0_i32_1 = arith.constant 0 : i32
    return %c0_i32, %c0_i32_0 : i32, i32
  }
  func.func @transform_11(%arg0: i32) -> (i32, i32) {
    %c0_i32 = arith.constant 0 : i32
    %c0_i32_0 = arith.constant 0 : i32
    %c0_i32_1 = arith.constant 0 : i32
    return %c0_i32, %c0_i32_0 : i32, i32
  }
  func.func @transform_12(%arg0: i32) -> (i32, i32) {
    %c0_i32 = arith.constant 0 : i32
    %c0_i32_0 = arith.constant 0 : i32
    %c0_i32_1 = arith.constant 0 : i32
    return %c0_i32, %c0_i32_0 : i32, i32
  }
  func.func @transform_13(%arg0: i32) -> (i32, i32) {
    %c0_i32 = arith.constant 0 : i32
    %c0_i32_0 = arith.constant 0 : i32
    %c0_i32_1 = arith.constant 0 : i32
    return %c0_i32, %c0_i32_0 : i32, i32
  }
  func.func @transform_14(%arg0: i32) -> (i32, i32) {
    %c0_i32 = arith.constant 0 : i32
    %c0_i32_0 = arith.constant 0 : i32
    %c0_i32_1 = arith.constant 0 : i32
    return %c0_i32, %c0_i32_0 : i32, i32
  }
  func.func @transform_15(%arg0: i32) -> (i32, i32) {
    %c0_i32 = arith.constant 0 : i32
    %c0_i32_0 = arith.constant 0 : i32
    %c0_i32_1 = arith.constant 0 : i32
    return %c0_i32, %c0_i32_0 : i32, i32
  }
  func.func @transform_16(%arg0: i32) -> (i32, i32) {
    %c0_i32 = arith.constant 0 : i32
    %c0_i32_0 = arith.constant 0 : i32
    %c0_i32_1 = arith.constant 0 : i32
    return %c0_i32, %c0_i32_0 : i32, i32
  }
  func.func @transform_17(%arg0: i32) -> (i32, i32) {
    %c0_i32 = arith.constant 0 : i32
    %c0_i32_0 = arith.constant 0 : i32
    %c0_i32_1 = arith.constant 0 : i32
    return %c0_i32, %c0_i32_0 : i32, i32
  }
  func.func @transform_18(%arg0: i32) -> (i32, i32) {
    %c0_i32 = arith.constant 0 : i32
    %c0_i32_0 = arith.constant 0 : i32
    %c0_i32_1 = arith.constant 0 : i32
    return %c0_i32, %c0_i32_0 : i32, i32
  }
  func.func @transform_19(%arg0: i32) -> (i32, i32, i32) {
    %c0_i32 = arith.constant 0 : i32
    %c0_i32_0 = arith.constant 0 : i32
    %c0_i32_1 = arith.constant 0 : i32
    return %arg0, %c0_i32, %c0_i32_0 : i32, i32, i32
  }
}

</mosaic_0001>

<llo_original>
// kernel: tpu_custom_call.1
$region0: #{tpu_custom_call.1}
  #allocation0 [shape = 'u32[]', space=smem, size = 0x4, offset = 0x4, fixed_abs, tag = 'smem constant byte address 0x4 - core index']
  #allocation1 [shape = 'u32[144,128]{1,0:T(1,128)}', space=vmem, size = 0x12000, scoped, tag = 'internal scratch']
  %s0 = inlined_call_operand.vmem [shape: f32[2,32,6], index: 0, kind: input, shape index: {}]
  %s1 = inlined_call_operand.hbm [shape: f32[6,128], index: 1, kind: input, shape index: {}]
  %s2 = inlined_call_operand.hbm [shape: f32[1,64], index: 2, kind: input, shape index: {}]
  %s3 = inlined_call_operand.hbm [shape: bf16[64,64], index: 3, kind: input, shape index: {}]
  %s4 = inlined_call_operand.hbm [shape: f32[1,64], index: 4, kind: input, shape index: {}]
  %s5 = inlined_call_operand.hbm [shape: f32[1,64], index: 5, kind: input, shape index: {}]
  %s6 = inlined_call_operand.vmem [shape: f32[64,128], index: 6, kind: input, shape index: {}]
  %s7 = inlined_call_operand.hbm [shape: f32[1,64], index: 7, kind: input, shape index: {}]
  %s8 = inlined_call_operand.hbm [shape: bf16[64,64], index: 8, kind: input, shape index: {}]
  %s9 = inlined_call_operand.hbm [shape: f32[1,64], index: 9, kind: input, shape index: {}]
  %s10 = inlined_call_operand.hbm [shape: f32[1,64], index: 10, kind: input, shape index: {}]
  %s11 = inlined_call_operand.hbm [shape: f32[64,128], index: 11, kind: input, shape index: {}]
  %s12 = inlined_call_operand.vmem [shape: f32[1,64], index: 12, kind: input, shape index: {}]
  %s13 = inlined_call_operand.vmem [shape: bf16[64,64], index: 13, kind: input, shape index: {}]
  %s14 = inlined_call_operand.hbm [shape: f32[1,64], index: 14, kind: input, shape index: {}]
  %s15 = inlined_call_operand.hbm [shape: f32[1,64], index: 15, kind: input, shape index: {}]
  %s16 = inlined_call_operand.hbm [shape: bf16[192,1024], index: 16, kind: input, shape index: {}]
  %s17 = inlined_call_operand.vmem [shape: f32[1,1024], index: 17, kind: input, shape index: {}]
  %s18 = inlined_call_operand.hbm [shape: f32[1,1024], index: 18, kind: input, shape index: {}]
  %s19 = inlined_call_operand.hbm [shape: f32[2,32,1024], index: 19, kind: output, shape index: {}]
  %s20 = sld [smem:[#allocation0]]
  $region165: #{tpu_custom_call.1} parent=0
    _
  %s22 = ssub.s32 1, %s20
  %s23 = scalar_select 0, %s22, %s20
  $region1: #{tpu_custom_call.1} parent=0
    #allocation2 [shape = 'u8[4096]{0}', space=vmem, size = 0x1000, scoped, tag = 'input window, operand 1, single buffered']
    #allocation3 [shape = 's32[2]{0}', space=sflag, size = 0x8, scoped, tag = 'scoped memory for tpu_custom_call.1']
    #allocation4 [shape = 's32[2]{0}', space=sflag, size = 0x8, scoped, tag = 'scoped memory for tpu_custom_call.1']
    #allocation5 [shape = 'u8[512]{0}', space=vmem, size = 0x400, scoped, tag = 'input window, operand 2, single buffered']
    #allocation6 [shape = 's32[1]{0}', space=sflag, size = 0x4, scoped, tag = 'scoped memory for tpu_custom_call.1']
    #allocation7 [shape = 'u8[16384]{0}', space=vmem, size = 0x4000, scoped, tag = 'input window, operand 3, single buffered']
    #allocation8 [shape = 'u8[512]{0}', space=vmem, size = 0x400, scoped, tag = 'input window, operand 4, single buffered']
    #allocation9 [shape = 's32[1]{0}', space=sflag, size = 0x4, scoped, tag = 'scoped memory for tpu_custom_call.1']
    #allocation10 [shape = 'u8[512]{0}', space=vmem, size = 0x400, scoped, tag = 'input window, operand 5, single buffered']
    #allocation11 [shape = 'u8[512]{0}', space=vmem, size = 0x400, scoped, tag = 'input window, operand 7, single buffered']
    #allocation12 [shape = 's32[1]{0}', space=sflag, size = 0x4, scoped, tag = 'scoped memory for tpu_custom_call.1']
    #allocation13 [shape = 'u8[16384]{0}', space=vmem, size = 0x4000, scoped, tag = 'input window, operand 8, single buffered']
    #allocation14 [shape = 'u8[512]{0}', space=vmem, size = 0x400, scoped, tag = 'input window, operand 9, single buffered']
    #allocation15 [shape = 's32[1]{0}', space=sflag, size = 0x4, scoped, tag = 'scoped memory for tpu_custom_call.1']
    #allocation16 [shape = 'u8[512]{0}', space=vmem, size = 0x400, scoped, tag = 'input window, operand 10, single buffered']
    #allocation17 [shape = 'u8[32768]{0}', space=vmem, size = 0x8000, scoped, tag = 'input window, operand 11, single buffered']
    #allocation18 [shape = 's32[1]{0}', space=sflag, size = 0x4, scoped, tag = 'scoped memory for tpu_custom_call.1']
    #allocation19 [shape = 'u8[512]{0}', space=vmem, size = 0x400, scoped, tag = 'input window, operand 14, single buffered']
    #allocation20 [shape = 'u8[512]{0}', space=vmem, size = 0x400, scoped, tag = 'input window, operand 15, single buffered']
    #allocation21 [shape = 's32[1]{0}', space=sflag, size = 0x4, scoped, tag = 'scoped memory for tpu_custom_call.1']
    #allocation22 [shape = 'u8[393216]{0}', space=vmem, size = 0x60000, scoped, tag = 'input window, operand 16, single buffered']
    #allocation23 [shape = 'u8[4096]{0}', space=vmem, size = 0x1000, scoped, tag = 'input window, operand 18, single buffered']
    #allocation24 [shape = 's32[1]{0}', space=sflag, size = 0x4, scoped, tag = 'scoped memory for tpu_custom_call.1']
    #allocation25 [shape = 'u8[262144]{0}', space=vmem, size = 0x40000, scoped, tag = 'output window, operand 0']
    %24 = vsyncpa [#allocation3], 0
    %25 = vsyncpa [#allocation6], 0
    %26 = vsyncpa [#allocation9], 0
    %27 = vsyncpa [#allocation12], 0
    %28 = vsyncpa [#allocation15], 0
    %29 = vsyncpa [#allocation18], 0
    %30 = vsyncpa [#allocation21], 0
    %31 = vsyncpa [#allocation24], 0
    %32 = vsyncpa [#allocation4], 0
    %s33 = scalar_lea.sflag [#allocation4], 1
    %34 = vsyncpa %s33, 0
    loop: start=0, step=1, limit=4
    $region2: #{tpu_custom_call.1} parent=1 // loop_pre_header
      _
    $region3: #{tpu_custom_call.1} parent=1 // loop_header
      %s36 = sphi 0, %s40
      %p37 = scmp.ge.s32.totalorder %s36, 4
      %s46 = sphi 0, %s48
      %s49 = sphi 0, %s46
      %s50 = sphi 0, %s49
      %s66 = sphi 0, %s50
      %s70 = sphi 0, %s70
      %s72 = sphi 0, %s70
      %s73 = sphi 0, %s72
      %s87 = sphi 0, %s73
      %s91 = sphi 0, %s91
      %s93 = sphi 0, %s91
      %s94 = sphi 0, %s93
      %s108 = sphi 0, %s94
      %s112 = sphi 0, %s112
      %s114 = sphi 0, %s112
      %s115 = sphi 0, %s114
      %s129 = sphi 0, %s115
      %s133 = sphi 0, %s133
      %s135 = sphi 0, %s133
      %s136 = sphi 0, %s135
      %s150 = sphi 0, %s136
      %s154 = sphi 0, %s154
      %s156 = sphi 0, %s154
      %s157 = sphi 0, %s156
      %s171 = sphi 0, %s157
      %s175 = sphi 0, %s175
      %s177 = sphi 0, %s175
      %s178 = sphi 0, %s177
      %s192 = sphi 0, %s178
      %s196 = sphi 0, %s196
      %s198 = sphi 0, %s196
      %s199 = sphi 0, %s198
      %s213 = sphi 0, %s199
      %s217 = sphi 0, %s217
      %s219 = sphi 0, %s217
      %s220 = sphi 0, %s219
      %s234 = sphi 0, %s220
      %s238 = sphi 0, %s238
      %s240 = sphi 0, %s238
      %s241 = sphi 0, %s240
      %s255 = sphi 0, %s241
      %s259 = sphi 0, %s259
      %s261 = sphi 0, %s259
      %s262 = sphi 0, %s261
      %s276 = sphi 0, %s262
      %s280 = sphi 0, %s280
      %s282 = sphi 0, %s280
      %s283 = sphi 0, %s282
      %s297 = sphi 0, %s283
      %s301 = sphi 0, %s301
      %s303 = sphi 0, %s301
      %s304 = sphi 0, %s303
      %s318 = sphi 0, %s304
      %s322 = sphi 0, %s322
      %s324 = sphi 0, %s322
      %s325 = sphi 0, %s324
      %s339 = sphi 0, %s325
      %s343 = sphi 0, %s343
      %s345 = sphi 0, %s343
      %s346 = sphi 0, %s345
      %s360 = sphi 0, %s346
      %s364 = sphi 0, %s364
      %s366 = sphi 0, %s364
      %s367 = sphi 0, %s366
      %s381 = sphi 0, %s367
      %s385 = sphi 0, %s385
      %s387 = sphi 0, %s385
      %s388 = sphi 0, %s387
      %s402 = sphi 0, %s388
      %s406 = sphi 0, %s406
      %s408 = sphi 0, %s406
      %s409 = sphi 0, %s408
      %s423 = sphi 0, %s409
      %s427 = sphi 0, %s427
      %s429 = sphi 0, %s427
      %s430 = sphi 0, %s429
      %s444 = sphi 0, %s430
      %s450 = sphi 0, %s452
      %s453 = sphi 0, %s450
      %s454 = sphi 0, %s453
      %s470 = sphi 0, %s454
    $region4: #{tpu_custom_call.1} parent=1 // loop_header_branch
      %39 = sbr.rel (%p37) target = $region8
    $region5: #{tpu_custom_call.1} parent=1 // loop_body
      %s41 = ssub.s32 %s36, 1
      %s42 = ssub.s32 %s36, 2
      %s43 = sadd.s32 %s36, 1
      %s44 = ssub.s32 %s36, %s43
      %p45 = scmp.eq.s32.totalorder %s44, 0
      %s47 = sadd.s32 %s46, 1
      %s48 = scalar_select %p45, %s46, %s47
      %p51 = pneg %p45
      %p52 = scmp.eq.s32.totalorder %s36, 1
      %p53 = por %p51, %p52
      %p54 = scmp.ne.s32.totalorder %s46, %s49
      %p55 = scmp.eq.s32.totalorder %s36, 0
      %p56 = por %p54, %p55
      %p57 = scmp.ne.s32.totalorder %s46, %s49
      %p58 = scmp.eq.s32.totalorder %s41, 1
      %p59 = por %p57, %p58
      %p60 = scmp.ne.s32.totalorder %s49, %s50
      %p61 = scmp.eq.s32.totalorder %s41, 0
      %p62 = por %p60, %p61
      %p63 = scmp.ne.s32.totalorder %s49, %s50
      %p64 = scmp.eq.s32.totalorder %s42, 1
      %p65 = por %p63, %p64
      %p67 = scmp.ne.s32.totalorder %s50, %s66
      %p68 = scmp.eq.s32.totalorder %s42, 0
      %p69 = por %p67, %p68
      %s71 = sadd.s32 %s70, 1
      %p74 = scmp.eq.s32.totalorder %s36, 1
      %p75 = scmp.ne.s32.totalorder %s70, %s72
      %p76 = scmp.eq.s32.totalorder %s36, 0
      %p77 = por %p75, %p76
      %p78 = scmp.ne.s32.totalorder %s70, %s72
      %p79 = scmp.eq.s32.totalorder %s41, 1
      %p80 = por %p78, %p79
      %p81 = scmp.ne.s32.totalorder %s72, %s73
      %p82 = scmp.eq.s32.totalorder %s41, 0
      %p83 = por %p81, %p82
      %p84 = scmp.ne.s32.totalorder %s72, %s73
      %p85 = scmp.eq.s32.totalorder %s42, 1
      %p86 = por %p84, %p85
      %p88 = scmp.ne.s32.totalorder %s73, %s87
      %p89 = scmp.eq.s32.totalorder %s42, 0
      %p90 = por %p88, %p89
      %s92 = sadd.s32 %s91, 1
      %p95 = scmp.eq.s32.totalorder %s36, 1
      %p96 = scmp.ne.s32.totalorder %s91, %s93
      %p97 = scmp.eq.s32.totalorder %s36, 0
      %p98 = por %p96, %p97
      %p99 = scmp.ne.s32.totalorder %s91, %s93
      %p100 = scmp.eq.s32.totalorder %s41, 1
      %p101 = por %p99, %p100
      %p102 = scmp.ne.s32.totalorder %s93, %s94
      %p103 = scmp.eq.s32.totalorder %s41, 0
      %p104 = por %p102, %p103
      %p105 = scmp.ne.s32.totalorder %s93, %s94
      %p106 = scmp.eq.s32.totalorder %s42, 1
      %p107 = por %p105, %p106
      %p109 = scmp.ne.s32.totalorder %s94, %s108
      %p110 = scmp.eq.s32.totalorder %s42, 0
      %p111 = por %p109, %p110
      %s113 = sadd.s32 %s112, 1
      %p116 = scmp.eq.s32.totalorder %s36, 1
      %p117 = scmp.ne.s32.totalorder %s112, %s114
      %p118 = scmp.eq.s32.totalorder %s36, 0
      %p119 = por %p117, %p118
      %p120 = scmp.ne.s32.totalorder %s112, %s114
      %p121 = scmp.eq.s32.totalorder %s41, 1
      %p122 = por %p120, %p121
      %p123 = scmp.ne.s32.totalorder %s114, %s115
      %p124 = scmp.eq.s32.totalorder %s41, 0
      %p125 = por %p123, %p124
      %p126 = scmp.ne.s32.totalorder %s114, %s115
      %p127 = scmp.eq.s32.totalorder %s42, 1
      %p128 = por %p126, %p127
      %p130 = scmp.ne.s32.totalorder %s115, %s129
      %p131 = scmp.eq.s32.totalorder %s42, 0
      %p132 = por %p130, %p131
      %s134 = sadd.s32 %s133, 1
      %p137 = scmp.eq.s32.totalorder %s36, 1
      %p138 = scmp.ne.s32.totalorder %s133, %s135
      %p139 = scmp.eq.s32.totalorder %s36, 0
      %p140 = por %p138, %p139
      %p141 = scmp.ne.s32.totalorder %s133, %s135
      %p142 = scmp.eq.s32.totalorder %s41, 1
      %p143 = por %p141, %p142
      %p144 = scmp.ne.s32.totalorder %s135, %s136
      %p145 = scmp.eq.s32.totalorder %s41, 0
      %p146 = por %p144, %p145
      %p147 = scmp.ne.s32.totalorder %s135, %s136
      %p148 = scmp.eq.s32.totalorder %s42, 1
      %p149 = por %p147, %p148
      %p151 = scmp.ne.s32.totalorder %s136, %s150
      %p152 = scmp.eq.s32.totalorder %s42, 0
      %p153 = por %p151, %p152
      %s155 = sadd.s32 %s154, 1
      %p158 = scmp.eq.s32.totalorder %s36, 1
      %p159 = scmp.ne.s32.totalorder %s154, %s156
      %p160 = scmp.eq.s32.totalorder %s36, 0
      %p161 = por %p159, %p160
      %p162 = scmp.ne.s32.totalorder %s154, %s156
      %p163 = scmp.eq.s32.totalorder %s41, 1
      %p164 = por %p162, %p163
      %p165 = scmp.ne.s32.totalorder %s156, %s157
      %p166 = scmp.eq.s32.totalorder %s41, 0
      %p167 = por %p165, %p166
      %p168 = scmp.ne.s32.totalorder %s156, %s157
      %p169 = scmp.eq.s32.totalorder %s42, 1
      %p170 = por %p168, %p169
      %p172 = scmp.ne.s32.totalorder %s157, %s171
      %p173 = scmp.eq.s32.totalorder %s42, 0
      %p174 = por %p172, %p173
      %s176 = sadd.s32 %s175, 1
      %p179 = scmp.eq.s32.totalorder %s36, 1
      %p180 = scmp.ne.s32.totalorder %s175, %s177
      %p181 = scmp.eq.s32.totalorder %s36, 0
      %p182 = por %p180, %p181
      %p183 = scmp.ne.s32.totalorder %s175, %s177
      %p184 = scmp.eq.s32.totalorder %s41, 1
      %p185 = por %p183, %p184
      %p186 = scmp.ne.s32.totalorder %s177, %s178
      %p187 = scmp.eq.s32.totalorder %s41, 0
      %p188 = por %p186, %p187
      %p189 = scmp.ne.s32.totalorder %s177, %s178
      %p190 = scmp.eq.s32.totalorder %s42, 1
      %p191 = por %p189, %p190
      %p193 = scmp.ne.s32.totalorder %s178, %s192
      %p194 = scmp.eq.s32.totalorder %s42, 0
      %p195 = por %p193, %p194
      %s197 = sadd.s32 %s196, 1
      %p200 = scmp.eq.s32.totalorder %s36, 1
      %p201 = scmp.ne.s32.totalorder %s196, %s198
      %p202 = scmp.eq.s32.totalorder %s36, 0
      %p203 = por %p201, %p202
      %p204 = scmp.ne.s32.totalorder %s196, %s198
      %p205 = scmp.eq.s32.totalorder %s41, 1
      %p206 = por %p204, %p205
      %p207 = scmp.ne.s32.totalorder %s198, %s199
      %p208 = scmp.eq.s32.totalorder %s41, 0
      %p209 = por %p207, %p208
      %p210 = scmp.ne.s32.totalorder %s198, %s199
      %p211 = scmp.eq.s32.totalorder %s42, 1
      %p212 = por %p210, %p211
      %p214 = scmp.ne.s32.totalorder %s199, %s213
      %p215 = scmp.eq.s32.totalorder %s42, 0
      %p216 = por %p214, %p215
      %s218 = sadd.s32 %s217, 1
      %p221 = scmp.eq.s32.totalorder %s36, 1
      %p222 = scmp.ne.s32.totalorder %s217, %s219
      %p223 = scmp.eq.s32.totalorder %s36, 0
      %p224 = por %p222, %p223
      %p225 = scmp.ne.s32.totalorder %s217, %s219
      %p226 = scmp.eq.s32.totalorder %s41, 1
      %p227 = por %p225, %p226
      %p228 = scmp.ne.s32.totalorder %s219, %s220
      %p229 = scmp.eq.s32.totalorder %s41, 0
      %p230 = por %p228, %p229
      %p231 = scmp.ne.s32.totalorder %s219, %s220
      %p232 = scmp.eq.s32.totalorder %s42, 1
      %p233 = por %p231, %p232
      %p235 = scmp.ne.s32.totalorder %s220, %s234
      %p236 = scmp.eq.s32.totalorder %s42, 0
      %p237 = por %p235, %p236
      %s239 = sadd.s32 %s238, 1
      %p242 = scmp.eq.s32.totalorder %s36, 1
      %p243 = scmp.ne.s32.totalorder %s238, %s240
      %p244 = scmp.eq.s32.totalorder %s36, 0
      %p245 = por %p243, %p244
      %p246 = scmp.ne.s32.totalorder %s238, %s240
      %p247 = scmp.eq.s32.totalorder %s41, 1
      %p248 = por %p246, %p247
      %p249 = scmp.ne.s32.totalorder %s240, %s241
      %p250 = scmp.eq.s32.totalorder %s41, 0
      %p251 = por %p249, %p250
      %p252 = scmp.ne.s32.totalorder %s240, %s241
      %p253 = scmp.eq.s32.totalorder %s42, 1
      %p254 = por %p252, %p253
      %p256 = scmp.ne.s32.totalorder %s241, %s255
      %p257 = scmp.eq.s32.totalorder %s42, 0
      %p258 = por %p256, %p257
      %s260 = sadd.s32 %s259, 1
      %p263 = scmp.eq.s32.totalorder %s36, 1
      %p264 = scmp.ne.s32.totalorder %s259, %s261
      %p265 = scmp.eq.s32.totalorder %s36, 0
      %p266 = por %p264, %p265
      %p267 = scmp.ne.s32.totalorder %s259, %s261
      %p268 = scmp.eq.s32.totalorder %s41, 1
      %p269 = por %p267, %p268
      %p270 = scmp.ne.s32.totalorder %s261, %s262
      %p271 = scmp.eq.s32.totalorder %s41, 0
      %p272 = por %p270, %p271
      %p273 = scmp.ne.s32.totalorder %s261, %s262
      %p274 = scmp.eq.s32.totalorder %s42, 1
      %p275 = por %p273, %p274
      %p277 = scmp.ne.s32.totalorder %s262, %s276
      %p278 = scmp.eq.s32.totalorder %s42, 0
      %p279 = por %p277, %p278
      %s281 = sadd.s32 %s280, 1
      %p284 = scmp.eq.s32.totalorder %s36, 1
      %p285 = scmp.ne.s32.totalorder %s280, %s282
      %p286 = scmp.eq.s32.totalorder %s36, 0
      %p287 = por %p285, %p286
      %p288 = scmp.ne.s32.totalorder %s280, %s282
      %p289 = scmp.eq.s32.totalorder %s41, 1
      %p290 = por %p288, %p289
      %p291 = scmp.ne.s32.totalorder %s282, %s283
      %p292 = scmp.eq.s32.totalorder %s41, 0
      %p293 = por %p291, %p292
      %p294 = scmp.ne.s32.totalorder %s282, %s283
      %p295 = scmp.eq.s32.totalorder %s42, 1
      %p296 = por %p294, %p295
      %p298 = scmp.ne.s32.totalorder %s283, %s297
      %p299 = scmp.eq.s32.totalorder %s42, 0
      %p300 = por %p298, %p299
      %s302 = sadd.s32 %s301, 1
      %p305 = scmp.eq.s32.totalorder %s36, 1
      %p306 = scmp.ne.s32.totalorder %s301, %s303
      %p307 = scmp.eq.s32.totalorder %s36, 0
      %p308 = por %p306, %p307
      %p309 = scmp.ne.s32.totalorder %s301, %s303
      %p310 = scmp.eq.s32.totalorder %s41, 1
      %p311 = por %p309, %p310
      %p312 = scmp.ne.s32.totalorder %s303, %s304
      %p313 = scmp.eq.s32.totalorder %s41, 0
      %p314 = por %p312, %p313
      %p315 = scmp.ne.s32.totalorder %s303, %s304
      %p316 = scmp.eq.s32.totalorder %s42, 1
      %p317 = por %p315, %p316
      %p319 = scmp.ne.s32.totalorder %s304, %s318
      %p320 = scmp.eq.s32.totalorder %s42, 0
      %p321 = por %p319, %p320
      %s323 = sadd.s32 %s322, 1
      %p326 = scmp.eq.s32.totalorder %s36, 1
      %p327 = scmp.ne.s32.totalorder %s322, %s324
      %p328 = scmp.eq.s32.totalorder %s36, 0
      %p329 = por %p327, %p328
      %p330 = scmp.ne.s32.totalorder %s322, %s324
      %p331 = scmp.eq.s32.totalorder %s41, 1
      %p332 = por %p330, %p331
      %p333 = scmp.ne.s32.totalorder %s324, %s325
      %p334 = scmp.eq.s32.totalorder %s41, 0
      %p335 = por %p333, %p334
      %p336 = scmp.ne.s32.totalorder %s324, %s325
      %p337 = scmp.eq.s32.totalorder %s42, 1
      %p338 = por %p336, %p337
      %p340 = scmp.ne.s32.totalorder %s325, %s339
      %p341 = scmp.eq.s32.totalorder %s42, 0
      %p342 = por %p340, %p341
      %s344 = sadd.s32 %s343, 1
      %p347 = scmp.eq.s32.totalorder %s36, 1
      %p348 = scmp.ne.s32.totalorder %s343, %s345
      %p349 = scmp.eq.s32.totalorder %s36, 0
      %p350 = por %p348, %p349
      %p351 = scmp.ne.s32.totalorder %s343, %s345
      %p352 = scmp.eq.s32.totalorder %s41, 1
      %p353 = por %p351, %p352
      %p354 = scmp.ne.s32.totalorder %s345, %s346
      %p355 = scmp.eq.s32.totalorder %s41, 0
      %p356 = por %p354, %p355
      %p357 = scmp.ne.s32.totalorder %s345, %s346
      %p358 = scmp.eq.s32.totalorder %s42, 1
      %p359 = por %p357, %p358
      %p361 = scmp.ne.s32.totalorder %s346, %s360
      %p362 = scmp.eq.s32.totalorder %s42, 0
      %p363 = por %p361, %p362
      %s365 = sadd.s32 %s364, 1
      %p368 = scmp.eq.s32.totalorder %s36, 1
      %p369 = scmp.ne.s32.totalorder %s364, %s366
      %p370 = scmp.eq.s32.totalorder %s36, 0
      %p371 = por %p369, %p370
      %p372 = scmp.ne.s32.totalorder %s364, %s366
      %p373 = scmp.eq.s32.totalorder %s41, 1
      %p374 = por %p372, %p373
      %p375 = scmp.ne.s32.totalorder %s366, %s367
      %p376 = scmp.eq.s32.totalorder %s41, 0
      %p377 = por %p375, %p376
      %p378 = scmp.ne.s32.totalorder %s366, %s367
      %p379 = scmp.eq.s32.totalorder %s42, 1
      %p380 = por %p378, %p379
      %p382 = scmp.ne.s32.totalorder %s367, %s381
      %p383 = scmp.eq.s32.totalorder %s42, 0
      %p384 = por %p382, %p383
      %s386 = sadd.s32 %s385, 1
      %p389 = scmp.eq.s32.totalorder %s36, 1
      %p390 = scmp.ne.s32.totalorder %s385, %s387
      %p391 = scmp.eq.s32.totalorder %s36, 0
      %p392 = por %p390, %p391
      %p393 = scmp.ne.s32.totalorder %s385, %s387
      %p394 = scmp.eq.s32.totalorder %s41, 1
      %p395 = por %p393, %p394
      %p396 = scmp.ne.s32.totalorder %s387, %s388
      %p397 = scmp.eq.s32.totalorder %s41, 0
      %p398 = por %p396, %p397
      %p399 = scmp.ne.s32.totalorder %s387, %s388
      %p400 = scmp.eq.s32.totalorder %s42, 1
      %p401 = por %p399, %p400
      %p403 = scmp.ne.s32.totalorder %s388, %s402
      %p404 = scmp.eq.s32.totalorder %s42, 0
      %p405 = por %p403, %p404
      %s407 = sadd.s32 %s406, 1
      %p410 = scmp.eq.s32.totalorder %s36, 1
      %p411 = scmp.ne.s32.totalorder %s406, %s408
      %p412 = scmp.eq.s32.totalorder %s36, 0
      %p413 = por %p411, %p412
      %p414 = scmp.ne.s32.totalorder %s406, %s408
      %p415 = scmp.eq.s32.totalorder %s41, 1
      %p416 = por %p414, %p415
      %p417 = scmp.ne.s32.totalorder %s408, %s409
      %p418 = scmp.eq.s32.totalorder %s41, 0
      %p419 = por %p417, %p418
      %p420 = scmp.ne.s32.totalorder %s408, %s409
      %p421 = scmp.eq.s32.totalorder %s42, 1
      %p422 = por %p420, %p421
      %p424 = scmp.ne.s32.totalorder %s409, %s423
      %p425 = scmp.eq.s32.totalorder %s42, 0
      %p426 = por %p424, %p425
      %s428 = sadd.s32 %s427, 1
      %p431 = scmp.eq.s32.totalorder %s36, 1
      %p432 = scmp.ne.s32.totalorder %s427, %s429
      %p433 = scmp.eq.s32.totalorder %s36, 0
      %p434 = por %p432, %p433
      %p435 = scmp.ne.s32.totalorder %s427, %s429
      %p436 = scmp.eq.s32.totalorder %s41, 1
      %p437 = por %p435, %p436
      %p438 = scmp.ne.s32.totalorder %s429, %s430
      %p439 = scmp.eq.s32.totalorder %s41, 0
      %p440 = por %p438, %p439
      %p441 = scmp.ne.s32.totalorder %s429, %s430
      %p442 = scmp.eq.s32.totalorder %s42, 1
      %p443 = por %p441, %p442
      %p445 = scmp.ne.s32.totalorder %s430, %s444
      %p446 = scmp.eq.s32.totalorder %s42, 0
      %p447 = por %p445, %p446
      %s448 = ssub.s32 %s36, %s43
      %p449 = scmp.eq.s32.totalorder %s448, 0
      %s451 = sadd.s32 %s450, 1
      %s452 = scalar_select %p449, %s450, %s451
      %p455 = pneg %p449
      %p456 = scmp.eq.s32.totalorder %s36, 1
      %p457 = por %p455, %p456
      %p458 = scmp.ne.s32.totalorder %s450, %s453
      %p459 = scmp.eq.s32.totalorder %s36, 0
      %p460 = por %p458, %p459
      %p461 = scmp.ne.s32.totalorder %s450, %s453
      %p462 = scmp.eq.s32.totalorder %s41, 1
      %p463 = por %p461, %p462
      %p464 = scmp.ne.s32.totalorder %s453, %s454
      %p465 = scmp.eq.s32.totalorder %s41, 0
      %p466 = por %p464, %p465
      %p467 = scmp.ne.s32.totalorder %s453, %s454
      %p468 = scmp.eq.s32.totalorder %s42, 1
      %p469 = por %p467, %p468
      %p471 = scmp.ne.s32.totalorder %s454, %s470
      %p472 = scmp.eq.s32.totalorder %s42, 0
      %p473 = por %p471, %p472
      %p474 = scmp.le.s32.totalorder 1, %s36
      %p475 = scmp.lt.s32.totalorder %s36, 3
      %p476 = pnand %p474, %p475
      %p477 = pneg %p476
      // Predicated region
      $region9: #{tpu_custom_call.1} parent=5 // pred_check
        _
      $region10: #{tpu_custom_call.1} parent=5 // pred_check_branch
        %479 = sbr.rel (%p476) target = $region12
      $region11: #{tpu_custom_call.1} parent=5 // pred_region
        %s480 = ssub.s32 %s36, 1
        // Predicated region
        $region13: #{tpu_custom_call.1} parent=11 // pred_check
          %p481 = pneg %p83
        $region14: #{tpu_custom_call.1} parent=11 // pred_check_branch
          %483 = sbr.rel (%p481) target = $region16
        $region15: #{tpu_custom_call.1} parent=11 // pred_region
          %s485 = ssub.s32 128, 128
          %486 = vsyncadd [#allocation3], %s485
          %s488 = sshll.u32 [#allocation2], 4
          %s489 = int_to_ptr.vmem [resolvable:$true] %s488
          %491 = dma.hbm_to_vmem [thread:$0]  %s1, 128, %s489, [#allocation3]
        $region16: #{tpu_custom_call.1} parent=11 // pred_fallthru
          _
        // Predicated region
        $region17: #{tpu_custom_call.1} parent=11 // pred_check
          %p492 = pneg %p104
        $region18: #{tpu_custom_call.1} parent=11 // pred_check_branch
          %494 = sbr.rel (%p492) target = $region20
        $region19: #{tpu_custom_call.1} parent=11 // pred_region
          %s496 = ssub.s32 16, 16
          %497 = vsyncadd [#allocation6], %s496
          %s499 = sshll.u32 [#allocation5], 4
          %s500 = int_to_ptr.vmem [resolvable:$true] %s499
          %502 = dma.hbm_to_vmem [thread:$0]  %s2, 16, %s500, [#allocation6]
        $region20: #{tpu_custom_call.1} parent=11 // pred_fallthru
          _
        // Predicated region
        $region21: #{tpu_custom_call.1} parent=11 // pred_check
          %p503 = pneg %p125
        $region22: #{tpu_custom_call.1} parent=11 // pred_check_branch
          %505 = sbr.rel (%p503) target = $region24
        $region23: #{tpu_custom_call.1} parent=11 // pred_region
          %s507 = ssub.s32 512, 512
          %508 = vsyncadd [#allocation6], %s507
          %s509 = sshll.u32 [#allocation7], 4
          %s510 = int_to_ptr.vmem [resolvable:$true] %s509
          %515 = dma.hbm_to_vmem [thread:$0]  %s3, 512, %s510, [#allocation6], 64, 64, 4
        $region24: #{tpu_custom_call.1} parent=11 // pred_fallthru
          _
        // Predicated region
        $region25: #{tpu_custom_call.1} parent=11 // pred_check
          %p516 = pneg %p146
        $region26: #{tpu_custom_call.1} parent=11 // pred_check_branch
          %518 = sbr.rel (%p516) target = $region28
        $region27: #{tpu_custom_call.1} parent=11 // pred_region
          %s520 = ssub.s32 16, 16
          %521 = vsyncadd [#allocation9], %s520
          %s523 = sshll.u32 [#allocation8], 4
          %s524 = int_to_ptr.vmem [resolvable:$true] %s523
          %526 = dma.hbm_to_vmem [thread:$0]  %s4, 16, %s524, [#allocation9]
        $region28: #{tpu_custom_call.1} parent=11 // pred_fallthru
          _
        // Predicated region
        $region29: #{tpu_custom_call.1} parent=11 // pred_check
          %p527 = pneg %p167
        $region30: #{tpu_custom_call.1} parent=11 // pred_check_branch
          %529 = sbr.rel (%p527) target = $region32
        $region31: #{tpu_custom_call.1} parent=11 // pred_region
          %s531 = ssub.s32 16, 16
          %532 = vsyncadd [#allocation9], %s531
          %s534 = sshll.u32 [#allocation10], 4
          %s535 = int_to_ptr.vmem [resolvable:$true] %s534
          %537 = dma.hbm_to_vmem [thread:$0]  %s5, 16, %s535, [#allocation9]
        $region32: #{tpu_custom_call.1} parent=11 // pred_fallthru
          _
        // Predicated region
        $region33: #{tpu_custom_call.1} parent=11 // pred_check
          %p538 = pneg %p188
        $region34: #{tpu_custom_call.1} parent=11 // pred_check_branch
          %540 = sbr.rel (%p538) target = $region36
        $region35: #{tpu_custom_call.1} parent=11 // pred_region
          _
        $region36: #{tpu_custom_call.1} parent=11 // pred_fallthru
          _
        // Predicated region
        $region37: #{tpu_custom_call.1} parent=11 // pred_check
          %p541 = pneg %p209
        $region38: #{tpu_custom_call.1} parent=11 // pred_check_branch
          %543 = sbr.rel (%p541) target = $region40
        $region39: #{tpu_custom_call.1} parent=11 // pred_region
          %s545 = ssub.s32 16, 16
          %546 = vsyncadd [#allocation12], %s545
          %s548 = sshll.u32 [#allocation11], 4
          %s549 = int_to_ptr.vmem [resolvable:$true] %s548
          %551 = dma.hbm_to_vmem [thread:$0]  %s7, 16, %s549, [#allocation12]
        $region40: #{tpu_custom_call.1} parent=11 // pred_fallthru
          _
        // Predicated region
        $region41: #{tpu_custom_call.1} parent=11 // pred_check
          %p552 = pneg %p230
        $region42: #{tpu_custom_call.1} parent=11 // pred_check_branch
          %554 = sbr.rel (%p552) target = $region44
        $region43: #{tpu_custom_call.1} parent=11 // pred_region
          %s556 = ssub.s32 512, 512
          %557 = vsyncadd [#allocation12], %s556
          %s558 = sshll.u32 [#allocation13], 4
          %s559 = int_to_ptr.vmem [resolvable:$true] %s558
          %564 = dma.hbm_to_vmem [thread:$0]  %s8, 512, %s559, [#allocation12], 64, 64, 4
        $region44: #{tpu_custom_call.1} parent=11 // pred_fallthru
          _
        // Predicated region
        $region45: #{tpu_custom_call.1} parent=11 // pred_check
          %p565 = pneg %p251
        $region46: #{tpu_custom_call.1} parent=11 // pred_check_branch
          %567 = sbr.rel (%p565) target = $region48
        $region47: #{tpu_custom_call.1} parent=11 // pred_region
          %s569 = ssub.s32 16, 16
          %570 = vsyncadd [#allocation15], %s569
          %s572 = sshll.u32 [#allocation14], 4
          %s573 = int_to_ptr.vmem [resolvable:$true] %s572
          %575 = dma.hbm_to_vmem [thread:$0]  %s9, 16, %s573, [#allocation15]
        $region48: #{tpu_custom_call.1} parent=11 // pred_fallthru
          _
        // Predicated region
        $region49: #{tpu_custom_call.1} parent=11 // pred_check
          %p576 = pneg %p272
        $region50: #{tpu_custom_call.1} parent=11 // pred_check_branch
          %578 = sbr.rel (%p576) target = $region52
        $region51: #{tpu_custom_call.1} parent=11 // pred_region
          %s580 = ssub.s32 16, 16
          %581 = vsyncadd [#allocation15], %s580
          %s583 = sshll.u32 [#allocation16], 4
          %s584 = int_to_ptr.vmem [resolvable:$true] %s583
          %586 = dma.hbm_to_vmem [thread:$0]  %s10, 16, %s584, [#allocation15]
        $region52: #{tpu_custom_call.1} parent=11 // pred_fallthru
          _
        // Predicated region
        $region53: #{tpu_custom_call.1} parent=11 // pred_check
          %p587 = pneg %p293
        $region54: #{tpu_custom_call.1} parent=11 // pred_check_branch
          %589 = sbr.rel (%p587) target = $region56
        $region55: #{tpu_custom_call.1} parent=11 // pred_region
          %s591 = ssub.s32 1024, 1024
          %592 = vsyncadd [#allocation18], %s591
          %s593 = sshll.u32 [#allocation17], 4
          %s594 = int_to_ptr.vmem [resolvable:$true] %s593
          %599 = dma.hbm_to_vmem [thread:$0]  %s11, 1024, %s594, [#allocation18], 128, 128, 8
        $region56: #{tpu_custom_call.1} parent=11 // pred_fallthru
          _
        // Predicated region
        $region57: #{tpu_custom_call.1} parent=11 // pred_check
          %p600 = pneg %p314
        $region58: #{tpu_custom_call.1} parent=11 // pred_check_branch
          %602 = sbr.rel (%p600) target = $region60
        $region59: #{tpu_custom_call.1} parent=11 // pred_region
          _
        $region60: #{tpu_custom_call.1} parent=11 // pred_fallthru
          _
        // Predicated region
        $region61: #{tpu_custom_call.1} parent=11 // pred_check
          %p603 = pneg %p335
        $region62: #{tpu_custom_call.1} parent=11 // pred_check_branch
          %605 = sbr.rel (%p603) target = $region64
        $region63: #{tpu_custom_call.1} parent=11 // pred_region
          _
        $region64: #{tpu_custom_call.1} parent=11 // pred_fallthru
          _
        // Predicated region
        $region65: #{tpu_custom_call.1} parent=11 // pred_check
          %p606 = pneg %p356
        $region66: #{tpu_custom_call.1} parent=11 // pred_check_branch
          %608 = sbr.rel (%p606) target = $region68
        $region67: #{tpu_custom_call.1} parent=11 // pred_region
          %s610 = ssub.s32 16, 16
          %611 = vsyncadd [#allocation18], %s610
          %s613 = sshll.u32 [#allocation19], 4
          %s614 = int_to_ptr.vmem [resolvable:$true] %s613
          %616 = dma.hbm_to_vmem [thread:$0]  %s14, 16, %s614, [#allocation18]
        $region68: #{tpu_custom_call.1} parent=11 // pred_fallthru
          _
        // Predicated region
        $region69: #{tpu_custom_call.1} parent=11 // pred_check
          %p617 = pneg %p377
        $region70: #{tpu_custom_call.1} parent=11 // pred_check_branch
          %619 = sbr.rel (%p617) target = $region72
        $region71: #{tpu_custom_call.1} parent=11 // pred_region
          %s621 = ssub.s32 16, 16
          %622 = vsyncadd [#allocation21], %s621
          %s624 = sshll.u32 [#allocation20], 4
          %s625 = int_to_ptr.vmem [resolvable:$true] %s624
          %627 = dma.hbm_to_vmem [thread:$0]  %s15, 16, %s625, [#allocation21]
        $region72: #{tpu_custom_call.1} parent=11 // pred_fallthru
          _
        // Predicated region
        $region73: #{tpu_custom_call.1} parent=11 // pred_check
          %p628 = pneg %p398
        $region74: #{tpu_custom_call.1} parent=11 // pred_check_branch
          %630 = sbr.rel (%p628) target = $region76
        $region75: #{tpu_custom_call.1} parent=11 // pred_region
          %s632 = ssub.s32 12288, 12288
          %633 = vsyncadd [#allocation21], %s632
          %s634 = sshll.u32 [#allocation22], 4
          %s635 = int_to_ptr.vmem [resolvable:$true] %s634
          %640 = dma.hbm_to_vmem [thread:$0]  %s16, 12288, %s635, [#allocation21], 512, 512, 32
        $region76: #{tpu_custom_call.1} parent=11 // pred_fallthru
          _
        // Predicated region
        $region77: #{tpu_custom_call.1} parent=11 // pred_check
          %p641 = pneg %p419
        $region78: #{tpu_custom_call.1} parent=11 // pred_check_branch
          %643 = sbr.rel (%p641) target = $region80
        $region79: #{tpu_custom_call.1} parent=11 // pred_region
          _
        $region80: #{tpu_custom_call.1} parent=11 // pred_fallthru
          _
        // Predicated region
        $region81: #{tpu_custom_call.1} parent=11 // pred_check
          %p644 = pneg %p440
        $region82: #{tpu_custom_call.1} parent=11 // pred_check_branch
          %646 = sbr.rel (%p644) target = $region84
        $region83: #{tpu_custom_call.1} parent=11 // pred_region
          %s648 = ssub.s32 128, 128
          %649 = vsyncadd [#allocation24], %s648
          %s651 = sshll.u32 [#allocation23], 4
          %s652 = int_to_ptr.vmem [resolvable:$true] %s651
          %654 = dma.hbm_to_vmem [thread:$0]  %s18, 128, %s652, [#allocation24]
        $region84: #{tpu_custom_call.1} parent=11 // pred_fallthru
          _
      $region12: #{tpu_custom_call.1} parent=5 // pred_fallthru
        _
      %p655 = scmp.lt.s32.totalorder %s36, 2
      // Predicated region
      $region85: #{tpu_custom_call.1} parent=5 // pred_check
        %p656 = pneg %p655
      $region86: #{tpu_custom_call.1} parent=5 // pred_check_branch
        %658 = sbr.rel (%p656) target = $region88
      $region87: #{tpu_custom_call.1} parent=5 // pred_region
        // Predicated region
        $region89: #{tpu_custom_call.1} parent=87 // pred_check
          %p659 = pneg %p56
        $region90: #{tpu_custom_call.1} parent=87 // pred_check_branch
          %661 = sbr.rel (%p659) target = $region92
        $region91: #{tpu_custom_call.1} parent=87 // pred_region
          %p662 = scmp.lt.s32.totalorder %s36, 1
          %s663 = scalar_select %p662, %s36, 1
          %s664 = smul.addr %s663, 4
          %s665 = smul.addr %s664, 8
          %s666 = scalar_lea.vmem %s0, %s665
        $region92: #{tpu_custom_call.1} parent=87 // pred_fallthru
          _
      $region88: #{tpu_custom_call.1} parent=5 // pred_fallthru
        _
      %p667 = scmp.le.s32.totalorder 1, %s36
      %p668 = scmp.lt.s32.totalorder %s36, 3
      %p669 = pnand %p667, %p668
      %p670 = pneg %p669
      // Predicated region
      $region93: #{tpu_custom_call.1} parent=5 // pred_check
        _
      $region94: #{tpu_custom_call.1} parent=5 // pred_check_branch
        %672 = sbr.rel (%p669) target = $region96
      $region95: #{tpu_custom_call.1} parent=5 // pred_region
        %s673 = ssub.s32 %s36, 1
        // Predicated region
        $region97: #{tpu_custom_call.1} parent=95 // pred_check
          %p674 = pneg %p83
        $region98: #{tpu_custom_call.1} parent=95 // pred_check_branch
          %676 = sbr.rel (%p674) target = $region100
        $region99: #{tpu_custom_call.1} parent=95 // pred_region
          %677 = dma.done [#allocation3], 128
        $region100: #{tpu_custom_call.1} parent=95 // pred_fallthru
          _
        // Predicated region
        $region101: #{tpu_custom_call.1} parent=95 // pred_check
          %p678 = pneg %p104
        $region102: #{tpu_custom_call.1} parent=95 // pred_check_branch
          %680 = sbr.rel (%p678) target = $region104
        $region103: #{tpu_custom_call.1} parent=95 // pred_region
          %681 = dma.done [#allocation6], 16
        $region104: #{tpu_custom_call.1} parent=95 // pred_fallthru
          _
        // Predicated region
        $region105: #{tpu_custom_call.1} parent=95 // pred_check
          %p682 = pneg %p125
        $region106: #{tpu_custom_call.1} parent=95 // pred_check_branch
          %684 = sbr.rel (%p682) target = $region108
        $region107: #{tpu_custom_call.1} parent=95 // pred_region
          %685 = dma.done [#allocation6], 512
        $region108: #{tpu_custom_call.1} parent=95 // pred_fallthru
          _
        // Predicated region
        $region109: #{tpu_custom_call.1} parent=95 // pred_check
          %p686 = pneg %p146
        $region110: #{tpu_custom_call.1} parent=95 // pred_check_branch
          %688 = sbr.rel (%p686) target = $region112
        $region111: #{tpu_custom_call.1} parent=95 // pred_region
          %689 = dma.done [#allocation9], 16
        $region112: #{tpu_custom_call.1} parent=95 // pred_fallthru
          _
        // Predicated region
        $region113: #{tpu_custom_call.1} parent=95 // pred_check
          %p690 = pneg %p167
        $region114: #{tpu_custom_call.1} parent=95 // pred_check_branch
          %692 = sbr.rel (%p690) target = $region116
        $region115: #{tpu_custom_call.1} parent=95 // pred_region
          %693 = dma.done [#allocation9], 16
        $region116: #{tpu_custom_call.1} parent=95 // pred_fallthru
          _
        // Predicated region
        $region117: #{tpu_custom_call.1} parent=95 // pred_check
          %p694 = pneg %p209
        $region118: #{tpu_custom_call.1} parent=95 // pred_check_branch
          %696 = sbr.rel (%p694) target = $region120
        $region119: #{tpu_custom_call.1} parent=95 // pred_region
          %697 = dma.done [#allocation12], 16
        $region120: #{tpu_custom_call.1} parent=95 // pred_fallthru
          _
        // Predicated region
        $region121: #{tpu_custom_call.1} parent=95 // pred_check
          %p698 = pneg %p230
        $region122: #{tpu_custom_call.1} parent=95 // pred_check_branch
          %700 = sbr.rel (%p698) target = $region124
        $region123: #{tpu_custom_call.1} parent=95 // pred_region
          %701 = dma.done [#allocation12], 512
        $region124: #{tpu_custom_call.1} parent=95 // pred_fallthru
          _
        // Predicated region
        $region125: #{tpu_custom_call.1} parent=95 // pred_check
          %p702 = pneg %p251
        $region126: #{tpu_custom_call.1} parent=95 // pred_check_branch
          %704 = sbr.rel (%p702) target = $region128
        $region127: #{tpu_custom_call.1} parent=95 // pred_region
          %705 = dma.done [#allocation15], 16
        $region128: #{tpu_custom_call.1} parent=95 // pred_fallthru
          _
        // Predicated region
        $region129: #{tpu_custom_call.1} parent=95 // pred_check
          %p706 = pneg %p272
        $region130: #{tpu_custom_call.1} parent=95 // pred_check_branch
          %708 = sbr.rel (%p706) target = $region132
        $region131: #{tpu_custom_call.1} parent=95 // pred_region
          %709 = dma.done [#allocation15], 16
        $region132: #{tpu_custom_call.1} parent=95 // pred_fallthru
          _
        // Predicated region
        $region133: #{tpu_custom_call.1} parent=95 // pred_check
          %p710 = pneg %p293
        $region134: #{tpu_custom_call.1} parent=95 // pred_check_branch
          %712 = sbr.rel (%p710) target = $region136
        $region135: #{tpu_custom_call.1} parent=95 // pred_region
          %713 = dma.done [#allocation18], 1024
        $region136: #{tpu_custom_call.1} parent=95 // pred_fallthru
          _
        // Predicated region
        $region137: #{tpu_custom_call.1} parent=95 // pred_check
          %p714 = pneg %p356
        $region138: #{tpu_custom_call.1} parent=95 // pred_check_branch
          %716 = sbr.rel (%p714) target = $region140
        $region139: #{tpu_custom_call.1} parent=95 // pred_region
          %717 = dma.done [#allocation18], 16
        $region140: #{tpu_custom_call.1} parent=95 // pred_fallthru
          _
        // Predicated region
        $region141: #{tpu_custom_call.1} parent=95 // pred_check
          %p718 = pneg %p377
        $region142: #{tpu_custom_call.1} parent=95 // pred_check_branch
          %720 = sbr.rel (%p718) target = $region144
        $region143: #{tpu_custom_call.1} parent=95 // pred_region
          %721 = dma.done [#allocation21], 16
        $region144: #{tpu_custom_call.1} parent=95 // pred_fallthru
          _
        // Predicated region
        $region145: #{tpu_custom_call.1} parent=95 // pred_check
          %p722 = pneg %p398
        $region146: #{tpu_custom_call.1} parent=95 // pred_check_branch
          %724 = sbr.rel (%p722) target = $region148
        $region147: #{tpu_custom_call.1} parent=95 // pred_region
          %725 = dma.done [#allocation21], 12288
        $region148: #{tpu_custom_call.1} parent=95 // pred_fallthru
          _
        // Predicated region
        $region149: #{tpu_custom_call.1} parent=95 // pred_check
          %p726 = pneg %p440
        $region150: #{tpu_custom_call.1} parent=95 // pred_check_branch
          %728 = sbr.rel (%p726) target = $region152
        $region151: #{tpu_custom_call.1} parent=95 // pred_region
          %729 = dma.done [#allocation24], 128
        $region152: #{tpu_custom_call.1} parent=95 // pred_fallthru
          _
        %p730 = scmp.lt.s32.totalorder %s41, 1
        %s731 = scalar_select %p730, %s41, 1
        %s732 = smul.addr %s731, 4
        %s733 = smul.addr %s732, 8
        %s734 = scalar_lea.vmem %s0, %s733
        %p735 = pneg %p62
        %p736 = pneg %p59
        %p737 = pneg %p83
        %p738 = pneg %p80
        %p739 = pneg %p104
        %p740 = pneg %p101
        %p741 = pneg %p125
        %p742 = pneg %p122
        %p743 = pneg %p146
        %p744 = pneg %p143
        %p745 = pneg %p167
        %p746 = pneg %p164
        %p747 = pneg %p188
        %p748 = pneg %p185
        %p749 = pneg %p209
        %p750 = pneg %p206
        %p751 = pneg %p230
        %p752 = pneg %p227
        %p753 = pneg %p251
        %p754 = pneg %p248
        %p755 = pneg %p272
        %p756 = pneg %p269
        %p757 = pneg %p293
        %p758 = pneg %p290
        %p759 = pneg %p314
        %p760 = pneg %p311
        %p761 = pneg %p335
        %p762 = pneg %p332
        %p763 = pneg %p356
        %p764 = pneg %p353
        %p765 = pneg %p377
        %p766 = pneg %p374
        %p767 = pneg %p398
        %p768 = pneg %p395
        %p769 = pneg %p419
        %p770 = pneg %p416
        %p771 = pneg %p440
        %p772 = pneg %p437
        %p773 = pneg %p466
        %p774 = pneg %p463
        %s775 = sand.u32 %s453, 1
        %s776 = scalar_lea.sflag [#allocation4], %s775
        %s777 = sand.u32 %s453, 1
        %s778 = smul.addr %s777, 256
        %s779 = scalar_lea.vmem [#allocation25], %s778
        %p780 = scmp.lt.s32.totalorder %s41, 1
        %s781 = scalar_select %p780, %s41, 1
        %s782 = smul.addr %s781, 4
        %s783 = smul.addr %s782, 8
        %s784 = scalar_lea.vmem %s0, %s783
        %v786 = vld [vmem:[%s784] sm:$0xff]
        %v787 = vld [vmem:[%s784 + $0x8] sm:$0xff]
        %v788 = vld [vmem:[%s784 + $0x10] sm:$0xff]
        %v789 = vld [vmem:[%s784 + $0x18] sm:$0xff]
        %v790 = vld [vmem:[#allocation2] sm:$0x3f]
        %v791 = vld [vmem:[#allocation5] sm:$0x1]
        %v792 = vld [vmem:[#allocation7] sm:$0xf]
        %v793 = vld [vmem:[#allocation7 + $0x4] sm:$0xf]
        %v794 = vld [vmem:[#allocation7 + $0x8] sm:$0xf]
        %v795 = vld [vmem:[#allocation7 + $0xc] sm:$0xf]
        %v796 = vld [vmem:[#allocation7 + $0x10] sm:$0xf]
        %v797 = vld [vmem:[#allocation7 + $0x14] sm:$0xf]
        %v798 = vld [vmem:[#allocation7 + $0x18] sm:$0xf]
        %v799 = vld [vmem:[#allocation7 + $0x1c] sm:$0xf]
        %v800 = vld [vmem:[#allocation8] sm:$0x1]
        %v801 = vld [vmem:[#allocation10] sm:$0x1]
        %v802 = vmul.f32 %v786, %v786
        %v803 = vmul.f32 %v787, %v787
        %v804 = vmul.f32 %v788, %v788
        %v805 = vmul.f32 %v789, %v789
        %vm806 = vcmask 48128
        %v807 = vsel %vm806, %v802, 0.0
        %808 = vadd.xlane.f32.xlu0 %v807
        %v809 = vpop.xlane.xlu0 %808
        %v810 = vsel %vm806, %v803, 0.0
        %811 = vadd.xlane.f32.xlu0 %v810
        %v812 = vpop.xlane.xlu0 %811
        %v813 = vsel %vm806, %v804, 0.0
        %814 = vadd.xlane.f32.xlu0 %v813
        %v815 = vpop.xlane.xlu0 %814
        %v816 = vsel %vm806, %v805, 0.0
        %817 = vadd.xlane.f32.xlu0 %v816
        %v818 = vpop.xlane.xlu0 %817
        %v820 = vsel %vm806, %v786, 0
        %v823 = vsel %vm806, %v787, 0
        %v826 = vsel %vm806, %v788, 0
        %v829 = vsel %vm806, %v789, 0
        %831 = vmatprep.subr.mxu0 0.0
        %832 = vmatpush1.xpose.msra.mxu0 0.0
        %833 = vmatprep.subr.mxu0 0.0
        %834 = vmatpush1.xpose.msra.mxu0 0.0
        %835 = vmatprep.subr.mxu0 0.0
        %836 = vmatpush1.xpose.msra.mxu0 0.0
        %837 = vmatprep.subr.mxu0 0.0
        %838 = vmatpush1.xpose.msra.mxu0 0.0
        %839 = vmatprep.subr.mxu0 0.0
        %840 = vmatpush1.xpose.msra.mxu0 0.0
        %841 = vmatprep.subr.mxu0 0.0
        %842 = vmatpush1.xpose.msra.mxu0 0.0
        %843 = vmatprep.subr.mxu0 0.0
        %844 = vmatpush1.xpose.msra.mxu0 0.0
        %845 = vmatprep.subr.mxu0 0.0
        %846 = vmatpush1.xpose.msra.mxu0 0.0
        %847 = vmatprep.subr.mxu0 0.0
        %848 = vmatpush1.xpose.msra.mxu0 0.0
        %849 = vmatprep.subr.mxu0 0.0
        %850 = vmatpush1.xpose.msra.mxu0 0.0
        %851 = vmatprep.subr.mxu0 0.0
        %852 = vmatpush1.xpose.msra.mxu0 0.0
        %853 = vmatprep.subr.mxu0 0.0
        %854 = vmatpush1.xpose.msra.mxu0 0.0
        %855 = vmatprep.subr.mxu0 0.0
        %856 = vmatpush1.xpose.msra.mxu0 %v829
        %857 = vmatprep.subr.mxu0 0.0
        %858 = vmatpush1.xpose.msra.mxu0 %v826
        %859 = vmatprep.subr.mxu0 0.0
        %860 = vmatpush1.xpose.msra.mxu0 %v823
        %861 = vmatprep.subr.mxu0 0.0
        %862 = vmatpush1.xpose.msra.mxu0 %v820
        %863 = vmatprep.subr.mxu0 0.0
        %864 = vmatpush2.xpose.msra.mxu0 0.0
        %865 = vmatprep.subr.mxu0 0.0
        %866 = vmatpush2.xpose.msra.mxu0 0.0
        %867 = vmatprep.subr.mxu0 0.0
        %868 = vmatpush2.xpose.msra.mxu0 0.0
        %869 = vmatprep.subr.mxu0 0.0
        %870 = vmatpush2.xpose.msra.mxu0 0.0
        %871 = vmatprep.subr.mxu0 0.0
        %872 = vmatpush2.xpose.msra.mxu0 0.0
        %873 = vmatprep.subr.mxu0 0.0
        %874 = vmatpush2.xpose.msra.mxu0 0.0
        %875 = vmatprep.subr.mxu0 0.0
        %876 = vmatpush2.xpose.msra.mxu0 0.0
        %877 = vmatprep.subr.mxu0 0.0
        %878 = vmatpush2.xpose.msra.mxu0 0.0
        %879 = vmatprep.subr.mxu0 0.0
        %880 = vmatpush2.xpose.msra.mxu0 0.0
        %881 = vmatprep.subr.mxu0 0.0
        %882 = vmatpush2.xpose.msra.mxu0 0.0
        %883 = vmatprep.subr.mxu0 0.0
        %884 = vmatpush2.xpose.msra.mxu0 0.0
        %885 = vmatprep.subr.mxu0 0.0
        %886 = vmatpush2.xpose.msra.mxu0 0.0
        %887 = vmatprep.subr.mxu0 0.0
        %888 = vmatpush2.xpose.msra.mxu0 0.0
        %889 = vmatprep.subr.mxu0 0.0
        %890 = vmatpush2.xpose.msra.mxu0 0.0
        %891 = vmatprep.subr.mxu0 0.0
        %892 = vmatpush2.xpose.msra.mxu0 0.0
        %893 = vmatprep.subr.mxu0 0.0
        %894 = vmatpush2.xpose.msra.mxu0 0.0
        %895 = vmatprep.mubr.f32.mxu0 0.0
        %896 = vmatmul.mubr.f32.gmra.mxu0 %v820
        %v897 = vpop.f32.mrf.mxu0
        %v898 = vadd.f32 0.0, %v897
        %v899 = vpop.f32.mrf.mxu0
        %900 = vmatprep.mubr.f32.mxu0 0.0
        %901 = vmatmul.mubr.f32.gmra.mxu0 %v823
        %v902 = vpop.f32.mrf.mxu0
        %v903 = vadd.f32 0.0, %v902
        %v904 = vpop.f32.mrf.mxu0
        %905 = vmatprep.mubr.f32.mxu0 0.0
        %906 = vmatmul.mubr.f32.gmra.mxu0 %v826
        %v907 = vpop.f32.mrf.mxu0
        %v908 = vadd.f32 0.0, %v907
        %v909 = vpop.f32.mrf.mxu0
        %910 = vmatprep.mubr.f32.mxu0 0.0
        %911 = vmatmul.mubr.f32.gmra.mxu0 %v829
        %v912 = vpop.f32.mrf.mxu0
        %v913 = vadd.f32 0.0, %v912
        %v914 = vpop.f32.mrf.mxu0
        %915 = vdwg.mxu0
        %916 = vxpose.xlu0.b32.start [1/16] %v809, 128
        %917 = vxpose.xlu0.b32.cont [2/16] %v812, 128
        %918 = vxpose.xlu0.b32.cont [3/16] %v815, 128
        %919 = vxpose.xlu0.b32.cont [4/16] %v818, 128
        %920 = vxpose.xlu0.b32.cont [5/16] 0.0, 128
        %921 = vxpose.xlu0.b32.cont [6/16] 0.0, 128
        %922 = vxpose.xlu0.b32.cont [7/16] 0.0, 128
        %923 = vxpose.xlu0.b32.cont [8/16] 0.0, 128
        %924 = vxpose.xlu0.b32.cont [9/16] 0.0, 128
        %925 = vxpose.xlu0.b32.cont [10/16] 0.0, 128
        %926 = vxpose.xlu0.b32.cont [11/16] 0.0, 128
        %927 = vxpose.xlu0.b32.cont [12/16] 0.0, 128
        %928 = vxpose.xlu0.b32.cont [13/16] 0.0, 128
        %929 = vxpose.xlu0.b32.cont [14/16] 0.0, 128
        %930 = vxpose.xlu0.b32.cont [15/16] 0.0, 128
        %931 = vxpose.xlu0.b32.end [16/16] 0.0, 128
        %v932 = vpop.trf.xlu0
        %v933 = vpop.trf.xlu0
        %v934 = vpop.trf.xlu0
        %v935 = vpop.trf.xlu0
        %v936 = vpop.trf.xlu0
        %v937 = vpop.trf.xlu0
        %v938 = vpop.trf.xlu0
        %v939 = vpop.trf.xlu0
        %v940 = vpop.trf.xlu0
        %v941 = vpop.trf.xlu0
        %v942 = vpop.trf.xlu0
        %v943 = vpop.trf.xlu0
        %v944 = vpop.trf.xlu0
        %v945 = vpop.trf.xlu0
        %v946 = vpop.trf.xlu0
        %v947 = vpop.trf.xlu0
        %v948 = vlaneseq
        %v949 = vshrl.u32 %v948, 7
        %v950 = vsub.s32 0, %v949
        %v951 = vrot.slane %v932, %v950
        %v952 = vadd.f32 %v809, %v951
        %v953 = vadd.f32 %v812, %v951
        %v954 = vadd.f32 %v815, %v951
        %v955 = vadd.f32 %v818, %v951
        %v956 = vmul.f32 %v898, 2.0
        %v957 = vmul.f32 %v903, 2.0
        %v958 = vmul.f32 %v908, 2.0
        %v959 = vmul.f32 %v913, 2.0
        %v960 = vsub.f32 %v952, %v956
        %v961 = vsub.f32 %v953, %v957
        %v962 = vsub.f32 %v954, %v958
        %v963 = vsub.f32 %v955, %v959
        %vm964 = vcmask 1045504
        %v966 = vsel %vm964, %v790, 0
        %968 = vmatprep.subr.mxu0 0.0
        %969 = vmatpush1.msra.mxu0 0.0
        %970 = vmatprep.subr.mxu0 0.0
        %971 = vmatpush1.msra.mxu0 0.0
        %972 = vmatprep.subr.mxu0 0.0
        %973 = vmatpush1.msra.mxu0 0.0
        %974 = vmatprep.subr.mxu0 0.0
        %975 = vmatpush1.msra.mxu0 0.0
        %976 = vmatprep.subr.mxu0 0.0
        %977 = vmatpush1.msra.mxu0 0.0
        %978 = vmatprep.subr.mxu0 0.0
        %979 = vmatpush1.msra.mxu0 0.0
        %980 = vmatprep.subr.mxu0 0.0
        %981 = vmatpush1.msra.mxu0 0.0
        %982 = vmatprep.subr.mxu0 0.0
        %983 = vmatpush1.msra.mxu0 0.0
        %984 = vmatprep.subr.mxu0 0.0
        %985 = vmatpush1.msra.mxu0 0.0
        %986 = vmatprep.subr.mxu0 0.0
        %987 = vmatpush1.msra.mxu0 0.0
        %988 = vmatprep.subr.mxu0 0.0
        %989 = vmatpush1.msra.mxu0 0.0
        %990 = vmatprep.subr.mxu0 0.0
        %991 = vmatpush1.msra.mxu0 0.0
        %992 = vmatprep.subr.mxu0 0.0
        %993 = vmatpush1.msra.mxu0 0.0
        %994 = vmatprep.subr.mxu0 0.0
        %995 = vmatpush1.msra.mxu0 0.0
        %996 = vmatprep.subr.mxu0 0.0
        %997 = vmatpush1.msra.mxu0 0.0
        %998 = vmatprep.subr.mxu0 0.0
        %999 = vmatpush1.msra.mxu0 %v966
        %1000 = vmatprep.subr.mxu0 0.0
        %1001 = vmatpush2.msra.mxu0 0.0
        %1002 = vmatprep.subr.mxu0 0.0
        %1003 = vmatpush2.msra.mxu0 0.0
        %1004 = vmatprep.subr.mxu0 0.0
        %1005 = vmatpush2.msra.mxu0 0.0
        %1006 = vmatprep.subr.mxu0 0.0
        %1007 = vmatpush2.msra.mxu0 0.0
        %1008 = vmatprep.subr.mxu0 0.0
        %1009 = vmatpush2.msra.mxu0 0.0
        %1010 = vmatprep.subr.mxu0 0.0
        %1011 = vmatpush2.msra.mxu0 0.0
        %1012 = vmatprep.subr.mxu0 0.0
        %1013 = vmatpush2.msra.mxu0 0.0
        %1014 = vmatprep.subr.mxu0 0.0
        %1015 = vmatpush2.msra.mxu0 0.0
        %1016 = vmatprep.subr.mxu0 0.0
        %1017 = vmatpush2.msra.mxu0 0.0
        %1018 = vmatprep.subr.mxu0 0.0
        %1019 = vmatpush2.msra.mxu0 0.0
        %1020 = vmatprep.subr.mxu0 0.0
        %1021 = vmatpush2.msra.mxu0 0.0
        %1022 = vmatprep.subr.mxu0 0.0
        %1023 = vmatpush2.msra.mxu0 0.0
        %1024 = vmatprep.subr.mxu0 0.0
        %1025 = vmatpush2.msra.mxu0 0.0
        %1026 = vmatprep.subr.mxu0 0.0
        %1027 = vmatpush2.msra.mxu0 0.0
        %1028 = vmatprep.subr.mxu0 0.0
        %1029 = vmatpush2.msra.mxu0 0.0
        %1030 = vmatprep.subr.mxu0 0.0
        %1031 = vmatpush2.msra.mxu0 0.0
        %1032 = vmatprep.mubr.f32.mxu0 0.0
        %1033 = vmatmul.mubr.f32.gmra.mxu0 %v820
        %v1034 = vpop.f32.mrf.mxu0
        %v1035 = vadd.f32 0.0, %v1034
        %v1036 = vpop.f32.mrf.mxu0
        %1037 = vmatprep.mubr.f32.mxu0 0.0
        %1038 = vmatmul.mubr.f32.gmra.mxu0 %v823
        %v1039 = vpop.f32.mrf.mxu0
        %v1040 = vadd.f32 0.0, %v1039
        %v1041 = vpop.f32.mrf.mxu0
        %1042 = vmatprep.mubr.f32.mxu0 0.0
        %1043 = vmatmul.mubr.f32.gmra.mxu0 %v826
        %v1044 = vpop.f32.mrf.mxu0
        %v1045 = vadd.f32 0.0, %v1044
        %v1046 = vpop.f32.mrf.mxu0
        %1047 = vmatprep.mubr.f32.mxu0 0.0
        %1048 = vmatmul.mubr.f32.gmra.mxu0 %v829
        %v1049 = vpop.f32.mrf.mxu0
        %v1050 = vadd.f32 0.0, %v1049
        %v1051 = vpop.f32.mrf.mxu0
        %1052 = vdwg.mxu0
        %v1054 = vlaneseq
        %v1055 = vshrl.u32 %v1054, 7
        %v1056 = vsub.s32 0, %v1055
        %v1057 = vrot.slane %v791, %v1056
        %v1059 = vadd.f32 %v1035, %v1057
        %v1060 = vadd.f32 %v1040, %v1057
        %v1061 = vadd.f32 %v1045, %v1057
        %v1062 = vadd.f32 %v1050, %v1057
        %v1063 = vlaneseq
        %v1064 = vand.u32 %v1063, 127
        %vm1065 = vcmask 261120
        %v1066 = vsel %vm1065, %v960, inf
        %1067 = vmin.xlane.f32.xlu0 %v1066
        %v1068 = vpop.xlane.xlu0 %1067
        %v1069 = vsel %vm1065, %v961, inf
        %1070 = vmin.xlane.f32.xlu0 %v1069
        %v1071 = vpop.xlane.xlu0 %1070
        %v1072 = vsel %vm1065, %v962, inf
        %1073 = vmin.xlane.f32.xlu0 %v1072
        %v1074 = vpop.xlane.xlu0 %1073
        %v1075 = vsel %vm1065, %v963, inf
        %1076 = vmin.xlane.f32.xlu0 %v1075
        %v1077 = vpop.xlane.xlu0 %1076
        %vm1078 = vcmp.le.f32.partialorder %v960, %v1068
        %vm1079 = vcmp.le.f32.partialorder %v961, %v1071
        %vm1080 = vcmp.le.f32.partialorder %v962, %v1074
        %vm1081 = vcmp.le.f32.partialorder %v963, %v1077
        %v1082 = vsel %vm1078, %v1064, 32
        %v1083 = vsel %vm1079, %v1064, 32
        %v1084 = vsel %vm1080, %v1064, 32
        %v1085 = vsel %vm1081, %v1064, 32
        %v1086 = vsel %vm1065, %v1082, 2147483647
        %v1087 = vand.u32 %v1086, 65535
        %v1088 = vshra.s32 %v1086, 16
        %v1089 = vcvt.s32.f32 %v1087
        %v1090 = vcvt.s32.f32 %v1088
        %1091 = vmin.xlane.f32.xlu0 %v1090
        %v1092 = vpop.xlane.xlu0 %1091
        %vm1093 = vcmp.eq.f32.partialorder %v1090, %v1092
        %v1094 = vsel %vm1093, %v1089, inf
        %1095 = vmin.xlane.f32.xlu0 %v1094
        %v1096 = vpop.xlane.xlu0 %1095
        %v1097 = vcvt.f32.s32 %v1096
        %v1098 = vcvt.f32.s32 %v1092
        %v1099 = vshll.u32 %v1098, 16
        %v1100 = vadd.s32 %v1099, %v1097
        %v1101 = vsel %vm1065, %v1083, 2147483647
        %v1102 = vand.u32 %v1101, 65535
        %v1103 = vshra.s32 %v1101, 16
        %v1104 = vcvt.s32.f32 %v1102
        %v1105 = vcvt.s32.f32 %v1103
        %1106 = vmin.xlane.f32.xlu0 %v1105
        %v1107 = vpop.xlane.xlu0 %1106
        %vm1108 = vcmp.eq.f32.partialorder %v1105, %v1107
        %v1109 = vsel %vm1108, %v1104, inf
        %1110 = vmin.xlane.f32.xlu0 %v1109
        %v1111 = vpop.xlane.xlu0 %1110
        %v1112 = vcvt.f32.s32 %v1111
        %v1113 = vcvt.f32.s32 %v1107
        %v1114 = vshll.u32 %v1113, 16
        %v1115 = vadd.s32 %v1114, %v1112
        %v1116 = vsel %vm1065, %v1084, 2147483647
        %v1117 = vand.u32 %v1116, 65535
        %v1118 = vshra.s32 %v1116, 16
        %v1119 = vcvt.s32.f32 %v1117
        %v1120 = vcvt.s32.f32 %v1118
        %1121 = vmin.xlane.f32.xlu0 %v1120
        %v1122 = vpop.xlane.xlu0 %1121
        %vm1123 = vcmp.eq.f32.partialorder %v1120, %v1122
        %v1124 = vsel %vm1123, %v1119, inf
        %1125 = vmin.xlane.f32.xlu0 %v1124
        %v1126 = vpop.xlane.xlu0 %1125
        %v1127 = vcvt.f32.s32 %v1126
        %v1128 = vcvt.f32.s32 %v1122
        %v1129 = vshll.u32 %v1128, 16
        %v1130 = vadd.s32 %v1129, %v1127
        %v1131 = vsel %vm1065, %v1085, 2147483647
        %v1132 = vand.u32 %v1131, 65535
        %v1133 = vshra.s32 %v1131, 16
        %v1134 = vcvt.s32.f32 %v1132
        %v1135 = vcvt.s32.f32 %v1133
        %1136 = vmin.xlane.f32.xlu0 %v1135
        %v1137 = vpop.xlane.xlu0 %1136
        %vm1138 = vcmp.eq.f32.partialorder %v1135, %v1137
        %v1139 = vsel %vm1138, %v1134, inf
        %1140 = vmin.xlane.f32.xlu0 %v1139
        %v1141 = vpop.xlane.xlu0 %1140
        %v1142 = vcvt.f32.s32 %v1141
        %v1143 = vcvt.f32.s32 %v1137
        %v1144 = vshll.u32 %v1143, 16
        %v1145 = vadd.s32 %v1144, %v1142
        %vm1146 = vcmp.eq.s32.totalorder %v1064, %v1100
        %vm1147 = vcmp.eq.s32.totalorder %v1064, %v1115
        %vm1148 = vcmp.eq.s32.totalorder %v1064, %v1130
        %vm1149 = vcmp.eq.s32.totalorder %v1064, %v1145
        %v1150 = vsel %vm1146, 1, 0
        %v1151 = vsel %vm1147, 1, 0
        %v1152 = vsel %vm1148, 1, 0
        %v1153 = vsel %vm1149, 1, 0
        %v1154 = vcvt.s32.f32 %v1150
        %v1155 = vcvt.s32.f32 %v1151
        %v1156 = vcvt.s32.f32 %v1152
        %v1157 = vcvt.s32.f32 %v1153
        %1162 = vrot.lane.b32.xlu0 %v1035, 64
        %v1163 = vpop.permute.xlu0 %1162
        %1164 = vrot.lane.b32.xlu0 %v1040, 64
        %v1165 = vpop.permute.xlu0 %1164
        %1166 = vrot.lane.b32.xlu0 %v1045, 64
        %v1167 = vpop.permute.xlu0 %1166
        %1168 = vrot.lane.b32.xlu0 %v1050, 64
        %v1169 = vpop.permute.xlu0 %1168
        %v1175 = vsel %vm1065, %v1154, 0
        %v1178 = vsel %vm1065, %v1155, 0
        %v1181 = vsel %vm1065, %v1156, 0
        %v1184 = vsel %vm1065, %v1157, 0
        %1186 = vmatprep.subr.mxu0 0.0
        %1187 = vmatpush1.msra.mxu0 0.0
        %1188 = vmatprep.subr.mxu0 0.0
        %1189 = vmatpush1.msra.mxu0 0.0
        %1190 = vmatprep.subr.mxu0 0.0
        %1191 = vmatpush1.msra.mxu0 0.0
        %1192 = vmatprep.subr.mxu0 0.0
        %1193 = vmatpush1.msra.mxu0 0.0
        %1194 = vmatprep.subr.mxu0 0.0
        %1195 = vmatpush1.msra.mxu0 0.0
        %1196 = vmatprep.subr.mxu0 0.0
        %1197 = vmatpush1.msra.mxu0 0.0
        %1198 = vmatprep.subr.mxu0 0.0
        %1199 = vmatpush1.msra.mxu0 0.0
        %1200 = vmatprep.subr.mxu0 0.0
        %1201 = vmatpush1.msra.mxu0 0.0
        %1202 = vmatprep.subr.mxu0 0.0
        %1203 = vmatpush1.msra.mxu0 0.0
        %1204 = vmatprep.subr.mxu0 0.0
        %1205 = vmatpush1.msra.mxu0 0.0
        %1206 = vmatprep.subr.mxu0 0.0
        %1207 = vmatpush1.msra.mxu0 0.0
        %1208 = vmatprep.subr.mxu0 0.0
        %1209 = vmatpush1.msra.mxu0 0.0
        %1210 = vmatprep.subr.mxu0 0.0
        %1211 = vmatpush1.msra.mxu0 %v1169
        %1212 = vmatprep.subr.mxu0 0.0
        %1213 = vmatpush1.msra.mxu0 %v1167
        %1214 = vmatprep.subr.mxu0 0.0
        %1215 = vmatpush1.msra.mxu0 %v1165
        %1216 = vmatprep.subr.mxu0 0.0
        %1217 = vmatpush1.msra.mxu0 %v1163
        %1218 = vmatprep.subr.mxu0 0.0
        %1219 = vmatpush2.msra.mxu0 0.0
        %1220 = vmatprep.subr.mxu0 0.0
        %1221 = vmatpush2.msra.mxu0 0.0
        %1222 = vmatprep.subr.mxu0 0.0
        %1223 = vmatpush2.msra.mxu0 0.0
        %1224 = vmatprep.subr.mxu0 0.0
        %1225 = vmatpush2.msra.mxu0 0.0
        %1226 = vmatprep.subr.mxu0 0.0
        %1227 = vmatpush2.msra.mxu0 0.0
        %1228 = vmatprep.subr.mxu0 0.0
        %1229 = vmatpush2.msra.mxu0 0.0
        %1230 = vmatprep.subr.mxu0 0.0
        %1231 = vmatpush2.msra.mxu0 0.0
        %1232 = vmatprep.subr.mxu0 0.0
        %1233 = vmatpush2.msra.mxu0 0.0
        %1234 = vmatprep.subr.mxu0 0.0
        %1235 = vmatpush2.msra.mxu0 0.0
        %1236 = vmatprep.subr.mxu0 0.0
        %1237 = vmatpush2.msra.mxu0 0.0
        %1238 = vmatprep.subr.mxu0 0.0
        %1239 = vmatpush2.msra.mxu0 0.0
        %1240 = vmatprep.subr.mxu0 0.0
        %1241 = vmatpush2.msra.mxu0 0.0
        %1242 = vmatprep.subr.mxu0 0.0
        %1243 = vmatpush2.msra.mxu0 0.0
        %1244 = vmatprep.subr.mxu0 0.0
        %1245 = vmatpush2.msra.mxu0 0.0
        %1246 = vmatprep.subr.mxu0 0.0
        %1247 = vmatpush2.msra.mxu0 0.0
        %1248 = vmatprep.subr.mxu0 0.0
        %1249 = vmatpush2.msra.mxu0 0.0
        %1250 = vmatprep.mubr.f32.mxu0 0.0
        %1251 = vmatmul.mubr.f32.gmra.mxu0 %v1175
        %v1252 = vpop.f32.mrf.mxu0
        %v1253 = vadd.f32 0.0, %v1252
        %v1254 = vpop.f32.mrf.mxu0
        %1255 = vmatprep.mubr.f32.mxu0 0.0
        %1256 = vmatmul.mubr.f32.gmra.mxu0 %v1178
        %v1257 = vpop.f32.mrf.mxu0
        %v1258 = vadd.f32 0.0, %v1257
        %v1259 = vpop.f32.mrf.mxu0
        %1260 = vmatprep.mubr.f32.mxu0 0.0
        %1261 = vmatmul.mubr.f32.gmra.mxu0 %v1181
        %v1262 = vpop.f32.mrf.mxu0
        %v1263 = vadd.f32 0.0, %v1262
        %v1264 = vpop.f32.mrf.mxu0
        %1265 = vmatprep.mubr.f32.mxu0 0.0
        %1266 = vmatmul.mubr.f32.gmra.mxu0 %v1184
        %v1267 = vpop.f32.mrf.mxu0
        %v1268 = vadd.f32 0.0, %v1267
        %v1269 = vpop.f32.mrf.mxu0
        %1270 = vdwg.mxu0
        %v1271 = vadd.f32 %v1059, %v1253
        %v1272 = vadd.f32 %v1060, %v1258
        %v1273 = vadd.f32 %v1061, %v1263
        %v1274 = vadd.f32 %v1062, %v1268
        %v1275 = vmax.f32 %v1271, 0.0
        %v1276 = vmax.f32 %v1272, 0.0
        %v1277 = vmax.f32 %v1273, 0.0
        %v1278 = vmax.f32 %v1274, 0.0
        %v1279 = vpack.c.bf16 %v1276, %v1275
        %v1280 = vpack.c.bf16 %v1278, %v1277
        %v1289 = vunpack.c.l.b16 %v792
        %v1290 = vunpack.c.l.b16 %v793
        %v1291 = vunpack.c.l.b16 %v794
        %v1292 = vunpack.c.l.b16 %v795
        %v1293 = vunpack.c.l.b16 %v796
        %v1294 = vunpack.c.l.b16 %v797
        %v1295 = vunpack.c.l.b16 %v798
        %v1296 = vunpack.c.l.b16 %v799
        %v1297 = vpack.c.b16 %v1290, %v1289
        %v1298 = vpack.c.b16 %v1292, %v1291
        %v1299 = vpack.c.b16 %v1294, %v1293
        %v1300 = vpack.c.b16 %v1296, %v1295
        %vm1305 = vcmask 523264
        %v1307 = vsel %vm1305, %v1279, 0
        %v1310 = vsel %vm1305, %v1280, 0
        %1312 = vmatprep.subr.bf16.mxu0 0
        %1313 = vmatpush1.bf16.msra.mxu0 0
        %1314 = vmatprep.subr.bf16.mxu0 0
        %1315 = vmatpush1.bf16.msra.mxu0 0
        %1316 = vmatprep.subr.bf16.mxu0 0
        %1317 = vmatpush1.bf16.msra.mxu0 0
        %1318 = vmatprep.subr.bf16.mxu0 0
        %1319 = vmatpush1.bf16.msra.mxu0 0
        %1320 = vmatprep.subr.bf16.mxu0 0
        %1321 = vmatpush1.bf16.msra.mxu0 %v1300
        %1322 = vmatprep.subr.bf16.mxu0 0
        %1323 = vmatpush1.bf16.msra.mxu0 %v1299
        %1324 = vmatprep.subr.bf16.mxu0 0
        %1325 = vmatpush1.bf16.msra.mxu0 %v1298
        %1326 = vmatprep.subr.bf16.mxu0 0
        %1327 = vmatpush1.bf16.msra.mxu0 %v1297
        %1328 = vmatprep.subr.bf16.mxu0 0
        %1329 = vmatpush2.bf16.msra.mxu0 0
        %1330 = vmatprep.subr.bf16.mxu0 0
        %1331 = vmatpush2.bf16.msra.mxu0 0
        %1332 = vmatprep.subr.bf16.mxu0 0
        %1333 = vmatpush2.bf16.msra.mxu0 0
        %1334 = vmatprep.subr.bf16.mxu0 0
        %1335 = vmatpush2.bf16.msra.mxu0 0
        %1336 = vmatprep.subr.bf16.mxu0 0
        %1337 = vmatpush2.bf16.msra.mxu0 0
        %1338 = vmatprep.subr.bf16.mxu0 0
        %1339 = vmatpush2.bf16.msra.mxu0 0
        %1340 = vmatprep.subr.bf16.mxu0 0
        %1341 = vmatpush2.bf16.msra.mxu0 0
        %1342 = vmatprep.subr.bf16.mxu0 0
        %1343 = vmatpush2.bf16.msra.mxu0 0
        %1344 = vmatprep.mubr.bf16.mxu0 0
        %1345 = vmatmul.mubr.bf16.gmra.mxu0 %v1307
        %v1346 = vpop.f32.mrf.mxu0
        %v1347 = vadd.f32 0.0, %v1346
        %v1348 = vpop.f32.mrf.mxu0
        %v1349 = vpop.f32.mrf.mxu0
        %v1350 = vadd.f32 0.0, %v1349
        %v1351 = vpop.f32.mrf.mxu0
        %1352 = vmatprep.mubr.bf16.mxu0 0
        %1353 = vmatmul.mubr.bf16.gmra.mxu0 %v1310
        %v1354 = vpop.f32.mrf.mxu0
        %v1355 = vadd.f32 0.0, %v1354
        %v1356 = vpop.f32.mrf.mxu0
        %v1357 = vpop.f32.mrf.mxu0
        %v1358 = vadd.f32 0.0, %v1357
        %v1359 = vpop.f32.mrf.mxu0
        %1360 = vdwg.mxu0
        %v1361 = vmax.f32 %v1347, -1e+30
        %v1362 = vmax.f32 %v1350, -1e+30
        %v1363 = vmax.f32 %v1355, -1e+30
        %v1364 = vmax.f32 %v1358, -1e+30
        %v1365 = vsel %vm1146, 1e+30, %v960
        %v1366 = vsel %vm1147, 1e+30, %v961
        %v1367 = vsel %vm1148, 1e+30, %v962
        %v1368 = vsel %vm1149, 1e+30, %v963
        %v1369 = vsel %vm1065, %v1365, inf
        %1370 = vmin.xlane.f32.xlu0 %v1369
        %v1371 = vpop.xlane.xlu0 %1370
        %v1372 = vsel %vm1065, %v1366, inf
        %1373 = vmin.xlane.f32.xlu0 %v1372
        %v1374 = vpop.xlane.xlu0 %1373
        %v1375 = vsel %vm1065, %v1367, inf
        %1376 = vmin.xlane.f32.xlu0 %v1375
        %v1377 = vpop.xlane.xlu0 %1376
        %v1378 = vsel %vm1065, %v1368, inf
        %1379 = vmin.xlane.f32.xlu0 %v1378
        %v1380 = vpop.xlane.xlu0 %1379
        %vm1381 = vcmp.le.f32.partialorder %v1365, %v1371
        %vm1382 = vcmp.le.f32.partialorder %v1366, %v1374
        %vm1383 = vcmp.le.f32.partialorder %v1367, %v1377
        %vm1384 = vcmp.le.f32.partialorder %v1368, %v1380
        %v1385 = vsel %vm1381, %v1064, 32
        %v1386 = vsel %vm1382, %v1064, 32
        %v1387 = vsel %vm1383, %v1064, 32
        %v1388 = vsel %vm1384, %v1064, 32
        %v1389 = vsel %vm1065, %v1385, 2147483647
        %v1390 = vand.u32 %v1389, 65535
        %v1391 = vshra.s32 %v1389, 16
        %v1392 = vcvt.s32.f32 %v1390
        %v1393 = vcvt.s32.f32 %v1391
        %1394 = vmin.xlane.f32.xlu0 %v1393
        %v1395 = vpop.xlane.xlu0 %1394
        %vm1396 = vcmp.eq.f32.partialorder %v1393, %v1395
        %v1397 = vsel %vm1396, %v1392, inf
        %1398 = vmin.xlane.f32.xlu0 %v1397
        %v1399 = vpop.xlane.xlu0 %1398
        %v1400 = vcvt.f32.s32 %v1399
        %v1401 = vcvt.f32.s32 %v1395
        %v1402 = vshll.u32 %v1401, 16
        %v1403 = vadd.s32 %v1402, %v1400
        %v1404 = vsel %vm1065, %v1386, 2147483647
        %v1405 = vand.u32 %v1404, 65535
        %v1406 = vshra.s32 %v1404, 16
        %v1407 = vcvt.s32.f32 %v1405
        %v1408 = vcvt.s32.f32 %v1406
        %1409 = vmin.xlane.f32.xlu0 %v1408
        %v1410 = vpop.xlane.xlu0 %1409
        %vm1411 = vcmp.eq.f32.partialorder %v1408, %v1410
        %v1412 = vsel %vm1411, %v1407, inf
        %1413 = vmin.xlane.f32.xlu0 %v1412
        %v1414 = vpop.xlane.xlu0 %1413
        %v1415 = vcvt.f32.s32 %v1414
        %v1416 = vcvt.f32.s32 %v1410
        %v1417 = vshll.u32 %v1416, 16
        %v1418 = vadd.s32 %v1417, %v1415
        %v1419 = vsel %vm1065, %v1387, 2147483647
        %v1420 = vand.u32 %v1419, 65535
        %v1421 = vshra.s32 %v1419, 16
        %v1422 = vcvt.s32.f32 %v1420
        %v1423 = vcvt.s32.f32 %v1421
        %1424 = vmin.xlane.f32.xlu0 %v1423
        %v1425 = vpop.xlane.xlu0 %1424
        %vm1426 = vcmp.eq.f32.partialorder %v1423, %v1425
        %v1427 = vsel %vm1426, %v1422, inf
        %1428 = vmin.xlane.f32.xlu0 %v1427
        %v1429 = vpop.xlane.xlu0 %1428
        %v1430 = vcvt.f32.s32 %v1429
        %v1431 = vcvt.f32.s32 %v1425
        %v1432 = vshll.u32 %v1431, 16
        %v1433 = vadd.s32 %v1432, %v1430
        %v1434 = vsel %vm1065, %v1388, 2147483647
        %v1435 = vand.u32 %v1434, 65535
        %v1436 = vshra.s32 %v1434, 16
        %v1437 = vcvt.s32.f32 %v1435
        %v1438 = vcvt.s32.f32 %v1436
        %1439 = vmin.xlane.f32.xlu0 %v1438
        %v1440 = vpop.xlane.xlu0 %1439
        %vm1441 = vcmp.eq.f32.partialorder %v1438, %v1440
        %v1442 = vsel %vm1441, %v1437, inf
        %1443 = vmin.xlane.f32.xlu0 %v1442
        %v1444 = vpop.xlane.xlu0 %1443
        %v1445 = vcvt.f32.s32 %v1444
        %v1446 = vcvt.f32.s32 %v1440
        %v1447 = vshll.u32 %v1446, 16
        %v1448 = vadd.s32 %v1447, %v1445
        %vm1449 = vcmp.eq.s32.totalorder %v1064, %v1403
        %vm1450 = vcmp.eq.s32.totalorder %v1064, %v1418
        %vm1451 = vcmp.eq.s32.totalorder %v1064, %v1433
        %vm1452 = vcmp.eq.s32.totalorder %v1064, %v1448
        %v1453 = vsel %vm1449, 1, 0
        %v1454 = vsel %vm1450, 1, 0
        %v1455 = vsel %vm1451, 1, 0
        %v1456 = vsel %vm1452, 1, 0
        %v1457 = vcvt.s32.f32 %v1453
        %v1458 = vcvt.s32.f32 %v1454
        %v1459 = vcvt.s32.f32 %v1455
        %v1460 = vcvt.s32.f32 %v1456
        %v1462 = vsel %vm1065, %v1457, 0
        %v1465 = vsel %vm1065, %v1458, 0
        %v1468 = vsel %vm1065, %v1459, 0
        %v1471 = vsel %vm1065, %v1460, 0
        %1473 = vmatprep.subr.mxu0 0.0
        %1474 = vmatpush1.msra.mxu0 0.0
        %1475 = vmatprep.subr.mxu0 0.0
        %1476 = vmatpush1.msra.mxu0 0.0
        %1477 = vmatprep.subr.mxu0 0.0
        %1478 = vmatpush1.msra.mxu0 0.0
        %1479 = vmatprep.subr.mxu0 0.0
        %1480 = vmatpush1.msra.mxu0 0.0
        %1481 = vmatprep.subr.mxu0 0.0
        %1482 = vmatpush1.msra.mxu0 0.0
        %1483 = vmatprep.subr.mxu0 0.0
        %1484 = vmatpush1.msra.mxu0 0.0
        %1485 = vmatprep.subr.mxu0 0.0
        %1486 = vmatpush1.msra.mxu0 0.0
        %1487 = vmatprep.subr.mxu0 0.0
        %1488 = vmatpush1.msra.mxu0 0.0
        %1489 = vmatprep.subr.mxu0 0.0
        %1490 = vmatpush1.msra.mxu0 0.0
        %1491 = vmatprep.subr.mxu0 0.0
        %1492 = vmatpush1.msra.mxu0 0.0
        %1493 = vmatprep.subr.mxu0 0.0
        %1494 = vmatpush1.msra.mxu0 0.0
        %1495 = vmatprep.subr.mxu0 0.0
        %1496 = vmatpush1.msra.mxu0 0.0
        %1497 = vmatprep.subr.mxu0 0.0
        %1498 = vmatpush1.msra.mxu0 %v1169
        %1499 = vmatprep.subr.mxu0 0.0
        %1500 = vmatpush1.msra.mxu0 %v1167
        %1501 = vmatprep.subr.mxu0 0.0
        %1502 = vmatpush1.msra.mxu0 %v1165
        %1503 = vmatprep.subr.mxu0 0.0
        %1504 = vmatpush1.msra.mxu0 %v1163
        %1505 = vmatprep.subr.mxu0 0.0
        %1506 = vmatpush2.msra.mxu0 0.0
        %1507 = vmatprep.subr.mxu0 0.0
        %1508 = vmatpush2.msra.mxu0 0.0
        %1509 = vmatprep.subr.mxu0 0.0
        %1510 = vmatpush2.msra.mxu0 0.0
        %1511 = vmatprep.subr.mxu0 0.0
        %1512 = vmatpush2.msra.mxu0 0.0
        %1513 = vmatprep.subr.mxu0 0.0
        %1514 = vmatpush2.msra.mxu0 0.0
        %1515 = vmatprep.subr.mxu0 0.0
        %1516 = vmatpush2.msra.mxu0 0.0
        %1517 = vmatprep.subr.mxu0 0.0
        %1518 = vmatpush2.msra.mxu0 0.0
        %1519 = vmatprep.subr.mxu0 0.0
        %1520 = vmatpush2.msra.mxu0 0.0
        %1521 = vmatprep.subr.mxu0 0.0
        %1522 = vmatpush2.msra.mxu0 0.0
        %1523 = vmatprep.subr.mxu0 0.0
        %1524 = vmatpush2.msra.mxu0 0.0
        %1525 = vmatprep.subr.mxu0 0.0
        %1526 = vmatpush2.msra.mxu0 0.0
        %1527 = vmatprep.subr.mxu0 0.0
        %1528 = vmatpush2.msra.mxu0 0.0
        %1529 = vmatprep.subr.mxu0 0.0
        %1530 = vmatpush2.msra.mxu0 0.0
        %1531 = vmatprep.subr.mxu0 0.0
        %1532 = vmatpush2.msra.mxu0 0.0
        %1533 = vmatprep.subr.mxu0 0.0
        %1534 = vmatpush2.msra.mxu0 0.0
        %1535 = vmatprep.subr.mxu0 0.0
        %1536 = vmatpush2.msra.mxu0 0.0
        %1537 = vmatprep.mubr.f32.mxu0 0.0
        %1538 = vmatmul.mubr.f32.gmra.mxu0 %v1462
        %v1539 = vpop.f32.mrf.mxu0
        %v1540 = vadd.f32 0.0, %v1539
        %v1541 = vpop.f32.mrf.mxu0
        %1542 = vmatprep.mubr.f32.mxu0 0.0
        %1543 = vmatmul.mubr.f32.gmra.mxu0 %v1465
        %v1544 = vpop.f32.mrf.mxu0
        %v1545 = vadd.f32 0.0, %v1544
        %v1546 = vpop.f32.mrf.mxu0
        %1547 = vmatprep.mubr.f32.mxu0 0.0
        %1548 = vmatmul.mubr.f32.gmra.mxu0 %v1468
        %v1549 = vpop.f32.mrf.mxu0
        %v1550 = vadd.f32 0.0, %v1549
        %v1551 = vpop.f32.mrf.mxu0
        %1552 = vmatprep.mubr.f32.mxu0 0.0
        %1553 = vmatmul.mubr.f32.gmra.mxu0 %v1471
        %v1554 = vpop.f32.mrf.mxu0
        %v1555 = vadd.f32 0.0, %v1554
        %v1556 = vpop.f32.mrf.mxu0
        %1557 = vdwg.mxu0
        %v1558 = vadd.f32 %v1059, %v1540
        %v1559 = vadd.f32 %v1060, %v1545
        %v1560 = vadd.f32 %v1061, %v1550
        %v1561 = vadd.f32 %v1062, %v1555
        %v1562 = vmax.f32 %v1558, 0.0
        %v1563 = vmax.f32 %v1559, 0.0
        %v1564 = vmax.f32 %v1560, 0.0
        %v1565 = vmax.f32 %v1561, 0.0
        %v1566 = vpack.c.bf16 %v1563, %v1562
        %v1567 = vpack.c.bf16 %v1565, %v1564
        %v1569 = vsel %vm1305, %v1566, 0
        %v1572 = vsel %vm1305, %v1567, 0
        %1574 = vmatprep.subr.bf16.mxu0 0
        %1575 = vmatpush1.bf16.msra.mxu0 0
        %1576 = vmatprep.subr.bf16.mxu0 0
        %1577 = vmatpush1.bf16.msra.mxu0 0
        %1578 = vmatprep.subr.bf16.mxu0 0
        %1579 = vmatpush1.bf16.msra.mxu0 0
        %1580 = vmatprep.subr.bf16.mxu0 0
        %1581 = vmatpush1.bf16.msra.mxu0 0
        %1582 = vmatprep.subr.bf16.mxu0 0
        %1583 = vmatpush1.bf16.msra.mxu0 %v1300
        %1584 = vmatprep.subr.bf16.mxu0 0
        %1585 = vmatpush1.bf16.msra.mxu0 %v1299
        %1586 = vmatprep.subr.bf16.mxu0 0
        %1587 = vmatpush1.bf16.msra.mxu0 %v1298
        %1588 = vmatprep.subr.bf16.mxu0 0
        %1589 = vmatpush1.bf16.msra.mxu0 %v1297
        %1590 = vmatprep.subr.bf16.mxu0 0
        %1591 = vmatpush2.bf16.msra.mxu0 0
        %1592 = vmatprep.subr.bf16.mxu0 0
        %1593 = vmatpush2.bf16.msra.mxu0 0
        %1594 = vmatprep.subr.bf16.mxu0 0
        %1595 = vmatpush2.bf16.msra.mxu0 0
        %1596 = vmatprep.subr.bf16.mxu0 0
        %1597 = vmatpush2.bf16.msra.mxu0 0
        %1598 = vmatprep.subr.bf16.mxu0 0
        %1599 = vmatpush2.bf16.msra.mxu0 0
        %1600 = vmatprep.subr.bf16.mxu0 0
        %1601 = vmatpush2.bf16.msra.mxu0 0
        %1602 = vmatprep.subr.bf16.mxu0 0
        %1603 = vmatpush2.bf16.msra.mxu0 0
        %1604 = vmatprep.subr.bf16.mxu0 0
        %1605 = vmatpush2.bf16.msra.mxu0 0
        %1606 = vmatprep.mubr.bf16.mxu0 0
        %1607 = vmatmul.mubr.bf16.gmra.mxu0 %v1569
        %v1608 = vpop.f32.mrf.mxu0
        %v1609 = vadd.f32 0.0, %v1608
        %v1610 = vpop.f32.mrf.mxu0
        %v1611 = vpop.f32.mrf.mxu0
        %v1612 = vadd.f32 0.0, %v1611
        %v1613 = vpop.f32.mrf.mxu0
        %1614 = vmatprep.mubr.bf16.mxu0 0
        %1615 = vmatmul.mubr.bf16.gmra.mxu0 %v1572
        %v1616 = vpop.f32.mrf.mxu0
        %v1617 = vadd.f32 0.0, %v1616
        %v1618 = vpop.f32.mrf.mxu0
        %v1619 = vpop.f32.mrf.mxu0
        %v1620 = vadd.f32 0.0, %v1619
        %v1621 = vpop.f32.mrf.mxu0
        %1622 = vdwg.mxu0
        %v1623 = vmax.f32 %v1361, %v1609
        %v1624 = vmax.f32 %v1362, %v1612
        %v1625 = vmax.f32 %v1363, %v1617
        %v1626 = vmax.f32 %v1364, %v1620
        %v1627 = vsel %vm1449, 1e+30, %v1365
        %v1628 = vsel %vm1450, 1e+30, %v1366
        %v1629 = vsel %vm1451, 1e+30, %v1367
        %v1630 = vsel %vm1452, 1e+30, %v1368
        %v1631 = vsel %vm1065, %v1627, inf
        %1632 = vmin.xlane.f32.xlu0 %v1631
        %v1633 = vpop.xlane.xlu0 %1632
        %v1634 = vsel %vm1065, %v1628, inf
        %1635 = vmin.xlane.f32.xlu0 %v1634
        %v1636 = vpop.xlane.xlu0 %1635
        %v1637 = vsel %vm1065, %v1629, inf
        %1638 = vmin.xlane.f32.xlu0 %v1637
        %v1639 = vpop.xlane.xlu0 %1638
        %v1640 = vsel %vm1065, %v1630, inf
        %1641 = vmin.xlane.f32.xlu0 %v1640
        %v1642 = vpop.xlane.xlu0 %1641
        %vm1643 = vcmp.le.f32.partialorder %v1627, %v1633
        %vm1644 = vcmp.le.f32.partialorder %v1628, %v1636
        %vm1645 = vcmp.le.f32.partialorder %v1629, %v1639
        %vm1646 = vcmp.le.f32.partialorder %v1630, %v1642
        %v1647 = vsel %vm1643, %v1064, 32
        %v1648 = vsel %vm1644, %v1064, 32
        %v1649 = vsel %vm1645, %v1064, 32
        %v1650 = vsel %vm1646, %v1064, 32
        %v1651 = vsel %vm1065, %v1647, 2147483647
        %v1652 = vand.u32 %v1651, 65535
        %v1653 = vshra.s32 %v1651, 16
        %v1654 = vcvt.s32.f32 %v1652
        %v1655 = vcvt.s32.f32 %v1653
        %1656 = vmin.xlane.f32.xlu0 %v1655
        %v1657 = vpop.xlane.xlu0 %1656
        %vm1658 = vcmp.eq.f32.partialorder %v1655, %v1657
        %v1659 = vsel %vm1658, %v1654, inf
        %1660 = vmin.xlane.f32.xlu0 %v1659
        %v1661 = vpop.xlane.xlu0 %1660
        %v1662 = vcvt.f32.s32 %v1661
        %v1663 = vcvt.f32.s32 %v1657
        %v1664 = vshll.u32 %v1663, 16
        %v1665 = vadd.s32 %v1664, %v1662
        %v1666 = vsel %vm1065, %v1648, 2147483647
        %v1667 = vand.u32 %v1666, 65535
        %v1668 = vshra.s32 %v1666, 16
        %v1669 = vcvt.s32.f32 %v1667
        %v1670 = vcvt.s32.f32 %v1668
        %1671 = vmin.xlane.f32.xlu0 %v1670
        %v1672 = vpop.xlane.xlu0 %1671
        %vm1673 = vcmp.eq.f32.partialorder %v1670, %v1672
        %v1674 = vsel %vm1673, %v1669, inf
        %1675 = vmin.xlane.f32.xlu0 %v1674
        %v1676 = vpop.xlane.xlu0 %1675
        %v1677 = vcvt.f32.s32 %v1676
        %v1678 = vcvt.f32.s32 %v1672
        %v1679 = vshll.u32 %v1678, 16
        %v1680 = vadd.s32 %v1679, %v1677
        %v1681 = vsel %vm1065, %v1649, 2147483647
        %v1682 = vand.u32 %v1681, 65535
        %v1683 = vshra.s32 %v1681, 16
        %v1684 = vcvt.s32.f32 %v1682
        %v1685 = vcvt.s32.f32 %v1683
        %1686 = vmin.xlane.f32.xlu0 %v1685
        %v1687 = vpop.xlane.xlu0 %1686
        %vm1688 = vcmp.eq.f32.partialorder %v1685, %v1687
        %v1689 = vsel %vm1688, %v1684, inf
        %1690 = vmin.xlane.f32.xlu0 %v1689
        %v1691 = vpop.xlane.xlu0 %1690
        %v1692 = vcvt.f32.s32 %v1691
        %v1693 = vcvt.f32.s32 %v1687
        %v1694 = vshll.u32 %v1693, 16
        %v1695 = vadd.s32 %v1694, %v1692
        %v1696 = vsel %vm1065, %v1650, 2147483647
        %v1697 = vand.u32 %v1696, 65535
        %v1698 = vshra.s32 %v1696, 16
        %v1699 = vcvt.s32.f32 %v1697
        %v1700 = vcvt.s32.f32 %v1698
        %1701 = vmin.xlane.f32.xlu0 %v1700
        %v1702 = vpop.xlane.xlu0 %1701
        %vm1703 = vcmp.eq.f32.partialorder %v1700, %v1702
        %v1704 = vsel %vm1703, %v1699, inf
        %1705 = vmin.xlane.f32.xlu0 %v1704
        %v1706 = vpop.xlane.xlu0 %1705
        %v1707 = vcvt.f32.s32 %v1706
        %v1708 = vcvt.f32.s32 %v1702
        %v1709 = vshll.u32 %v1708, 16
        %v1710 = vadd.s32 %v1709, %v1707
        %vm1711 = vcmp.eq.s32.totalorder %v1064, %v1665
        %vm1712 = vcmp.eq.s32.totalorder %v1064, %v1680
        %vm1713 = vcmp.eq.s32.totalorder %v1064, %v1695
        %vm1714 = vcmp.eq.s32.totalorder %v1064, %v1710
        %v1715 = vsel %vm1711, 1, 0
        %v1716 = vsel %vm1712, 1, 0
        %v1717 = vsel %vm1713, 1, 0
        %v1718 = vsel %vm1714, 1, 0
        %v1719 = vcvt.s32.f32 %v1715
        %v1720 = vcvt.s32.f32 %v1716
        %v1721 = vcvt.s32.f32 %v1717
        %v1722 = vcvt.s32.f32 %v1718
        %v1724 = vsel %vm1065, %v1719, 0
        %v1727 = vsel %vm1065, %v1720, 0
        %v1730 = vsel %vm1065, %v1721, 0
        %v1733 = vsel %vm1065, %v1722, 0
        %1735 = vmatprep.subr.mxu0 0.0
        %1736 = vmatpush1.msra.mxu0 0.0
        %1737 = vmatprep.subr.mxu0 0.0
        %1738 = vmatpush1.msra.mxu0 0.0
        %1739 = vmatprep.subr.mxu0 0.0
        %1740 = vmatpush1.msra.mxu0 0.0
        %1741 = vmatprep.subr.mxu0 0.0
        %1742 = vmatpush1.msra.mxu0 0.0
        %1743 = vmatprep.subr.mxu0 0.0
        %1744 = vmatpush1.msra.mxu0 0.0
        %1745 = vmatprep.subr.mxu0 0.0
        %1746 = vmatpush1.msra.mxu0 0.0
        %1747 = vmatprep.subr.mxu0 0.0
        %1748 = vmatpush1.msra.mxu0 0.0
        %1749 = vmatprep.subr.mxu0 0.0
        %1750 = vmatpush1.msra.mxu0 0.0
        %1751 = vmatprep.subr.mxu0 0.0
        %1752 = vmatpush1.msra.mxu0 0.0
        %1753 = vmatprep.subr.mxu0 0.0
        %1754 = vmatpush1.msra.mxu0 0.0
        %1755 = vmatprep.subr.mxu0 0.0
        %1756 = vmatpush1.msra.mxu0 0.0
        %1757 = vmatprep.subr.mxu0 0.0
        %1758 = vmatpush1.msra.mxu0 0.0
        %1759 = vmatprep.subr.mxu0 0.0
        %1760 = vmatpush1.msra.mxu0 %v1169
        %1761 = vmatprep.subr.mxu0 0.0
        %1762 = vmatpush1.msra.mxu0 %v1167
        %1763 = vmatprep.subr.mxu0 0.0
        %1764 = vmatpush1.msra.mxu0 %v1165
        %1765 = vmatprep.subr.mxu0 0.0
        %1766 = vmatpush1.msra.mxu0 %v1163
        %1767 = vmatprep.subr.mxu0 0.0
        %1768 = vmatpush2.msra.mxu0 0.0
        %1769 = vmatprep.subr.mxu0 0.0
        %1770 = vmatpush2.msra.mxu0 0.0
        %1771 = vmatprep.subr.mxu0 0.0
        %1772 = vmatpush2.msra.mxu0 0.0
        %1773 = vmatprep.subr.mxu0 0.0
        %1774 = vmatpush2.msra.mxu0 0.0
        %1775 = vmatprep.subr.mxu0 0.0
        %1776 = vmatpush2.msra.mxu0 0.0
        %1777 = vmatprep.subr.mxu0 0.0
        %1778 = vmatpush2.msra.mxu0 0.0
        %1779 = vmatprep.subr.mxu0 0.0
        %1780 = vmatpush2.msra.mxu0 0.0
        %1781 = vmatprep.subr.mxu0 0.0
        %1782 = vmatpush2.msra.mxu0 0.0
        %1783 = vmatprep.subr.mxu0 0.0
        %1784 = vmatpush2.msra.mxu0 0.0
        %1785 = vmatprep.subr.mxu0 0.0
        %1786 = vmatpush2.msra.mxu0 0.0
        %1787 = vmatprep.subr.mxu0 0.0
        %1788 = vmatpush2.msra.mxu0 0.0
        %1789 = vmatprep.subr.mxu0 0.0
        %1790 = vmatpush2.msra.mxu0 0.0
        %1791 = vmatprep.subr.mxu0 0.0
        %1792 = vmatpush2.msra.mxu0 0.0
        %1793 = vmatprep.subr.mxu0 0.0
        %1794 = vmatpush2.msra.mxu0 0.0
        %1795 = vmatprep.subr.mxu0 0.0
        %1796 = vmatpush2.msra.mxu0 0.0
        %1797 = vmatprep.subr.mxu0 0.0
        %1798 = vmatpush2.msra.mxu0 0.0
        %1799 = vmatprep.mubr.f32.mxu0 0.0
        %1800 = vmatmul.mubr.f32.gmra.mxu0 %v1724
        %v1801 = vpop.f32.mrf.mxu0
        %v1802 = vadd.f32 0.0, %v1801
        %v1803 = vpop.f32.mrf.mxu0
        %1804 = vmatprep.mubr.f32.mxu0 0.0
        %1805 = vmatmul.mubr.f32.gmra.mxu0 %v1727
        %v1806 = vpop.f32.mrf.mxu0
        %v1807 = vadd.f32 0.0, %v1806
        %v1808 = vpop.f32.mrf.mxu0
        %1809 = vmatprep.mubr.f32.mxu0 0.0
        %1810 = vmatmul.mubr.f32.gmra.mxu0 %v1730
        %v1811 = vpop.f32.mrf.mxu0
        %v1812 = vadd.f32 0.0, %v1811
        %v1813 = vpop.f32.mrf.mxu0
        %1814 = vmatprep.mubr.f32.mxu0 0.0
        %1815 = vmatmul.mubr.f32.gmra.mxu0 %v1733
        %v1816 = vpop.f32.mrf.mxu0
        %v1817 = vadd.f32 0.0, %v1816
        %v1818 = vpop.f32.mrf.mxu0
        %1819 = vdwg.mxu0
        %v1820 = vadd.f32 %v1059, %v1802
        %v1821 = vadd.f32 %v1060, %v1807
        %v1822 = vadd.f32 %v1061, %v1812
        %v1823 = vadd.f32 %v1062, %v1817
        %v1824 = vmax.f32 %v1820, 0.0
        %v1825 = vmax.f32 %v1821, 0.0
        %v1826 = vmax.f32 %v1822, 0.0
        %v1827 = vmax.f32 %v1823, 0.0
        %v1828 = vpack.c.bf16 %v1825, %v1824
        %v1829 = vpack.c.bf16 %v1827, %v1826
        %v1831 = vsel %vm1305, %v1828, 0
        %v1834 = vsel %vm1305, %v1829, 0
        %1836 = vmatprep.subr.bf16.mxu0 0
        %1837 = vmatpush1.bf16.msra.mxu0 0
        %1838 = vmatprep.subr.bf16.mxu0 0
        %1839 = vmatpush1.bf16.msra.mxu0 0
        %1840 = vmatprep.subr.bf16.mxu0 0
        %1841 = vmatpush1.bf16.msra.mxu0 0
        %1842 = vmatprep.subr.bf16.mxu0 0
        %1843 = vmatpush1.bf16.msra.mxu0 0
        %1844 = vmatprep.subr.bf16.mxu0 0
        %1845 = vmatpush1.bf16.msra.mxu0 %v1300
        %1846 = vmatprep.subr.bf16.mxu0 0
        %1847 = vmatpush1.bf16.msra.mxu0 %v1299
        %1848 = vmatprep.subr.bf16.mxu0 0
        %1849 = vmatpush1.bf16.msra.mxu0 %v1298
        %1850 = vmatprep.subr.bf16.mxu0 0
        %1851 = vmatpush1.bf16.msra.mxu0 %v1297
        %1852 = vmatprep.subr.bf16.mxu0 0
        %1853 = vmatpush2.bf16.msra.mxu0 0
        %1854 = vmatprep.subr.bf16.mxu0 0
        %1855 = vmatpush2.bf16.msra.mxu0 0
        %1856 = vmatprep.subr.bf16.mxu0 0
        %1857 = vmatpush2.bf16.msra.mxu0 0
        %1858 = vmatprep.subr.bf16.mxu0 0
        %1859 = vmatpush2.bf16.msra.mxu0 0
        %1860 = vmatprep.subr.bf16.mxu0 0
        %1861 = vmatpush2.bf16.msra.mxu0 0
        %1862 = vmatprep.subr.bf16.mxu0 0
        %1863 = vmatpush2.bf16.msra.mxu0 0
        %1864 = vmatprep.subr.bf16.mxu0 0
        %1865 = vmatpush2.bf16.msra.mxu0 0
        %1866 = vmatprep.subr.bf16.mxu0 0
        %1867 = vmatpush2.bf16.msra.mxu0 0
        %1868 = vmatprep.mubr.bf16.mxu0 0
        %1869 = vmatmul.mubr.bf16.gmra.mxu0 %v1831
        %v1870 = vpop.f32.mrf.mxu0
        %v1871 = vadd.f32 0.0, %v1870
        %v1872 = vpop.f32.mrf.mxu0
        %v1873 = vpop.f32.mrf.mxu0
        %v1874 = vadd.f32 0.0, %v1873
        %v1875 = vpop.f32.mrf.mxu0
        %1876 = vmatprep.mubr.bf16.mxu0 0
        %1877 = vmatmul.mubr.bf16.gmra.mxu0 %v1834
        %v1878 = vpop.f32.mrf.mxu0
        %v1879 = vadd.f32 0.0, %v1878
        %v1880 = vpop.f32.mrf.mxu0
        %v1881 = vpop.f32.mrf.mxu0
        %v1882 = vadd.f32 0.0, %v1881
        %v1883 = vpop.f32.mrf.mxu0
        %1884 = vdwg.mxu0
        %v1885 = vmax.f32 %v1623, %v1871
        %v1886 = vmax.f32 %v1624, %v1874
        %v1887 = vmax.f32 %v1625, %v1879
        %v1888 = vmax.f32 %v1626, %v1882
        %v1889 = vsel %vm1711, 1e+30, %v1627
        %v1890 = vsel %vm1712, 1e+30, %v1628
        %v1891 = vsel %vm1713, 1e+30, %v1629
        %v1892 = vsel %vm1714, 1e+30, %v1630
        %v1893 = vsel %vm1065, %v1889, inf
        %1894 = vmin.xlane.f32.xlu0 %v1893
        %v1895 = vpop.xlane.xlu0 %1894
        %v1896 = vsel %vm1065, %v1890, inf
        %1897 = vmin.xlane.f32.xlu0 %v1896
        %v1898 = vpop.xlane.xlu0 %1897
        %v1899 = vsel %vm1065, %v1891, inf
        %1900 = vmin.xlane.f32.xlu0 %v1899
        %v1901 = vpop.xlane.xlu0 %1900
        %v1902 = vsel %vm1065, %v1892, inf
        %1903 = vmin.xlane.f32.xlu0 %v1902
        %v1904 = vpop.xlane.xlu0 %1903
        %vm1905 = vcmp.le.f32.partialorder %v1889, %v1895
        %vm1906 = vcmp.le.f32.partialorder %v1890, %v1898
        %vm1907 = vcmp.le.f32.partialorder %v1891, %v1901
        %vm1908 = vcmp.le.f32.partialorder %v1892, %v1904
        %v1909 = vsel %vm1905, %v1064, 32
        %v1910 = vsel %vm1906, %v1064, 32
        %v1911 = vsel %vm1907, %v1064, 32
        %v1912 = vsel %vm1908, %v1064, 32
        %v1913 = vsel %vm1065, %v1909, 2147483647
        %v1914 = vand.u32 %v1913, 65535
        %v1915 = vshra.s32 %v1913, 16
        %v1916 = vcvt.s32.f32 %v1914
        %v1917 = vcvt.s32.f32 %v1915
        %1918 = vmin.xlane.f32.xlu0 %v1917
        %v1919 = vpop.xlane.xlu0 %1918
        %vm1920 = vcmp.eq.f32.partialorder %v1917, %v1919
        %v1921 = vsel %vm1920, %v1916, inf
        %1922 = vmin.xlane.f32.xlu0 %v1921
        %v1923 = vpop.xlane.xlu0 %1922
        %v1924 = vcvt.f32.s32 %v1923
        %v1925 = vcvt.f32.s32 %v1919
        %v1926 = vshll.u32 %v1925, 16
        %v1927 = vadd.s32 %v1926, %v1924
        %v1928 = vsel %vm1065, %v1910, 2147483647
        %v1929 = vand.u32 %v1928, 65535
        %v1930 = vshra.s32 %v1928, 16
        %v1931 = vcvt.s32.f32 %v1929
        %v1932 = vcvt.s32.f32 %v1930
        %1933 = vmin.xlane.f32.xlu0 %v1932
        %v1934 = vpop.xlane.xlu0 %1933
        %vm1935 = vcmp.eq.f32.partialorder %v1932, %v1934
        %v1936 = vsel %vm1935, %v1931, inf
        %1937 = vmin.xlane.f32.xlu0 %v1936
        %v1938 = vpop.xlane.xlu0 %1937
        %v1939 = vcvt.f32.s32 %v1938
        %v1940 = vcvt.f32.s32 %v1934
        %v1941 = vshll.u32 %v1940, 16
        %v1942 = vadd.s32 %v1941, %v1939
        %v1943 = vsel %vm1065, %v1911, 2147483647
        %v1944 = vand.u32 %v1943, 65535
        %v1945 = vshra.s32 %v1943, 16
        %v1946 = vcvt.s32.f32 %v1944
        %v1947 = vcvt.s32.f32 %v1945
        %1948 = vmin.xlane.f32.xlu0 %v1947
        %v1949 = vpop.xlane.xlu0 %1948
        %vm1950 = vcmp.eq.f32.partialorder %v1947, %v1949
        %v1951 = vsel %vm1950, %v1946, inf
        %1952 = vmin.xlane.f32.xlu0 %v1951
        %v1953 = vpop.xlane.xlu0 %1952
        %v1954 = vcvt.f32.s32 %v1953
        %v1955 = vcvt.f32.s32 %v1949
        %v1956 = vshll.u32 %v1955, 16
        %v1957 = vadd.s32 %v1956, %v1954
        %v1958 = vsel %vm1065, %v1912, 2147483647
        %v1959 = vand.u32 %v1958, 65535
        %v1960 = vshra.s32 %v1958, 16
        %v1961 = vcvt.s32.f32 %v1959
        %v1962 = vcvt.s32.f32 %v1960
        %1963 = vmin.xlane.f32.xlu0 %v1962
        %v1964 = vpop.xlane.xlu0 %1963
        %vm1965 = vcmp.eq.f32.partialorder %v1962, %v1964
        %v1966 = vsel %vm1965, %v1961, inf
        %1967 = vmin.xlane.f32.xlu0 %v1966
        %v1968 = vpop.xlane.xlu0 %1967
        %v1969 = vcvt.f32.s32 %v1968
        %v1970 = vcvt.f32.s32 %v1964
        %v1971 = vshll.u32 %v1970, 16
        %v1972 = vadd.s32 %v1971, %v1969
        %vm1973 = vcmp.eq.s32.totalorder %v1064, %v1927
        %vm1974 = vcmp.eq.s32.totalorder %v1064, %v1942
        %vm1975 = vcmp.eq.s32.totalorder %v1064, %v1957
        %vm1976 = vcmp.eq.s32.totalorder %v1064, %v1972
        %v1977 = vsel %vm1973, 1, 0
        %v1978 = vsel %vm1974, 1, 0
        %v1979 = vsel %vm1975, 1, 0
        %v1980 = vsel %vm1976, 1, 0
        %v1981 = vcvt.s32.f32 %v1977
        %v1982 = vcvt.s32.f32 %v1978
        %v1983 = vcvt.s32.f32 %v1979
        %v1984 = vcvt.s32.f32 %v1980
        %v1986 = vsel %vm1065, %v1981, 0
        %v1989 = vsel %vm1065, %v1982, 0
        %v1992 = vsel %vm1065, %v1983, 0
        %v1995 = vsel %vm1065, %v1984, 0
        %1997 = vmatprep.subr.mxu0 0.0
        %1998 = vmatpush1.msra.mxu0 0.0
        %1999 = vmatprep.subr.mxu0 0.0
        %2000 = vmatpush1.msra.mxu0 0.0
        %2001 = vmatprep.subr.mxu0 0.0
        %2002 = vmatpush1.msra.mxu0 0.0
        %2003 = vmatprep.subr.mxu0 0.0
        %2004 = vmatpush1.msra.mxu0 0.0
        %2005 = vmatprep.subr.mxu0 0.0
        %2006 = vmatpush1.msra.mxu0 0.0
        %2007 = vmatprep.subr.mxu0 0.0
        %2008 = vmatpush1.msra.mxu0 0.0
        %2009 = vmatprep.subr.mxu0 0.0
        %2010 = vmatpush1.msra.mxu0 0.0
        %2011 = vmatprep.subr.mxu0 0.0
        %2012 = vmatpush1.msra.mxu0 0.0
        %2013 = vmatprep.subr.mxu0 0.0
        %2014 = vmatpush1.msra.mxu0 0.0
        %2015 = vmatprep.subr.mxu0 0.0
        %2016 = vmatpush1.msra.mxu0 0.0
        %2017 = vmatprep.subr.mxu0 0.0
        %2018 = vmatpush1.msra.mxu0 0.0
        %2019 = vmatprep.subr.mxu0 0.0
        %2020 = vmatpush1.msra.mxu0 0.0
        %2021 = vmatprep.subr.mxu0 0.0
        %2022 = vmatpush1.msra.mxu0 %v1169
        %2023 = vmatprep.subr.mxu0 0.0
        %2024 = vmatpush1.msra.mxu0 %v1167
        %2025 = vmatprep.subr.mxu0 0.0
        %2026 = vmatpush1.msra.mxu0 %v1165
        %2027 = vmatprep.subr.mxu0 0.0
        %2028 = vmatpush1.msra.mxu0 %v1163
        %2029 = vmatprep.subr.mxu0 0.0
        %2030 = vmatpush2.msra.mxu0 0.0
        %2031 = vmatprep.subr.mxu0 0.0
        %2032 = vmatpush2.msra.mxu0 0.0
        %2033 = vmatprep.subr.mxu0 0.0
        %2034 = vmatpush2.msra.mxu0 0.0
        %2035 = vmatprep.subr.mxu0 0.0
        %2036 = vmatpush2.msra.mxu0 0.0
        %2037 = vmatprep.subr.mxu0 0.0
        %2038 = vmatpush2.msra.mxu0 0.0
        %2039 = vmatprep.subr.mxu0 0.0
        %2040 = vmatpush2.msra.mxu0 0.0
        %2041 = vmatprep.subr.mxu0 0.0
        %2042 = vmatpush2.msra.mxu0 0.0
        %2043 = vmatprep.subr.mxu0 0.0
        %2044 = vmatpush2.msra.mxu0 0.0
        %2045 = vmatprep.subr.mxu0 0.0
        %2046 = vmatpush2.msra.mxu0 0.0
        %2047 = vmatprep.subr.mxu0 0.0
        %2048 = vmatpush2.msra.mxu0 0.0
        %2049 = vmatprep.subr.mxu0 0.0
        %2050 = vmatpush2.msra.mxu0 0.0
        %2051 = vmatprep.subr.mxu0 0.0
        %2052 = vmatpush2.msra.mxu0 0.0
        %2053 = vmatprep.subr.mxu0 0.0
        %2054 = vmatpush2.msra.mxu0 0.0
        %2055 = vmatprep.subr.mxu0 0.0
        %2056 = vmatpush2.msra.mxu0 0.0
        %2057 = vmatprep.subr.mxu0 0.0
        %2058 = vmatpush2.msra.mxu0 0.0
        %2059 = vmatprep.subr.mxu0 0.0
        %2060 = vmatpush2.msra.mxu0 0.0
        %2061 = vmatprep.mubr.f32.mxu0 0.0
        %2062 = vmatmul.mubr.f32.gmra.mxu0 %v1986
        %v2063 = vpop.f32.mrf.mxu0
        %v2064 = vadd.f32 0.0, %v2063
        %v2065 = vpop.f32.mrf.mxu0
        %2066 = vmatprep.mubr.f32.mxu0 0.0
        %2067 = vmatmul.mubr.f32.gmra.mxu0 %v1989
        %v2068 = vpop.f32.mrf.mxu0
        %v2069 = vadd.f32 0.0, %v2068
        %v2070 = vpop.f32.mrf.mxu0
        %2071 = vmatprep.mubr.f32.mxu0 0.0
        %2072 = vmatmul.mubr.f32.gmra.mxu0 %v1992
        %v2073 = vpop.f32.mrf.mxu0
        %v2074 = vadd.f32 0.0, %v2073
        %v2075 = vpop.f32.mrf.mxu0
        %2076 = vmatprep.mubr.f32.mxu0 0.0
        %2077 = vmatmul.mubr.f32.gmra.mxu0 %v1995
        %v2078 = vpop.f32.mrf.mxu0
        %v2079 = vadd.f32 0.0, %v2078
        %v2080 = vpop.f32.mrf.mxu0
        %2081 = vdwg.mxu0
        %v2082 = vadd.f32 %v1059, %v2064
        %v2083 = vadd.f32 %v1060, %v2069
        %v2084 = vadd.f32 %v1061, %v2074
        %v2085 = vadd.f32 %v1062, %v2079
        %v2086 = vmax.f32 %v2082, 0.0
        %v2087 = vmax.f32 %v2083, 0.0
        %v2088 = vmax.f32 %v2084, 0.0
        %v2089 = vmax.f32 %v2085, 0.0
        %v2090 = vpack.c.bf16 %v2087, %v2086
        %v2091 = vpack.c.bf16 %v2089, %v2088
        %v2093 = vsel %vm1305, %v2090, 0
        %v2096 = vsel %vm1305, %v2091, 0
        %2098 = vmatprep.subr.bf16.mxu0 0
        %2099 = vmatpush1.bf16.msra.mxu0 0
        %2100 = vmatprep.subr.bf16.mxu0 0
        %2101 = vmatpush1.bf16.msra.mxu0 0
        %2102 = vmatprep.subr.bf16.mxu0 0
        %2103 = vmatpush1.bf16.msra.mxu0 0
        %2104 = vmatprep.subr.bf16.mxu0 0
        %2105 = vmatpush1.bf16.msra.mxu0 0
        %2106 = vmatprep.subr.bf16.mxu0 0
        %2107 = vmatpush1.bf16.msra.mxu0 %v1300
        %2108 = vmatprep.subr.bf16.mxu0 0
        %2109 = vmatpush1.bf16.msra.mxu0 %v1299
        %2110 = vmatprep.subr.bf16.mxu0 0
        %2111 = vmatpush1.bf16.msra.mxu0 %v1298
        %2112 = vmatprep.subr.bf16.mxu0 0
        %2113 = vmatpush1.bf16.msra.mxu0 %v1297
        %2114 = vmatprep.subr.bf16.mxu0 0
        %2115 = vmatpush2.bf16.msra.mxu0 0
        %2116 = vmatprep.subr.bf16.mxu0 0
        %2117 = vmatpush2.bf16.msra.mxu0 0
        %2118 = vmatprep.subr.bf16.mxu0 0
        %2119 = vmatpush2.bf16.msra.mxu0 0
        %2120 = vmatprep.subr.bf16.mxu0 0
        %2121 = vmatpush2.bf16.msra.mxu0 0
        %2122 = vmatprep.subr.bf16.mxu0 0
        %2123 = vmatpush2.bf16.msra.mxu0 0
        %2124 = vmatprep.subr.bf16.mxu0 0
        %2125 = vmatpush2.bf16.msra.mxu0 0
        %2126 = vmatprep.subr.bf16.mxu0 0
        %2127 = vmatpush2.bf16.msra.mxu0 0
        %2128 = vmatprep.subr.bf16.mxu0 0
        %2129 = vmatpush2.bf16.msra.mxu0 0
        %2130 = vmatprep.mubr.bf16.mxu0 0
        %2131 = vmatmul.mubr.bf16.gmra.mxu0 %v2093
        %v2132 = vpop.f32.mrf.mxu0
        %v2133 = vadd.f32 0.0, %v2132
        %v2134 = vpop.f32.mrf.mxu0
        %v2135 = vpop.f32.mrf.mxu0
        %v2136 = vadd.f32 0.0, %v2135
        %v2137 = vpop.f32.mrf.mxu0
        %2138 = vmatprep.mubr.bf16.mxu0 0
        %2139 = vmatmul.mubr.bf16.gmra.mxu0 %v2096
        %v2140 = vpop.f32.mrf.mxu0
        %v2141 = vadd.f32 0.0, %v2140
        %v2142 = vpop.f32.mrf.mxu0
        %v2143 = vpop.f32.mrf.mxu0
        %v2144 = vadd.f32 0.0, %v2143
        %v2145 = vpop.f32.mrf.mxu0
        %2146 = vdwg.mxu0
        %v2147 = vmax.f32 %v1885, %v2133
        %v2148 = vmax.f32 %v1886, %v2136
        %v2149 = vmax.f32 %v1887, %v2141
        %v2150 = vmax.f32 %v1888, %v2144
        %v2151 = vsel %vm1973, 1e+30, %v1889
        %v2152 = vsel %vm1974, 1e+30, %v1890
        %v2153 = vsel %vm1975, 1e+30, %v1891
        %v2154 = vsel %vm1976, 1e+30, %v1892
        %v2155 = vsel %vm1065, %v2151, inf
        %2156 = vmin.xlane.f32.xlu0 %v2155
        %v2157 = vpop.xlane.xlu0 %2156
        %v2158 = vsel %vm1065, %v2152, inf
        %2159 = vmin.xlane.f32.xlu0 %v2158
        %v2160 = vpop.xlane.xlu0 %2159
        %v2161 = vsel %vm1065, %v2153, inf
        %2162 = vmin.xlane.f32.xlu0 %v2161
        %v2163 = vpop.xlane.xlu0 %2162
        %v2164 = vsel %vm1065, %v2154, inf
        %2165 = vmin.xlane.f32.xlu0 %v2164
        %v2166 = vpop.xlane.xlu0 %2165
        %vm2167 = vcmp.le.f32.partialorder %v2151, %v2157
        %vm2168 = vcmp.le.f32.partialorder %v2152, %v2160
        %vm2169 = vcmp.le.f32.partialorder %v2153, %v2163
        %vm2170 = vcmp.le.f32.partialorder %v2154, %v2166
        %v2171 = vsel %vm2167, %v1064, 32
        %v2172 = vsel %vm2168, %v1064, 32
        %v2173 = vsel %vm2169, %v1064, 32
        %v2174 = vsel %vm2170, %v1064, 32
        %v2175 = vsel %vm1065, %v2171, 2147483647
        %v2176 = vand.u32 %v2175, 65535
        %v2177 = vshra.s32 %v2175, 16
        %v2178 = vcvt.s32.f32 %v2176
        %v2179 = vcvt.s32.f32 %v2177
        %2180 = vmin.xlane.f32.xlu0 %v2179
        %v2181 = vpop.xlane.xlu0 %2180
        %vm2182 = vcmp.eq.f32.partialorder %v2179, %v2181
        %v2183 = vsel %vm2182, %v2178, inf
        %2184 = vmin.xlane.f32.xlu0 %v2183
        %v2185 = vpop.xlane.xlu0 %2184
        %v2186 = vcvt.f32.s32 %v2185
        %v2187 = vcvt.f32.s32 %v2181
        %v2188 = vshll.u32 %v2187, 16
        %v2189 = vadd.s32 %v2188, %v2186
        %v2190 = vsel %vm1065, %v2172, 2147483647
        %v2191 = vand.u32 %v2190, 65535
        %v2192 = vshra.s32 %v2190, 16
        %v2193 = vcvt.s32.f32 %v2191
        %v2194 = vcvt.s32.f32 %v2192
        %2195 = vmin.xlane.f32.xlu0 %v2194
        %v2196 = vpop.xlane.xlu0 %2195
        %vm2197 = vcmp.eq.f32.partialorder %v2194, %v2196
        %v2198 = vsel %vm2197, %v2193, inf
        %2199 = vmin.xlane.f32.xlu0 %v2198
        %v2200 = vpop.xlane.xlu0 %2199
        %v2201 = vcvt.f32.s32 %v2200
        %v2202 = vcvt.f32.s32 %v2196
        %v2203 = vshll.u32 %v2202, 16
        %v2204 = vadd.s32 %v2203, %v2201
        %v2205 = vsel %vm1065, %v2173, 2147483647
        %v2206 = vand.u32 %v2205, 65535
        %v2207 = vshra.s32 %v2205, 16
        %v2208 = vcvt.s32.f32 %v2206
        %v2209 = vcvt.s32.f32 %v2207
        %2210 = vmin.xlane.f32.xlu0 %v2209
        %v2211 = vpop.xlane.xlu0 %2210
        %vm2212 = vcmp.eq.f32.partialorder %v2209, %v2211
        %v2213 = vsel %vm2212, %v2208, inf
        %2214 = vmin.xlane.f32.xlu0 %v2213
        %v2215 = vpop.xlane.xlu0 %2214
        %v2216 = vcvt.f32.s32 %v2215
        %v2217 = vcvt.f32.s32 %v2211
        %v2218 = vshll.u32 %v2217, 16
        %v2219 = vadd.s32 %v2218, %v2216
        %v2220 = vsel %vm1065, %v2174, 2147483647
        %v2221 = vand.u32 %v2220, 65535
        %v2222 = vshra.s32 %v2220, 16
        %v2223 = vcvt.s32.f32 %v2221
        %v2224 = vcvt.s32.f32 %v2222
        %2225 = vmin.xlane.f32.xlu0 %v2224
        %v2226 = vpop.xlane.xlu0 %2225
        %vm2227 = vcmp.eq.f32.partialorder %v2224, %v2226
        %v2228 = vsel %vm2227, %v2223, inf
        %2229 = vmin.xlane.f32.xlu0 %v2228
        %v2230 = vpop.xlane.xlu0 %2229
        %v2231 = vcvt.f32.s32 %v2230
        %v2232 = vcvt.f32.s32 %v2226
        %v2233 = vshll.u32 %v2232, 16
        %v2234 = vadd.s32 %v2233, %v2231
        %vm2235 = vcmp.eq.s32.totalorder %v1064, %v2189
        %vm2236 = vcmp.eq.s32.totalorder %v1064, %v2204
        %vm2237 = vcmp.eq.s32.totalorder %v1064, %v2219
        %vm2238 = vcmp.eq.s32.totalorder %v1064, %v2234
        %v2239 = vsel %vm2235, 1, 0
        %v2240 = vsel %vm2236, 1, 0
        %v2241 = vsel %vm2237, 1, 0
        %v2242 = vsel %vm2238, 1, 0
        %v2243 = vcvt.s32.f32 %v2239
        %v2244 = vcvt.s32.f32 %v2240
        %v2245 = vcvt.s32.f32 %v2241
        %v2246 = vcvt.s32.f32 %v2242
        %v2248 = vsel %vm1065, %v2243, 0
        %v2251 = vsel %vm1065, %v2244, 0
        %v2254 = vsel %vm1065, %v2245, 0
        %v2257 = vsel %vm1065, %v2246, 0
        %2259 = vmatprep.subr.mxu0 0.0
        %2260 = vmatpush1.msra.mxu0 0.0
        %2261 = vmatprep.subr.mxu0 0.0
        %2262 = vmatpush1.msra.mxu0 0.0
        %2263 = vmatprep.subr.mxu0 0.0
        %2264 = vmatpush1.msra.mxu0 0.0
        %2265 = vmatprep.subr.mxu0 0.0
        %2266 = vmatpush1.msra.mxu0 0.0
        %2267 = vmatprep.subr.mxu0 0.0
        %2268 = vmatpush1.msra.mxu0 0.0
        %2269 = vmatprep.subr.mxu0 0.0
        %2270 = vmatpush1.msra.mxu0 0.0
        %2271 = vmatprep.subr.mxu0 0.0
        %2272 = vmatpush1.msra.mxu0 0.0
        %2273 = vmatprep.subr.mxu0 0.0
        %2274 = vmatpush1.msra.mxu0 0.0
        %2275 = vmatprep.subr.mxu0 0.0
        %2276 = vmatpush1.msra.mxu0 0.0
        %2277 = vmatprep.subr.mxu0 0.0
        %2278 = vmatpush1.msra.mxu0 0.0
        %2279 = vmatprep.subr.mxu0 0.0
        %2280 = vmatpush1.msra.mxu0 0.0
        %2281 = vmatprep.subr.mxu0 0.0
        %2282 = vmatpush1.msra.mxu0 0.0
        %2283 = vmatprep.subr.mxu0 0.0
        %2284 = vmatpush1.msra.mxu0 %v1169
        %2285 = vmatprep.subr.mxu0 0.0
        %2286 = vmatpush1.msra.mxu0 %v1167
        %2287 = vmatprep.subr.mxu0 0.0
        %2288 = vmatpush1.msra.mxu0 %v1165
        %2289 = vmatprep.subr.mxu0 0.0
        %2290 = vmatpush1.msra.mxu0 %v1163
        %2291 = vmatprep.subr.mxu0 0.0
        %2292 = vmatpush2.msra.mxu0 0.0
        %2293 = vmatprep.subr.mxu0 0.0
        %2294 = vmatpush2.msra.mxu0 0.0
        %2295 = vmatprep.subr.mxu0 0.0
        %2296 = vmatpush2.msra.mxu0 0.0
        %2297 = vmatprep.subr.mxu0 0.0
        %2298 = vmatpush2.msra.mxu0 0.0
        %2299 = vmatprep.subr.mxu0 0.0
        %2300 = vmatpush2.msra.mxu0 0.0
        %2301 = vmatprep.subr.mxu0 0.0
        %2302 = vmatpush2.msra.mxu0 0.0
        %2303 = vmatprep.subr.mxu0 0.0
        %2304 = vmatpush2.msra.mxu0 0.0
        %2305 = vmatprep.subr.mxu0 0.0
        %2306 = vmatpush2.msra.mxu0 0.0
        %2307 = vmatprep.subr.mxu0 0.0
        %2308 = vmatpush2.msra.mxu0 0.0
        %2309 = vmatprep.subr.mxu0 0.0
        %2310 = vmatpush2.msra.mxu0 0.0
        %2311 = vmatprep.subr.mxu0 0.0
        %2312 = vmatpush2.msra.mxu0 0.0
        %2313 = vmatprep.subr.mxu0 0.0
        %2314 = vmatpush2.msra.mxu0 0.0
        %2315 = vmatprep.subr.mxu0 0.0
        %2316 = vmatpush2.msra.mxu0 0.0
        %2317 = vmatprep.subr.mxu0 0.0
        %2318 = vmatpush2.msra.mxu0 0.0
        %2319 = vmatprep.subr.mxu0 0.0
        %2320 = vmatpush2.msra.mxu0 0.0
        %2321 = vmatprep.subr.mxu0 0.0
        %2322 = vmatpush2.msra.mxu0 0.0
        %2323 = vmatprep.mubr.f32.mxu0 0.0
        %2324 = vmatmul.mubr.f32.gmra.mxu0 %v2248
        %v2325 = vpop.f32.mrf.mxu0
        %v2326 = vadd.f32 0.0, %v2325
        %v2327 = vpop.f32.mrf.mxu0
        %2328 = vmatprep.mubr.f32.mxu0 0.0
        %2329 = vmatmul.mubr.f32.gmra.mxu0 %v2251
        %v2330 = vpop.f32.mrf.mxu0
        %v2331 = vadd.f32 0.0, %v2330
        %v2332 = vpop.f32.mrf.mxu0
        %2333 = vmatprep.mubr.f32.mxu0 0.0
        %2334 = vmatmul.mubr.f32.gmra.mxu0 %v2254
        %v2335 = vpop.f32.mrf.mxu0
        %v2336 = vadd.f32 0.0, %v2335
        %v2337 = vpop.f32.mrf.mxu0
        %2338 = vmatprep.mubr.f32.mxu0 0.0
        %2339 = vmatmul.mubr.f32.gmra.mxu0 %v2257
        %v2340 = vpop.f32.mrf.mxu0
        %v2341 = vadd.f32 0.0, %v2340
        %v2342 = vpop.f32.mrf.mxu0
        %2343 = vdwg.mxu0
        %v2344 = vadd.f32 %v1059, %v2326
        %v2345 = vadd.f32 %v1060, %v2331
        %v2346 = vadd.f32 %v1061, %v2336
        %v2347 = vadd.f32 %v1062, %v2341
        %v2348 = vmax.f32 %v2344, 0.0
        %v2349 = vmax.f32 %v2345, 0.0
        %v2350 = vmax.f32 %v2346, 0.0
        %v2351 = vmax.f32 %v2347, 0.0
        %v2352 = vpack.c.bf16 %v2349, %v2348
        %v2353 = vpack.c.bf16 %v2351, %v2350
        %v2355 = vsel %vm1305, %v2352, 0
        %v2358 = vsel %vm1305, %v2353, 0
        %2360 = vmatprep.subr.bf16.mxu0 0
        %2361 = vmatpush1.bf16.msra.mxu0 0
        %2362 = vmatprep.subr.bf16.mxu0 0
        %2363 = vmatpush1.bf16.msra.mxu0 0
        %2364 = vmatprep.subr.bf16.mxu0 0
        %2365 = vmatpush1.bf16.msra.mxu0 0
        %2366 = vmatprep.subr.bf16.mxu0 0
        %2367 = vmatpush1.bf16.msra.mxu0 0
        %2368 = vmatprep.subr.bf16.mxu0 0
        %2369 = vmatpush1.bf16.msra.mxu0 %v1300
        %2370 = vmatprep.subr.bf16.mxu0 0
        %2371 = vmatpush1.bf16.msra.mxu0 %v1299
        %2372 = vmatprep.subr.bf16.mxu0 0
        %2373 = vmatpush1.bf16.msra.mxu0 %v1298
        %2374 = vmatprep.subr.bf16.mxu0 0
        %2375 = vmatpush1.bf16.msra.mxu0 %v1297
        %2376 = vmatprep.subr.bf16.mxu0 0
        %2377 = vmatpush2.bf16.msra.mxu0 0
        %2378 = vmatprep.subr.bf16.mxu0 0
        %2379 = vmatpush2.bf16.msra.mxu0 0
        %2380 = vmatprep.subr.bf16.mxu0 0
        %2381 = vmatpush2.bf16.msra.mxu0 0
        %2382 = vmatprep.subr.bf16.mxu0 0
        %2383 = vmatpush2.bf16.msra.mxu0 0
        %2384 = vmatprep.subr.bf16.mxu0 0
        %2385 = vmatpush2.bf16.msra.mxu0 0
        %2386 = vmatprep.subr.bf16.mxu0 0
        %2387 = vmatpush2.bf16.msra.mxu0 0
        %2388 = vmatprep.subr.bf16.mxu0 0
        %2389 = vmatpush2.bf16.msra.mxu0 0
        %2390 = vmatprep.subr.bf16.mxu0 0
        %2391 = vmatpush2.bf16.msra.mxu0 0
        %2392 = vmatprep.mubr.bf16.mxu0 0
        %2393 = vmatmul.mubr.bf16.gmra.mxu0 %v2355
        %v2394 = vpop.f32.mrf.mxu0
        %v2395 = vadd.f32 0.0, %v2394
        %v2396 = vpop.f32.mrf.mxu0
        %v2397 = vpop.f32.mrf.mxu0
        %v2398 = vadd.f32 0.0, %v2397
        %v2399 = vpop.f32.mrf.mxu0
        %2400 = vmatprep.mubr.bf16.mxu0 0
        %2401 = vmatmul.mubr.bf16.gmra.mxu0 %v2358
        %v2402 = vpop.f32.mrf.mxu0
        %v2403 = vadd.f32 0.0, %v2402
        %v2404 = vpop.f32.mrf.mxu0
        %v2405 = vpop.f32.mrf.mxu0
        %v2406 = vadd.f32 0.0, %v2405
        %v2407 = vpop.f32.mrf.mxu0
        %2408 = vdwg.mxu0
        %v2409 = vmax.f32 %v2147, %v2395
        %v2410 = vmax.f32 %v2148, %v2398
        %v2411 = vmax.f32 %v2149, %v2403
        %v2412 = vmax.f32 %v2150, %v2406
        %v2413 = vsel %vm2235, 1e+30, %v2151
        %v2414 = vsel %vm2236, 1e+30, %v2152
        %v2415 = vsel %vm2237, 1e+30, %v2153
        %v2416 = vsel %vm2238, 1e+30, %v2154
        %v2417 = vsel %vm1065, %v2413, inf
        %2418 = vmin.xlane.f32.xlu0 %v2417
        %v2419 = vpop.xlane.xlu0 %2418
        %v2420 = vsel %vm1065, %v2414, inf
        %2421 = vmin.xlane.f32.xlu0 %v2420
        %v2422 = vpop.xlane.xlu0 %2421
        %v2423 = vsel %vm1065, %v2415, inf
        %2424 = vmin.xlane.f32.xlu0 %v2423
        %v2425 = vpop.xlane.xlu0 %2424
        %v2426 = vsel %vm1065, %v2416, inf
        %2427 = vmin.xlane.f32.xlu0 %v2426
        %v2428 = vpop.xlane.xlu0 %2427
        %vm2429 = vcmp.le.f32.partialorder %v2413, %v2419
        %vm2430 = vcmp.le.f32.partialorder %v2414, %v2422
        %vm2431 = vcmp.le.f32.partialorder %v2415, %v2425
        %vm2432 = vcmp.le.f32.partialorder %v2416, %v2428
        %v2433 = vsel %vm2429, %v1064, 32
        %v2434 = vsel %vm2430, %v1064, 32
        %v2435 = vsel %vm2431, %v1064, 32
        %v2436 = vsel %vm2432, %v1064, 32
        %v2437 = vsel %vm1065, %v2433, 2147483647
        %v2438 = vand.u32 %v2437, 65535
        %v2439 = vshra.s32 %v2437, 16
        %v2440 = vcvt.s32.f32 %v2438
        %v2441 = vcvt.s32.f32 %v2439
        %2442 = vmin.xlane.f32.xlu0 %v2441
        %v2443 = vpop.xlane.xlu0 %2442
        %vm2444 = vcmp.eq.f32.partialorder %v2441, %v2443
        %v2445 = vsel %vm2444, %v2440, inf
        %2446 = vmin.xlane.f32.xlu0 %v2445
        %v2447 = vpop.xlane.xlu0 %2446
        %v2448 = vcvt.f32.s32 %v2447
        %v2449 = vcvt.f32.s32 %v2443
        %v2450 = vshll.u32 %v2449, 16
        %v2451 = vadd.s32 %v2450, %v2448
        %v2452 = vsel %vm1065, %v2434, 2147483647
        %v2453 = vand.u32 %v2452, 65535
        %v2454 = vshra.s32 %v2452, 16
        %v2455 = vcvt.s32.f32 %v2453
        %v2456 = vcvt.s32.f32 %v2454
        %2457 = vmin.xlane.f32.xlu0 %v2456
        %v2458 = vpop.xlane.xlu0 %2457
        %vm2459 = vcmp.eq.f32.partialorder %v2456, %v2458
        %v2460 = vsel %vm2459, %v2455, inf
        %2461 = vmin.xlane.f32.xlu0 %v2460
        %v2462 = vpop.xlane.xlu0 %2461
        %v2463 = vcvt.f32.s32 %v2462
        %v2464 = vcvt.f32.s32 %v2458
        %v2465 = vshll.u32 %v2464, 16
        %v2466 = vadd.s32 %v2465, %v2463
        %v2467 = vsel %vm1065, %v2435, 2147483647
        %v2468 = vand.u32 %v2467, 65535
        %v2469 = vshra.s32 %v2467, 16
        %v2470 = vcvt.s32.f32 %v2468
        %v2471 = vcvt.s32.f32 %v2469
        %2472 = vmin.xlane.f32.xlu0 %v2471
        %v2473 = vpop.xlane.xlu0 %2472
        %vm2474 = vcmp.eq.f32.partialorder %v2471, %v2473
        %v2475 = vsel %vm2474, %v2470, inf
        %2476 = vmin.xlane.f32.xlu0 %v2475
        %v2477 = vpop.xlane.xlu0 %2476
        %v2478 = vcvt.f32.s32 %v2477
        %v2479 = vcvt.f32.s32 %v2473
        %v2480 = vshll.u32 %v2479, 16
        %v2481 = vadd.s32 %v2480, %v2478
        %v2482 = vsel %vm1065, %v2436, 2147483647
        %v2483 = vand.u32 %v2482, 65535
        %v2484 = vshra.s32 %v2482, 16
        %v2485 = vcvt.s32.f32 %v2483
        %v2486 = vcvt.s32.f32 %v2484
        %2487 = vmin.xlane.f32.xlu0 %v2486
        %v2488 = vpop.xlane.xlu0 %2487
        %vm2489 = vcmp.eq.f32.partialorder %v2486, %v2488
        %v2490 = vsel %vm2489, %v2485, inf
        %2491 = vmin.xlane.f32.xlu0 %v2490
        %v2492 = vpop.xlane.xlu0 %2491
        %v2493 = vcvt.f32.s32 %v2492
        %v2494 = vcvt.f32.s32 %v2488
        %v2495 = vshll.u32 %v2494, 16
        %v2496 = vadd.s32 %v2495, %v2493
        %vm2497 = vcmp.eq.s32.totalorder %v1064, %v2451
        %vm2498 = vcmp.eq.s32.totalorder %v1064, %v2466
        %vm2499 = vcmp.eq.s32.totalorder %v1064, %v2481
        %vm2500 = vcmp.eq.s32.totalorder %v1064, %v2496
        %v2501 = vsel %vm2497, 1, 0
        %v2502 = vsel %vm2498, 1, 0
        %v2503 = vsel %vm2499, 1, 0
        %v2504 = vsel %vm2500, 1, 0
        %v2505 = vcvt.s32.f32 %v2501
        %v2506 = vcvt.s32.f32 %v2502
        %v2507 = vcvt.s32.f32 %v2503
        %v2508 = vcvt.s32.f32 %v2504
        %v2510 = vsel %vm1065, %v2505, 0
        %v2513 = vsel %vm1065, %v2506, 0
        %v2516 = vsel %vm1065, %v2507, 0
        %v2519 = vsel %vm1065, %v2508, 0
        %2521 = vmatprep.subr.mxu0 0.0
        %2522 = vmatpush1.msra.mxu0 0.0
        %2523 = vmatprep.subr.mxu0 0.0
        %2524 = vmatpush1.msra.mxu0 0.0
        %2525 = vmatprep.subr.mxu0 0.0
        %2526 = vmatpush1.msra.mxu0 0.0
        %2527 = vmatprep.subr.mxu0 0.0
        %2528 = vmatpush1.msra.mxu0 0.0
        %2529 = vmatprep.subr.mxu0 0.0
        %2530 = vmatpush1.msra.mxu0 0.0
        %2531 = vmatprep.subr.mxu0 0.0
        %2532 = vmatpush1.msra.mxu0 0.0
        %2533 = vmatprep.subr.mxu0 0.0
        %2534 = vmatpush1.msra.mxu0 0.0
        %2535 = vmatprep.subr.mxu0 0.0
        %2536 = vmatpush1.msra.mxu0 0.0
        %2537 = vmatprep.subr.mxu0 0.0
        %2538 = vmatpush1.msra.mxu0 0.0
        %2539 = vmatprep.subr.mxu0 0.0
        %2540 = vmatpush1.msra.mxu0 0.0
        %2541 = vmatprep.subr.mxu0 0.0
        %2542 = vmatpush1.msra.mxu0 0.0
        %2543 = vmatprep.subr.mxu0 0.0
        %2544 = vmatpush1.msra.mxu0 0.0
        %2545 = vmatprep.subr.mxu0 0.0
        %2546 = vmatpush1.msra.mxu0 %v1169
        %2547 = vmatprep.subr.mxu0 0.0
        %2548 = vmatpush1.msra.mxu0 %v1167
        %2549 = vmatprep.subr.mxu0 0.0
        %2550 = vmatpush1.msra.mxu0 %v1165
        %2551 = vmatprep.subr.mxu0 0.0
        %2552 = vmatpush1.msra.mxu0 %v1163
        %2553 = vmatprep.subr.mxu0 0.0
        %2554 = vmatpush2.msra.mxu0 0.0
        %2555 = vmatprep.subr.mxu0 0.0
        %2556 = vmatpush2.msra.mxu0 0.0
        %2557 = vmatprep.subr.mxu0 0.0
        %2558 = vmatpush2.msra.mxu0 0.0
        %2559 = vmatprep.subr.mxu0 0.0
        %2560 = vmatpush2.msra.mxu0 0.0
        %2561 = vmatprep.subr.mxu0 0.0
        %2562 = vmatpush2.msra.mxu0 0.0
        %2563 = vmatprep.subr.mxu0 0.0
        %2564 = vmatpush2.msra.mxu0 0.0
        %2565 = vmatprep.subr.mxu0 0.0
        %2566 = vmatpush2.msra.mxu0 0.0
        %2567 = vmatprep.subr.mxu0 0.0
        %2568 = vmatpush2.msra.mxu0 0.0
        %2569 = vmatprep.subr.mxu0 0.0
        %2570 = vmatpush2.msra.mxu0 0.0
        %2571 = vmatprep.subr.mxu0 0.0
        %2572 = vmatpush2.msra.mxu0 0.0
        %2573 = vmatprep.subr.mxu0 0.0
        %2574 = vmatpush2.msra.mxu0 0.0
        %2575 = vmatprep.subr.mxu0 0.0
        %2576 = vmatpush2.msra.mxu0 0.0
        %2577 = vmatprep.subr.mxu0 0.0
        %2578 = vmatpush2.msra.mxu0 0.0
        %2579 = vmatprep.subr.mxu0 0.0
        %2580 = vmatpush2.msra.mxu0 0.0
        %2581 = vmatprep.subr.mxu0 0.0
        %2582 = vmatpush2.msra.mxu0 0.0
        %2583 = vmatprep.subr.mxu0 0.0
        %2584 = vmatpush2.msra.mxu0 0.0
        %2585 = vmatprep.mubr.f32.mxu0 0.0
        %2586 = vmatmul.mubr.f32.gmra.mxu0 %v2510
        %v2587 = vpop.f32.mrf.mxu0
        %v2588 = vadd.f32 0.0, %v2587
        %v2589 = vpop.f32.mrf.mxu0
        %2590 = vmatprep.mubr.f32.mxu0 0.0
        %2591 = vmatmul.mubr.f32.gmra.mxu0 %v2513
        %v2592 = vpop.f32.mrf.mxu0
        %v2593 = vadd.f32 0.0, %v2592
        %v2594 = vpop.f32.mrf.mxu0
        %2595 = vmatprep.mubr.f32.mxu0 0.0
        %2596 = vmatmul.mubr.f32.gmra.mxu0 %v2516
        %v2597 = vpop.f32.mrf.mxu0
        %v2598 = vadd.f32 0.0, %v2597
        %v2599 = vpop.f32.mrf.mxu0
        %2600 = vmatprep.mubr.f32.mxu0 0.0
        %2601 = vmatmul.mubr.f32.gmra.mxu0 %v2519
        %v2602 = vpop.f32.mrf.mxu0
        %v2603 = vadd.f32 0.0, %v2602
        %v2604 = vpop.f32.mrf.mxu0
        %2605 = vdwg.mxu0
        %v2606 = vadd.f32 %v1059, %v2588
        %v2607 = vadd.f32 %v1060, %v2593
        %v2608 = vadd.f32 %v1061, %v2598
        %v2609 = vadd.f32 %v1062, %v2603
        %v2610 = vmax.f32 %v2606, 0.0
        %v2611 = vmax.f32 %v2607, 0.0
        %v2612 = vmax.f32 %v2608, 0.0
        %v2613 = vmax.f32 %v2609, 0.0
        %v2614 = vpack.c.bf16 %v2611, %v2610
        %v2615 = vpack.c.bf16 %v2613, %v2612
        %v2617 = vsel %vm1305, %v2614, 0
        %v2620 = vsel %vm1305, %v2615, 0
        %2622 = vmatprep.subr.bf16.mxu0 0
        %2623 = vmatpush1.bf16.msra.mxu0 0
        %2624 = vmatprep.subr.bf16.mxu0 0
        %2625 = vmatpush1.bf16.msra.mxu0 0
        %2626 = vmatprep.subr.bf16.mxu0 0
        %2627 = vmatpush1.bf16.msra.mxu0 0
        %2628 = vmatprep.subr.bf16.mxu0 0
        %2629 = vmatpush1.bf16.msra.mxu0 0
        %2630 = vmatprep.subr.bf16.mxu0 0
        %2631 = vmatpush1.bf16.msra.mxu0 %v1300
        %2632 = vmatprep.subr.bf16.mxu0 0
        %2633 = vmatpush1.bf16.msra.mxu0 %v1299
        %2634 = vmatprep.subr.bf16.mxu0 0
        %2635 = vmatpush1.bf16.msra.mxu0 %v1298
        %2636 = vmatprep.subr.bf16.mxu0 0
        %2637 = vmatpush1.bf16.msra.mxu0 %v1297
        %2638 = vmatprep.subr.bf16.mxu0 0
        %2639 = vmatpush2.bf16.msra.mxu0 0
        %2640 = vmatprep.subr.bf16.mxu0 0
        %2641 = vmatpush2.bf16.msra.mxu0 0
        %2642 = vmatprep.subr.bf16.mxu0 0
        %2643 = vmatpush2.bf16.msra.mxu0 0
        %2644 = vmatprep.subr.bf16.mxu0 0
        %2645 = vmatpush2.bf16.msra.mxu0 0
        %2646 = vmatprep.subr.bf16.mxu0 0
        %2647 = vmatpush2.bf16.msra.mxu0 0
        %2648 = vmatprep.subr.bf16.mxu0 0
        %2649 = vmatpush2.bf16.msra.mxu0 0
        %2650 = vmatprep.subr.bf16.mxu0 0
        %2651 = vmatpush2.bf16.msra.mxu0 0
        %2652 = vmatprep.subr.bf16.mxu0 0
        %2653 = vmatpush2.bf16.msra.mxu0 0
        %2654 = vmatprep.mubr.bf16.mxu0 0
        %2655 = vmatmul.mubr.bf16.gmra.mxu0 %v2617
        %v2656 = vpop.f32.mrf.mxu0
        %v2657 = vadd.f32 0.0, %v2656
        %v2658 = vpop.f32.mrf.mxu0
        %v2659 = vpop.f32.mrf.mxu0
        %v2660 = vadd.f32 0.0, %v2659
        %v2661 = vpop.f32.mrf.mxu0
        %2662 = vmatprep.mubr.bf16.mxu0 0
        %2663 = vmatmul.mubr.bf16.gmra.mxu0 %v2620
        %v2664 = vpop.f32.mrf.mxu0
        %v2665 = vadd.f32 0.0, %v2664
        %v2666 = vpop.f32.mrf.mxu0
        %v2667 = vpop.f32.mrf.mxu0
        %v2668 = vadd.f32 0.0, %v2667
        %v2669 = vpop.f32.mrf.mxu0
        %2670 = vdwg.mxu0
        %v2671 = vmax.f32 %v2409, %v2657
        %v2672 = vmax.f32 %v2410, %v2660
        %v2673 = vmax.f32 %v2411, %v2665
        %v2674 = vmax.f32 %v2412, %v2668
        %v2675 = vsel %vm2497, 1e+30, %v2413
        %v2676 = vsel %vm2498, 1e+30, %v2414
        %v2677 = vsel %vm2499, 1e+30, %v2415
        %v2678 = vsel %vm2500, 1e+30, %v2416
        %v2679 = vsel %vm1065, %v2675, inf
        %2680 = vmin.xlane.f32.xlu0 %v2679
        %v2681 = vpop.xlane.xlu0 %2680
        %v2682 = vsel %vm1065, %v2676, inf
        %2683 = vmin.xlane.f32.xlu0 %v2682
        %v2684 = vpop.xlane.xlu0 %2683
        %v2685 = vsel %vm1065, %v2677, inf
        %2686 = vmin.xlane.f32.xlu0 %v2685
        %v2687 = vpop.xlane.xlu0 %2686
        %v2688 = vsel %vm1065, %v2678, inf
        %2689 = vmin.xlane.f32.xlu0 %v2688
        %v2690 = vpop.xlane.xlu0 %2689
        %vm2691 = vcmp.le.f32.partialorder %v2675, %v2681
        %vm2692 = vcmp.le.f32.partialorder %v2676, %v2684
        %vm2693 = vcmp.le.f32.partialorder %v2677, %v2687
        %vm2694 = vcmp.le.f32.partialorder %v2678, %v2690
        %v2695 = vsel %vm2691, %v1064, 32
        %v2696 = vsel %vm2692, %v1064, 32
        %v2697 = vsel %vm2693, %v1064, 32
        %v2698 = vsel %vm2694, %v1064, 32
        %v2699 = vsel %vm1065, %v2695, 2147483647
        %v2700 = vand.u32 %v2699, 65535
        %v2701 = vshra.s32 %v2699, 16
        %v2702 = vcvt.s32.f32 %v2700
        %v2703 = vcvt.s32.f32 %v2701
        %2704 = vmin.xlane.f32.xlu0 %v2703
        %v2705 = vpop.xlane.xlu0 %2704
        %vm2706 = vcmp.eq.f32.partialorder %v2703, %v2705
        %v2707 = vsel %vm2706, %v2702, inf
        %2708 = vmin.xlane.f32.xlu0 %v2707
        %v2709 = vpop.xlane.xlu0 %2708
        %v2710 = vcvt.f32.s32 %v2709
        %v2711 = vcvt.f32.s32 %v2705
        %v2712 = vshll.u32 %v2711, 16
        %v2713 = vadd.s32 %v2712, %v2710
        %v2714 = vsel %vm1065, %v2696, 2147483647
        %v2715 = vand.u32 %v2714, 65535
        %v2716 = vshra.s32 %v2714, 16
        %v2717 = vcvt.s32.f32 %v2715
        %v2718 = vcvt.s32.f32 %v2716
        %2719 = vmin.xlane.f32.xlu0 %v2718
        %v2720 = vpop.xlane.xlu0 %2719
        %vm2721 = vcmp.eq.f32.partialorder %v2718, %v2720
        %v2722 = vsel %vm2721, %v2717, inf
        %2723 = vmin.xlane.f32.xlu0 %v2722
        %v2724 = vpop.xlane.xlu0 %2723
        %v2725 = vcvt.f32.s32 %v2724
        %v2726 = vcvt.f32.s32 %v2720
        %v2727 = vshll.u32 %v2726, 16
        %v2728 = vadd.s32 %v2727, %v2725
        %v2729 = vsel %vm1065, %v2697, 2147483647
        %v2730 = vand.u32 %v2729, 65535
        %v2731 = vshra.s32 %v2729, 16
        %v2732 = vcvt.s32.f32 %v2730
        %v2733 = vcvt.s32.f32 %v2731
        %2734 = vmin.xlane.f32.xlu0 %v2733
        %v2735 = vpop.xlane.xlu0 %2734
        %vm2736 = vcmp.eq.f32.partialorder %v2733, %v2735
        %v2737 = vsel %vm2736, %v2732, inf
        %2738 = vmin.xlane.f32.xlu0 %v2737
        %v2739 = vpop.xlane.xlu0 %2738
        %v2740 = vcvt.f32.s32 %v2739
        %v2741 = vcvt.f32.s32 %v2735
        %v2742 = vshll.u32 %v2741, 16
        %v2743 = vadd.s32 %v2742, %v2740
        %v2744 = vsel %vm1065, %v2698, 2147483647
        %v2745 = vand.u32 %v2744, 65535
        %v2746 = vshra.s32 %v2744, 16
        %v2747 = vcvt.s32.f32 %v2745
        %v2748 = vcvt.s32.f32 %v2746
        %2749 = vmin.xlane.f32.xlu0 %v2748
        %v2750 = vpop.xlane.xlu0 %2749
        %vm2751 = vcmp.eq.f32.partialorder %v2748, %v2750
        %v2752 = vsel %vm2751, %v2747, inf
        %2753 = vmin.xlane.f32.xlu0 %v2752
        %v2754 = vpop.xlane.xlu0 %2753
        %v2755 = vcvt.f32.s32 %v2754
        %v2756 = vcvt.f32.s32 %v2750
        %v2757 = vshll.u32 %v2756, 16
        %v2758 = vadd.s32 %v2757, %v2755
        %vm2759 = vcmp.eq.s32.totalorder %v1064, %v2713
        %vm2760 = vcmp.eq.s32.totalorder %v1064, %v2728
        %vm2761 = vcmp.eq.s32.totalorder %v1064, %v2743
        %vm2762 = vcmp.eq.s32.totalorder %v1064, %v2758
        %v2763 = vsel %vm2759, 1, 0
        %v2764 = vsel %vm2760, 1, 0
        %v2765 = vsel %vm2761, 1, 0
        %v2766 = vsel %vm2762, 1, 0
        %v2767 = vcvt.s32.f32 %v2763
        %v2768 = vcvt.s32.f32 %v2764
        %v2769 = vcvt.s32.f32 %v2765
        %v2770 = vcvt.s32.f32 %v2766
        %v2772 = vsel %vm1065, %v2767, 0
        %v2775 = vsel %vm1065, %v2768, 0
        %v2778 = vsel %vm1065, %v2769, 0
        %v2781 = vsel %vm1065, %v2770, 0
        %2783 = vmatprep.subr.mxu0 0.0
        %2784 = vmatpush1.msra.mxu0 0.0
        %2785 = vmatprep.subr.mxu0 0.0
        %2786 = vmatpush1.msra.mxu0 0.0
        %2787 = vmatprep.subr.mxu0 0.0
        %2788 = vmatpush1.msra.mxu0 0.0
        %2789 = vmatprep.subr.mxu0 0.0
        %2790 = vmatpush1.msra.mxu0 0.0
        %2791 = vmatprep.subr.mxu0 0.0
        %2792 = vmatpush1.msra.mxu0 0.0
        %2793 = vmatprep.subr.mxu0 0.0
        %2794 = vmatpush1.msra.mxu0 0.0
        %2795 = vmatprep.subr.mxu0 0.0
        %2796 = vmatpush1.msra.mxu0 0.0
        %2797 = vmatprep.subr.mxu0 0.0
        %2798 = vmatpush1.msra.mxu0 0.0
        %2799 = vmatprep.subr.mxu0 0.0
        %2800 = vmatpush1.msra.mxu0 0.0
        %2801 = vmatprep.subr.mxu0 0.0
        %2802 = vmatpush1.msra.mxu0 0.0
        %2803 = vmatprep.subr.mxu0 0.0
        %2804 = vmatpush1.msra.mxu0 0.0
        %2805 = vmatprep.subr.mxu0 0.0
        %2806 = vmatpush1.msra.mxu0 0.0
        %2807 = vmatprep.subr.mxu0 0.0
        %2808 = vmatpush1.msra.mxu0 %v1169
        %2809 = vmatprep.subr.mxu0 0.0
        %2810 = vmatpush1.msra.mxu0 %v1167
        %2811 = vmatprep.subr.mxu0 0.0
        %2812 = vmatpush1.msra.mxu0 %v1165
        %2813 = vmatprep.subr.mxu0 0.0
        %2814 = vmatpush1.msra.mxu0 %v1163
        %2815 = vmatprep.subr.mxu0 0.0
        %2816 = vmatpush2.msra.mxu0 0.0
        %2817 = vmatprep.subr.mxu0 0.0
        %2818 = vmatpush2.msra.mxu0 0.0
        %2819 = vmatprep.subr.mxu0 0.0
        %2820 = vmatpush2.msra.mxu0 0.0
        %2821 = vmatprep.subr.mxu0 0.0
        %2822 = vmatpush2.msra.mxu0 0.0
        %2823 = vmatprep.subr.mxu0 0.0
        %2824 = vmatpush2.msra.mxu0 0.0
        %2825 = vmatprep.subr.mxu0 0.0
        %2826 = vmatpush2.msra.mxu0 0.0
        %2827 = vmatprep.subr.mxu0 0.0
        %2828 = vmatpush2.msra.mxu0 0.0
        %2829 = vmatprep.subr.mxu0 0.0
        %2830 = vmatpush2.msra.mxu0 0.0
        %2831 = vmatprep.subr.mxu0 0.0
        %2832 = vmatpush2.msra.mxu0 0.0
        %2833 = vmatprep.subr.mxu0 0.0
        %2834 = vmatpush2.msra.mxu0 0.0
        %2835 = vmatprep.subr.mxu0 0.0
        %2836 = vmatpush2.msra.mxu0 0.0
        %2837 = vmatprep.subr.mxu0 0.0
        %2838 = vmatpush2.msra.mxu0 0.0
        %2839 = vmatprep.subr.mxu0 0.0
        %2840 = vmatpush2.msra.mxu0 0.0
        %2841 = vmatprep.subr.mxu0 0.0
        %2842 = vmatpush2.msra.mxu0 0.0
        %2843 = vmatprep.subr.mxu0 0.0
        %2844 = vmatpush2.msra.mxu0 0.0
        %2845 = vmatprep.subr.mxu0 0.0
        %2846 = vmatpush2.msra.mxu0 0.0
        %2847 = vmatprep.mubr.f32.mxu0 0.0
        %2848 = vmatmul.mubr.f32.gmra.mxu0 %v2772
        %v2849 = vpop.f32.mrf.mxu0
        %v2850 = vadd.f32 0.0, %v2849
        %v2851 = vpop.f32.mrf.mxu0
        %2852 = vmatprep.mubr.f32.mxu0 0.0
        %2853 = vmatmul.mubr.f32.gmra.mxu0 %v2775
        %v2854 = vpop.f32.mrf.mxu0
        %v2855 = vadd.f32 0.0, %v2854
        %v2856 = vpop.f32.mrf.mxu0
        %2857 = vmatprep.mubr.f32.mxu0 0.0
        %2858 = vmatmul.mubr.f32.gmra.mxu0 %v2778
        %v2859 = vpop.f32.mrf.mxu0
        %v2860 = vadd.f32 0.0, %v2859
        %v2861 = vpop.f32.mrf.mxu0
        %2862 = vmatprep.mubr.f32.mxu0 0.0
        %2863 = vmatmul.mubr.f32.gmra.mxu0 %v2781
        %v2864 = vpop.f32.mrf.mxu0
        %v2865 = vadd.f32 0.0, %v2864
        %v2866 = vpop.f32.mrf.mxu0
        %2867 = vdwg.mxu0
        %v2868 = vadd.f32 %v1059, %v2850
        %v2869 = vadd.f32 %v1060, %v2855
        %v2870 = vadd.f32 %v1061, %v2860
        %v2871 = vadd.f32 %v1062, %v2865
        %v2872 = vmax.f32 %v2868, 0.0
        %v2873 = vmax.f32 %v2869, 0.0
        %v2874 = vmax.f32 %v2870, 0.0
        %v2875 = vmax.f32 %v2871, 0.0
        %v2876 = vpack.c.bf16 %v2873, %v2872
        %v2877 = vpack.c.bf16 %v2875, %v2874
        %v2879 = vsel %vm1305, %v2876, 0
        %v2882 = vsel %vm1305, %v2877, 0
        %2884 = vmatprep.subr.bf16.mxu0 0
        %2885 = vmatpush1.bf16.msra.mxu0 0
        %2886 = vmatprep.subr.bf16.mxu0 0
        %2887 = vmatpush1.bf16.msra.mxu0 0
        %2888 = vmatprep.subr.bf16.mxu0 0
        %2889 = vmatpush1.bf16.msra.mxu0 0
        %2890 = vmatprep.subr.bf16.mxu0 0
        %2891 = vmatpush1.bf16.msra.mxu0 0
        %2892 = vmatprep.subr.bf16.mxu0 0
        %2893 = vmatpush1.bf16.msra.mxu0 %v1300
        %2894 = vmatprep.subr.bf16.mxu0 0
        %2895 = vmatpush1.bf16.msra.mxu0 %v1299
        %2896 = vmatprep.subr.bf16.mxu0 0
        %2897 = vmatpush1.bf16.msra.mxu0 %v1298
        %2898 = vmatprep.subr.bf16.mxu0 0
        %2899 = vmatpush1.bf16.msra.mxu0 %v1297
        %2900 = vmatprep.subr.bf16.mxu0 0
        %2901 = vmatpush2.bf16.msra.mxu0 0
        %2902 = vmatprep.subr.bf16.mxu0 0
        %2903 = vmatpush2.bf16.msra.mxu0 0
        %2904 = vmatprep.subr.bf16.mxu0 0
        %2905 = vmatpush2.bf16.msra.mxu0 0
        %2906 = vmatprep.subr.bf16.mxu0 0
        %2907 = vmatpush2.bf16.msra.mxu0 0
        %2908 = vmatprep.subr.bf16.mxu0 0
        %2909 = vmatpush2.bf16.msra.mxu0 0
        %2910 = vmatprep.subr.bf16.mxu0 0
        %2911 = vmatpush2.bf16.msra.mxu0 0
        %2912 = vmatprep.subr.bf16.mxu0 0
        %2913 = vmatpush2.bf16.msra.mxu0 0
        %2914 = vmatprep.subr.bf16.mxu0 0
        %2915 = vmatpush2.bf16.msra.mxu0 0
        %2916 = vmatprep.mubr.bf16.mxu0 0
        %2917 = vmatmul.mubr.bf16.gmra.mxu0 %v2879
        %v2918 = vpop.f32.mrf.mxu0
        %v2919 = vadd.f32 0.0, %v2918
        %v2920 = vpop.f32.mrf.mxu0
        %v2921 = vpop.f32.mrf.mxu0
        %v2922 = vadd.f32 0.0, %v2921
        %v2923 = vpop.f32.mrf.mxu0
        %2924 = vmatprep.mubr.bf16.mxu0 0
        %2925 = vmatmul.mubr.bf16.gmra.mxu0 %v2882
        %v2926 = vpop.f32.mrf.mxu0
        %v2927 = vadd.f32 0.0, %v2926
        %v2928 = vpop.f32.mrf.mxu0
        %v2929 = vpop.f32.mrf.mxu0
        %v2930 = vadd.f32 0.0, %v2929
        %v2931 = vpop.f32.mrf.mxu0
        %2932 = vdwg.mxu0
        %v2933 = vmax.f32 %v2671, %v2919
        %v2934 = vmax.f32 %v2672, %v2922
        %v2935 = vmax.f32 %v2673, %v2927
        %v2936 = vmax.f32 %v2674, %v2930
        %v2937 = vsel %vm2759, 1e+30, %v2675
        %v2938 = vsel %vm2760, 1e+30, %v2676
        %v2939 = vsel %vm2761, 1e+30, %v2677
        %v2940 = vsel %vm2762, 1e+30, %v2678
        %v2941 = vsel %vm1065, %v2937, inf
        %2942 = vmin.xlane.f32.xlu0 %v2941
        %v2943 = vpop.xlane.xlu0 %2942
        %v2944 = vsel %vm1065, %v2938, inf
        %2945 = vmin.xlane.f32.xlu0 %v2944
        %v2946 = vpop.xlane.xlu0 %2945
        %v2947 = vsel %vm1065, %v2939, inf
        %2948 = vmin.xlane.f32.xlu0 %v2947
        %v2949 = vpop.xlane.xlu0 %2948
        %v2950 = vsel %vm1065, %v2940, inf
        %2951 = vmin.xlane.f32.xlu0 %v2950
        %v2952 = vpop.xlane.xlu0 %2951
        %vm2953 = vcmp.le.f32.partialorder %v2937, %v2943
        %vm2954 = vcmp.le.f32.partialorder %v2938, %v2946
        %vm2955 = vcmp.le.f32.partialorder %v2939, %v2949
        %vm2956 = vcmp.le.f32.partialorder %v2940, %v2952
        %v2957 = vsel %vm2953, %v1064, 32
        %v2958 = vsel %vm2954, %v1064, 32
        %v2959 = vsel %vm2955, %v1064, 32
        %v2960 = vsel %vm2956, %v1064, 32
        %v2961 = vsel %vm1065, %v2957, 2147483647
        %v2962 = vand.u32 %v2961, 65535
        %v2963 = vshra.s32 %v2961, 16
        %v2964 = vcvt.s32.f32 %v2962
        %v2965 = vcvt.s32.f32 %v2963
        %2966 = vmin.xlane.f32.xlu0 %v2965
        %v2967 = vpop.xlane.xlu0 %2966
        %vm2968 = vcmp.eq.f32.partialorder %v2965, %v2967
        %v2969 = vsel %vm2968, %v2964, inf
        %2970 = vmin.xlane.f32.xlu0 %v2969
        %v2971 = vpop.xlane.xlu0 %2970
        %v2972 = vcvt.f32.s32 %v2971
        %v2973 = vcvt.f32.s32 %v2967
        %v2974 = vshll.u32 %v2973, 16
        %v2975 = vadd.s32 %v2974, %v2972
        %v2976 = vsel %vm1065, %v2958, 2147483647
        %v2977 = vand.u32 %v2976, 65535
        %v2978 = vshra.s32 %v2976, 16
        %v2979 = vcvt.s32.f32 %v2977
        %v2980 = vcvt.s32.f32 %v2978
        %2981 = vmin.xlane.f32.xlu0 %v2980
        %v2982 = vpop.xlane.xlu0 %2981
        %vm2983 = vcmp.eq.f32.partialorder %v2980, %v2982
        %v2984 = vsel %vm2983, %v2979, inf
        %2985 = vmin.xlane.f32.xlu0 %v2984
        %v2986 = vpop.xlane.xlu0 %2985
        %v2987 = vcvt.f32.s32 %v2986
        %v2988 = vcvt.f32.s32 %v2982
        %v2989 = vshll.u32 %v2988, 16
        %v2990 = vadd.s32 %v2989, %v2987
        %v2991 = vsel %vm1065, %v2959, 2147483647
        %v2992 = vand.u32 %v2991, 65535
        %v2993 = vshra.s32 %v2991, 16
        %v2994 = vcvt.s32.f32 %v2992
        %v2995 = vcvt.s32.f32 %v2993
        %2996 = vmin.xlane.f32.xlu0 %v2995
        %v2997 = vpop.xlane.xlu0 %2996
        %vm2998 = vcmp.eq.f32.partialorder %v2995, %v2997
        %v2999 = vsel %vm2998, %v2994, inf
        %3000 = vmin.xlane.f32.xlu0 %v2999
        %v3001 = vpop.xlane.xlu0 %3000
        %v3002 = vcvt.f32.s32 %v3001
        %v3003 = vcvt.f32.s32 %v2997
        %v3004 = vshll.u32 %v3003, 16
        %v3005 = vadd.s32 %v3004, %v3002
        %v3006 = vsel %vm1065, %v2960, 2147483647
        %v3007 = vand.u32 %v3006, 65535
        %v3008 = vshra.s32 %v3006, 16
        %v3009 = vcvt.s32.f32 %v3007
        %v3010 = vcvt.s32.f32 %v3008
        %3011 = vmin.xlane.f32.xlu0 %v3010
        %v3012 = vpop.xlane.xlu0 %3011
        %vm3013 = vcmp.eq.f32.partialorder %v3010, %v3012
        %v3014 = vsel %vm3013, %v3009, inf
        %3015 = vmin.xlane.f32.xlu0 %v3014
        %v3016 = vpop.xlane.xlu0 %3015
        %v3017 = vcvt.f32.s32 %v3016
        %v3018 = vcvt.f32.s32 %v3012
        %v3019 = vshll.u32 %v3018, 16
        %v3020 = vadd.s32 %v3019, %v3017
        %vm3021 = vcmp.eq.s32.totalorder %v1064, %v2975
        %vm3022 = vcmp.eq.s32.totalorder %v1064, %v2990
        %vm3023 = vcmp.eq.s32.totalorder %v1064, %v3005
        %vm3024 = vcmp.eq.s32.totalorder %v1064, %v3020
        %v3025 = vsel %vm3021, 1, 0
        %v3026 = vsel %vm3022, 1, 0
        %v3027 = vsel %vm3023, 1, 0
        %v3028 = vsel %vm3024, 1, 0
        %v3029 = vcvt.s32.f32 %v3025
        %v3030 = vcvt.s32.f32 %v3026
        %v3031 = vcvt.s32.f32 %v3027
        %v3032 = vcvt.s32.f32 %v3028
        %v3034 = vsel %vm1065, %v3029, 0
        %v3037 = vsel %vm1065, %v3030, 0
        %v3040 = vsel %vm1065, %v3031, 0
        %v3043 = vsel %vm1065, %v3032, 0
        %3045 = vmatprep.subr.mxu0 0.0
        %3046 = vmatpush1.msra.mxu0 0.0
        %3047 = vmatprep.subr.mxu0 0.0
        %3048 = vmatpush1.msra.mxu0 0.0
        %3049 = vmatprep.subr.mxu0 0.0
        %3050 = vmatpush1.msra.mxu0 0.0
        %3051 = vmatprep.subr.mxu0 0.0
        %3052 = vmatpush1.msra.mxu0 0.0
        %3053 = vmatprep.subr.mxu0 0.0
        %3054 = vmatpush1.msra.mxu0 0.0
        %3055 = vmatprep.subr.mxu0 0.0
        %3056 = vmatpush1.msra.mxu0 0.0
        %3057 = vmatprep.subr.mxu0 0.0
        %3058 = vmatpush1.msra.mxu0 0.0
        %3059 = vmatprep.subr.mxu0 0.0
        %3060 = vmatpush1.msra.mxu0 0.0
        %3061 = vmatprep.subr.mxu0 0.0
        %3062 = vmatpush1.msra.mxu0 0.0
        %3063 = vmatprep.subr.mxu0 0.0
        %3064 = vmatpush1.msra.mxu0 0.0
        %3065 = vmatprep.subr.mxu0 0.0
        %3066 = vmatpush1.msra.mxu0 0.0
        %3067 = vmatprep.subr.mxu0 0.0
        %3068 = vmatpush1.msra.mxu0 0.0
        %3069 = vmatprep.subr.mxu0 0.0
        %3070 = vmatpush1.msra.mxu0 %v1169
        %3071 = vmatprep.subr.mxu0 0.0
        %3072 = vmatpush1.msra.mxu0 %v1167
        %3073 = vmatprep.subr.mxu0 0.0
        %3074 = vmatpush1.msra.mxu0 %v1165
        %3075 = vmatprep.subr.mxu0 0.0
        %3076 = vmatpush1.msra.mxu0 %v1163
        %3077 = vmatprep.subr.mxu0 0.0
        %3078 = vmatpush2.msra.mxu0 0.0
        %3079 = vmatprep.subr.mxu0 0.0
        %3080 = vmatpush2.msra.mxu0 0.0
        %3081 = vmatprep.subr.mxu0 0.0
        %3082 = vmatpush2.msra.mxu0 0.0
        %3083 = vmatprep.subr.mxu0 0.0
        %3084 = vmatpush2.msra.mxu0 0.0
        %3085 = vmatprep.subr.mxu0 0.0
        %3086 = vmatpush2.msra.mxu0 0.0
        %3087 = vmatprep.subr.mxu0 0.0
        %3088 = vmatpush2.msra.mxu0 0.0
        %3089 = vmatprep.subr.mxu0 0.0
        %3090 = vmatpush2.msra.mxu0 0.0
        %3091 = vmatprep.subr.mxu0 0.0
        %3092 = vmatpush2.msra.mxu0 0.0
        %3093 = vmatprep.subr.mxu0 0.0
        %3094 = vmatpush2.msra.mxu0 0.0
        %3095 = vmatprep.subr.mxu0 0.0
        %3096 = vmatpush2.msra.mxu0 0.0
        %3097 = vmatprep.subr.mxu0 0.0
        %3098 = vmatpush2.msra.mxu0 0.0
        %3099 = vmatprep.subr.mxu0 0.0
        %3100 = vmatpush2.msra.mxu0 0.0
        %3101 = vmatprep.subr.mxu0 0.0
        %3102 = vmatpush2.msra.mxu0 0.0
        %3103 = vmatprep.subr.mxu0 0.0
        %3104 = vmatpush2.msra.mxu0 0.0
        %3105 = vmatprep.subr.mxu0 0.0
        %3106 = vmatpush2.msra.mxu0 0.0
        %3107 = vmatprep.subr.mxu0 0.0
        %3108 = vmatpush2.msra.mxu0 0.0
        %3109 = vmatprep.mubr.f32.mxu0 0.0
        %3110 = vmatmul.mubr.f32.gmra.mxu0 %v3034
        %v3111 = vpop.f32.mrf.mxu0
        %v3112 = vadd.f32 0.0, %v3111
        %v3113 = vpop.f32.mrf.mxu0
        %3114 = vmatprep.mubr.f32.mxu0 0.0
        %3115 = vmatmul.mubr.f32.gmra.mxu0 %v3037
        %v3116 = vpop.f32.mrf.mxu0
        %v3117 = vadd.f32 0.0, %v3116
        %v3118 = vpop.f32.mrf.mxu0
        %3119 = vmatprep.mubr.f32.mxu0 0.0
        %3120 = vmatmul.mubr.f32.gmra.mxu0 %v3040
        %v3121 = vpop.f32.mrf.mxu0
        %v3122 = vadd.f32 0.0, %v3121
        %v3123 = vpop.f32.mrf.mxu0
        %3124 = vmatprep.mubr.f32.mxu0 0.0
        %3125 = vmatmul.mubr.f32.gmra.mxu0 %v3043
        %v3126 = vpop.f32.mrf.mxu0
        %v3127 = vadd.f32 0.0, %v3126
        %v3128 = vpop.f32.mrf.mxu0
        %3129 = vdwg.mxu0
        %v3130 = vadd.f32 %v1059, %v3112
        %v3131 = vadd.f32 %v1060, %v3117
        %v3132 = vadd.f32 %v1061, %v3122
        %v3133 = vadd.f32 %v1062, %v3127
        %v3134 = vmax.f32 %v3130, 0.0
        %v3135 = vmax.f32 %v3131, 0.0
        %v3136 = vmax.f32 %v3132, 0.0
        %v3137 = vmax.f32 %v3133, 0.0
        %v3138 = vpack.c.bf16 %v3135, %v3134
        %v3139 = vpack.c.bf16 %v3137, %v3136
        %v3141 = vsel %vm1305, %v3138, 0
        %v3144 = vsel %vm1305, %v3139, 0
        %3146 = vmatprep.subr.bf16.mxu0 0
        %3147 = vmatpush1.bf16.msra.mxu0 0
        %3148 = vmatprep.subr.bf16.mxu0 0
        %3149 = vmatpush1.bf16.msra.mxu0 0
        %3150 = vmatprep.subr.bf16.mxu0 0
        %3151 = vmatpush1.bf16.msra.mxu0 0
        %3152 = vmatprep.subr.bf16.mxu0 0
        %3153 = vmatpush1.bf16.msra.mxu0 0
        %3154 = vmatprep.subr.bf16.mxu0 0
        %3155 = vmatpush1.bf16.msra.mxu0 %v1300
        %3156 = vmatprep.subr.bf16.mxu0 0
        %3157 = vmatpush1.bf16.msra.mxu0 %v1299
        %3158 = vmatprep.subr.bf16.mxu0 0
        %3159 = vmatpush1.bf16.msra.mxu0 %v1298
        %3160 = vmatprep.subr.bf16.mxu0 0
        %3161 = vmatpush1.bf16.msra.mxu0 %v1297
        %3162 = vmatprep.subr.bf16.mxu0 0
        %3163 = vmatpush2.bf16.msra.mxu0 0
        %3164 = vmatprep.subr.bf16.mxu0 0
        %3165 = vmatpush2.bf16.msra.mxu0 0
        %3166 = vmatprep.subr.bf16.mxu0 0
        %3167 = vmatpush2.bf16.msra.mxu0 0
        %3168 = vmatprep.subr.bf16.mxu0 0
        %3169 = vmatpush2.bf16.msra.mxu0 0
        %3170 = vmatprep.subr.bf16.mxu0 0
        %3171 = vmatpush2.bf16.msra.mxu0 0
        %3172 = vmatprep.subr.bf16.mxu0 0
        %3173 = vmatpush2.bf16.msra.mxu0 0
        %3174 = vmatprep.subr.bf16.mxu0 0
        %3175 = vmatpush2.bf16.msra.mxu0 0
        %3176 = vmatprep.subr.bf16.mxu0 0
        %3177 = vmatpush2.bf16.msra.mxu0 0
        %3178 = vmatprep.mubr.bf16.mxu0 0
        %3179 = vmatmul.mubr.bf16.gmra.mxu0 %v3141
        %v3180 = vpop.f32.mrf.mxu0
        %v3181 = vadd.f32 0.0, %v3180
        %v3182 = vpop.f32.mrf.mxu0
        %v3183 = vpop.f32.mrf.mxu0
        %v3184 = vadd.f32 0.0, %v3183
        %v3185 = vpop.f32.mrf.mxu0
        %3186 = vmatprep.mubr.bf16.mxu0 0
        %3187 = vmatmul.mubr.bf16.gmra.mxu0 %v3144
        %v3188 = vpop.f32.mrf.mxu0
        %v3189 = vadd.f32 0.0, %v3188
        %v3190 = vpop.f32.mrf.mxu0
        %v3191 = vpop.f32.mrf.mxu0
        %v3192 = vadd.f32 0.0, %v3191
        %v3193 = vpop.f32.mrf.mxu0
        %3194 = vdwg.mxu0
        %v3195 = vmax.f32 %v2933, %v3181
        %v3196 = vmax.f32 %v2934, %v3184
        %v3197 = vmax.f32 %v2935, %v3189
        %v3198 = vmax.f32 %v2936, %v3192
        %v3200 = vlaneseq
        %v3201 = vshrl.u32 %v3200, 7
        %v3202 = vsub.s32 0, %v3201
        %v3203 = vrot.slane %v800, %v3202
        %v3205 = vadd.f32 %v3195, %v3203
        %v3206 = vadd.f32 %v3196, %v3203
        %v3207 = vadd.f32 %v3197, %v3203
        %v3208 = vadd.f32 %v3198, %v3203
        %v3209 = vmax.f32 %v3205, 0.0
        %v3210 = vmax.f32 %v3206, 0.0
        %v3211 = vmax.f32 %v3207, 0.0
        %v3212 = vmax.f32 %v3208, 0.0
        %v3214 = vlaneseq
        %v3215 = vshrl.u32 %v3214, 7
        %v3216 = vsub.s32 0, %v3215
        %v3217 = vrot.slane %v801, %v3216
        %v3219 = vadd.f32 %v3209, %v3217
        %v3220 = vadd.f32 %v3210, %v3217
        %v3221 = vadd.f32 %v3211, %v3217
        %v3222 = vadd.f32 %v3212, %v3217
        %v3223 = vld [vmem:[%s6] sm:$0xff]
        %v3224 = vld [vmem:[%s6 + $0x8] sm:$0xff]
        %v3225 = vld [vmem:[%s6 + $0x10] sm:$0xff]
        %v3226 = vld [vmem:[%s6 + $0x18] sm:$0xff]
        %v3227 = vld [vmem:[%s6 + $0x20] sm:$0xff]
        %v3228 = vld [vmem:[%s6 + $0x28] sm:$0xff]
        %v3229 = vld [vmem:[%s6 + $0x30] sm:$0xff]
        %v3230 = vld [vmem:[%s6 + $0x38] sm:$0xff]
        %v3231 = vld [vmem:[#allocation11] sm:$0x1]
        %v3232 = vld [vmem:[#allocation13] sm:$0xf]
        %v3233 = vld [vmem:[#allocation13 + $0x4] sm:$0xf]
        %v3234 = vld [vmem:[#allocation13 + $0x8] sm:$0xf]
        %v3235 = vld [vmem:[#allocation13 + $0xc] sm:$0xf]
        %v3236 = vld [vmem:[#allocation13 + $0x10] sm:$0xf]
        %v3237 = vld [vmem:[#allocation13 + $0x14] sm:$0xf]
        %v3238 = vld [vmem:[#allocation13 + $0x18] sm:$0xf]
        %v3239 = vld [vmem:[#allocation13 + $0x1c] sm:$0xf]
        %v3240 = vld [vmem:[#allocation14] sm:$0x1]
        %v3241 = vld [vmem:[#allocation16] sm:$0x1]
        %v3242 = vmul.f32 %v3219, %v3219
        %v3243 = vmul.f32 %v3220, %v3220
        %v3244 = vmul.f32 %v3221, %v3221
        %v3245 = vmul.f32 %v3222, %v3222
        %v3246 = vsel %vm1305, %v3242, 0.0
        %3247 = vadd.xlane.f32.xlu0 %v3246
        %v3248 = vpop.xlane.xlu0 %3247
        %v3249 = vsel %vm1305, %v3243, 0.0
        %3250 = vadd.xlane.f32.xlu0 %v3249
        %v3251 = vpop.xlane.xlu0 %3250
        %v3252 = vsel %vm1305, %v3244, 0.0
        %3253 = vadd.xlane.f32.xlu0 %v3252
        %v3254 = vpop.xlane.xlu0 %3253
        %v3255 = vsel %vm1305, %v3245, 0.0
        %3256 = vadd.xlane.f32.xlu0 %v3255
        %v3257 = vpop.xlane.xlu0 %3256
        %v3259 = vsel %vm1305, %v3219, 0
        %v3262 = vsel %vm1305, %v3220, 0
        %v3265 = vsel %vm1305, %v3221, 0
        %v3268 = vsel %vm1305, %v3222, 0
        %3270 = vmatprep.subr.mxu0 0.0
        %3271 = vmatpush1.xpose.msra.mxu0 0.0
        %3272 = vmatprep.subr.mxu0 0.0
        %3273 = vmatpush1.xpose.msra.mxu0 0.0
        %3274 = vmatprep.subr.mxu0 0.0
        %3275 = vmatpush1.xpose.msra.mxu0 0.0
        %3276 = vmatprep.subr.mxu0 0.0
        %3277 = vmatpush1.xpose.msra.mxu0 0.0
        %3278 = vmatprep.subr.mxu0 0.0
        %3279 = vmatpush1.xpose.msra.mxu0 0.0
        %3280 = vmatprep.subr.mxu0 0.0
        %3281 = vmatpush1.xpose.msra.mxu0 0.0
        %3282 = vmatprep.subr.mxu0 0.0
        %3283 = vmatpush1.xpose.msra.mxu0 0.0
        %3284 = vmatprep.subr.mxu0 0.0
        %3285 = vmatpush1.xpose.msra.mxu0 0.0
        %3286 = vmatprep.subr.mxu0 0.0
        %3287 = vmatpush1.xpose.msra.mxu0 0.0
        %3288 = vmatprep.subr.mxu0 0.0
        %3289 = vmatpush1.xpose.msra.mxu0 0.0
        %3290 = vmatprep.subr.mxu0 0.0
        %3291 = vmatpush1.xpose.msra.mxu0 0.0
        %3292 = vmatprep.subr.mxu0 0.0
        %3293 = vmatpush1.xpose.msra.mxu0 0.0
        %3294 = vmatprep.subr.mxu0 0.0
        %3295 = vmatpush1.xpose.msra.mxu0 %v3268
        %3296 = vmatprep.subr.mxu0 0.0
        %3297 = vmatpush1.xpose.msra.mxu0 %v3265
        %3298 = vmatprep.subr.mxu0 0.0
        %3299 = vmatpush1.xpose.msra.mxu0 %v3262
        %3300 = vmatprep.subr.mxu0 0.0
        %3301 = vmatpush1.xpose.msra.mxu0 %v3259
        %3302 = vmatprep.subr.mxu0 0.0
        %3303 = vmatpush2.xpose.msra.mxu0 0.0
        %3304 = vmatprep.subr.mxu0 0.0
        %3305 = vmatpush2.xpose.msra.mxu0 0.0
        %3306 = vmatprep.subr.mxu0 0.0
        %3307 = vmatpush2.xpose.msra.mxu0 0.0
        %3308 = vmatprep.subr.mxu0 0.0
        %3309 = vmatpush2.xpose.msra.mxu0 0.0
        %3310 = vmatprep.subr.mxu0 0.0
        %3311 = vmatpush2.xpose.msra.mxu0 0.0
        %3312 = vmatprep.subr.mxu0 0.0
        %3313 = vmatpush2.xpose.msra.mxu0 0.0
        %3314 = vmatprep.subr.mxu0 0.0
        %3315 = vmatpush2.xpose.msra.mxu0 0.0
        %3316 = vmatprep.subr.mxu0 0.0
        %3317 = vmatpush2.xpose.msra.mxu0 0.0
        %3318 = vmatprep.subr.mxu0 0.0
        %3319 = vmatpush2.xpose.msra.mxu0 0.0
        %3320 = vmatprep.subr.mxu0 0.0
        %3321 = vmatpush2.xpose.msra.mxu0 0.0
        %3322 = vmatprep.subr.mxu0 0.0
        %3323 = vmatpush2.xpose.msra.mxu0 0.0
        %3324 = vmatprep.subr.mxu0 0.0
        %3325 = vmatpush2.xpose.msra.mxu0 0.0
        %3326 = vmatprep.subr.mxu0 0.0
        %3327 = vmatpush2.xpose.msra.mxu0 0.0
        %3328 = vmatprep.subr.mxu0 0.0
        %3329 = vmatpush2.xpose.msra.mxu0 0.0
        %3330 = vmatprep.subr.mxu0 0.0
        %3331 = vmatpush2.xpose.msra.mxu0 0.0
        %3332 = vmatprep.subr.mxu0 0.0
        %3333 = vmatpush2.xpose.msra.mxu0 0.0
        %3334 = vmatprep.mubr.f32.mxu0 0.0
        %3335 = vmatmul.mubr.f32.gmra.mxu0 %v3259
        %v3336 = vpop.f32.mrf.mxu0
        %v3337 = vadd.f32 0.0, %v3336
        %v3338 = vpop.f32.mrf.mxu0
        %3339 = vmatprep.mubr.f32.mxu0 0.0
        %3340 = vmatmul.mubr.f32.gmra.mxu0 %v3262
        %v3341 = vpop.f32.mrf.mxu0
        %v3342 = vadd.f32 0.0, %v3341
        %v3343 = vpop.f32.mrf.mxu0
        %3344 = vmatprep.mubr.f32.mxu0 0.0
        %3345 = vmatmul.mubr.f32.gmra.mxu0 %v3265
        %v3346 = vpop.f32.mrf.mxu0
        %v3347 = vadd.f32 0.0, %v3346
        %v3348 = vpop.f32.mrf.mxu0
        %3349 = vmatprep.mubr.f32.mxu0 0.0
        %3350 = vmatmul.mubr.f32.gmra.mxu0 %v3268
        %v3351 = vpop.f32.mrf.mxu0
        %v3352 = vadd.f32 0.0, %v3351
        %v3353 = vpop.f32.mrf.mxu0
        %3354 = vdwg.mxu0
        %3355 = vxpose.xlu0.b32.start [1/16] %v3248, 128
        %3356 = vxpose.xlu0.b32.cont [2/16] %v3251, 128
        %3357 = vxpose.xlu0.b32.cont [3/16] %v3254, 128
        %3358 = vxpose.xlu0.b32.cont [4/16] %v3257, 128
        %3359 = vxpose.xlu0.b32.cont [5/16] 0.0, 128
        %3360 = vxpose.xlu0.b32.cont [6/16] 0.0, 128
        %3361 = vxpose.xlu0.b32.cont [7/16] 0.0, 128
        %3362 = vxpose.xlu0.b32.cont [8/16] 0.0, 128
        %3363 = vxpose.xlu0.b32.cont [9/16] 0.0, 128
        %3364 = vxpose.xlu0.b32.cont [10/16] 0.0, 128
        %3365 = vxpose.xlu0.b32.cont [11/16] 0.0, 128
        %3366 = vxpose.xlu0.b32.cont [12/16] 0.0, 128
        %3367 = vxpose.xlu0.b32.cont [13/16] 0.0, 128
        %3368 = vxpose.xlu0.b32.cont [14/16] 0.0, 128
        %3369 = vxpose.xlu0.b32.cont [15/16] 0.0, 128
        %3370 = vxpose.xlu0.b32.end [16/16] 0.0, 128
        %v3371 = vpop.trf.xlu0
        %v3372 = vpop.trf.xlu0
        %v3373 = vpop.trf.xlu0
        %v3374 = vpop.trf.xlu0
        %v3375 = vpop.trf.xlu0
        %v3376 = vpop.trf.xlu0
        %v3377 = vpop.trf.xlu0
        %v3378 = vpop.trf.xlu0
        %v3379 = vpop.trf.xlu0
        %v3380 = vpop.trf.xlu0
        %v3381 = vpop.trf.xlu0
        %v3382 = vpop.trf.xlu0
        %v3383 = vpop.trf.xlu0
        %v3384 = vpop.trf.xlu0
        %v3385 = vpop.trf.xlu0
        %v3386 = vpop.trf.xlu0
        %v3387 = vlaneseq
        %v3388 = vshrl.u32 %v3387, 7
        %v3389 = vsub.s32 0, %v3388
        %v3390 = vrot.slane %v3371, %v3389
        %v3391 = vadd.f32 %v3248, %v3390
        %v3392 = vadd.f32 %v3251, %v3390
        %v3393 = vadd.f32 %v3254, %v3390
        %v3394 = vadd.f32 %v3257, %v3390
        %v3395 = vmul.f32 %v3337, 2.0
        %v3396 = vmul.f32 %v3342, 2.0
        %v3397 = vmul.f32 %v3347, 2.0
        %v3398 = vmul.f32 %v3352, 2.0
        %v3399 = vsub.f32 %v3391, %v3395
        %v3400 = vsub.f32 %v3392, %v3396
        %v3401 = vsub.f32 %v3393, %v3397
        %v3402 = vsub.f32 %v3394, %v3398
        %3403 = vmatprep.subr.mxu0 0.0
        %3404 = vmatpush1.msra.mxu0 0.0
        %3405 = vmatprep.subr.mxu0 0.0
        %3406 = vmatpush1.msra.mxu0 0.0
        %3407 = vmatprep.subr.mxu0 0.0
        %3408 = vmatpush1.msra.mxu0 0.0
        %3409 = vmatprep.subr.mxu0 0.0
        %3410 = vmatpush1.msra.mxu0 0.0
        %3411 = vmatprep.subr.mxu0 0.0
        %3412 = vmatpush1.msra.mxu0 0.0
        %3413 = vmatprep.subr.mxu0 0.0
        %3414 = vmatpush1.msra.mxu0 0.0
        %3415 = vmatprep.subr.mxu0 0.0
        %3416 = vmatpush1.msra.mxu0 0.0
        %3417 = vmatprep.subr.mxu0 0.0
        %3418 = vmatpush1.msra.mxu0 0.0
        %3419 = vmatprep.subr.mxu0 0.0
        %3420 = vmatpush1.msra.mxu0 %v3230
        %3421 = vmatprep.subr.mxu0 0.0
        %3422 = vmatpush1.msra.mxu0 %v3229
        %3423 = vmatprep.subr.mxu0 0.0
        %3424 = vmatpush1.msra.mxu0 %v3228
        %3425 = vmatprep.subr.mxu0 0.0
        %3426 = vmatpush1.msra.mxu0 %v3227
        %3427 = vmatprep.subr.mxu0 0.0
        %3428 = vmatpush1.msra.mxu0 %v3226
        %3429 = vmatprep.subr.mxu0 0.0
        %3430 = vmatpush1.msra.mxu0 %v3225
        %3431 = vmatprep.subr.mxu0 0.0
        %3432 = vmatpush1.msra.mxu0 %v3224
        %3433 = vmatprep.subr.mxu0 0.0
        %3434 = vmatpush1.msra.mxu0 %v3223
        %3435 = vmatprep.subr.mxu0 0.0
        %3436 = vmatpush2.msra.mxu0 0.0
        %3437 = vmatprep.subr.mxu0 0.0
        %3438 = vmatpush2.msra.mxu0 0.0
        %3439 = vmatprep.subr.mxu0 0.0
        %3440 = vmatpush2.msra.mxu0 0.0
        %3441 = vmatprep.subr.mxu0 0.0
        %3442 = vmatpush2.msra.mxu0 0.0
        %3443 = vmatprep.subr.mxu0 0.0
        %3444 = vmatpush2.msra.mxu0 0.0
        %3445 = vmatprep.subr.mxu0 0.0
        %3446 = vmatpush2.msra.mxu0 0.0
        %3447 = vmatprep.subr.mxu0 0.0
        %3448 = vmatpush2.msra.mxu0 0.0
        %3449 = vmatprep.subr.mxu0 0.0
        %3450 = vmatpush2.msra.mxu0 0.0
        %3451 = vmatprep.subr.mxu0 0.0
        %3452 = vmatpush2.msra.mxu0 0.0
        %3453 = vmatprep.subr.mxu0 0.0
        %3454 = vmatpush2.msra.mxu0 0.0
        %3455 = vmatprep.subr.mxu0 0.0
        %3456 = vmatpush2.msra.mxu0 0.0
        %3457 = vmatprep.subr.mxu0 0.0
        %3458 = vmatpush2.msra.mxu0 0.0
        %3459 = vmatprep.subr.mxu0 0.0
        %3460 = vmatpush2.msra.mxu0 0.0
        %3461 = vmatprep.subr.mxu0 0.0
        %3462 = vmatpush2.msra.mxu0 0.0
        %3463 = vmatprep.subr.mxu0 0.0
        %3464 = vmatpush2.msra.mxu0 0.0
        %3465 = vmatprep.subr.mxu0 0.0
        %3466 = vmatpush2.msra.mxu0 0.0
        %3467 = vmatprep.mubr.f32.mxu0 0.0
        %3468 = vmatmul.mubr.f32.gmra.mxu0 %v3259
        %v3469 = vpop.f32.mrf.mxu0
        %v3470 = vadd.f32 0.0, %v3469
        %v3471 = vpop.f32.mrf.mxu0
        %3472 = vmatprep.mubr.f32.mxu0 0.0
        %3473 = vmatmul.mubr.f32.gmra.mxu0 %v3262
        %v3474 = vpop.f32.mrf.mxu0
        %v3475 = vadd.f32 0.0, %v3474
        %v3476 = vpop.f32.mrf.mxu0
        %3477 = vmatprep.mubr.f32.mxu0 0.0
        %3478 = vmatmul.mubr.f32.gmra.mxu0 %v3265
        %v3479 = vpop.f32.mrf.mxu0
        %v3480 = vadd.f32 0.0, %v3479
        %v3481 = vpop.f32.mrf.mxu0
        %3482 = vmatprep.mubr.f32.mxu0 0.0
        %3483 = vmatmul.mubr.f32.gmra.mxu0 %v3268
        %v3484 = vpop.f32.mrf.mxu0
        %v3485 = vadd.f32 0.0, %v3484
        %v3486 = vpop.f32.mrf.mxu0
        %3487 = vdwg.mxu0
        %v3489 = vlaneseq
        %v3490 = vshrl.u32 %v3489, 7
        %v3491 = vsub.s32 0, %v3490
        %v3492 = vrot.slane %v3231, %v3491
        %v3494 = vadd.f32 %v3470, %v3492
        %v3495 = vadd.f32 %v3475, %v3492
        %v3496 = vadd.f32 %v3480, %v3492
        %v3497 = vadd.f32 %v3485, %v3492
        %v3498 = vsel %vm1065, %v3399, inf
        %3499 = vmin.xlane.f32.xlu0 %v3498
        %v3500 = vpop.xlane.xlu0 %3499
        %v3501 = vsel %vm1065, %v3400, inf
        %3502 = vmin.xlane.f32.xlu0 %v3501
        %v3503 = vpop.xlane.xlu0 %3502
        %v3504 = vsel %vm1065, %v3401, inf
        %3505 = vmin.xlane.f32.xlu0 %v3504
        %v3506 = vpop.xlane.xlu0 %3505
        %v3507 = vsel %vm1065, %v3402, inf
        %3508 = vmin.xlane.f32.xlu0 %v3507
        %v3509 = vpop.xlane.xlu0 %3508
        %vm3510 = vcmp.le.f32.partialorder %v3399, %v3500
        %vm3511 = vcmp.le.f32.partialorder %v3400, %v3503
        %vm3512 = vcmp.le.f32.partialorder %v3401, %v3506
        %vm3513 = vcmp.le.f32.partialorder %v3402, %v3509
        %v3514 = vsel %vm3510, %v1064, 32
        %v3515 = vsel %vm3511, %v1064, 32
        %v3516 = vsel %vm3512, %v1064, 32
        %v3517 = vsel %vm3513, %v1064, 32
        %v3518 = vsel %vm1065, %v3514, 2147483647
        %v3519 = vand.u32 %v3518, 65535
        %v3520 = vshra.s32 %v3518, 16
        %v3521 = vcvt.s32.f32 %v3519
        %v3522 = vcvt.s32.f32 %v3520
        %3523 = vmin.xlane.f32.xlu0 %v3522
        %v3524 = vpop.xlane.xlu0 %3523
        %vm3525 = vcmp.eq.f32.partialorder %v3522, %v3524
        %v3526 = vsel %vm3525, %v3521, inf
        %3527 = vmin.xlane.f32.xlu0 %v3526
        %v3528 = vpop.xlane.xlu0 %3527
        %v3529 = vcvt.f32.s32 %v3528
        %v3530 = vcvt.f32.s32 %v3524
        %v3531 = vshll.u32 %v3530, 16
        %v3532 = vadd.s32 %v3531, %v3529
        %v3533 = vsel %vm1065, %v3515, 2147483647
        %v3534 = vand.u32 %v3533, 65535
        %v3535 = vshra.s32 %v3533, 16
        %v3536 = vcvt.s32.f32 %v3534
        %v3537 = vcvt.s32.f32 %v3535
        %3538 = vmin.xlane.f32.xlu0 %v3537
        %v3539 = vpop.xlane.xlu0 %3538
        %vm3540 = vcmp.eq.f32.partialorder %v3537, %v3539
        %v3541 = vsel %vm3540, %v3536, inf
        %3542 = vmin.xlane.f32.xlu0 %v3541
        %v3543 = vpop.xlane.xlu0 %3542
        %v3544 = vcvt.f32.s32 %v3543
        %v3545 = vcvt.f32.s32 %v3539
        %v3546 = vshll.u32 %v3545, 16
        %v3547 = vadd.s32 %v3546, %v3544
        %v3548 = vsel %vm1065, %v3516, 2147483647
        %v3549 = vand.u32 %v3548, 65535
        %v3550 = vshra.s32 %v3548, 16
        %v3551 = vcvt.s32.f32 %v3549
        %v3552 = vcvt.s32.f32 %v3550
        %3553 = vmin.xlane.f32.xlu0 %v3552
        %v3554 = vpop.xlane.xlu0 %3553
        %vm3555 = vcmp.eq.f32.partialorder %v3552, %v3554
        %v3556 = vsel %vm3555, %v3551, inf
        %3557 = vmin.xlane.f32.xlu0 %v3556
        %v3558 = vpop.xlane.xlu0 %3557
        %v3559 = vcvt.f32.s32 %v3558
        %v3560 = vcvt.f32.s32 %v3554
        %v3561 = vshll.u32 %v3560, 16
        %v3562 = vadd.s32 %v3561, %v3559
        %v3563 = vsel %vm1065, %v3517, 2147483647
        %v3564 = vand.u32 %v3563, 65535
        %v3565 = vshra.s32 %v3563, 16
        %v3566 = vcvt.s32.f32 %v3564
        %v3567 = vcvt.s32.f32 %v3565
        %3568 = vmin.xlane.f32.xlu0 %v3567
        %v3569 = vpop.xlane.xlu0 %3568
        %vm3570 = vcmp.eq.f32.partialorder %v3567, %v3569
        %v3571 = vsel %vm3570, %v3566, inf
        %3572 = vmin.xlane.f32.xlu0 %v3571
        %v3573 = vpop.xlane.xlu0 %3572
        %v3574 = vcvt.f32.s32 %v3573
        %v3575 = vcvt.f32.s32 %v3569
        %v3576 = vshll.u32 %v3575, 16
        %v3577 = vadd.s32 %v3576, %v3574
        %vm3578 = vcmp.eq.s32.totalorder %v1064, %v3532
        %vm3579 = vcmp.eq.s32.totalorder %v1064, %v3547
        %vm3580 = vcmp.eq.s32.totalorder %v1064, %v3562
        %vm3581 = vcmp.eq.s32.totalorder %v1064, %v3577
        %v3582 = vsel %vm3578, 1, 0
        %v3583 = vsel %vm3579, 1, 0
        %v3584 = vsel %vm3580, 1, 0
        %v3585 = vsel %vm3581, 1, 0
        %v3586 = vcvt.s32.f32 %v3582
        %v3587 = vcvt.s32.f32 %v3583
        %v3588 = vcvt.s32.f32 %v3584
        %v3589 = vcvt.s32.f32 %v3585
        %3594 = vrot.lane.b32.xlu0 %v3470, 64
        %v3595 = vpop.permute.xlu0 %3594
        %3596 = vrot.lane.b32.xlu0 %v3475, 64
        %v3597 = vpop.permute.xlu0 %3596
        %3598 = vrot.lane.b32.xlu0 %v3480, 64
        %v3599 = vpop.permute.xlu0 %3598
        %3600 = vrot.lane.b32.xlu0 %v3485, 64
        %v3601 = vpop.permute.xlu0 %3600
        %v3607 = vsel %vm1065, %v3586, 0
        %v3610 = vsel %vm1065, %v3587, 0
        %v3613 = vsel %vm1065, %v3588, 0
        %v3616 = vsel %vm1065, %v3589, 0
        %3618 = vmatprep.subr.mxu0 0.0
        %3619 = vmatpush1.msra.mxu0 0.0
        %3620 = vmatprep.subr.mxu0 0.0
        %3621 = vmatpush1.msra.mxu0 0.0
        %3622 = vmatprep.subr.mxu0 0.0
        %3623 = vmatpush1.msra.mxu0 0.0
        %3624 = vmatprep.subr.mxu0 0.0
        %3625 = vmatpush1.msra.mxu0 0.0
        %3626 = vmatprep.subr.mxu0 0.0
        %3627 = vmatpush1.msra.mxu0 0.0
        %3628 = vmatprep.subr.mxu0 0.0
        %3629 = vmatpush1.msra.mxu0 0.0
        %3630 = vmatprep.subr.mxu0 0.0
        %3631 = vmatpush1.msra.mxu0 0.0
        %3632 = vmatprep.subr.mxu0 0.0
        %3633 = vmatpush1.msra.mxu0 0.0
        %3634 = vmatprep.subr.mxu0 0.0
        %3635 = vmatpush1.msra.mxu0 0.0
        %3636 = vmatprep.subr.mxu0 0.0
        %3637 = vmatpush1.msra.mxu0 0.0
        %3638 = vmatprep.subr.mxu0 0.0
        %3639 = vmatpush1.msra.mxu0 0.0
        %3640 = vmatprep.subr.mxu0 0.0
        %3641 = vmatpush1.msra.mxu0 0.0
        %3642 = vmatprep.subr.mxu0 0.0
        %3643 = vmatpush1.msra.mxu0 %v3601
        %3644 = vmatprep.subr.mxu0 0.0
        %3645 = vmatpush1.msra.mxu0 %v3599
        %3646 = vmatprep.subr.mxu0 0.0
        %3647 = vmatpush1.msra.mxu0 %v3597
        %3648 = vmatprep.subr.mxu0 0.0
        %3649 = vmatpush1.msra.mxu0 %v3595
        %3650 = vmatprep.subr.mxu0 0.0
        %3651 = vmatpush2.msra.mxu0 0.0
        %3652 = vmatprep.subr.mxu0 0.0
        %3653 = vmatpush2.msra.mxu0 0.0
        %3654 = vmatprep.subr.mxu0 0.0
        %3655 = vmatpush2.msra.mxu0 0.0
        %3656 = vmatprep.subr.mxu0 0.0
        %3657 = vmatpush2.msra.mxu0 0.0
        %3658 = vmatprep.subr.mxu0 0.0
        %3659 = vmatpush2.msra.mxu0 0.0
        %3660 = vmatprep.subr.mxu0 0.0
        %3661 = vmatpush2.msra.mxu0 0.0
        %3662 = vmatprep.subr.mxu0 0.0
        %3663 = vmatpush2.msra.mxu0 0.0
        %3664 = vmatprep.subr.mxu0 0.0
        %3665 = vmatpush2.msra.mxu0 0.0
        %3666 = vmatprep.subr.mxu0 0.0
        %3667 = vmatpush2.msra.mxu0 0.0
        %3668 = vmatprep.subr.mxu0 0.0
        %3669 = vmatpush2.msra.mxu0 0.0
        %3670 = vmatprep.subr.mxu0 0.0
        %3671 = vmatpush2.msra.mxu0 0.0
        %3672 = vmatprep.subr.mxu0 0.0
        %3673 = vmatpush2.msra.mxu0 0.0
        %3674 = vmatprep.subr.mxu0 0.0
        %3675 = vmatpush2.msra.mxu0 0.0
        %3676 = vmatprep.subr.mxu0 0.0
        %3677 = vmatpush2.msra.mxu0 0.0
        %3678 = vmatprep.subr.mxu0 0.0
        %3679 = vmatpush2.msra.mxu0 0.0
        %3680 = vmatprep.subr.mxu0 0.0
        %3681 = vmatpush2.msra.mxu0 0.0
        %3682 = vmatprep.mubr.f32.mxu0 0.0
        %3683 = vmatmul.mubr.f32.gmra.mxu0 %v3607
        %v3684 = vpop.f32.mrf.mxu0
        %v3685 = vadd.f32 0.0, %v3684
        %v3686 = vpop.f32.mrf.mxu0
        %3687 = vmatprep.mubr.f32.mxu0 0.0
        %3688 = vmatmul.mubr.f32.gmra.mxu0 %v3610
        %v3689 = vpop.f32.mrf.mxu0
        %v3690 = vadd.f32 0.0, %v3689
        %v3691 = vpop.f32.mrf.mxu0
        %3692 = vmatprep.mubr.f32.mxu0 0.0
        %3693 = vmatmul.mubr.f32.gmra.mxu0 %v3613
        %v3694 = vpop.f32.mrf.mxu0
        %v3695 = vadd.f32 0.0, %v3694
        %v3696 = vpop.f32.mrf.mxu0
        %3697 = vmatprep.mubr.f32.mxu0 0.0
        %3698 = vmatmul.mubr.f32.gmra.mxu0 %v3616
        %v3699 = vpop.f32.mrf.mxu0
        %v3700 = vadd.f32 0.0, %v3699
        %v3701 = vpop.f32.mrf.mxu0
        %3702 = vdwg.mxu0
        %v3703 = vadd.f32 %v3494, %v3685
        %v3704 = vadd.f32 %v3495, %v3690
        %v3705 = vadd.f32 %v3496, %v3695
        %v3706 = vadd.f32 %v3497, %v3700
        %v3707 = vmax.f32 %v3703, 0.0
        %v3708 = vmax.f32 %v3704, 0.0
        %v3709 = vmax.f32 %v3705, 0.0
        %v3710 = vmax.f32 %v3706, 0.0
        %v3711 = vpack.c.bf16 %v3708, %v3707
        %v3712 = vpack.c.bf16 %v3710, %v3709
        %v3721 = vunpack.c.l.b16 %v3232
        %v3722 = vunpack.c.l.b16 %v3233
        %v3723 = vunpack.c.l.b16 %v3234
        %v3724 = vunpack.c.l.b16 %v3235
        %v3725 = vunpack.c.l.b16 %v3236
        %v3726 = vunpack.c.l.b16 %v3237
        %v3727 = vunpack.c.l.b16 %v3238
        %v3728 = vunpack.c.l.b16 %v3239
        %v3729 = vpack.c.b16 %v3722, %v3721
        %v3730 = vpack.c.b16 %v3724, %v3723
        %v3731 = vpack.c.b16 %v3726, %v3725
        %v3732 = vpack.c.b16 %v3728, %v3727
        %v3738 = vsel %vm1305, %v3711, 0
        %v3741 = vsel %vm1305, %v3712, 0
        %3743 = vmatprep.subr.bf16.mxu0 0
        %3744 = vmatpush1.bf16.msra.mxu0 0
        %3745 = vmatprep.subr.bf16.mxu0 0
        %3746 = vmatpush1.bf16.msra.mxu0 0
        %3747 = vmatprep.subr.bf16.mxu0 0
        %3748 = vmatpush1.bf16.msra.mxu0 0
        %3749 = vmatprep.subr.bf16.mxu0 0
        %3750 = vmatpush1.bf16.msra.mxu0 0
        %3751 = vmatprep.subr.bf16.mxu0 0
        %3752 = vmatpush1.bf16.msra.mxu0 %v3732
        %3753 = vmatprep.subr.bf16.mxu0 0
        %3754 = vmatpush1.bf16.msra.mxu0 %v3731
        %3755 = vmatprep.subr.bf16.mxu0 0
        %3756 = vmatpush1.bf16.msra.mxu0 %v3730
        %3757 = vmatprep.subr.bf16.mxu0 0
        %3758 = vmatpush1.bf16.msra.mxu0 %v3729
        %3759 = vmatprep.subr.bf16.mxu0 0
        %3760 = vmatpush2.bf16.msra.mxu0 0
        %3761 = vmatprep.subr.bf16.mxu0 0
        %3762 = vmatpush2.bf16.msra.mxu0 0
        %3763 = vmatprep.subr.bf16.mxu0 0
        %3764 = vmatpush2.bf16.msra.mxu0 0
        %3765 = vmatprep.subr.bf16.mxu0 0
        %3766 = vmatpush2.bf16.msra.mxu0 0
        %3767 = vmatprep.subr.bf16.mxu0 0
        %3768 = vmatpush2.bf16.msra.mxu0 0
        %3769 = vmatprep.subr.bf16.mxu0 0
        %3770 = vmatpush2.bf16.msra.mxu0 0
        %3771 = vmatprep.subr.bf16.mxu0 0
        %3772 = vmatpush2.bf16.msra.mxu0 0
        %3773 = vmatprep.subr.bf16.mxu0 0
        %3774 = vmatpush2.bf16.msra.mxu0 0
        %3775 = vmatprep.mubr.bf16.mxu0 0
        %3776 = vmatmul.mubr.bf16.gmra.mxu0 %v3738
        %v3777 = vpop.f32.mrf.mxu0
        %v3778 = vadd.f32 0.0, %v3777
        %v3779 = vpop.f32.mrf.mxu0
        %v3780 = vpop.f32.mrf.mxu0
        %v3781 = vadd.f32 0.0, %v3780
        %v3782 = vpop.f32.mrf.mxu0
        %3783 = vmatprep.mubr.bf16.mxu0 0
        %3784 = vmatmul.mubr.bf16.gmra.mxu0 %v3741
        %v3785 = vpop.f32.mrf.mxu0
        %v3786 = vadd.f32 0.0, %v3785
        %v3787 = vpop.f32.mrf.mxu0
        %v3788 = vpop.f32.mrf.mxu0
        %v3789 = vadd.f32 0.0, %v3788
        %v3790 = vpop.f32.mrf.mxu0
        %3791 = vdwg.mxu0
        %v3792 = vmax.f32 %v3778, -1e+30
        %v3793 = vmax.f32 %v3781, -1e+30
        %v3794 = vmax.f32 %v3786, -1e+30
        %v3795 = vmax.f32 %v3789, -1e+30
        %v3796 = vsel %vm3578, 1e+30, %v3399
        %v3797 = vsel %vm3579, 1e+30, %v3400
        %v3798 = vsel %vm3580, 1e+30, %v3401
        %v3799 = vsel %vm3581, 1e+30, %v3402
        %v3800 = vsel %vm1065, %v3796, inf
        %3801 = vmin.xlane.f32.xlu0 %v3800
        %v3802 = vpop.xlane.xlu0 %3801
        %v3803 = vsel %vm1065, %v3797, inf
        %3804 = vmin.xlane.f32.xlu0 %v3803
        %v3805 = vpop.xlane.xlu0 %3804
        %v3806 = vsel %vm1065, %v3798, inf
        %3807 = vmin.xlane.f32.xlu0 %v3806
        %v3808 = vpop.xlane.xlu0 %3807
        %v3809 = vsel %vm1065, %v3799, inf
        %3810 = vmin.xlane.f32.xlu0 %v3809
        %v3811 = vpop.xlane.xlu0 %3810
        %vm3812 = vcmp.le.f32.partialorder %v3796, %v3802
        %vm3813 = vcmp.le.f32.partialorder %v3797, %v3805
        %vm3814 = vcmp.le.f32.partialorder %v3798, %v3808
        %vm3815 = vcmp.le.f32.partialorder %v3799, %v3811
        %v3816 = vsel %vm3812, %v1064, 32
        %v3817 = vsel %vm3813, %v1064, 32
        %v3818 = vsel %vm3814, %v1064, 32
        %v3819 = vsel %vm3815, %v1064, 32
        %v3820 = vsel %vm1065, %v3816, 2147483647
        %v3821 = vand.u32 %v3820, 65535
        %v3822 = vshra.s32 %v3820, 16
        %v3823 = vcvt.s32.f32 %v3821
        %v3824 = vcvt.s32.f32 %v3822
        %3825 = vmin.xlane.f32.xlu0 %v3824
        %v3826 = vpop.xlane.xlu0 %3825
        %vm3827 = vcmp.eq.f32.partialorder %v3824, %v3826
        %v3828 = vsel %vm3827, %v3823, inf
        %3829 = vmin.xlane.f32.xlu0 %v3828
        %v3830 = vpop.xlane.xlu0 %3829
        %v3831 = vcvt.f32.s32 %v3830
        %v3832 = vcvt.f32.s32 %v3826
        %v3833 = vshll.u32 %v3832, 16
        %v3834 = vadd.s32 %v3833, %v3831
        %v3835 = vsel %vm1065, %v3817, 2147483647
        %v3836 = vand.u32 %v3835, 65535
        %v3837 = vshra.s32 %v3835, 16
        %v3838 = vcvt.s32.f32 %v3836
        %v3839 = vcvt.s32.f32 %v3837
        %3840 = vmin.xlane.f32.xlu0 %v3839
        %v3841 = vpop.xlane.xlu0 %3840
        %vm3842 = vcmp.eq.f32.partialorder %v3839, %v3841
        %v3843 = vsel %vm3842, %v3838, inf
        %3844 = vmin.xlane.f32.xlu0 %v3843
        %v3845 = vpop.xlane.xlu0 %3844
        %v3846 = vcvt.f32.s32 %v3845
        %v3847 = vcvt.f32.s32 %v3841
        %v3848 = vshll.u32 %v3847, 16
        %v3849 = vadd.s32 %v3848, %v3846
        %v3850 = vsel %vm1065, %v3818, 2147483647
        %v3851 = vand.u32 %v3850, 65535
        %v3852 = vshra.s32 %v3850, 16
        %v3853 = vcvt.s32.f32 %v3851
        %v3854 = vcvt.s32.f32 %v3852
        %3855 = vmin.xlane.f32.xlu0 %v3854
        %v3856 = vpop.xlane.xlu0 %3855
        %vm3857 = vcmp.eq.f32.partialorder %v3854, %v3856
        %v3858 = vsel %vm3857, %v3853, inf
        %3859 = vmin.xlane.f32.xlu0 %v3858
        %v3860 = vpop.xlane.xlu0 %3859
        %v3861 = vcvt.f32.s32 %v3860
        %v3862 = vcvt.f32.s32 %v3856
        %v3863 = vshll.u32 %v3862, 16
        %v3864 = vadd.s32 %v3863, %v3861
        %v3865 = vsel %vm1065, %v3819, 2147483647
        %v3866 = vand.u32 %v3865, 65535
        %v3867 = vshra.s32 %v3865, 16
        %v3868 = vcvt.s32.f32 %v3866
        %v3869 = vcvt.s32.f32 %v3867
        %3870 = vmin.xlane.f32.xlu0 %v3869
        %v3871 = vpop.xlane.xlu0 %3870
        %vm3872 = vcmp.eq.f32.partialorder %v3869, %v3871
        %v3873 = vsel %vm3872, %v3868, inf
        %3874 = vmin.xlane.f32.xlu0 %v3873
        %v3875 = vpop.xlane.xlu0 %3874
        %v3876 = vcvt.f32.s32 %v3875
        %v3877 = vcvt.f32.s32 %v3871
        %v3878 = vshll.u32 %v3877, 16
        %v3879 = vadd.s32 %v3878, %v3876
        %vm3880 = vcmp.eq.s32.totalorder %v1064, %v3834
        %vm3881 = vcmp.eq.s32.totalorder %v1064, %v3849
        %vm3882 = vcmp.eq.s32.totalorder %v1064, %v3864
        %vm3883 = vcmp.eq.s32.totalorder %v1064, %v3879
        %v3884 = vsel %vm3880, 1, 0
        %v3885 = vsel %vm3881, 1, 0
        %v3886 = vsel %vm3882, 1, 0
        %v3887 = vsel %vm3883, 1, 0
        %v3888 = vcvt.s32.f32 %v3884
        %v3889 = vcvt.s32.f32 %v3885
        %v3890 = vcvt.s32.f32 %v3886
        %v3891 = vcvt.s32.f32 %v3887
        %v3893 = vsel %vm1065, %v3888, 0
        %v3896 = vsel %vm1065, %v3889, 0
        %v3899 = vsel %vm1065, %v3890, 0
        %v3902 = vsel %vm1065, %v3891, 0
        %3904 = vmatprep.subr.mxu0 0.0
        %3905 = vmatpush1.msra.mxu0 0.0
        %3906 = vmatprep.subr.mxu0 0.0
        %3907 = vmatpush1.msra.mxu0 0.0
        %3908 = vmatprep.subr.mxu0 0.0
        %3909 = vmatpush1.msra.mxu0 0.0
        %3910 = vmatprep.subr.mxu0 0.0
        %3911 = vmatpush1.msra.mxu0 0.0
        %3912 = vmatprep.subr.mxu0 0.0
        %3913 = vmatpush1.msra.mxu0 0.0
        %3914 = vmatprep.subr.mxu0 0.0
        %3915 = vmatpush1.msra.mxu0 0.0
        %3916 = vmatprep.subr.mxu0 0.0
        %3917 = vmatpush1.msra.mxu0 0.0
        %3918 = vmatprep.subr.mxu0 0.0
        %3919 = vmatpush1.msra.mxu0 0.0
        %3920 = vmatprep.subr.mxu0 0.0
        %3921 = vmatpush1.msra.mxu0 0.0
        %3922 = vmatprep.subr.mxu0 0.0
        %3923 = vmatpush1.msra.mxu0 0.0
        %3924 = vmatprep.subr.mxu0 0.0
        %3925 = vmatpush1.msra.mxu0 0.0
        %3926 = vmatprep.subr.mxu0 0.0
        %3927 = vmatpush1.msra.mxu0 0.0
        %3928 = vmatprep.subr.mxu0 0.0
        %3929 = vmatpush1.msra.mxu0 %v3601
        %3930 = vmatprep.subr.mxu0 0.0
        %3931 = vmatpush1.msra.mxu0 %v3599
        %3932 = vmatprep.subr.mxu0 0.0
        %3933 = vmatpush1.msra.mxu0 %v3597
        %3934 = vmatprep.subr.mxu0 0.0
        %3935 = vmatpush1.msra.mxu0 %v3595
        %3936 = vmatprep.subr.mxu0 0.0
        %3937 = vmatpush2.msra.mxu0 0.0
        %3938 = vmatprep.subr.mxu0 0.0
        %3939 = vmatpush2.msra.mxu0 0.0
        %3940 = vmatprep.subr.mxu0 0.0
        %3941 = vmatpush2.msra.mxu0 0.0
        %3942 = vmatprep.subr.mxu0 0.0
        %3943 = vmatpush2.msra.mxu0 0.0
        %3944 = vmatprep.subr.mxu0 0.0
        %3945 = vmatpush2.msra.mxu0 0.0
        %3946 = vmatprep.subr.mxu0 0.0
        %3947 = vmatpush2.msra.mxu0 0.0
        %3948 = vmatprep.subr.mxu0 0.0
        %3949 = vmatpush2.msra.mxu0 0.0
        %3950 = vmatprep.subr.mxu0 0.0
        %3951 = vmatpush2.msra.mxu0 0.0
        %3952 = vmatprep.subr.mxu0 0.0
        %3953 = vmatpush2.msra.mxu0 0.0
        %3954 = vmatprep.subr.mxu0 0.0
        %3955 = vmatpush2.msra.mxu0 0.0
        %3956 = vmatprep.subr.mxu0 0.0
        %3957 = vmatpush2.msra.mxu0 0.0
        %3958 = vmatprep.subr.mxu0 0.0
        %3959 = vmatpush2.msra.mxu0 0.0
        %3960 = vmatprep.subr.mxu0 0.0
        %3961 = vmatpush2.msra.mxu0 0.0
        %3962 = vmatprep.subr.mxu0 0.0
        %3963 = vmatpush2.msra.mxu0 0.0
        %3964 = vmatprep.subr.mxu0 0.0
        %3965 = vmatpush2.msra.mxu0 0.0
        %3966 = vmatprep.subr.mxu0 0.0
        %3967 = vmatpush2.msra.mxu0 0.0
        %3968 = vmatprep.mubr.f32.mxu0 0.0
        %3969 = vmatmul.mubr.f32.gmra.mxu0 %v3893
        %v3970 = vpop.f32.mrf.mxu0
        %v3971 = vadd.f32 0.0, %v3970
        %v3972 = vpop.f32.mrf.mxu0
        %3973 = vmatprep.mubr.f32.mxu0 0.0
        %3974 = vmatmul.mubr.f32.gmra.mxu0 %v3896
        %v3975 = vpop.f32.mrf.mxu0
        %v3976 = vadd.f32 0.0, %v3975
        %v3977 = vpop.f32.mrf.mxu0
        %3978 = vmatprep.mubr.f32.mxu0 0.0
        %3979 = vmatmul.mubr.f32.gmra.mxu0 %v3899
        %v3980 = vpop.f32.mrf.mxu0
        %v3981 = vadd.f32 0.0, %v3980
        %v3982 = vpop.f32.mrf.mxu0
        %3983 = vmatprep.mubr.f32.mxu0 0.0
        %3984 = vmatmul.mubr.f32.gmra.mxu0 %v3902
        %v3985 = vpop.f32.mrf.mxu0
        %v3986 = vadd.f32 0.0, %v3985
        %v3987 = vpop.f32.mrf.mxu0
        %3988 = vdwg.mxu0
        %v3989 = vadd.f32 %v3494, %v3971
        %v3990 = vadd.f32 %v3495, %v3976
        %v3991 = vadd.f32 %v3496, %v3981
        %v3992 = vadd.f32 %v3497, %v3986
        %v3993 = vmax.f32 %v3989, 0.0
        %v3994 = vmax.f32 %v3990, 0.0
        %v3995 = vmax.f32 %v3991, 0.0
        %v3996 = vmax.f32 %v3992, 0.0
        %v3997 = vpack.c.bf16 %v3994, %v3993
        %v3998 = vpack.c.bf16 %v3996, %v3995
        %v4000 = vsel %vm1305, %v3997, 0
        %v4003 = vsel %vm1305, %v3998, 0
        %4005 = vmatprep.subr.bf16.mxu0 0
        %4006 = vmatpush1.bf16.msra.mxu0 0
        %4007 = vmatprep.subr.bf16.mxu0 0
        %4008 = vmatpush1.bf16.msra.mxu0 0
        %4009 = vmatprep.subr.bf16.mxu0 0
        %4010 = vmatpush1.bf16.msra.mxu0 0
        %4011 = vmatprep.subr.bf16.mxu0 0
        %4012 = vmatpush1.bf16.msra.mxu0 0
        %4013 = vmatprep.subr.bf16.mxu0 0
        %4014 = vmatpush1.bf16.msra.mxu0 %v3732
        %4015 = vmatprep.subr.bf16.mxu0 0
        %4016 = vmatpush1.bf16.msra.mxu0 %v3731
        %4017 = vmatprep.subr.bf16.mxu0 0
        %4018 = vmatpush1.bf16.msra.mxu0 %v3730
        %4019 = vmatprep.subr.bf16.mxu0 0
        %4020 = vmatpush1.bf16.msra.mxu0 %v3729
        %4021 = vmatprep.subr.bf16.mxu0 0
        %4022 = vmatpush2.bf16.msra.mxu0 0
        %4023 = vmatprep.subr.bf16.mxu0 0
        %4024 = vmatpush2.bf16.msra.mxu0 0
        %4025 = vmatprep.subr.bf16.mxu0 0
        %4026 = vmatpush2.bf16.msra.mxu0 0
        %4027 = vmatprep.subr.bf16.mxu0 0
        %4028 = vmatpush2.bf16.msra.mxu0 0
        %4029 = vmatprep.subr.bf16.mxu0 0
        %4030 = vmatpush2.bf16.msra.mxu0 0
        %4031 = vmatprep.subr.bf16.mxu0 0
        %4032 = vmatpush2.bf16.msra.mxu0 0
        %4033 = vmatprep.subr.bf16.mxu0 0
        %4034 = vmatpush2.bf16.msra.mxu0 0
        %4035 = vmatprep.subr.bf16.mxu0 0
        %4036 = vmatpush2.bf16.msra.mxu0 0
        %4037 = vmatprep.mubr.bf16.mxu0 0
        %4038 = vmatmul.mubr.bf16.gmra.mxu0 %v4000
        %v4039 = vpop.f32.mrf.mxu0
        %v4040 = vadd.f32 0.0, %v4039
        %v4041 = vpop.f32.mrf.mxu0
        %v4042 = vpop.f32.mrf.mxu0
        %v4043 = vadd.f32 0.0, %v4042
        %v4044 = vpop.f32.mrf.mxu0
        %4045 = vmatprep.mubr.bf16.mxu0 0
        %4046 = vmatmul.mubr.bf16.gmra.mxu0 %v4003
        %v4047 = vpop.f32.mrf.mxu0
        %v4048 = vadd.f32 0.0, %v4047
        %v4049 = vpop.f32.mrf.mxu0
        %v4050 = vpop.f32.mrf.mxu0
        %v4051 = vadd.f32 0.0, %v4050
        %v4052 = vpop.f32.mrf.mxu0
        %4053 = vdwg.mxu0
        %v4054 = vmax.f32 %v3792, %v4040
        %v4055 = vmax.f32 %v3793, %v4043
        %v4056 = vmax.f32 %v3794, %v4048
        %v4057 = vmax.f32 %v3795, %v4051
        %v4058 = vsel %vm3880, 1e+30, %v3796
        %v4059 = vsel %vm3881, 1e+30, %v3797
        %v4060 = vsel %vm3882, 1e+30, %v3798
        %v4061 = vsel %vm3883, 1e+30, %v3799
        %v4062 = vsel %vm1065, %v4058, inf
        %4063 = vmin.xlane.f32.xlu0 %v4062
        %v4064 = vpop.xlane.xlu0 %4063
        %v4065 = vsel %vm1065, %v4059, inf
        %4066 = vmin.xlane.f32.xlu0 %v4065
        %v4067 = vpop.xlane.xlu0 %4066
        %v4068 = vsel %vm1065, %v4060, inf
        %4069 = vmin.xlane.f32.xlu0 %v4068
        %v4070 = vpop.xlane.xlu0 %4069
        %v4071 = vsel %vm1065, %v4061, inf
        %4072 = vmin.xlane.f32.xlu0 %v4071
        %v4073 = vpop.xlane.xlu0 %4072
        %vm4074 = vcmp.le.f32.partialorder %v4058, %v4064
        %vm4075 = vcmp.le.f32.partialorder %v4059, %v4067
        %vm4076 = vcmp.le.f32.partialorder %v4060, %v4070
        %vm4077 = vcmp.le.f32.partialorder %v4061, %v4073
        %v4078 = vsel %vm4074, %v1064, 32
        %v4079 = vsel %vm4075, %v1064, 32
        %v4080 = vsel %vm4076, %v1064, 32
        %v4081 = vsel %vm4077, %v1064, 32
        %v4082 = vsel %vm1065, %v4078, 2147483647
        %v4083 = vand.u32 %v4082, 65535
        %v4084 = vshra.s32 %v4082, 16
        %v4085 = vcvt.s32.f32 %v4083
        %v4086 = vcvt.s32.f32 %v4084
        %4087 = vmin.xlane.f32.xlu0 %v4086
        %v4088 = vpop.xlane.xlu0 %4087
        %vm4089 = vcmp.eq.f32.partialorder %v4086, %v4088
        %v4090 = vsel %vm4089, %v4085, inf
        %4091 = vmin.xlane.f32.xlu0 %v4090
        %v4092 = vpop.xlane.xlu0 %4091
        %v4093 = vcvt.f32.s32 %v4092
        %v4094 = vcvt.f32.s32 %v4088
        %v4095 = vshll.u32 %v4094, 16
        %v4096 = vadd.s32 %v4095, %v4093
        %v4097 = vsel %vm1065, %v4079, 2147483647
        %v4098 = vand.u32 %v4097, 65535
        %v4099 = vshra.s32 %v4097, 16
        %v4100 = vcvt.s32.f32 %v4098
        %v4101 = vcvt.s32.f32 %v4099
        %4102 = vmin.xlane.f32.xlu0 %v4101
        %v4103 = vpop.xlane.xlu0 %4102
        %vm4104 = vcmp.eq.f32.partialorder %v4101, %v4103
        %v4105 = vsel %vm4104, %v4100, inf
        %4106 = vmin.xlane.f32.xlu0 %v4105
        %v4107 = vpop.xlane.xlu0 %4106
        %v4108 = vcvt.f32.s32 %v4107
        %v4109 = vcvt.f32.s32 %v4103
        %v4110 = vshll.u32 %v4109, 16
        %v4111 = vadd.s32 %v4110, %v4108
        %v4112 = vsel %vm1065, %v4080, 2147483647
        %v4113 = vand.u32 %v4112, 65535
        %v4114 = vshra.s32 %v4112, 16
        %v4115 = vcvt.s32.f32 %v4113
        %v4116 = vcvt.s32.f32 %v4114
        %4117 = vmin.xlane.f32.xlu0 %v4116
        %v4118 = vpop.xlane.xlu0 %4117
        %vm4119 = vcmp.eq.f32.partialorder %v4116, %v4118
        %v4120 = vsel %vm4119, %v4115, inf
        %4121 = vmin.xlane.f32.xlu0 %v4120
        %v4122 = vpop.xlane.xlu0 %4121
        %v4123 = vcvt.f32.s32 %v4122
        %v4124 = vcvt.f32.s32 %v4118
        %v4125 = vshll.u32 %v4124, 16
        %v4126 = vadd.s32 %v4125, %v4123
        %v4127 = vsel %vm1065, %v4081, 2147483647
        %v4128 = vand.u32 %v4127, 65535
        %v4129 = vshra.s32 %v4127, 16
        %v4130 = vcvt.s32.f32 %v4128
        %v4131 = vcvt.s32.f32 %v4129
        %4132 = vmin.xlane.f32.xlu0 %v4131
        %v4133 = vpop.xlane.xlu0 %4132
        %vm4134 = vcmp.eq.f32.partialorder %v4131, %v4133
        %v4135 = vsel %vm4134, %v4130, inf
        %4136 = vmin.xlane.f32.xlu0 %v4135
        %v4137 = vpop.xlane.xlu0 %4136
        %v4138 = vcvt.f32.s32 %v4137
        %v4139 = vcvt.f32.s32 %v4133
        %v4140 = vshll.u32 %v4139, 16
        %v4141 = vadd.s32 %v4140, %v4138
        %vm4142 = vcmp.eq.s32.totalorder %v1064, %v4096
        %vm4143 = vcmp.eq.s32.totalorder %v1064, %v4111
        %vm4144 = vcmp.eq.s32.totalorder %v1064, %v4126
        %vm4145 = vcmp.eq.s32.totalorder %v1064, %v4141
        %v4146 = vsel %vm4142, 1, 0
        %v4147 = vsel %vm4143, 1, 0
        %v4148 = vsel %vm4144, 1, 0
        %v4149 = vsel %vm4145, 1, 0
        %v4150 = vcvt.s32.f32 %v4146
        %v4151 = vcvt.s32.f32 %v4147
        %v4152 = vcvt.s32.f32 %v4148
        %v4153 = vcvt.s32.f32 %v4149
        %v4155 = vsel %vm1065, %v4150, 0
        %v4158 = vsel %vm1065, %v4151, 0
        %v4161 = vsel %vm1065, %v4152, 0
        %v4164 = vsel %vm1065, %v4153, 0
        %4166 = vmatprep.subr.mxu0 0.0
        %4167 = vmatpush1.msra.mxu0 0.0
        %4168 = vmatprep.subr.mxu0 0.0
        %4169 = vmatpush1.msra.mxu0 0.0
        %4170 = vmatprep.subr.mxu0 0.0
        %4171 = vmatpush1.msra.mxu0 0.0
        %4172 = vmatprep.subr.mxu0 0.0
        %4173 = vmatpush1.msra.mxu0 0.0
        %4174 = vmatprep.subr.mxu0 0.0
        %4175 = vmatpush1.msra.mxu0 0.0
        %4176 = vmatprep.subr.mxu0 0.0
        %4177 = vmatpush1.msra.mxu0 0.0
        %4178 = vmatprep.subr.mxu0 0.0
        %4179 = vmatpush1.msra.mxu0 0.0
        %4180 = vmatprep.subr.mxu0 0.0
        %4181 = vmatpush1.msra.mxu0 0.0
        %4182 = vmatprep.subr.mxu0 0.0
        %4183 = vmatpush1.msra.mxu0 0.0
        %4184 = vmatprep.subr.mxu0 0.0
        %4185 = vmatpush1.msra.mxu0 0.0
        %4186 = vmatprep.subr.mxu0 0.0
        %4187 = vmatpush1.msra.mxu0 0.0
        %4188 = vmatprep.subr.mxu0 0.0
        %4189 = vmatpush1.msra.mxu0 0.0
        %4190 = vmatprep.subr.mxu0 0.0
        %4191 = vmatpush1.msra.mxu0 %v3601
        %4192 = vmatprep.subr.mxu0 0.0
        %4193 = vmatpush1.msra.mxu0 %v3599
        %4194 = vmatprep.subr.mxu0 0.0
        %4195 = vmatpush1.msra.mxu0 %v3597
        %4196 = vmatprep.subr.mxu0 0.0
        %4197 = vmatpush1.msra.mxu0 %v3595
        %4198 = vmatprep.subr.mxu0 0.0
        %4199 = vmatpush2.msra.mxu0 0.0
        %4200 = vmatprep.subr.mxu0 0.0
        %4201 = vmatpush2.msra.mxu0 0.0
        %4202 = vmatprep.subr.mxu0 0.0
        %4203 = vmatpush2.msra.mxu0 0.0
        %4204 = vmatprep.subr.mxu0 0.0
        %4205 = vmatpush2.msra.mxu0 0.0
        %4206 = vmatprep.subr.mxu0 0.0
        %4207 = vmatpush2.msra.mxu0 0.0
        %4208 = vmatprep.subr.mxu0 0.0
        %4209 = vmatpush2.msra.mxu0 0.0
        %4210 = vmatprep.subr.mxu0 0.0
        %4211 = vmatpush2.msra.mxu0 0.0
        %4212 = vmatprep.subr.mxu0 0.0
        %4213 = vmatpush2.msra.mxu0 0.0
        %4214 = vmatprep.subr.mxu0 0.0
        %4215 = vmatpush2.msra.mxu0 0.0
        %4216 = vmatprep.subr.mxu0 0.0
        %4217 = vmatpush2.msra.mxu0 0.0
        %4218 = vmatprep.subr.mxu0 0.0
        %4219 = vmatpush2.msra.mxu0 0.0
        %4220 = vmatprep.subr.mxu0 0.0
        %4221 = vmatpush2.msra.mxu0 0.0
        %4222 = vmatprep.subr.mxu0 0.0
        %4223 = vmatpush2.msra.mxu0 0.0
        %4224 = vmatprep.subr.mxu0 0.0
        %4225 = vmatpush2.msra.mxu0 0.0
        %4226 = vmatprep.subr.mxu0 0.0
        %4227 = vmatpush2.msra.mxu0 0.0
        %4228 = vmatprep.subr.mxu0 0.0
        %4229 = vmatpush2.msra.mxu0 0.0
        %4230 = vmatprep.mubr.f32.mxu0 0.0
        %4231 = vmatmul.mubr.f32.gmra.mxu0 %v4155
        %v4232 = vpop.f32.mrf.mxu0
        %v4233 = vadd.f32 0.0, %v4232
        %v4234 = vpop.f32.mrf.mxu0
        %4235 = vmatprep.mubr.f32.mxu0 0.0
        %4236 = vmatmul.mubr.f32.gmra.mxu0 %v4158
        %v4237 = vpop.f32.mrf.mxu0
        %v4238 = vadd.f32 0.0, %v4237
        %v4239 = vpop.f32.mrf.mxu0
        %4240 = vmatprep.mubr.f32.mxu0 0.0
        %4241 = vmatmul.mubr.f32.gmra.mxu0 %v4161
        %v4242 = vpop.f32.mrf.mxu0
        %v4243 = vadd.f32 0.0, %v4242
        %v4244 = vpop.f32.mrf.mxu0
        %4245 = vmatprep.mubr.f32.mxu0 0.0
        %4246 = vmatmul.mubr.f32.gmra.mxu0 %v4164
        %v4247 = vpop.f32.mrf.mxu0
        %v4248 = vadd.f32 0.0, %v4247
        %v4249 = vpop.f32.mrf.mxu0
        %4250 = vdwg.mxu0
        %v4251 = vadd.f32 %v3494, %v4233
        %v4252 = vadd.f32 %v3495, %v4238
        %v4253 = vadd.f32 %v3496, %v4243
        %v4254 = vadd.f32 %v3497, %v4248
        %v4255 = vmax.f32 %v4251, 0.0
        %v4256 = vmax.f32 %v4252, 0.0
        %v4257 = vmax.f32 %v4253, 0.0
        %v4258 = vmax.f32 %v4254, 0.0
        %v4259 = vpack.c.bf16 %v4256, %v4255
        %v4260 = vpack.c.bf16 %v4258, %v4257
        %v4262 = vsel %vm1305, %v4259, 0
        %v4265 = vsel %vm1305, %v4260, 0
        %4267 = vmatprep.subr.bf16.mxu0 0
        %4268 = vmatpush1.bf16.msra.mxu0 0
        %4269 = vmatprep.subr.bf16.mxu0 0
        %4270 = vmatpush1.bf16.msra.mxu0 0
        %4271 = vmatprep.subr.bf16.mxu0 0
        %4272 = vmatpush1.bf16.msra.mxu0 0
        %4273 = vmatprep.subr.bf16.mxu0 0
        %4274 = vmatpush1.bf16.msra.mxu0 0
        %4275 = vmatprep.subr.bf16.mxu0 0
        %4276 = vmatpush1.bf16.msra.mxu0 %v3732
        %4277 = vmatprep.subr.bf16.mxu0 0
        %4278 = vmatpush1.bf16.msra.mxu0 %v3731
        %4279 = vmatprep.subr.bf16.mxu0 0
        %4280 = vmatpush1.bf16.msra.mxu0 %v3730
        %4281 = vmatprep.subr.bf16.mxu0 0
        %4282 = vmatpush1.bf16.msra.mxu0 %v3729
        %4283 = vmatprep.subr.bf16.mxu0 0
        %4284 = vmatpush2.bf16.msra.mxu0 0
        %4285 = vmatprep.subr.bf16.mxu0 0
        %4286 = vmatpush2.bf16.msra.mxu0 0
        %4287 = vmatprep.subr.bf16.mxu0 0
        %4288 = vmatpush2.bf16.msra.mxu0 0
        %4289 = vmatprep.subr.bf16.mxu0 0
        %4290 = vmatpush2.bf16.msra.mxu0 0
        %4291 = vmatprep.subr.bf16.mxu0 0
        %4292 = vmatpush2.bf16.msra.mxu0 0
        %4293 = vmatprep.subr.bf16.mxu0 0
        %4294 = vmatpush2.bf16.msra.mxu0 0
        %4295 = vmatprep.subr.bf16.mxu0 0
        %4296 = vmatpush2.bf16.msra.mxu0 0
        %4297 = vmatprep.subr.bf16.mxu0 0
        %4298 = vmatpush2.bf16.msra.mxu0 0
        %4299 = vmatprep.mubr.bf16.mxu0 0
        %4300 = vmatmul.mubr.bf16.gmra.mxu0 %v4262
        %v4301 = vpop.f32.mrf.mxu0
        %v4302 = vadd.f32 0.0, %v4301
        %v4303 = vpop.f32.mrf.mxu0
        %v4304 = vpop.f32.mrf.mxu0
        %v4305 = vadd.f32 0.0, %v4304
        %v4306 = vpop.f32.mrf.mxu0
        %4307 = vmatprep.mubr.bf16.mxu0 0
        %4308 = vmatmul.mubr.bf16.gmra.mxu0 %v4265
        %v4309 = vpop.f32.mrf.mxu0
        %v4310 = vadd.f32 0.0, %v4309
        %v4311 = vpop.f32.mrf.mxu0
        %v4312 = vpop.f32.mrf.mxu0
        %v4313 = vadd.f32 0.0, %v4312
        %v4314 = vpop.f32.mrf.mxu0
        %4315 = vdwg.mxu0
        %v4316 = vmax.f32 %v4054, %v4302
        %v4317 = vmax.f32 %v4055, %v4305
        %v4318 = vmax.f32 %v4056, %v4310
        %v4319 = vmax.f32 %v4057, %v4313
        %v4320 = vsel %vm4142, 1e+30, %v4058
        %v4321 = vsel %vm4143, 1e+30, %v4059
        %v4322 = vsel %vm4144, 1e+30, %v4060
        %v4323 = vsel %vm4145, 1e+30, %v4061
        %v4324 = vsel %vm1065, %v4320, inf
        %4325 = vmin.xlane.f32.xlu0 %v4324
        %v4326 = vpop.xlane.xlu0 %4325
        %v4327 = vsel %vm1065, %v4321, inf
        %4328 = vmin.xlane.f32.xlu0 %v4327
        %v4329 = vpop.xlane.xlu0 %4328
        %v4330 = vsel %vm1065, %v4322, inf
        %4331 = vmin.xlane.f32.xlu0 %v4330
        %v4332 = vpop.xlane.xlu0 %4331
        %v4333 = vsel %vm1065, %v4323, inf
        %4334 = vmin.xlane.f32.xlu0 %v4333
        %v4335 = vpop.xlane.xlu0 %4334
        %vm4336 = vcmp.le.f32.partialorder %v4320, %v4326
        %vm4337 = vcmp.le.f32.partialorder %v4321, %v4329
        %vm4338 = vcmp.le.f32.partialorder %v4322, %v4332
        %vm4339 = vcmp.le.f32.partialorder %v4323, %v4335
        %v4340 = vsel %vm4336, %v1064, 32
        %v4341 = vsel %vm4337, %v1064, 32
        %v4342 = vsel %vm4338, %v1064, 32
        %v4343 = vsel %vm4339, %v1064, 32
        %v4344 = vsel %vm1065, %v4340, 2147483647
        %v4345 = vand.u32 %v4344, 65535
        %v4346 = vshra.s32 %v4344, 16
        %v4347 = vcvt.s32.f32 %v4345
        %v4348 = vcvt.s32.f32 %v4346
        %4349 = vmin.xlane.f32.xlu0 %v4348
        %v4350 = vpop.xlane.xlu0 %4349
        %vm4351 = vcmp.eq.f32.partialorder %v4348, %v4350
        %v4352 = vsel %vm4351, %v4347, inf
        %4353 = vmin.xlane.f32.xlu0 %v4352
        %v4354 = vpop.xlane.xlu0 %4353
        %v4355 = vcvt.f32.s32 %v4354
        %v4356 = vcvt.f32.s32 %v4350
        %v4357 = vshll.u32 %v4356, 16
        %v4358 = vadd.s32 %v4357, %v4355
        %v4359 = vsel %vm1065, %v4341, 2147483647
        %v4360 = vand.u32 %v4359, 65535
        %v4361 = vshra.s32 %v4359, 16
        %v4362 = vcvt.s32.f32 %v4360
        %v4363 = vcvt.s32.f32 %v4361
        %4364 = vmin.xlane.f32.xlu0 %v4363
        %v4365 = vpop.xlane.xlu0 %4364
        %vm4366 = vcmp.eq.f32.partialorder %v4363, %v4365
        %v4367 = vsel %vm4366, %v4362, inf
        %4368 = vmin.xlane.f32.xlu0 %v4367
        %v4369 = vpop.xlane.xlu0 %4368
        %v4370 = vcvt.f32.s32 %v4369
        %v4371 = vcvt.f32.s32 %v4365
        %v4372 = vshll.u32 %v4371, 16
        %v4373 = vadd.s32 %v4372, %v4370
        %v4374 = vsel %vm1065, %v4342, 2147483647
        %v4375 = vand.u32 %v4374, 65535
        %v4376 = vshra.s32 %v4374, 16
        %v4377 = vcvt.s32.f32 %v4375
        %v4378 = vcvt.s32.f32 %v4376
        %4379 = vmin.xlane.f32.xlu0 %v4378
        %v4380 = vpop.xlane.xlu0 %4379
        %vm4381 = vcmp.eq.f32.partialorder %v4378, %v4380
        %v4382 = vsel %vm4381, %v4377, inf
        %4383 = vmin.xlane.f32.xlu0 %v4382
        %v4384 = vpop.xlane.xlu0 %4383
        %v4385 = vcvt.f32.s32 %v4384
        %v4386 = vcvt.f32.s32 %v4380
        %v4387 = vshll.u32 %v4386, 16
        %v4388 = vadd.s32 %v4387, %v4385
        %v4389 = vsel %vm1065, %v4343, 2147483647
        %v4390 = vand.u32 %v4389, 65535
        %v4391 = vshra.s32 %v4389, 16
        %v4392 = vcvt.s32.f32 %v4390
        %v4393 = vcvt.s32.f32 %v4391
        %4394 = vmin.xlane.f32.xlu0 %v4393
        %v4395 = vpop.xlane.xlu0 %4394
        %vm4396 = vcmp.eq.f32.partialorder %v4393, %v4395
        %v4397 = vsel %vm4396, %v4392, inf
        %4398 = vmin.xlane.f32.xlu0 %v4397
        %v4399 = vpop.xlane.xlu0 %4398
        %v4400 = vcvt.f32.s32 %v4399
        %v4401 = vcvt.f32.s32 %v4395
        %v4402 = vshll.u32 %v4401, 16
        %v4403 = vadd.s32 %v4402, %v4400
        %vm4404 = vcmp.eq.s32.totalorder %v1064, %v4358
        %vm4405 = vcmp.eq.s32.totalorder %v1064, %v4373
        %vm4406 = vcmp.eq.s32.totalorder %v1064, %v4388
        %vm4407 = vcmp.eq.s32.totalorder %v1064, %v4403
        %v4408 = vsel %vm4404, 1, 0
        %v4409 = vsel %vm4405, 1, 0
        %v4410 = vsel %vm4406, 1, 0
        %v4411 = vsel %vm4407, 1, 0
        %v4412 = vcvt.s32.f32 %v4408
        %v4413 = vcvt.s32.f32 %v4409
        %v4414 = vcvt.s32.f32 %v4410
        %v4415 = vcvt.s32.f32 %v4411
        %v4417 = vsel %vm1065, %v4412, 0
        %v4420 = vsel %vm1065, %v4413, 0
        %v4423 = vsel %vm1065, %v4414, 0
        %v4426 = vsel %vm1065, %v4415, 0
        %4428 = vmatprep.subr.mxu0 0.0
        %4429 = vmatpush1.msra.mxu0 0.0
        %4430 = vmatprep.subr.mxu0 0.0
        %4431 = vmatpush1.msra.mxu0 0.0
        %4432 = vmatprep.subr.mxu0 0.0
        %4433 = vmatpush1.msra.mxu0 0.0
        %4434 = vmatprep.subr.mxu0 0.0
        %4435 = vmatpush1.msra.mxu0 0.0
        %4436 = vmatprep.subr.mxu0 0.0
        %4437 = vmatpush1.msra.mxu0 0.0
        %4438 = vmatprep.subr.mxu0 0.0
        %4439 = vmatpush1.msra.mxu0 0.0
        %4440 = vmatprep.subr.mxu0 0.0
        %4441 = vmatpush1.msra.mxu0 0.0
        %4442 = vmatprep.subr.mxu0 0.0
        %4443 = vmatpush1.msra.mxu0 0.0
        %4444 = vmatprep.subr.mxu0 0.0
        %4445 = vmatpush1.msra.mxu0 0.0
        %4446 = vmatprep.subr.mxu0 0.0
        %4447 = vmatpush1.msra.mxu0 0.0
        %4448 = vmatprep.subr.mxu0 0.0
        %4449 = vmatpush1.msra.mxu0 0.0
        %4450 = vmatprep.subr.mxu0 0.0
        %4451 = vmatpush1.msra.mxu0 0.0
        %4452 = vmatprep.subr.mxu0 0.0
        %4453 = vmatpush1.msra.mxu0 %v3601
        %4454 = vmatprep.subr.mxu0 0.0
        %4455 = vmatpush1.msra.mxu0 %v3599
        %4456 = vmatprep.subr.mxu0 0.0
        %4457 = vmatpush1.msra.mxu0 %v3597
        %4458 = vmatprep.subr.mxu0 0.0
        %4459 = vmatpush1.msra.mxu0 %v3595
        %4460 = vmatprep.subr.mxu0 0.0
        %4461 = vmatpush2.msra.mxu0 0.0
        %4462 = vmatprep.subr.mxu0 0.0
        %4463 = vmatpush2.msra.mxu0 0.0
        %4464 = vmatprep.subr.mxu0 0.0
        %4465 = vmatpush2.msra.mxu0 0.0
        %4466 = vmatprep.subr.mxu0 0.0
        %4467 = vmatpush2.msra.mxu0 0.0
        %4468 = vmatprep.subr.mxu0 0.0
        %4469 = vmatpush2.msra.mxu0 0.0
        %4470 = vmatprep.subr.mxu0 0.0
        %4471 = vmatpush2.msra.mxu0 0.0
        %4472 = vmatprep.subr.mxu0 0.0
        %4473 = vmatpush2.msra.mxu0 0.0
        %4474 = vmatprep.subr.mxu0 0.0
        %4475 = vmatpush2.msra.mxu0 0.0
        %4476 = vmatprep.subr.mxu0 0.0
        %4477 = vmatpush2.msra.mxu0 0.0
        %4478 = vmatprep.subr.mxu0 0.0
        %4479 = vmatpush2.msra.mxu0 0.0
        %4480 = vmatprep.subr.mxu0 0.0
        %4481 = vmatpush2.msra.mxu0 0.0
        %4482 = vmatprep.subr.mxu0 0.0
        %4483 = vmatpush2.msra.mxu0 0.0
        %4484 = vmatprep.subr.mxu0 0.0
        %4485 = vmatpush2.msra.mxu0 0.0
        %4486 = vmatprep.subr.mxu0 0.0
        %4487 = vmatpush2.msra.mxu0 0.0
        %4488 = vmatprep.subr.mxu0 0.0
        %4489 = vmatpush2.msra.mxu0 0.0
        %4490 = vmatprep.subr.mxu0 0.0
        %4491 = vmatpush2.msra.mxu0 0.0
        %4492 = vmatprep.mubr.f32.mxu0 0.0
        %4493 = vmatmul.mubr.f32.gmra.mxu0 %v4417
        %v4494 = vpop.f32.mrf.mxu0
        %v4495 = vadd.f32 0.0, %v4494
        %v4496 = vpop.f32.mrf.mxu0
        %4497 = vmatprep.mubr.f32.mxu0 0.0
        %4498 = vmatmul.mubr.f32.gmra.mxu0 %v4420
        %v4499 = vpop.f32.mrf.mxu0
        %v4500 = vadd.f32 0.0, %v4499
        %v4501 = vpop.f32.mrf.mxu0
        %4502 = vmatprep.mubr.f32.mxu0 0.0
        %4503 = vmatmul.mubr.f32.gmra.mxu0 %v4423
        %v4504 = vpop.f32.mrf.mxu0
        %v4505 = vadd.f32 0.0, %v4504
        %v4506 = vpop.f32.mrf.mxu0
        %4507 = vmatprep.mubr.f32.mxu0 0.0
        %4508 = vmatmul.mubr.f32.gmra.mxu0 %v4426
        %v4509 = vpop.f32.mrf.mxu0
        %v4510 = vadd.f32 0.0, %v4509
        %v4511 = vpop.f32.mrf.mxu0
        %4512 = vdwg.mxu0
        %v4513 = vadd.f32 %v3494, %v4495
        %v4514 = vadd.f32 %v3495, %v4500
        %v4515 = vadd.f32 %v3496, %v4505
        %v4516 = vadd.f32 %v3497, %v4510
        %v4517 = vmax.f32 %v4513, 0.0
        %v4518 = vmax.f32 %v4514, 0.0
        %v4519 = vmax.f32 %v4515, 0.0
        %v4520 = vmax.f32 %v4516, 0.0
        %v4521 = vpack.c.bf16 %v4518, %v4517
        %v4522 = vpack.c.bf16 %v4520, %v4519
        %v4524 = vsel %vm1305, %v4521, 0
        %v4527 = vsel %vm1305, %v4522, 0
        %4529 = vmatprep.subr.bf16.mxu0 0
        %4530 = vmatpush1.bf16.msra.mxu0 0
        %4531 = vmatprep.subr.bf16.mxu0 0
        %4532 = vmatpush1.bf16.msra.mxu0 0
        %4533 = vmatprep.subr.bf16.mxu0 0
        %4534 = vmatpush1.bf16.msra.mxu0 0
        %4535 = vmatprep.subr.bf16.mxu0 0
        %4536 = vmatpush1.bf16.msra.mxu0 0
        %4537 = vmatprep.subr.bf16.mxu0 0
        %4538 = vmatpush1.bf16.msra.mxu0 %v3732
        %4539 = vmatprep.subr.bf16.mxu0 0
        %4540 = vmatpush1.bf16.msra.mxu0 %v3731
        %4541 = vmatprep.subr.bf16.mxu0 0
        %4542 = vmatpush1.bf16.msra.mxu0 %v3730
        %4543 = vmatprep.subr.bf16.mxu0 0
        %4544 = vmatpush1.bf16.msra.mxu0 %v3729
        %4545 = vmatprep.subr.bf16.mxu0 0
        %4546 = vmatpush2.bf16.msra.mxu0 0
        %4547 = vmatprep.subr.bf16.mxu0 0
        %4548 = vmatpush2.bf16.msra.mxu0 0
        %4549 = vmatprep.subr.bf16.mxu0 0
        %4550 = vmatpush2.bf16.msra.mxu0 0
        %4551 = vmatprep.subr.bf16.mxu0 0
        %4552 = vmatpush2.bf16.msra.mxu0 0
        %4553 = vmatprep.subr.bf16.mxu0 0
        %4554 = vmatpush2.bf16.msra.mxu0 0
        %4555 = vmatprep.subr.bf16.mxu0 0
        %4556 = vmatpush2.bf16.msra.mxu0 0
        %4557 = vmatprep.subr.bf16.mxu0 0
        %4558 = vmatpush2.bf16.msra.mxu0 0
        %4559 = vmatprep.subr.bf16.mxu0 0
        %4560 = vmatpush2.bf16.msra.mxu0 0
        %4561 = vmatprep.mubr.bf16.mxu0 0
        %4562 = vmatmul.mubr.bf16.gmra.mxu0 %v4524
        %v4563 = vpop.f32.mrf.mxu0
        %v4564 = vadd.f32 0.0, %v4563
        %v4565 = vpop.f32.mrf.mxu0
        %v4566 = vpop.f32.mrf.mxu0
        %v4567 = vadd.f32 0.0, %v4566
        %v4568 = vpop.f32.mrf.mxu0
        %4569 = vmatprep.mubr.bf16.mxu0 0
        %4570 = vmatmul.mubr.bf16.gmra.mxu0 %v4527
        %v4571 = vpop.f32.mrf.mxu0
        %v4572 = vadd.f32 0.0, %v4571
        %v4573 = vpop.f32.mrf.mxu0
        %v4574 = vpop.f32.mrf.mxu0
        %v4575 = vadd.f32 0.0, %v4574
        %v4576 = vpop.f32.mrf.mxu0
        %4577 = vdwg.mxu0
        %v4578 = vmax.f32 %v4316, %v4564
        %v4579 = vmax.f32 %v4317, %v4567
        %v4580 = vmax.f32 %v4318, %v4572
        %v4581 = vmax.f32 %v4319, %v4575
        %v4582 = vsel %vm4404, 1e+30, %v4320
        %v4583 = vsel %vm4405, 1e+30, %v4321
        %v4584 = vsel %vm4406, 1e+30, %v4322
        %v4585 = vsel %vm4407, 1e+30, %v4323
        %v4586 = vsel %vm1065, %v4582, inf
        %4587 = vmin.xlane.f32.xlu0 %v4586
        %v4588 = vpop.xlane.xlu0 %4587
        %v4589 = vsel %vm1065, %v4583, inf
        %4590 = vmin.xlane.f32.xlu0 %v4589
        %v4591 = vpop.xlane.xlu0 %4590
        %v4592 = vsel %vm1065, %v4584, inf
        %4593 = vmin.xlane.f32.xlu0 %v4592
        %v4594 = vpop.xlane.xlu0 %4593
        %v4595 = vsel %vm1065, %v4585, inf
        %4596 = vmin.xlane.f32.xlu0 %v4595
        %v4597 = vpop.xlane.xlu0 %4596
        %vm4598 = vcmp.le.f32.partialorder %v4582, %v4588
        %vm4599 = vcmp.le.f32.partialorder %v4583, %v4591
        %vm4600 = vcmp.le.f32.partialorder %v4584, %v4594
        %vm4601 = vcmp.le.f32.partialorder %v4585, %v4597
        %v4602 = vsel %vm4598, %v1064, 32
        %v4603 = vsel %vm4599, %v1064, 32
        %v4604 = vsel %vm4600, %v1064, 32
        %v4605 = vsel %vm4601, %v1064, 32
        %v4606 = vsel %vm1065, %v4602, 2147483647
        %v4607 = vand.u32 %v4606, 65535
        %v4608 = vshra.s32 %v4606, 16
        %v4609 = vcvt.s32.f32 %v4607
        %v4610 = vcvt.s32.f32 %v4608
        %4611 = vmin.xlane.f32.xlu0 %v4610
        %v4612 = vpop.xlane.xlu0 %4611
        %vm4613 = vcmp.eq.f32.partialorder %v4610, %v4612
        %v4614 = vsel %vm4613, %v4609, inf
        %4615 = vmin.xlane.f32.xlu0 %v4614
        %v4616 = vpop.xlane.xlu0 %4615
        %v4617 = vcvt.f32.s32 %v4616
        %v4618 = vcvt.f32.s32 %v4612
        %v4619 = vshll.u32 %v4618, 16
        %v4620 = vadd.s32 %v4619, %v4617
        %v4621 = vsel %vm1065, %v4603, 2147483647
        %v4622 = vand.u32 %v4621, 65535
        %v4623 = vshra.s32 %v4621, 16
        %v4624 = vcvt.s32.f32 %v4622
        %v4625 = vcvt.s32.f32 %v4623
        %4626 = vmin.xlane.f32.xlu0 %v4625
        %v4627 = vpop.xlane.xlu0 %4626
        %vm4628 = vcmp.eq.f32.partialorder %v4625, %v4627
        %v4629 = vsel %vm4628, %v4624, inf
        %4630 = vmin.xlane.f32.xlu0 %v4629
        %v4631 = vpop.xlane.xlu0 %4630
        %v4632 = vcvt.f32.s32 %v4631
        %v4633 = vcvt.f32.s32 %v4627
        %v4634 = vshll.u32 %v4633, 16
        %v4635 = vadd.s32 %v4634, %v4632
        %v4636 = vsel %vm1065, %v4604, 2147483647
        %v4637 = vand.u32 %v4636, 65535
        %v4638 = vshra.s32 %v4636, 16
        %v4639 = vcvt.s32.f32 %v4637
        %v4640 = vcvt.s32.f32 %v4638
        %4641 = vmin.xlane.f32.xlu0 %v4640
        %v4642 = vpop.xlane.xlu0 %4641
        %vm4643 = vcmp.eq.f32.partialorder %v4640, %v4642
        %v4644 = vsel %vm4643, %v4639, inf
        %4645 = vmin.xlane.f32.xlu0 %v4644
        %v4646 = vpop.xlane.xlu0 %4645
        %v4647 = vcvt.f32.s32 %v4646
        %v4648 = vcvt.f32.s32 %v4642
        %v4649 = vshll.u32 %v4648, 16
        %v4650 = vadd.s32 %v4649, %v4647
        %v4651 = vsel %vm1065, %v4605, 2147483647
        %v4652 = vand.u32 %v4651, 65535
        %v4653 = vshra.s32 %v4651, 16
        %v4654 = vcvt.s32.f32 %v4652
        %v4655 = vcvt.s32.f32 %v4653
        %4656 = vmin.xlane.f32.xlu0 %v4655
        %v4657 = vpop.xlane.xlu0 %4656
        %vm4658 = vcmp.eq.f32.partialorder %v4655, %v4657
        %v4659 = vsel %vm4658, %v4654, inf
        %4660 = vmin.xlane.f32.xlu0 %v4659
        %v4661 = vpop.xlane.xlu0 %4660
        %v4662 = vcvt.f32.s32 %v4661
        %v4663 = vcvt.f32.s32 %v4657
        %v4664 = vshll.u32 %v4663, 16
        %v4665 = vadd.s32 %v4664, %v4662
        %vm4666 = vcmp.eq.s32.totalorder %v1064, %v4620
        %vm4667 = vcmp.eq.s32.totalorder %v1064, %v4635
        %vm4668 = vcmp.eq.s32.totalorder %v1064, %v4650
        %vm4669 = vcmp.eq.s32.totalorder %v1064, %v4665
        %v4670 = vsel %vm4666, 1, 0
        %v4671 = vsel %vm4667, 1, 0
        %v4672 = vsel %vm4668, 1, 0
        %v4673 = vsel %vm4669, 1, 0
        %v4674 = vcvt.s32.f32 %v4670
        %v4675 = vcvt.s32.f32 %v4671
        %v4676 = vcvt.s32.f32 %v4672
        %v4677 = vcvt.s32.f32 %v4673
        %v4679 = vsel %vm1065, %v4674, 0
        %v4682 = vsel %vm1065, %v4675, 0
        %v4685 = vsel %vm1065, %v4676, 0
        %v4688 = vsel %vm1065, %v4677, 0
        %4690 = vmatprep.subr.mxu0 0.0
        %4691 = vmatpush1.msra.mxu0 0.0
        %4692 = vmatprep.subr.mxu0 0.0
        %4693 = vmatpush1.msra.mxu0 0.0
        %4694 = vmatprep.subr.mxu0 0.0
        %4695 = vmatpush1.msra.mxu0 0.0
        %4696 = vmatprep.subr.mxu0 0.0
        %4697 = vmatpush1.msra.mxu0 0.0
        %4698 = vmatprep.subr.mxu0 0.0
        %4699 = vmatpush1.msra.mxu0 0.0
        %4700 = vmatprep.subr.mxu0 0.0
        %4701 = vmatpush1.msra.mxu0 0.0
        %4702 = vmatprep.subr.mxu0 0.0
        %4703 = vmatpush1.msra.mxu0 0.0
        %4704 = vmatprep.subr.mxu0 0.0
        %4705 = vmatpush1.msra.mxu0 0.0
        %4706 = vmatprep.subr.mxu0 0.0
        %4707 = vmatpush1.msra.mxu0 0.0
        %4708 = vmatprep.subr.mxu0 0.0
        %4709 = vmatpush1.msra.mxu0 0.0
        %4710 = vmatprep.subr.mxu0 0.0
        %4711 = vmatpush1.msra.mxu0 0.0
        %4712 = vmatprep.subr.mxu0 0.0
        %4713 = vmatpush1.msra.mxu0 0.0
        %4714 = vmatprep.subr.mxu0 0.0
        %4715 = vmatpush1.msra.mxu0 %v3601
        %4716 = vmatprep.subr.mxu0 0.0
        %4717 = vmatpush1.msra.mxu0 %v3599
        %4718 = vmatprep.subr.mxu0 0.0
        %4719 = vmatpush1.msra.mxu0 %v3597
        %4720 = vmatprep.subr.mxu0 0.0
        %4721 = vmatpush1.msra.mxu0 %v3595
        %4722 = vmatprep.subr.mxu0 0.0
        %4723 = vmatpush2.msra.mxu0 0.0
        %4724 = vmatprep.subr.mxu0 0.0
        %4725 = vmatpush2.msra.mxu0 0.0
        %4726 = vmatprep.subr.mxu0 0.0
        %4727 = vmatpush2.msra.mxu0 0.0
        %4728 = vmatprep.subr.mxu0 0.0
        %4729 = vmatpush2.msra.mxu0 0.0
        %4730 = vmatprep.subr.mxu0 0.0
        %4731 = vmatpush2.msra.mxu0 0.0
        %4732 = vmatprep.subr.mxu0 0.0
        %4733 = vmatpush2.msra.mxu0 0.0
        %4734 = vmatprep.subr.mxu0 0.0
        %4735 = vmatpush2.msra.mxu0 0.0
        %4736 = vmatprep.subr.mxu0 0.0
        %4737 = vmatpush2.msra.mxu0 0.0
        %4738 = vmatprep.subr.mxu0 0.0
        %4739 = vmatpush2.msra.mxu0 0.0
        %4740 = vmatprep.subr.mxu0 0.0
        %4741 = vmatpush2.msra.mxu0 0.0
        %4742 = vmatprep.subr.mxu0 0.0
        %4743 = vmatpush2.msra.mxu0 0.0
        %4744 = vmatprep.subr.mxu0 0.0
        %4745 = vmatpush2.msra.mxu0 0.0
        %4746 = vmatprep.subr.mxu0 0.0
        %4747 = vmatpush2.msra.mxu0 0.0
        %4748 = vmatprep.subr.mxu0 0.0
        %4749 = vmatpush2.msra.mxu0 0.0
        %4750 = vmatprep.subr.mxu0 0.0
        %4751 = vmatpush2.msra.mxu0 0.0
        %4752 = vmatprep.subr.mxu0 0.0
        %4753 = vmatpush2.msra.mxu0 0.0
        %4754 = vmatprep.mubr.f32.mxu0 0.0
        %4755 = vmatmul.mubr.f32.gmra.mxu0 %v4679
        %v4756 = vpop.f32.mrf.mxu0
        %v4757 = vadd.f32 0.0, %v4756
        %v4758 = vpop.f32.mrf.mxu0
        %4759 = vmatprep.mubr.f32.mxu0 0.0
        %4760 = vmatmul.mubr.f32.gmra.mxu0 %v4682
        %v4761 = vpop.f32.mrf.mxu0
        %v4762 = vadd.f32 0.0, %v4761
        %v4763 = vpop.f32.mrf.mxu0
        %4764 = vmatprep.mubr.f32.mxu0 0.0
        %4765 = vmatmul.mubr.f32.gmra.mxu0 %v4685
        %v4766 = vpop.f32.mrf.mxu0
        %v4767 = vadd.f32 0.0, %v4766
        %v4768 = vpop.f32.mrf.mxu0
        %4769 = vmatprep.mubr.f32.mxu0 0.0
        %4770 = vmatmul.mubr.f32.gmra.mxu0 %v4688
        %v4771 = vpop.f32.mrf.mxu0
        %v4772 = vadd.f32 0.0, %v4771
        %v4773 = vpop.f32.mrf.mxu0
        %4774 = vdwg.mxu0
        %v4775 = vadd.f32 %v3494, %v4757
        %v4776 = vadd.f32 %v3495, %v4762
        %v4777 = vadd.f32 %v3496, %v4767
        %v4778 = vadd.f32 %v3497, %v4772
        %v4779 = vmax.f32 %v4775, 0.0
        %v4780 = vmax.f32 %v4776, 0.0
        %v4781 = vmax.f32 %v4777, 0.0
        %v4782 = vmax.f32 %v4778, 0.0
        %v4783 = vpack.c.bf16 %v4780, %v4779
        %v4784 = vpack.c.bf16 %v4782, %v4781
        %v4786 = vsel %vm1305, %v4783, 0
        %v4789 = vsel %vm1305, %v4784, 0
        %4791 = vmatprep.subr.bf16.mxu0 0
        %4792 = vmatpush1.bf16.msra.mxu0 0
        %4793 = vmatprep.subr.bf16.mxu0 0
        %4794 = vmatpush1.bf16.msra.mxu0 0
        %4795 = vmatprep.subr.bf16.mxu0 0
        %4796 = vmatpush1.bf16.msra.mxu0 0
        %4797 = vmatprep.subr.bf16.mxu0 0
        %4798 = vmatpush1.bf16.msra.mxu0 0
        %4799 = vmatprep.subr.bf16.mxu0 0
        %4800 = vmatpush1.bf16.msra.mxu0 %v3732
        %4801 = vmatprep.subr.bf16.mxu0 0
        %4802 = vmatpush1.bf16.msra.mxu0 %v3731
        %4803 = vmatprep.subr.bf16.mxu0 0
        %4804 = vmatpush1.bf16.msra.mxu0 %v3730
        %4805 = vmatprep.subr.bf16.mxu0 0
        %4806 = vmatpush1.bf16.msra.mxu0 %v3729
        %4807 = vmatprep.subr.bf16.mxu0 0
        %4808 = vmatpush2.bf16.msra.mxu0 0
        %4809 = vmatprep.subr.bf16.mxu0 0
        %4810 = vmatpush2.bf16.msra.mxu0 0
        %4811 = vmatprep.subr.bf16.mxu0 0
        %4812 = vmatpush2.bf16.msra.mxu0 0
        %4813 = vmatprep.subr.bf16.mxu0 0
        %4814 = vmatpush2.bf16.msra.mxu0 0
        %4815 = vmatprep.subr.bf16.mxu0 0
        %4816 = vmatpush2.bf16.msra.mxu0 0
        %4817 = vmatprep.subr.bf16.mxu0 0
        %4818 = vmatpush2.bf16.msra.mxu0 0
        %4819 = vmatprep.subr.bf16.mxu0 0
        %4820 = vmatpush2.bf16.msra.mxu0 0
        %4821 = vmatprep.subr.bf16.mxu0 0
        %4822 = vmatpush2.bf16.msra.mxu0 0
        %4823 = vmatprep.mubr.bf16.mxu0 0
        %4824 = vmatmul.mubr.bf16.gmra.mxu0 %v4786
        %v4825 = vpop.f32.mrf.mxu0
        %v4826 = vadd.f32 0.0, %v4825
        %v4827 = vpop.f32.mrf.mxu0
        %v4828 = vpop.f32.mrf.mxu0
        %v4829 = vadd.f32 0.0, %v4828
        %v4830 = vpop.f32.mrf.mxu0
        %4831 = vmatprep.mubr.bf16.mxu0 0
        %4832 = vmatmul.mubr.bf16.gmra.mxu0 %v4789
        %v4833 = vpop.f32.mrf.mxu0
        %v4834 = vadd.f32 0.0, %v4833
        %v4835 = vpop.f32.mrf.mxu0
        %v4836 = vpop.f32.mrf.mxu0
        %v4837 = vadd.f32 0.0, %v4836
        %v4838 = vpop.f32.mrf.mxu0
        %4839 = vdwg.mxu0
        %v4840 = vmax.f32 %v4578, %v4826
        %v4841 = vmax.f32 %v4579, %v4829
        %v4842 = vmax.f32 %v4580, %v4834
        %v4843 = vmax.f32 %v4581, %v4837
        %v4844 = vsel %vm4666, 1e+30, %v4582
        %v4845 = vsel %vm4667, 1e+30, %v4583
        %v4846 = vsel %vm4668, 1e+30, %v4584
        %v4847 = vsel %vm4669, 1e+30, %v4585
        %v4848 = vsel %vm1065, %v4844, inf
        %4849 = vmin.xlane.f32.xlu0 %v4848
        %v4850 = vpop.xlane.xlu0 %4849
        %v4851 = vsel %vm1065, %v4845, inf
        %4852 = vmin.xlane.f32.xlu0 %v4851
        %v4853 = vpop.xlane.xlu0 %4852
        %v4854 = vsel %vm1065, %v4846, inf
        %4855 = vmin.xlane.f32.xlu0 %v4854
        %v4856 = vpop.xlane.xlu0 %4855
        %v4857 = vsel %vm1065, %v4847, inf
        %4858 = vmin.xlane.f32.xlu0 %v4857
        %v4859 = vpop.xlane.xlu0 %4858
        %vm4860 = vcmp.le.f32.partialorder %v4844, %v4850
        %vm4861 = vcmp.le.f32.partialorder %v4845, %v4853
        %vm4862 = vcmp.le.f32.partialorder %v4846, %v4856
        %vm4863 = vcmp.le.f32.partialorder %v4847, %v4859
        %v4864 = vsel %vm4860, %v1064, 32
        %v4865 = vsel %vm4861, %v1064, 32
        %v4866 = vsel %vm4862, %v1064, 32
        %v4867 = vsel %vm4863, %v1064, 32
        %v4868 = vsel %vm1065, %v4864, 2147483647
        %v4869 = vand.u32 %v4868, 65535
        %v4870 = vshra.s32 %v4868, 16
        %v4871 = vcvt.s32.f32 %v4869
        %v4872 = vcvt.s32.f32 %v4870
        %4873 = vmin.xlane.f32.xlu0 %v4872
        %v4874 = vpop.xlane.xlu0 %4873
        %vm4875 = vcmp.eq.f32.partialorder %v4872, %v4874
        %v4876 = vsel %vm4875, %v4871, inf
        %4877 = vmin.xlane.f32.xlu0 %v4876
        %v4878 = vpop.xlane.xlu0 %4877
        %v4879 = vcvt.f32.s32 %v4878
        %v4880 = vcvt.f32.s32 %v4874
        %v4881 = vshll.u32 %v4880, 16
        %v4882 = vadd.s32 %v4881, %v4879
        %v4883 = vsel %vm1065, %v4865, 2147483647
        %v4884 = vand.u32 %v4883, 65535
        %v4885 = vshra.s32 %v4883, 16
        %v4886 = vcvt.s32.f32 %v4884
        %v4887 = vcvt.s32.f32 %v4885
        %4888 = vmin.xlane.f32.xlu0 %v4887
        %v4889 = vpop.xlane.xlu0 %4888
        %vm4890 = vcmp.eq.f32.partialorder %v4887, %v4889
        %v4891 = vsel %vm4890, %v4886, inf
        %4892 = vmin.xlane.f32.xlu0 %v4891
        %v4893 = vpop.xlane.xlu0 %4892
        %v4894 = vcvt.f32.s32 %v4893
        %v4895 = vcvt.f32.s32 %v4889
        %v4896 = vshll.u32 %v4895, 16
        %v4897 = vadd.s32 %v4896, %v4894
        %v4898 = vsel %vm1065, %v4866, 2147483647
        %v4899 = vand.u32 %v4898, 65535
        %v4900 = vshra.s32 %v4898, 16
        %v4901 = vcvt.s32.f32 %v4899
        %v4902 = vcvt.s32.f32 %v4900
        %4903 = vmin.xlane.f32.xlu0 %v4902
        %v4904 = vpop.xlane.xlu0 %4903
        %vm4905 = vcmp.eq.f32.partialorder %v4902, %v4904
        %v4906 = vsel %vm4905, %v4901, inf
        %4907 = vmin.xlane.f32.xlu0 %v4906
        %v4908 = vpop.xlane.xlu0 %4907
        %v4909 = vcvt.f32.s32 %v4908
        %v4910 = vcvt.f32.s32 %v4904
        %v4911 = vshll.u32 %v4910, 16
        %v4912 = vadd.s32 %v4911, %v4909
        %v4913 = vsel %vm1065, %v4867, 2147483647
        %v4914 = vand.u32 %v4913, 65535
        %v4915 = vshra.s32 %v4913, 16
        %v4916 = vcvt.s32.f32 %v4914
        %v4917 = vcvt.s32.f32 %v4915
        %4918 = vmin.xlane.f32.xlu0 %v4917
        %v4919 = vpop.xlane.xlu0 %4918
        %vm4920 = vcmp.eq.f32.partialorder %v4917, %v4919
        %v4921 = vsel %vm4920, %v4916, inf
        %4922 = vmin.xlane.f32.xlu0 %v4921
        %v4923 = vpop.xlane.xlu0 %4922
        %v4924 = vcvt.f32.s32 %v4923
        %v4925 = vcvt.f32.s32 %v4919
        %v4926 = vshll.u32 %v4925, 16
        %v4927 = vadd.s32 %v4926, %v4924
        %vm4928 = vcmp.eq.s32.totalorder %v1064, %v4882
        %vm4929 = vcmp.eq.s32.totalorder %v1064, %v4897
        %vm4930 = vcmp.eq.s32.totalorder %v1064, %v4912
        %vm4931 = vcmp.eq.s32.totalorder %v1064, %v4927
        %v4932 = vsel %vm4928, 1, 0
        %v4933 = vsel %vm4929, 1, 0
        %v4934 = vsel %vm4930, 1, 0
        %v4935 = vsel %vm4931, 1, 0
        %v4936 = vcvt.s32.f32 %v4932
        %v4937 = vcvt.s32.f32 %v4933
        %v4938 = vcvt.s32.f32 %v4934
        %v4939 = vcvt.s32.f32 %v4935
        %v4941 = vsel %vm1065, %v4936, 0
        %v4944 = vsel %vm1065, %v4937, 0
        %v4947 = vsel %vm1065, %v4938, 0
        %v4950 = vsel %vm1065, %v4939, 0
        %4952 = vmatprep.subr.mxu0 0.0
        %4953 = vmatpush1.msra.mxu0 0.0
        %4954 = vmatprep.subr.mxu0 0.0
        %4955 = vmatpush1.msra.mxu0 0.0
        %4956 = vmatprep.subr.mxu0 0.0
        %4957 = vmatpush1.msra.mxu0 0.0
        %4958 = vmatprep.subr.mxu0 0.0
        %4959 = vmatpush1.msra.mxu0 0.0
        %4960 = vmatprep.subr.mxu0 0.0
        %4961 = vmatpush1.msra.mxu0 0.0
        %4962 = vmatprep.subr.mxu0 0.0
        %4963 = vmatpush1.msra.mxu0 0.0
        %4964 = vmatprep.subr.mxu0 0.0
        %4965 = vmatpush1.msra.mxu0 0.0
        %4966 = vmatprep.subr.mxu0 0.0
        %4967 = vmatpush1.msra.mxu0 0.0
        %4968 = vmatprep.subr.mxu0 0.0
        %4969 = vmatpush1.msra.mxu0 0.0
        %4970 = vmatprep.subr.mxu0 0.0
        %4971 = vmatpush1.msra.mxu0 0.0
        %4972 = vmatprep.subr.mxu0 0.0
        %4973 = vmatpush1.msra.mxu0 0.0
        %4974 = vmatprep.subr.mxu0 0.0
        %4975 = vmatpush1.msra.mxu0 0.0
        %4976 = vmatprep.subr.mxu0 0.0
        %4977 = vmatpush1.msra.mxu0 %v3601
        %4978 = vmatprep.subr.mxu0 0.0
        %4979 = vmatpush1.msra.mxu0 %v3599
        %4980 = vmatprep.subr.mxu0 0.0
        %4981 = vmatpush1.msra.mxu0 %v3597
        %4982 = vmatprep.subr.mxu0 0.0
        %4983 = vmatpush1.msra.mxu0 %v3595
        %4984 = vmatprep.subr.mxu0 0.0
        %4985 = vmatpush2.msra.mxu0 0.0
        %4986 = vmatprep.subr.mxu0 0.0
        %4987 = vmatpush2.msra.mxu0 0.0
        %4988 = vmatprep.subr.mxu0 0.0
        %4989 = vmatpush2.msra.mxu0 0.0
        %4990 = vmatprep.subr.mxu0 0.0
        %4991 = vmatpush2.msra.mxu0 0.0
        %4992 = vmatprep.subr.mxu0 0.0
        %4993 = vmatpush2.msra.mxu0 0.0
        %4994 = vmatprep.subr.mxu0 0.0
        %4995 = vmatpush2.msra.mxu0 0.0
        %4996 = vmatprep.subr.mxu0 0.0
        %4997 = vmatpush2.msra.mxu0 0.0
        %4998 = vmatprep.subr.mxu0 0.0
        %4999 = vmatpush2.msra.mxu0 0.0
        %5000 = vmatprep.subr.mxu0 0.0
        %5001 = vmatpush2.msra.mxu0 0.0
        %5002 = vmatprep.subr.mxu0 0.0
        %5003 = vmatpush2.msra.mxu0 0.0
        %5004 = vmatprep.subr.mxu0 0.0
        %5005 = vmatpush2.msra.mxu0 0.0
        %5006 = vmatprep.subr.mxu0 0.0
        %5007 = vmatpush2.msra.mxu0 0.0
        %5008 = vmatprep.subr.mxu0 0.0
        %5009 = vmatpush2.msra.mxu0 0.0
        %5010 = vmatprep.subr.mxu0 0.0
        %5011 = vmatpush2.msra.mxu0 0.0
        %5012 = vmatprep.subr.mxu0 0.0
        %5013 = vmatpush2.msra.mxu0 0.0
        %5014 = vmatprep.subr.mxu0 0.0
        %5015 = vmatpush2.msra.mxu0 0.0
        %5016 = vmatprep.mubr.f32.mxu0 0.0
        %5017 = vmatmul.mubr.f32.gmra.mxu0 %v4941
        %v5018 = vpop.f32.mrf.mxu0
        %v5019 = vadd.f32 0.0, %v5018
        %v5020 = vpop.f32.mrf.mxu0
        %5021 = vmatprep.mubr.f32.mxu0 0.0
        %5022 = vmatmul.mubr.f32.gmra.mxu0 %v4944
        %v5023 = vpop.f32.mrf.mxu0
        %v5024 = vadd.f32 0.0, %v5023
        %v5025 = vpop.f32.mrf.mxu0
        %5026 = vmatprep.mubr.f32.mxu0 0.0
        %5027 = vmatmul.mubr.f32.gmra.mxu0 %v4947
        %v5028 = vpop.f32.mrf.mxu0
        %v5029 = vadd.f32 0.0, %v5028
        %v5030 = vpop.f32.mrf.mxu0
        %5031 = vmatprep.mubr.f32.mxu0 0.0
        %5032 = vmatmul.mubr.f32.gmra.mxu0 %v4950
        %v5033 = vpop.f32.mrf.mxu0
        %v5034 = vadd.f32 0.0, %v5033
        %v5035 = vpop.f32.mrf.mxu0
        %5036 = vdwg.mxu0
        %v5037 = vadd.f32 %v3494, %v5019
        %v5038 = vadd.f32 %v3495, %v5024
        %v5039 = vadd.f32 %v3496, %v5029
        %v5040 = vadd.f32 %v3497, %v5034
        %v5041 = vmax.f32 %v5037, 0.0
        %v5042 = vmax.f32 %v5038, 0.0
        %v5043 = vmax.f32 %v5039, 0.0
        %v5044 = vmax.f32 %v5040, 0.0
        %v5045 = vpack.c.bf16 %v5042, %v5041
        %v5046 = vpack.c.bf16 %v5044, %v5043
        %v5048 = vsel %vm1305, %v5045, 0
        %v5051 = vsel %vm1305, %v5046, 0
        %5053 = vmatprep.subr.bf16.mxu0 0
        %5054 = vmatpush1.bf16.msra.mxu0 0
        %5055 = vmatprep.subr.bf16.mxu0 0
        %5056 = vmatpush1.bf16.msra.mxu0 0
        %5057 = vmatprep.subr.bf16.mxu0 0
        %5058 = vmatpush1.bf16.msra.mxu0 0
        %5059 = vmatprep.subr.bf16.mxu0 0
        %5060 = vmatpush1.bf16.msra.mxu0 0
        %5061 = vmatprep.subr.bf16.mxu0 0
        %5062 = vmatpush1.bf16.msra.mxu0 %v3732
        %5063 = vmatprep.subr.bf16.mxu0 0
        %5064 = vmatpush1.bf16.msra.mxu0 %v3731
        %5065 = vmatprep.subr.bf16.mxu0 0
        %5066 = vmatpush1.bf16.msra.mxu0 %v3730
        %5067 = vmatprep.subr.bf16.mxu0 0
        %5068 = vmatpush1.bf16.msra.mxu0 %v3729
        %5069 = vmatprep.subr.bf16.mxu0 0
        %5070 = vmatpush2.bf16.msra.mxu0 0
        %5071 = vmatprep.subr.bf16.mxu0 0
        %5072 = vmatpush2.bf16.msra.mxu0 0
        %5073 = vmatprep.subr.bf16.mxu0 0
        %5074 = vmatpush2.bf16.msra.mxu0 0
        %5075 = vmatprep.subr.bf16.mxu0 0
        %5076 = vmatpush2.bf16.msra.mxu0 0
        %5077 = vmatprep.subr.bf16.mxu0 0
        %5078 = vmatpush2.bf16.msra.mxu0 0
        %5079 = vmatprep.subr.bf16.mxu0 0
        %5080 = vmatpush2.bf16.msra.mxu0 0
        %5081 = vmatprep.subr.bf16.mxu0 0
        %5082 = vmatpush2.bf16.msra.mxu0 0
        %5083 = vmatprep.subr.bf16.mxu0 0
        %5084 = vmatpush2.bf16.msra.mxu0 0
        %5085 = vmatprep.mubr.bf16.mxu0 0
        %5086 = vmatmul.mubr.bf16.gmra.mxu0 %v5048
        %v5087 = vpop.f32.mrf.mxu0
        %v5088 = vadd.f32 0.0, %v5087
        %v5089 = vpop.f32.mrf.mxu0
        %v5090 = vpop.f32.mrf.mxu0
        %v5091 = vadd.f32 0.0, %v5090
        %v5092 = vpop.f32.mrf.mxu0
        %5093 = vmatprep.mubr.bf16.mxu0 0
        %5094 = vmatmul.mubr.bf16.gmra.mxu0 %v5051
        %v5095 = vpop.f32.mrf.mxu0
        %v5096 = vadd.f32 0.0, %v5095
        %v5097 = vpop.f32.mrf.mxu0
        %v5098 = vpop.f32.mrf.mxu0
        %v5099 = vadd.f32 0.0, %v5098
        %v5100 = vpop.f32.mrf.mxu0
        %5101 = vdwg.mxu0
        %v5102 = vmax.f32 %v4840, %v5088
        %v5103 = vmax.f32 %v4841, %v5091
        %v5104 = vmax.f32 %v4842, %v5096
        %v5105 = vmax.f32 %v4843, %v5099
        %v5106 = vsel %vm4928, 1e+30, %v4844
        %v5107 = vsel %vm4929, 1e+30, %v4845
        %v5108 = vsel %vm4930, 1e+30, %v4846
        %v5109 = vsel %vm4931, 1e+30, %v4847
        %v5110 = vsel %vm1065, %v5106, inf
        %5111 = vmin.xlane.f32.xlu0 %v5110
        %v5112 = vpop.xlane.xlu0 %5111
        %v5113 = vsel %vm1065, %v5107, inf
        %5114 = vmin.xlane.f32.xlu0 %v5113
        %v5115 = vpop.xlane.xlu0 %5114
        %v5116 = vsel %vm1065, %v5108, inf
        %5117 = vmin.xlane.f32.xlu0 %v5116
        %v5118 = vpop.xlane.xlu0 %5117
        %v5119 = vsel %vm1065, %v5109, inf
        %5120 = vmin.xlane.f32.xlu0 %v5119
        %v5121 = vpop.xlane.xlu0 %5120
        %vm5122 = vcmp.le.f32.partialorder %v5106, %v5112
        %vm5123 = vcmp.le.f32.partialorder %v5107, %v5115
        %vm5124 = vcmp.le.f32.partialorder %v5108, %v5118
        %vm5125 = vcmp.le.f32.partialorder %v5109, %v5121
        %v5126 = vsel %vm5122, %v1064, 32
        %v5127 = vsel %vm5123, %v1064, 32
        %v5128 = vsel %vm5124, %v1064, 32
        %v5129 = vsel %vm5125, %v1064, 32
        %v5130 = vsel %vm1065, %v5126, 2147483647
        %v5131 = vand.u32 %v5130, 65535
        %v5132 = vshra.s32 %v5130, 16
        %v5133 = vcvt.s32.f32 %v5131
        %v5134 = vcvt.s32.f32 %v5132
        %5135 = vmin.xlane.f32.xlu0 %v5134
        %v5136 = vpop.xlane.xlu0 %5135
        %vm5137 = vcmp.eq.f32.partialorder %v5134, %v5136
        %v5138 = vsel %vm5137, %v5133, inf
        %5139 = vmin.xlane.f32.xlu0 %v5138
        %v5140 = vpop.xlane.xlu0 %5139
        %v5141 = vcvt.f32.s32 %v5140
        %v5142 = vcvt.f32.s32 %v5136
        %v5143 = vshll.u32 %v5142, 16
        %v5144 = vadd.s32 %v5143, %v5141
        %v5145 = vsel %vm1065, %v5127, 2147483647
        %v5146 = vand.u32 %v5145, 65535
        %v5147 = vshra.s32 %v5145, 16
        %v5148 = vcvt.s32.f32 %v5146
        %v5149 = vcvt.s32.f32 %v5147
        %5150 = vmin.xlane.f32.xlu0 %v5149
        %v5151 = vpop.xlane.xlu0 %5150
        %vm5152 = vcmp.eq.f32.partialorder %v5149, %v5151
        %v5153 = vsel %vm5152, %v5148, inf
        %5154 = vmin.xlane.f32.xlu0 %v5153
        %v5155 = vpop.xlane.xlu0 %5154
        %v5156 = vcvt.f32.s32 %v5155
        %v5157 = vcvt.f32.s32 %v5151
        %v5158 = vshll.u32 %v5157, 16
        %v5159 = vadd.s32 %v5158, %v5156
        %v5160 = vsel %vm1065, %v5128, 2147483647
        %v5161 = vand.u32 %v5160, 65535
        %v5162 = vshra.s32 %v5160, 16
        %v5163 = vcvt.s32.f32 %v5161
        %v5164 = vcvt.s32.f32 %v5162
        %5165 = vmin.xlane.f32.xlu0 %v5164
        %v5166 = vpop.xlane.xlu0 %5165
        %vm5167 = vcmp.eq.f32.partialorder %v5164, %v5166
        %v5168 = vsel %vm5167, %v5163, inf
        %5169 = vmin.xlane.f32.xlu0 %v5168
        %v5170 = vpop.xlane.xlu0 %5169
        %v5171 = vcvt.f32.s32 %v5170
        %v5172 = vcvt.f32.s32 %v5166
        %v5173 = vshll.u32 %v5172, 16
        %v5174 = vadd.s32 %v5173, %v5171
        %v5175 = vsel %vm1065, %v5129, 2147483647
        %v5176 = vand.u32 %v5175, 65535
        %v5177 = vshra.s32 %v5175, 16
        %v5178 = vcvt.s32.f32 %v5176
        %v5179 = vcvt.s32.f32 %v5177
        %5180 = vmin.xlane.f32.xlu0 %v5179
        %v5181 = vpop.xlane.xlu0 %5180
        %vm5182 = vcmp.eq.f32.partialorder %v5179, %v5181
        %v5183 = vsel %vm5182, %v5178, inf
        %5184 = vmin.xlane.f32.xlu0 %v5183
        %v5185 = vpop.xlane.xlu0 %5184
        %v5186 = vcvt.f32.s32 %v5185
        %v5187 = vcvt.f32.s32 %v5181
        %v5188 = vshll.u32 %v5187, 16
        %v5189 = vadd.s32 %v5188, %v5186
        %vm5190 = vcmp.eq.s32.totalorder %v1064, %v5144
        %vm5191 = vcmp.eq.s32.totalorder %v1064, %v5159
        %vm5192 = vcmp.eq.s32.totalorder %v1064, %v5174
        %vm5193 = vcmp.eq.s32.totalorder %v1064, %v5189
        %v5194 = vsel %vm5190, 1, 0
        %v5195 = vsel %vm5191, 1, 0
        %v5196 = vsel %vm5192, 1, 0
        %v5197 = vsel %vm5193, 1, 0
        %v5198 = vcvt.s32.f32 %v5194
        %v5199 = vcvt.s32.f32 %v5195
        %v5200 = vcvt.s32.f32 %v5196
        %v5201 = vcvt.s32.f32 %v5197
        %v5203 = vsel %vm1065, %v5198, 0
        %v5206 = vsel %vm1065, %v5199, 0
        %v5209 = vsel %vm1065, %v5200, 0
        %v5212 = vsel %vm1065, %v5201, 0
        %5214 = vmatprep.subr.mxu0 0.0
        %5215 = vmatpush1.msra.mxu0 0.0
        %5216 = vmatprep.subr.mxu0 0.0
        %5217 = vmatpush1.msra.mxu0 0.0
        %5218 = vmatprep.subr.mxu0 0.0
        %5219 = vmatpush1.msra.mxu0 0.0
        %5220 = vmatprep.subr.mxu0 0.0
        %5221 = vmatpush1.msra.mxu0 0.0
        %5222 = vmatprep.subr.mxu0 0.0
        %5223 = vmatpush1.msra.mxu0 0.0
        %5224 = vmatprep.subr.mxu0 0.0
        %5225 = vmatpush1.msra.mxu0 0.0
        %5226 = vmatprep.subr.mxu0 0.0
        %5227 = vmatpush1.msra.mxu0 0.0
        %5228 = vmatprep.subr.mxu0 0.0
        %5229 = vmatpush1.msra.mxu0 0.0
        %5230 = vmatprep.subr.mxu0 0.0
        %5231 = vmatpush1.msra.mxu0 0.0
        %5232 = vmatprep.subr.mxu0 0.0
        %5233 = vmatpush1.msra.mxu0 0.0
        %5234 = vmatprep.subr.mxu0 0.0
        %5235 = vmatpush1.msra.mxu0 0.0
        %5236 = vmatprep.subr.mxu0 0.0
        %5237 = vmatpush1.msra.mxu0 0.0
        %5238 = vmatprep.subr.mxu0 0.0
        %5239 = vmatpush1.msra.mxu0 %v3601
        %5240 = vmatprep.subr.mxu0 0.0
        %5241 = vmatpush1.msra.mxu0 %v3599
        %5242 = vmatprep.subr.mxu0 0.0
        %5243 = vmatpush1.msra.mxu0 %v3597
        %5244 = vmatprep.subr.mxu0 0.0
        %5245 = vmatpush1.msra.mxu0 %v3595
        %5246 = vmatprep.subr.mxu0 0.0
        %5247 = vmatpush2.msra.mxu0 0.0
        %5248 = vmatprep.subr.mxu0 0.0
        %5249 = vmatpush2.msra.mxu0 0.0
        %5250 = vmatprep.subr.mxu0 0.0
        %5251 = vmatpush2.msra.mxu0 0.0
        %5252 = vmatprep.subr.mxu0 0.0
        %5253 = vmatpush2.msra.mxu0 0.0
        %5254 = vmatprep.subr.mxu0 0.0
        %5255 = vmatpush2.msra.mxu0 0.0
        %5256 = vmatprep.subr.mxu0 0.0
        %5257 = vmatpush2.msra.mxu0 0.0
        %5258 = vmatprep.subr.mxu0 0.0
        %5259 = vmatpush2.msra.mxu0 0.0
        %5260 = vmatprep.subr.mxu0 0.0
        %5261 = vmatpush2.msra.mxu0 0.0
        %5262 = vmatprep.subr.mxu0 0.0
        %5263 = vmatpush2.msra.mxu0 0.0
        %5264 = vmatprep.subr.mxu0 0.0
        %5265 = vmatpush2.msra.mxu0 0.0
        %5266 = vmatprep.subr.mxu0 0.0
        %5267 = vmatpush2.msra.mxu0 0.0
        %5268 = vmatprep.subr.mxu0 0.0
        %5269 = vmatpush2.msra.mxu0 0.0
        %5270 = vmatprep.subr.mxu0 0.0
        %5271 = vmatpush2.msra.mxu0 0.0
        %5272 = vmatprep.subr.mxu0 0.0
        %5273 = vmatpush2.msra.mxu0 0.0
        %5274 = vmatprep.subr.mxu0 0.0
        %5275 = vmatpush2.msra.mxu0 0.0
        %5276 = vmatprep.subr.mxu0 0.0
        %5277 = vmatpush2.msra.mxu0 0.0
        %5278 = vmatprep.mubr.f32.mxu0 0.0
        %5279 = vmatmul.mubr.f32.gmra.mxu0 %v5203
        %v5280 = vpop.f32.mrf.mxu0
        %v5281 = vadd.f32 0.0, %v5280
        %v5282 = vpop.f32.mrf.mxu0
        %5283 = vmatprep.mubr.f32.mxu0 0.0
        %5284 = vmatmul.mubr.f32.gmra.mxu0 %v5206
        %v5285 = vpop.f32.mrf.mxu0
        %v5286 = vadd.f32 0.0, %v5285
        %v5287 = vpop.f32.mrf.mxu0
        %5288 = vmatprep.mubr.f32.mxu0 0.0
        %5289 = vmatmul.mubr.f32.gmra.mxu0 %v5209
        %v5290 = vpop.f32.mrf.mxu0
        %v5291 = vadd.f32 0.0, %v5290
        %v5292 = vpop.f32.mrf.mxu0
        %5293 = vmatprep.mubr.f32.mxu0 0.0
        %5294 = vmatmul.mubr.f32.gmra.mxu0 %v5212
        %v5295 = vpop.f32.mrf.mxu0
        %v5296 = vadd.f32 0.0, %v5295
        %v5297 = vpop.f32.mrf.mxu0
        %5298 = vdwg.mxu0
        %v5299 = vadd.f32 %v3494, %v5281
        %v5300 = vadd.f32 %v3495, %v5286
        %v5301 = vadd.f32 %v3496, %v5291
        %v5302 = vadd.f32 %v3497, %v5296
        %v5303 = vmax.f32 %v5299, 0.0
        %v5304 = vmax.f32 %v5300, 0.0
        %v5305 = vmax.f32 %v5301, 0.0
        %v5306 = vmax.f32 %v5302, 0.0
        %v5307 = vpack.c.bf16 %v5304, %v5303
        %v5308 = vpack.c.bf16 %v5306, %v5305
        %v5310 = vsel %vm1305, %v5307, 0
        %v5313 = vsel %vm1305, %v5308, 0
        %5315 = vmatprep.subr.bf16.mxu0 0
        %5316 = vmatpush1.bf16.msra.mxu0 0
        %5317 = vmatprep.subr.bf16.mxu0 0
        %5318 = vmatpush1.bf16.msra.mxu0 0
        %5319 = vmatprep.subr.bf16.mxu0 0
        %5320 = vmatpush1.bf16.msra.mxu0 0
        %5321 = vmatprep.subr.bf16.mxu0 0
        %5322 = vmatpush1.bf16.msra.mxu0 0
        %5323 = vmatprep.subr.bf16.mxu0 0
        %5324 = vmatpush1.bf16.msra.mxu0 %v3732
        %5325 = vmatprep.subr.bf16.mxu0 0
        %5326 = vmatpush1.bf16.msra.mxu0 %v3731
        %5327 = vmatprep.subr.bf16.mxu0 0
        %5328 = vmatpush1.bf16.msra.mxu0 %v3730
        %5329 = vmatprep.subr.bf16.mxu0 0
        %5330 = vmatpush1.bf16.msra.mxu0 %v3729
        %5331 = vmatprep.subr.bf16.mxu0 0
        %5332 = vmatpush2.bf16.msra.mxu0 0
        %5333 = vmatprep.subr.bf16.mxu0 0
        %5334 = vmatpush2.bf16.msra.mxu0 0
        %5335 = vmatprep.subr.bf16.mxu0 0
        %5336 = vmatpush2.bf16.msra.mxu0 0
        %5337 = vmatprep.subr.bf16.mxu0 0
        %5338 = vmatpush2.bf16.msra.mxu0 0
        %5339 = vmatprep.subr.bf16.mxu0 0
        %5340 = vmatpush2.bf16.msra.mxu0 0
        %5341 = vmatprep.subr.bf16.mxu0 0
        %5342 = vmatpush2.bf16.msra.mxu0 0
        %5343 = vmatprep.subr.bf16.mxu0 0
        %5344 = vmatpush2.bf16.msra.mxu0 0
        %5345 = vmatprep.subr.bf16.mxu0 0
        %5346 = vmatpush2.bf16.msra.mxu0 0
        %5347 = vmatprep.mubr.bf16.mxu0 0
        %5348 = vmatmul.mubr.bf16.gmra.mxu0 %v5310
        %v5349 = vpop.f32.mrf.mxu0
        %v5350 = vadd.f32 0.0, %v5349
        %v5351 = vpop.f32.mrf.mxu0
        %v5352 = vpop.f32.mrf.mxu0
        %v5353 = vadd.f32 0.0, %v5352
        %v5354 = vpop.f32.mrf.mxu0
        %5355 = vmatprep.mubr.bf16.mxu0 0
        %5356 = vmatmul.mubr.bf16.gmra.mxu0 %v5313
        %v5357 = vpop.f32.mrf.mxu0
        %v5358 = vadd.f32 0.0, %v5357
        %v5359 = vpop.f32.mrf.mxu0
        %v5360 = vpop.f32.mrf.mxu0
        %v5361 = vadd.f32 0.0, %v5360
        %v5362 = vpop.f32.mrf.mxu0
        %5363 = vdwg.mxu0
        %v5364 = vmax.f32 %v5102, %v5350
        %v5365 = vmax.f32 %v5103, %v5353
        %v5366 = vmax.f32 %v5104, %v5358
        %v5367 = vmax.f32 %v5105, %v5361
        %v5368 = vsel %vm5190, 1e+30, %v5106
        %v5369 = vsel %vm5191, 1e+30, %v5107
        %v5370 = vsel %vm5192, 1e+30, %v5108
        %v5371 = vsel %vm5193, 1e+30, %v5109
        %v5372 = vsel %vm1065, %v5368, inf
        %5373 = vmin.xlane.f32.xlu0 %v5372
        %v5374 = vpop.xlane.xlu0 %5373
        %v5375 = vsel %vm1065, %v5369, inf
        %5376 = vmin.xlane.f32.xlu0 %v5375
        %v5377 = vpop.xlane.xlu0 %5376
        %v5378 = vsel %vm1065, %v5370, inf
        %5379 = vmin.xlane.f32.xlu0 %v5378
        %v5380 = vpop.xlane.xlu0 %5379
        %v5381 = vsel %vm1065, %v5371, inf
        %5382 = vmin.xlane.f32.xlu0 %v5381
        %v5383 = vpop.xlane.xlu0 %5382
        %vm5384 = vcmp.le.f32.partialorder %v5368, %v5374
        %vm5385 = vcmp.le.f32.partialorder %v5369, %v5377
        %vm5386 = vcmp.le.f32.partialorder %v5370, %v5380
        %vm5387 = vcmp.le.f32.partialorder %v5371, %v5383
        %v5388 = vsel %vm5384, %v1064, 32
        %v5389 = vsel %vm5385, %v1064, 32
        %v5390 = vsel %vm5386, %v1064, 32
        %v5391 = vsel %vm5387, %v1064, 32
        %v5392 = vsel %vm1065, %v5388, 2147483647
        %v5393 = vand.u32 %v5392, 65535
        %v5394 = vshra.s32 %v5392, 16
        %v5395 = vcvt.s32.f32 %v5393
        %v5396 = vcvt.s32.f32 %v5394
        %5397 = vmin.xlane.f32.xlu0 %v5396
        %v5398 = vpop.xlane.xlu0 %5397
        %vm5399 = vcmp.eq.f32.partialorder %v5396, %v5398
        %v5400 = vsel %vm5399, %v5395, inf
        %5401 = vmin.xlane.f32.xlu0 %v5400
        %v5402 = vpop.xlane.xlu0 %5401
        %v5403 = vcvt.f32.s32 %v5402
        %v5404 = vcvt.f32.s32 %v5398
        %v5405 = vshll.u32 %v5404, 16
        %v5406 = vadd.s32 %v5405, %v5403
        %v5407 = vsel %vm1065, %v5389, 2147483647
        %v5408 = vand.u32 %v5407, 65535
        %v5409 = vshra.s32 %v5407, 16
        %v5410 = vcvt.s32.f32 %v5408
        %v5411 = vcvt.s32.f32 %v5409
        %5412 = vmin.xlane.f32.xlu0 %v5411
        %v5413 = vpop.xlane.xlu0 %5412
        %vm5414 = vcmp.eq.f32.partialorder %v5411, %v5413
        %v5415 = vsel %vm5414, %v5410, inf
        %5416 = vmin.xlane.f32.xlu0 %v5415
        %v5417 = vpop.xlane.xlu0 %5416
        %v5418 = vcvt.f32.s32 %v5417
        %v5419 = vcvt.f32.s32 %v5413
        %v5420 = vshll.u32 %v5419, 16
        %v5421 = vadd.s32 %v5420, %v5418
        %v5422 = vsel %vm1065, %v5390, 2147483647
        %v5423 = vand.u32 %v5422, 65535
        %v5424 = vshra.s32 %v5422, 16
        %v5425 = vcvt.s32.f32 %v5423
        %v5426 = vcvt.s32.f32 %v5424
        %5427 = vmin.xlane.f32.xlu0 %v5426
        %v5428 = vpop.xlane.xlu0 %5427
        %vm5429 = vcmp.eq.f32.partialorder %v5426, %v5428
        %v5430 = vsel %vm5429, %v5425, inf
        %5431 = vmin.xlane.f32.xlu0 %v5430
        %v5432 = vpop.xlane.xlu0 %5431
        %v5433 = vcvt.f32.s32 %v5432
        %v5434 = vcvt.f32.s32 %v5428
        %v5435 = vshll.u32 %v5434, 16
        %v5436 = vadd.s32 %v5435, %v5433
        %v5437 = vsel %vm1065, %v5391, 2147483647
        %v5438 = vand.u32 %v5437, 65535
        %v5439 = vshra.s32 %v5437, 16
        %v5440 = vcvt.s32.f32 %v5438
        %v5441 = vcvt.s32.f32 %v5439
        %5442 = vmin.xlane.f32.xlu0 %v5441
        %v5443 = vpop.xlane.xlu0 %5442
        %vm5444 = vcmp.eq.f32.partialorder %v5441, %v5443
        %v5445 = vsel %vm5444, %v5440, inf
        %5446 = vmin.xlane.f32.xlu0 %v5445
        %v5447 = vpop.xlane.xlu0 %5446
        %v5448 = vcvt.f32.s32 %v5447
        %v5449 = vcvt.f32.s32 %v5443
        %v5450 = vshll.u32 %v5449, 16
        %v5451 = vadd.s32 %v5450, %v5448
        %vm5452 = vcmp.eq.s32.totalorder %v1064, %v5406
        %vm5453 = vcmp.eq.s32.totalorder %v1064, %v5421
        %vm5454 = vcmp.eq.s32.totalorder %v1064, %v5436
        %vm5455 = vcmp.eq.s32.totalorder %v1064, %v5451
        %v5456 = vsel %vm5452, 1, 0
        %v5457 = vsel %vm5453, 1, 0
        %v5458 = vsel %vm5454, 1, 0
        %v5459 = vsel %vm5455, 1, 0
        %v5460 = vcvt.s32.f32 %v5456
        %v5461 = vcvt.s32.f32 %v5457
        %v5462 = vcvt.s32.f32 %v5458
        %v5463 = vcvt.s32.f32 %v5459
        %v5465 = vsel %vm1065, %v5460, 0
        %v5468 = vsel %vm1065, %v5461, 0
        %v5471 = vsel %vm1065, %v5462, 0
        %v5474 = vsel %vm1065, %v5463, 0
        %5476 = vmatprep.subr.mxu0 0.0
        %5477 = vmatpush1.msra.mxu0 0.0
        %5478 = vmatprep.subr.mxu0 0.0
        %5479 = vmatpush1.msra.mxu0 0.0
        %5480 = vmatprep.subr.mxu0 0.0
        %5481 = vmatpush1.msra.mxu0 0.0
        %5482 = vmatprep.subr.mxu0 0.0
        %5483 = vmatpush1.msra.mxu0 0.0
        %5484 = vmatprep.subr.mxu0 0.0
        %5485 = vmatpush1.msra.mxu0 0.0
        %5486 = vmatprep.subr.mxu0 0.0
        %5487 = vmatpush1.msra.mxu0 0.0
        %5488 = vmatprep.subr.mxu0 0.0
        %5489 = vmatpush1.msra.mxu0 0.0
        %5490 = vmatprep.subr.mxu0 0.0
        %5491 = vmatpush1.msra.mxu0 0.0
        %5492 = vmatprep.subr.mxu0 0.0
        %5493 = vmatpush1.msra.mxu0 0.0
        %5494 = vmatprep.subr.mxu0 0.0
        %5495 = vmatpush1.msra.mxu0 0.0
        %5496 = vmatprep.subr.mxu0 0.0
        %5497 = vmatpush1.msra.mxu0 0.0
        %5498 = vmatprep.subr.mxu0 0.0
        %5499 = vmatpush1.msra.mxu0 0.0
        %5500 = vmatprep.subr.mxu0 0.0
        %5501 = vmatpush1.msra.mxu0 %v3601
        %5502 = vmatprep.subr.mxu0 0.0
        %5503 = vmatpush1.msra.mxu0 %v3599
        %5504 = vmatprep.subr.mxu0 0.0
        %5505 = vmatpush1.msra.mxu0 %v3597
        %5506 = vmatprep.subr.mxu0 0.0
        %5507 = vmatpush1.msra.mxu0 %v3595
        %5508 = vmatprep.subr.mxu0 0.0
        %5509 = vmatpush2.msra.mxu0 0.0
        %5510 = vmatprep.subr.mxu0 0.0
        %5511 = vmatpush2.msra.mxu0 0.0
        %5512 = vmatprep.subr.mxu0 0.0
        %5513 = vmatpush2.msra.mxu0 0.0
        %5514 = vmatprep.subr.mxu0 0.0
        %5515 = vmatpush2.msra.mxu0 0.0
        %5516 = vmatprep.subr.mxu0 0.0
        %5517 = vmatpush2.msra.mxu0 0.0
        %5518 = vmatprep.subr.mxu0 0.0
        %5519 = vmatpush2.msra.mxu0 0.0
        %5520 = vmatprep.subr.mxu0 0.0
        %5521 = vmatpush2.msra.mxu0 0.0
        %5522 = vmatprep.subr.mxu0 0.0
        %5523 = vmatpush2.msra.mxu0 0.0
        %5524 = vmatprep.subr.mxu0 0.0
        %5525 = vmatpush2.msra.mxu0 0.0
        %5526 = vmatprep.subr.mxu0 0.0
        %5527 = vmatpush2.msra.mxu0 0.0
        %5528 = vmatprep.subr.mxu0 0.0
        %5529 = vmatpush2.msra.mxu0 0.0
        %5530 = vmatprep.subr.mxu0 0.0
        %5531 = vmatpush2.msra.mxu0 0.0
        %5532 = vmatprep.subr.mxu0 0.0
        %5533 = vmatpush2.msra.mxu0 0.0
        %5534 = vmatprep.subr.mxu0 0.0
        %5535 = vmatpush2.msra.mxu0 0.0
        %5536 = vmatprep.subr.mxu0 0.0
        %5537 = vmatpush2.msra.mxu0 0.0
        %5538 = vmatprep.subr.mxu0 0.0
        %5539 = vmatpush2.msra.mxu0 0.0
        %5540 = vmatprep.mubr.f32.mxu0 0.0
        %5541 = vmatmul.mubr.f32.gmra.mxu0 %v5465
        %v5542 = vpop.f32.mrf.mxu0
        %v5543 = vadd.f32 0.0, %v5542
        %v5544 = vpop.f32.mrf.mxu0
        %5545 = vmatprep.mubr.f32.mxu0 0.0
        %5546 = vmatmul.mubr.f32.gmra.mxu0 %v5468
        %v5547 = vpop.f32.mrf.mxu0
        %v5548 = vadd.f32 0.0, %v5547
        %v5549 = vpop.f32.mrf.mxu0
        %5550 = vmatprep.mubr.f32.mxu0 0.0
        %5551 = vmatmul.mubr.f32.gmra.mxu0 %v5471
        %v5552 = vpop.f32.mrf.mxu0
        %v5553 = vadd.f32 0.0, %v5552
        %v5554 = vpop.f32.mrf.mxu0
        %5555 = vmatprep.mubr.f32.mxu0 0.0
        %5556 = vmatmul.mubr.f32.gmra.mxu0 %v5474
        %v5557 = vpop.f32.mrf.mxu0
        %v5558 = vadd.f32 0.0, %v5557
        %v5559 = vpop.f32.mrf.mxu0
        %5560 = vdwg.mxu0
        %v5561 = vadd.f32 %v3494, %v5543
        %v5562 = vadd.f32 %v3495, %v5548
        %v5563 = vadd.f32 %v3496, %v5553
        %v5564 = vadd.f32 %v3497, %v5558
        %v5565 = vmax.f32 %v5561, 0.0
        %v5566 = vmax.f32 %v5562, 0.0
        %v5567 = vmax.f32 %v5563, 0.0
        %v5568 = vmax.f32 %v5564, 0.0
        %v5569 = vpack.c.bf16 %v5566, %v5565
        %v5570 = vpack.c.bf16 %v5568, %v5567
        %v5572 = vsel %vm1305, %v5569, 0
        %v5575 = vsel %vm1305, %v5570, 0
        %5577 = vmatprep.subr.bf16.mxu0 0
        %5578 = vmatpush1.bf16.msra.mxu0 0
        %5579 = vmatprep.subr.bf16.mxu0 0
        %5580 = vmatpush1.bf16.msra.mxu0 0
        %5581 = vmatprep.subr.bf16.mxu0 0
        %5582 = vmatpush1.bf16.msra.mxu0 0
        %5583 = vmatprep.subr.bf16.mxu0 0
        %5584 = vmatpush1.bf16.msra.mxu0 0
        %5585 = vmatprep.subr.bf16.mxu0 0
        %5586 = vmatpush1.bf16.msra.mxu0 %v3732
        %5587 = vmatprep.subr.bf16.mxu0 0
        %5588 = vmatpush1.bf16.msra.mxu0 %v3731
        %5589 = vmatprep.subr.bf16.mxu0 0
        %5590 = vmatpush1.bf16.msra.mxu0 %v3730
        %5591 = vmatprep.subr.bf16.mxu0 0
        %5592 = vmatpush1.bf16.msra.mxu0 %v3729
        %5593 = vmatprep.subr.bf16.mxu0 0
        %5594 = vmatpush2.bf16.msra.mxu0 0
        %5595 = vmatprep.subr.bf16.mxu0 0
        %5596 = vmatpush2.bf16.msra.mxu0 0
        %5597 = vmatprep.subr.bf16.mxu0 0
        %5598 = vmatpush2.bf16.msra.mxu0 0
        %5599 = vmatprep.subr.bf16.mxu0 0
        %5600 = vmatpush2.bf16.msra.mxu0 0
        %5601 = vmatprep.subr.bf16.mxu0 0
        %5602 = vmatpush2.bf16.msra.mxu0 0
        %5603 = vmatprep.subr.bf16.mxu0 0
        %5604 = vmatpush2.bf16.msra.mxu0 0
        %5605 = vmatprep.subr.bf16.mxu0 0
        %5606 = vmatpush2.bf16.msra.mxu0 0
        %5607 = vmatprep.subr.bf16.mxu0 0
        %5608 = vmatpush2.bf16.msra.mxu0 0
        %5609 = vmatprep.mubr.bf16.mxu0 0
        %5610 = vmatmul.mubr.bf16.gmra.mxu0 %v5572
        %v5611 = vpop.f32.mrf.mxu0
        %v5612 = vadd.f32 0.0, %v5611
        %v5613 = vpop.f32.mrf.mxu0
        %v5614 = vpop.f32.mrf.mxu0
        %v5615 = vadd.f32 0.0, %v5614
        %v5616 = vpop.f32.mrf.mxu0
        %5617 = vmatprep.mubr.bf16.mxu0 0
        %5618 = vmatmul.mubr.bf16.gmra.mxu0 %v5575
        %v5619 = vpop.f32.mrf.mxu0
        %v5620 = vadd.f32 0.0, %v5619
        %v5621 = vpop.f32.mrf.mxu0
        %v5622 = vpop.f32.mrf.mxu0
        %v5623 = vadd.f32 0.0, %v5622
        %v5624 = vpop.f32.mrf.mxu0
        %5625 = vdwg.mxu0
        %v5626 = vmax.f32 %v5364, %v5612
        %v5627 = vmax.f32 %v5365, %v5615
        %v5628 = vmax.f32 %v5366, %v5620
        %v5629 = vmax.f32 %v5367, %v5623
        %v5631 = vlaneseq
        %v5632 = vshrl.u32 %v5631, 7
        %v5633 = vsub.s32 0, %v5632
        %v5634 = vrot.slane %v3240, %v5633
        %v5636 = vadd.f32 %v5626, %v5634
        %v5637 = vadd.f32 %v5627, %v5634
        %v5638 = vadd.f32 %v5628, %v5634
        %v5639 = vadd.f32 %v5629, %v5634
        %v5640 = vmax.f32 %v5636, 0.0
        %v5641 = vmax.f32 %v5637, 0.0
        %v5642 = vmax.f32 %v5638, 0.0
        %v5643 = vmax.f32 %v5639, 0.0
        %v5645 = vlaneseq
        %v5646 = vshrl.u32 %v5645, 7
        %v5647 = vsub.s32 0, %v5646
        %v5648 = vrot.slane %v3241, %v5647
        %v5650 = vadd.f32 %v5640, %v5648
        %v5651 = vadd.f32 %v5641, %v5648
        %v5652 = vadd.f32 %v5642, %v5648
        %v5653 = vadd.f32 %v5643, %v5648
        %v5654 = vld [vmem:[#allocation17] sm:$0xff]
        %v5655 = vld [vmem:[#allocation17 + $0x8] sm:$0xff]
        %v5656 = vld [vmem:[#allocation17 + $0x10] sm:$0xff]
        %v5657 = vld [vmem:[#allocation17 + $0x18] sm:$0xff]
        %v5658 = vld [vmem:[#allocation17 + $0x20] sm:$0xff]
        %v5659 = vld [vmem:[#allocation17 + $0x28] sm:$0xff]
        %v5660 = vld [vmem:[#allocation17 + $0x30] sm:$0xff]
        %v5661 = vld [vmem:[#allocation17 + $0x38] sm:$0xff]
        %v5662 = vld [vmem:[%s12] sm:$0x1]
        %v5663 = vld [vmem:[%s13] sm:$0xf]
        %v5664 = vld [vmem:[%s13 + $0x4] sm:$0xf]
        %v5665 = vld [vmem:[%s13 + $0x8] sm:$0xf]
        %v5666 = vld [vmem:[%s13 + $0xc] sm:$0xf]
        %v5667 = vld [vmem:[%s13 + $0x10] sm:$0xf]
        %v5668 = vld [vmem:[%s13 + $0x14] sm:$0xf]
        %v5669 = vld [vmem:[%s13 + $0x18] sm:$0xf]
        %v5670 = vld [vmem:[%s13 + $0x1c] sm:$0xf]
        %v5671 = vld [vmem:[#allocation19] sm:$0x1]
        %v5672 = vld [vmem:[#allocation20] sm:$0x1]
        %v5673 = vmul.f32 %v5650, %v5650
        %v5674 = vmul.f32 %v5651, %v5651
        %v5675 = vmul.f32 %v5652, %v5652
        %v5676 = vmul.f32 %v5653, %v5653
        %v5677 = vsel %vm1305, %v5673, 0.0
        %5678 = vadd.xlane.f32.xlu0 %v5677
        %v5679 = vpop.xlane.xlu0 %5678
        %v5680 = vsel %vm1305, %v5674, 0.0
        %5681 = vadd.xlane.f32.xlu0 %v5680
        %v5682 = vpop.xlane.xlu0 %5681
        %v5683 = vsel %vm1305, %v5675, 0.0
        %5684 = vadd.xlane.f32.xlu0 %v5683
        %v5685 = vpop.xlane.xlu0 %5684
        %v5686 = vsel %vm1305, %v5676, 0.0
        %5687 = vadd.xlane.f32.xlu0 %v5686
        %v5688 = vpop.xlane.xlu0 %5687
        %v5690 = vsel %vm1305, %v5650, 0
        %v5693 = vsel %vm1305, %v5651, 0
        %v5696 = vsel %vm1305, %v5652, 0
        %v5699 = vsel %vm1305, %v5653, 0
        %5701 = vmatprep.subr.mxu0 0.0
        %5702 = vmatpush1.xpose.msra.mxu0 0.0
        %5703 = vmatprep.subr.mxu0 0.0
        %5704 = vmatpush1.xpose.msra.mxu0 0.0
        %5705 = vmatprep.subr.mxu0 0.0
        %5706 = vmatpush1.xpose.msra.mxu0 0.0
        %5707 = vmatprep.subr.mxu0 0.0
        %5708 = vmatpush1.xpose.msra.mxu0 0.0
        %5709 = vmatprep.subr.mxu0 0.0
        %5710 = vmatpush1.xpose.msra.mxu0 0.0
        %5711 = vmatprep.subr.mxu0 0.0
        %5712 = vmatpush1.xpose.msra.mxu0 0.0
        %5713 = vmatprep.subr.mxu0 0.0
        %5714 = vmatpush1.xpose.msra.mxu0 0.0
        %5715 = vmatprep.subr.mxu0 0.0
        %5716 = vmatpush1.xpose.msra.mxu0 0.0
        %5717 = vmatprep.subr.mxu0 0.0
        %5718 = vmatpush1.xpose.msra.mxu0 0.0
        %5719 = vmatprep.subr.mxu0 0.0
        %5720 = vmatpush1.xpose.msra.mxu0 0.0
        %5721 = vmatprep.subr.mxu0 0.0
        %5722 = vmatpush1.xpose.msra.mxu0 0.0
        %5723 = vmatprep.subr.mxu0 0.0
        %5724 = vmatpush1.xpose.msra.mxu0 0.0
        %5725 = vmatprep.subr.mxu0 0.0
        %5726 = vmatpush1.xpose.msra.mxu0 %v5699
        %5727 = vmatprep.subr.mxu0 0.0
        %5728 = vmatpush1.xpose.msra.mxu0 %v5696
        %5729 = vmatprep.subr.mxu0 0.0
        %5730 = vmatpush1.xpose.msra.mxu0 %v5693
        %5731 = vmatprep.subr.mxu0 0.0
        %5732 = vmatpush1.xpose.msra.mxu0 %v5690
        %5733 = vmatprep.subr.mxu0 0.0
        %5734 = vmatpush2.xpose.msra.mxu0 0.0
        %5735 = vmatprep.subr.mxu0 0.0
        %5736 = vmatpush2.xpose.msra.mxu0 0.0
        %5737 = vmatprep.subr.mxu0 0.0
        %5738 = vmatpush2.xpose.msra.mxu0 0.0
        %5739 = vmatprep.subr.mxu0 0.0
        %5740 = vmatpush2.xpose.msra.mxu0 0.0
        %5741 = vmatprep.subr.mxu0 0.0
        %5742 = vmatpush2.xpose.msra.mxu0 0.0
        %5743 = vmatprep.subr.mxu0 0.0
        %5744 = vmatpush2.xpose.msra.mxu0 0.0
        %5745 = vmatprep.subr.mxu0 0.0
        %5746 = vmatpush2.xpose.msra.mxu0 0.0
        %5747 = vmatprep.subr.mxu0 0.0
        %5748 = vmatpush2.xpose.msra.mxu0 0.0
        %5749 = vmatprep.subr.mxu0 0.0
        %5750 = vmatpush2.xpose.msra.mxu0 0.0
        %5751 = vmatprep.subr.mxu0 0.0
        %5752 = vmatpush2.xpose.msra.mxu0 0.0
        %5753 = vmatprep.subr.mxu0 0.0
        %5754 = vmatpush2.xpose.msra.mxu0 0.0
        %5755 = vmatprep.subr.mxu0 0.0
        %5756 = vmatpush2.xpose.msra.mxu0 0.0
        %5757 = vmatprep.subr.mxu0 0.0
        %5758 = vmatpush2.xpose.msra.mxu0 0.0
        %5759 = vmatprep.subr.mxu0 0.0
        %5760 = vmatpush2.xpose.msra.mxu0 0.0
        %5761 = vmatprep.subr.mxu0 0.0
        %5762 = vmatpush2.xpose.msra.mxu0 0.0
        %5763 = vmatprep.subr.mxu0 0.0
        %5764 = vmatpush2.xpose.msra.mxu0 0.0
        %5765 = vmatprep.mubr.f32.mxu0 0.0
        %5766 = vmatmul.mubr.f32.gmra.mxu0 %v5690
        %v5767 = vpop.f32.mrf.mxu0
        %v5768 = vadd.f32 0.0, %v5767
        %v5769 = vpop.f32.mrf.mxu0
        %5770 = vmatprep.mubr.f32.mxu0 0.0
        %5771 = vmatmul.mubr.f32.gmra.mxu0 %v5693
        %v5772 = vpop.f32.mrf.mxu0
        %v5773 = vadd.f32 0.0, %v5772
        %v5774 = vpop.f32.mrf.mxu0
        %5775 = vmatprep.mubr.f32.mxu0 0.0
        %5776 = vmatmul.mubr.f32.gmra.mxu0 %v5696
        %v5777 = vpop.f32.mrf.mxu0
        %v5778 = vadd.f32 0.0, %v5777
        %v5779 = vpop.f32.mrf.mxu0
        %5780 = vmatprep.mubr.f32.mxu0 0.0
        %5781 = vmatmul.mubr.f32.gmra.mxu0 %v5699
        %v5782 = vpop.f32.mrf.mxu0
        %v5783 = vadd.f32 0.0, %v5782
        %v5784 = vpop.f32.mrf.mxu0
        %5785 = vdwg.mxu0
        %5786 = vxpose.xlu0.b32.start [1/16] %v5679, 128
        %5787 = vxpose.xlu0.b32.cont [2/16] %v5682, 128
        %5788 = vxpose.xlu0.b32.cont [3/16] %v5685, 128
        %5789 = vxpose.xlu0.b32.cont [4/16] %v5688, 128
        %5790 = vxpose.xlu0.b32.cont [5/16] 0.0, 128
        %5791 = vxpose.xlu0.b32.cont [6/16] 0.0, 128
        %5792 = vxpose.xlu0.b32.cont [7/16] 0.0, 128
        %5793 = vxpose.xlu0.b32.cont [8/16] 0.0, 128
        %5794 = vxpose.xlu0.b32.cont [9/16] 0.0, 128
        %5795 = vxpose.xlu0.b32.cont [10/16] 0.0, 128
        %5796 = vxpose.xlu0.b32.cont [11/16] 0.0, 128
        %5797 = vxpose.xlu0.b32.cont [12/16] 0.0, 128
        %5798 = vxpose.xlu0.b32.cont [13/16] 0.0, 128
        %5799 = vxpose.xlu0.b32.cont [14/16] 0.0, 128
        %5800 = vxpose.xlu0.b32.cont [15/16] 0.0, 128
        %5801 = vxpose.xlu0.b32.end [16/16] 0.0, 128
        %v5802 = vpop.trf.xlu0
        %v5803 = vpop.trf.xlu0
        %v5804 = vpop.trf.xlu0
        %v5805 = vpop.trf.xlu0
        %v5806 = vpop.trf.xlu0
        %v5807 = vpop.trf.xlu0
        %v5808 = vpop.trf.xlu0
        %v5809 = vpop.trf.xlu0
        %v5810 = vpop.trf.xlu0
        %v5811 = vpop.trf.xlu0
        %v5812 = vpop.trf.xlu0
        %v5813 = vpop.trf.xlu0
        %v5814 = vpop.trf.xlu0
        %v5815 = vpop.trf.xlu0
        %v5816 = vpop.trf.xlu0
        %v5817 = vpop.trf.xlu0
        %v5818 = vlaneseq
        %v5819 = vshrl.u32 %v5818, 7
        %v5820 = vsub.s32 0, %v5819
        %v5821 = vrot.slane %v5802, %v5820
        %v5822 = vadd.f32 %v5679, %v5821
        %v5823 = vadd.f32 %v5682, %v5821
        %v5824 = vadd.f32 %v5685, %v5821
        %v5825 = vadd.f32 %v5688, %v5821
        %v5826 = vmul.f32 %v5768, 2.0
        %v5827 = vmul.f32 %v5773, 2.0
        %v5828 = vmul.f32 %v5778, 2.0
        %v5829 = vmul.f32 %v5783, 2.0
        %v5830 = vsub.f32 %v5822, %v5826
        %v5831 = vsub.f32 %v5823, %v5827
        %v5832 = vsub.f32 %v5824, %v5828
        %v5833 = vsub.f32 %v5825, %v5829
        %5834 = vmatprep.subr.mxu0 0.0
        %5835 = vmatpush1.msra.mxu0 0.0
        %5836 = vmatprep.subr.mxu0 0.0
        %5837 = vmatpush1.msra.mxu0 0.0
        %5838 = vmatprep.subr.mxu0 0.0
        %5839 = vmatpush1.msra.mxu0 0.0
        %5840 = vmatprep.subr.mxu0 0.0
        %5841 = vmatpush1.msra.mxu0 0.0
        %5842 = vmatprep.subr.mxu0 0.0
        %5843 = vmatpush1.msra.mxu0 0.0
        %5844 = vmatprep.subr.mxu0 0.0
        %5845 = vmatpush1.msra.mxu0 0.0
        %5846 = vmatprep.subr.mxu0 0.0
        %5847 = vmatpush1.msra.mxu0 0.0
        %5848 = vmatprep.subr.mxu0 0.0
        %5849 = vmatpush1.msra.mxu0 0.0
        %5850 = vmatprep.subr.mxu0 0.0
        %5851 = vmatpush1.msra.mxu0 %v5661
        %5852 = vmatprep.subr.mxu0 0.0
        %5853 = vmatpush1.msra.mxu0 %v5660
        %5854 = vmatprep.subr.mxu0 0.0
        %5855 = vmatpush1.msra.mxu0 %v5659
        %5856 = vmatprep.subr.mxu0 0.0
        %5857 = vmatpush1.msra.mxu0 %v5658
        %5858 = vmatprep.subr.mxu0 0.0
        %5859 = vmatpush1.msra.mxu0 %v5657
        %5860 = vmatprep.subr.mxu0 0.0
        %5861 = vmatpush1.msra.mxu0 %v5656
        %5862 = vmatprep.subr.mxu0 0.0
        %5863 = vmatpush1.msra.mxu0 %v5655
        %5864 = vmatprep.subr.mxu0 0.0
        %5865 = vmatpush1.msra.mxu0 %v5654
        %5866 = vmatprep.subr.mxu0 0.0
        %5867 = vmatpush2.msra.mxu0 0.0
        %5868 = vmatprep.subr.mxu0 0.0
        %5869 = vmatpush2.msra.mxu0 0.0
        %5870 = vmatprep.subr.mxu0 0.0
        %5871 = vmatpush2.msra.mxu0 0.0
        %5872 = vmatprep.subr.mxu0 0.0
        %5873 = vmatpush2.msra.mxu0 0.0
        %5874 = vmatprep.subr.mxu0 0.0
        %5875 = vmatpush2.msra.mxu0 0.0
        %5876 = vmatprep.subr.mxu0 0.0
        %5877 = vmatpush2.msra.mxu0 0.0
        %5878 = vmatprep.subr.mxu0 0.0
        %5879 = vmatpush2.msra.mxu0 0.0
        %5880 = vmatprep.subr.mxu0 0.0
        %5881 = vmatpush2.msra.mxu0 0.0
        %5882 = vmatprep.subr.mxu0 0.0
        %5883 = vmatpush2.msra.mxu0 0.0
        %5884 = vmatprep.subr.mxu0 0.0
        %5885 = vmatpush2.msra.mxu0 0.0
        %5886 = vmatprep.subr.mxu0 0.0
        %5887 = vmatpush2.msra.mxu0 0.0
        %5888 = vmatprep.subr.mxu0 0.0
        %5889 = vmatpush2.msra.mxu0 0.0
        %5890 = vmatprep.subr.mxu0 0.0
        %5891 = vmatpush2.msra.mxu0 0.0
        %5892 = vmatprep.subr.mxu0 0.0
        %5893 = vmatpush2.msra.mxu0 0.0
        %5894 = vmatprep.subr.mxu0 0.0
        %5895 = vmatpush2.msra.mxu0 0.0
        %5896 = vmatprep.subr.mxu0 0.0
        %5897 = vmatpush2.msra.mxu0 0.0
        %5898 = vmatprep.mubr.f32.mxu0 0.0
        %5899 = vmatmul.mubr.f32.gmra.mxu0 %v5690
        %v5900 = vpop.f32.mrf.mxu0
        %v5901 = vadd.f32 0.0, %v5900
        %v5902 = vpop.f32.mrf.mxu0
        %5903 = vmatprep.mubr.f32.mxu0 0.0
        %5904 = vmatmul.mubr.f32.gmra.mxu0 %v5693
        %v5905 = vpop.f32.mrf.mxu0
        %v5906 = vadd.f32 0.0, %v5905
        %v5907 = vpop.f32.mrf.mxu0
        %5908 = vmatprep.mubr.f32.mxu0 0.0
        %5909 = vmatmul.mubr.f32.gmra.mxu0 %v5696
        %v5910 = vpop.f32.mrf.mxu0
        %v5911 = vadd.f32 0.0, %v5910
        %v5912 = vpop.f32.mrf.mxu0
        %5913 = vmatprep.mubr.f32.mxu0 0.0
        %5914 = vmatmul.mubr.f32.gmra.mxu0 %v5699
        %v5915 = vpop.f32.mrf.mxu0
        %v5916 = vadd.f32 0.0, %v5915
        %v5917 = vpop.f32.mrf.mxu0
        %5918 = vdwg.mxu0
        %v5920 = vlaneseq
        %v5921 = vshrl.u32 %v5920, 7
        %v5922 = vsub.s32 0, %v5921
        %v5923 = vrot.slane %v5662, %v5922
        %v5925 = vadd.f32 %v5901, %v5923
        %v5926 = vadd.f32 %v5906, %v5923
        %v5927 = vadd.f32 %v5911, %v5923
        %v5928 = vadd.f32 %v5916, %v5923
        %v5929 = vsel %vm1065, %v5830, inf
        %5930 = vmin.xlane.f32.xlu0 %v5929
        %v5931 = vpop.xlane.xlu0 %5930
        %v5932 = vsel %vm1065, %v5831, inf
        %5933 = vmin.xlane.f32.xlu0 %v5932
        %v5934 = vpop.xlane.xlu0 %5933
        %v5935 = vsel %vm1065, %v5832, inf
        %5936 = vmin.xlane.f32.xlu0 %v5935
        %v5937 = vpop.xlane.xlu0 %5936
        %v5938 = vsel %vm1065, %v5833, inf
        %5939 = vmin.xlane.f32.xlu0 %v5938
        %v5940 = vpop.xlane.xlu0 %5939
        %vm5941 = vcmp.le.f32.partialorder %v5830, %v5931
        %vm5942 = vcmp.le.f32.partialorder %v5831, %v5934
        %vm5943 = vcmp.le.f32.partialorder %v5832, %v5937
        %vm5944 = vcmp.le.f32.partialorder %v5833, %v5940
        %v5945 = vsel %vm5941, %v1064, 32
        %v5946 = vsel %vm5942, %v1064, 32
        %v5947 = vsel %vm5943, %v1064, 32
        %v5948 = vsel %vm5944, %v1064, 32
        %v5949 = vsel %vm1065, %v5945, 2147483647
        %v5950 = vand.u32 %v5949, 65535
        %v5951 = vshra.s32 %v5949, 16
        %v5952 = vcvt.s32.f32 %v5950
        %v5953 = vcvt.s32.f32 %v5951
        %5954 = vmin.xlane.f32.xlu0 %v5953
        %v5955 = vpop.xlane.xlu0 %5954
        %vm5956 = vcmp.eq.f32.partialorder %v5953, %v5955
        %v5957 = vsel %vm5956, %v5952, inf
        %5958 = vmin.xlane.f32.xlu0 %v5957
        %v5959 = vpop.xlane.xlu0 %5958
        %v5960 = vcvt.f32.s32 %v5959
        %v5961 = vcvt.f32.s32 %v5955
        %v5962 = vshll.u32 %v5961, 16
        %v5963 = vadd.s32 %v5962, %v5960
        %v5964 = vsel %vm1065, %v5946, 2147483647
        %v5965 = vand.u32 %v5964, 65535
        %v5966 = vshra.s32 %v5964, 16
        %v5967 = vcvt.s32.f32 %v5965
        %v5968 = vcvt.s32.f32 %v5966
        %5969 = vmin.xlane.f32.xlu0 %v5968
        %v5970 = vpop.xlane.xlu0 %5969
        %vm5971 = vcmp.eq.f32.partialorder %v5968, %v5970
        %v5972 = vsel %vm5971, %v5967, inf
        %5973 = vmin.xlane.f32.xlu0 %v5972
        %v5974 = vpop.xlane.xlu0 %5973
        %v5975 = vcvt.f32.s32 %v5974
        %v5976 = vcvt.f32.s32 %v5970
        %v5977 = vshll.u32 %v5976, 16
        %v5978 = vadd.s32 %v5977, %v5975
        %v5979 = vsel %vm1065, %v5947, 2147483647
        %v5980 = vand.u32 %v5979, 65535
        %v5981 = vshra.s32 %v5979, 16
        %v5982 = vcvt.s32.f32 %v5980
        %v5983 = vcvt.s32.f32 %v5981
        %5984 = vmin.xlane.f32.xlu0 %v5983
        %v5985 = vpop.xlane.xlu0 %5984
        %vm5986 = vcmp.eq.f32.partialorder %v5983, %v5985
        %v5987 = vsel %vm5986, %v5982, inf
        %5988 = vmin.xlane.f32.xlu0 %v5987
        %v5989 = vpop.xlane.xlu0 %5988
        %v5990 = vcvt.f32.s32 %v5989
        %v5991 = vcvt.f32.s32 %v5985
        %v5992 = vshll.u32 %v5991, 16
        %v5993 = vadd.s32 %v5992, %v5990
        %v5994 = vsel %vm1065, %v5948, 2147483647
        %v5995 = vand.u32 %v5994, 65535
        %v5996 = vshra.s32 %v5994, 16
        %v5997 = vcvt.s32.f32 %v5995
        %v5998 = vcvt.s32.f32 %v5996
        %5999 = vmin.xlane.f32.xlu0 %v5998
        %v6000 = vpop.xlane.xlu0 %5999
        %vm6001 = vcmp.eq.f32.partialorder %v5998, %v6000
        %v6002 = vsel %vm6001, %v5997, inf
        %6003 = vmin.xlane.f32.xlu0 %v6002
        %v6004 = vpop.xlane.xlu0 %6003
        %v6005 = vcvt.f32.s32 %v6004
        %v6006 = vcvt.f32.s32 %v6000
        %v6007 = vshll.u32 %v6006, 16
        %v6008 = vadd.s32 %v6007, %v6005
        %vm6009 = vcmp.eq.s32.totalorder %v1064, %v5963
        %vm6010 = vcmp.eq.s32.totalorder %v1064, %v5978
        %vm6011 = vcmp.eq.s32.totalorder %v1064, %v5993
        %vm6012 = vcmp.eq.s32.totalorder %v1064, %v6008
        %v6013 = vsel %vm6009, 1, 0
        %v6014 = vsel %vm6010, 1, 0
        %v6015 = vsel %vm6011, 1, 0
        %v6016 = vsel %vm6012, 1, 0
        %v6017 = vcvt.s32.f32 %v6013
        %v6018 = vcvt.s32.f32 %v6014
        %v6019 = vcvt.s32.f32 %v6015
        %v6020 = vcvt.s32.f32 %v6016
        %6025 = vrot.lane.b32.xlu0 %v5901, 64
        %v6026 = vpop.permute.xlu0 %6025
        %6027 = vrot.lane.b32.xlu0 %v5906, 64
        %v6028 = vpop.permute.xlu0 %6027
        %6029 = vrot.lane.b32.xlu0 %v5911, 64
        %v6030 = vpop.permute.xlu0 %6029
        %6031 = vrot.lane.b32.xlu0 %v5916, 64
        %v6032 = vpop.permute.xlu0 %6031
        %v6038 = vsel %vm1065, %v6017, 0
        %v6041 = vsel %vm1065, %v6018, 0
        %v6044 = vsel %vm1065, %v6019, 0
        %v6047 = vsel %vm1065, %v6020, 0
        %6049 = vmatprep.subr.mxu0 0.0
        %6050 = vmatpush1.msra.mxu0 0.0
        %6051 = vmatprep.subr.mxu0 0.0
        %6052 = vmatpush1.msra.mxu0 0.0
        %6053 = vmatprep.subr.mxu0 0.0
        %6054 = vmatpush1.msra.mxu0 0.0
        %6055 = vmatprep.subr.mxu0 0.0
        %6056 = vmatpush1.msra.mxu0 0.0
        %6057 = vmatprep.subr.mxu0 0.0
        %6058 = vmatpush1.msra.mxu0 0.0
        %6059 = vmatprep.subr.mxu0 0.0
        %6060 = vmatpush1.msra.mxu0 0.0
        %6061 = vmatprep.subr.mxu0 0.0
        %6062 = vmatpush1.msra.mxu0 0.0
        %6063 = vmatprep.subr.mxu0 0.0
        %6064 = vmatpush1.msra.mxu0 0.0
        %6065 = vmatprep.subr.mxu0 0.0
        %6066 = vmatpush1.msra.mxu0 0.0
        %6067 = vmatprep.subr.mxu0 0.0
        %6068 = vmatpush1.msra.mxu0 0.0
        %6069 = vmatprep.subr.mxu0 0.0
        %6070 = vmatpush1.msra.mxu0 0.0
        %6071 = vmatprep.subr.mxu0 0.0
        %6072 = vmatpush1.msra.mxu0 0.0
        %6073 = vmatprep.subr.mxu0 0.0
        %6074 = vmatpush1.msra.mxu0 %v6032
        %6075 = vmatprep.subr.mxu0 0.0
        %6076 = vmatpush1.msra.mxu0 %v6030
        %6077 = vmatprep.subr.mxu0 0.0
        %6078 = vmatpush1.msra.mxu0 %v6028
        %6079 = vmatprep.subr.mxu0 0.0
        %6080 = vmatpush1.msra.mxu0 %v6026
        %6081 = vmatprep.subr.mxu0 0.0
        %6082 = vmatpush2.msra.mxu0 0.0
        %6083 = vmatprep.subr.mxu0 0.0
        %6084 = vmatpush2.msra.mxu0 0.0
        %6085 = vmatprep.subr.mxu0 0.0
        %6086 = vmatpush2.msra.mxu0 0.0
        %6087 = vmatprep.subr.mxu0 0.0
        %6088 = vmatpush2.msra.mxu0 0.0
        %6089 = vmatprep.subr.mxu0 0.0
        %6090 = vmatpush2.msra.mxu0 0.0
        %6091 = vmatprep.subr.mxu0 0.0
        %6092 = vmatpush2.msra.mxu0 0.0
        %6093 = vmatprep.subr.mxu0 0.0
        %6094 = vmatpush2.msra.mxu0 0.0
        %6095 = vmatprep.subr.mxu0 0.0
        %6096 = vmatpush2.msra.mxu0 0.0
        %6097 = vmatprep.subr.mxu0 0.0
        %6098 = vmatpush2.msra.mxu0 0.0
        %6099 = vmatprep.subr.mxu0 0.0
        %6100 = vmatpush2.msra.mxu0 0.0
        %6101 = vmatprep.subr.mxu0 0.0
        %6102 = vmatpush2.msra.mxu0 0.0
        %6103 = vmatprep.subr.mxu0 0.0
        %6104 = vmatpush2.msra.mxu0 0.0
        %6105 = vmatprep.subr.mxu0 0.0
        %6106 = vmatpush2.msra.mxu0 0.0
        %6107 = vmatprep.subr.mxu0 0.0
        %6108 = vmatpush2.msra.mxu0 0.0
        %6109 = vmatprep.subr.mxu0 0.0
        %6110 = vmatpush2.msra.mxu0 0.0
        %6111 = vmatprep.subr.mxu0 0.0
        %6112 = vmatpush2.msra.mxu0 0.0
        %6113 = vmatprep.mubr.f32.mxu0 0.0
        %6114 = vmatmul.mubr.f32.gmra.mxu0 %v6038
        %v6115 = vpop.f32.mrf.mxu0
        %v6116 = vadd.f32 0.0, %v6115
        %v6117 = vpop.f32.mrf.mxu0
        %6118 = vmatprep.mubr.f32.mxu0 0.0
        %6119 = vmatmul.mubr.f32.gmra.mxu0 %v6041
        %v6120 = vpop.f32.mrf.mxu0
        %v6121 = vadd.f32 0.0, %v6120
        %v6122 = vpop.f32.mrf.mxu0
        %6123 = vmatprep.mubr.f32.mxu0 0.0
        %6124 = vmatmul.mubr.f32.gmra.mxu0 %v6044
        %v6125 = vpop.f32.mrf.mxu0
        %v6126 = vadd.f32 0.0, %v6125
        %v6127 = vpop.f32.mrf.mxu0
        %6128 = vmatprep.mubr.f32.mxu0 0.0
        %6129 = vmatmul.mubr.f32.gmra.mxu0 %v6047
        %v6130 = vpop.f32.mrf.mxu0
        %v6131 = vadd.f32 0.0, %v6130
        %v6132 = vpop.f32.mrf.mxu0
        %6133 = vdwg.mxu0
        %v6134 = vadd.f32 %v5925, %v6116
        %v6135 = vadd.f32 %v5926, %v6121
        %v6136 = vadd.f32 %v5927, %v6126
        %v6137 = vadd.f32 %v5928, %v6131
        %v6138 = vmax.f32 %v6134, 0.0
        %v6139 = vmax.f32 %v6135, 0.0
        %v6140 = vmax.f32 %v6136, 0.0
        %v6141 = vmax.f32 %v6137, 0.0
        %v6142 = vpack.c.bf16 %v6139, %v6138
        %v6143 = vpack.c.bf16 %v6141, %v6140
        %v6152 = vunpack.c.l.b16 %v5663
        %v6153 = vunpack.c.l.b16 %v5664
        %v6154 = vunpack.c.l.b16 %v5665
        %v6155 = vunpack.c.l.b16 %v5666
        %v6156 = vunpack.c.l.b16 %v5667
        %v6157 = vunpack.c.l.b16 %v5668
        %v6158 = vunpack.c.l.b16 %v5669
        %v6159 = vunpack.c.l.b16 %v5670
        %v6160 = vpack.c.b16 %v6153, %v6152
        %v6161 = vpack.c.b16 %v6155, %v6154
        %v6162 = vpack.c.b16 %v6157, %v6156
        %v6163 = vpack.c.b16 %v6159, %v6158
        %v6169 = vsel %vm1305, %v6142, 0
        %v6172 = vsel %vm1305, %v6143, 0
        %6174 = vmatprep.subr.bf16.mxu0 0
        %6175 = vmatpush1.bf16.msra.mxu0 0
        %6176 = vmatprep.subr.bf16.mxu0 0
        %6177 = vmatpush1.bf16.msra.mxu0 0
        %6178 = vmatprep.subr.bf16.mxu0 0
        %6179 = vmatpush1.bf16.msra.mxu0 0
        %6180 = vmatprep.subr.bf16.mxu0 0
        %6181 = vmatpush1.bf16.msra.mxu0 0
        %6182 = vmatprep.subr.bf16.mxu0 0
        %6183 = vmatpush1.bf16.msra.mxu0 %v6163
        %6184 = vmatprep.subr.bf16.mxu0 0
        %6185 = vmatpush1.bf16.msra.mxu0 %v6162
        %6186 = vmatprep.subr.bf16.mxu0 0
        %6187 = vmatpush1.bf16.msra.mxu0 %v6161
        %6188 = vmatprep.subr.bf16.mxu0 0
        %6189 = vmatpush1.bf16.msra.mxu0 %v6160
        %6190 = vmatprep.subr.bf16.mxu0 0
        %6191 = vmatpush2.bf16.msra.mxu0 0
        %6192 = vmatprep.subr.bf16.mxu0 0
        %6193 = vmatpush2.bf16.msra.mxu0 0
        %6194 = vmatprep.subr.bf16.mxu0 0
        %6195 = vmatpush2.bf16.msra.mxu0 0
        %6196 = vmatprep.subr.bf16.mxu0 0
        %6197 = vmatpush2.bf16.msra.mxu0 0
        %6198 = vmatprep.subr.bf16.mxu0 0
        %6199 = vmatpush2.bf16.msra.mxu0 0
        %6200 = vmatprep.subr.bf16.mxu0 0
        %6201 = vmatpush2.bf16.msra.mxu0 0
        %6202 = vmatprep.subr.bf16.mxu0 0
        %6203 = vmatpush2.bf16.msra.mxu0 0
        %6204 = vmatprep.subr.bf16.mxu0 0
        %6205 = vmatpush2.bf16.msra.mxu0 0
        %6206 = vmatprep.mubr.bf16.mxu0 0
        %6207 = vmatmul.mubr.bf16.gmra.mxu0 %v6169
        %v6208 = vpop.f32.mrf.mxu0
        %v6209 = vadd.f32 0.0, %v6208
        %v6210 = vpop.f32.mrf.mxu0
        %v6211 = vpop.f32.mrf.mxu0
        %v6212 = vadd.f32 0.0, %v6211
        %v6213 = vpop.f32.mrf.mxu0
        %6214 = vmatprep.mubr.bf16.mxu0 0
        %6215 = vmatmul.mubr.bf16.gmra.mxu0 %v6172
        %v6216 = vpop.f32.mrf.mxu0
        %v6217 = vadd.f32 0.0, %v6216
        %v6218 = vpop.f32.mrf.mxu0
        %v6219 = vpop.f32.mrf.mxu0
        %v6220 = vadd.f32 0.0, %v6219
        %v6221 = vpop.f32.mrf.mxu0
        %6222 = vdwg.mxu0
        %v6223 = vmax.f32 %v6209, -1e+30
        %v6224 = vmax.f32 %v6212, -1e+30
        %v6225 = vmax.f32 %v6217, -1e+30
        %v6226 = vmax.f32 %v6220, -1e+30
        %v6227 = vsel %vm6009, 1e+30, %v5830
        %v6228 = vsel %vm6010, 1e+30, %v5831
        %v6229 = vsel %vm6011, 1e+30, %v5832
        %v6230 = vsel %vm6012, 1e+30, %v5833
        %v6231 = vsel %vm1065, %v6227, inf
        %6232 = vmin.xlane.f32.xlu0 %v6231
        %v6233 = vpop.xlane.xlu0 %6232
        %v6234 = vsel %vm1065, %v6228, inf
        %6235 = vmin.xlane.f32.xlu0 %v6234
        %v6236 = vpop.xlane.xlu0 %6235
        %v6237 = vsel %vm1065, %v6229, inf
        %6238 = vmin.xlane.f32.xlu0 %v6237
        %v6239 = vpop.xlane.xlu0 %6238
        %v6240 = vsel %vm1065, %v6230, inf
        %6241 = vmin.xlane.f32.xlu0 %v6240
        %v6242 = vpop.xlane.xlu0 %6241
        %vm6243 = vcmp.le.f32.partialorder %v6227, %v6233
        %vm6244 = vcmp.le.f32.partialorder %v6228, %v6236
        %vm6245 = vcmp.le.f32.partialorder %v6229, %v6239
        %vm6246 = vcmp.le.f32.partialorder %v6230, %v6242
        %v6247 = vsel %vm6243, %v1064, 32
        %v6248 = vsel %vm6244, %v1064, 32
        %v6249 = vsel %vm6245, %v1064, 32
        %v6250 = vsel %vm6246, %v1064, 32
        %v6251 = vsel %vm1065, %v6247, 2147483647
        %v6252 = vand.u32 %v6251, 65535
        %v6253 = vshra.s32 %v6251, 16
        %v6254 = vcvt.s32.f32 %v6252
        %v6255 = vcvt.s32.f32 %v6253
        %6256 = vmin.xlane.f32.xlu0 %v6255
        %v6257 = vpop.xlane.xlu0 %6256
        %vm6258 = vcmp.eq.f32.partialorder %v6255, %v6257
        %v6259 = vsel %vm6258, %v6254, inf
        %6260 = vmin.xlane.f32.xlu0 %v6259
        %v6261 = vpop.xlane.xlu0 %6260
        %v6262 = vcvt.f32.s32 %v6261
        %v6263 = vcvt.f32.s32 %v6257
        %v6264 = vshll.u32 %v6263, 16
        %v6265 = vadd.s32 %v6264, %v6262
        %v6266 = vsel %vm1065, %v6248, 2147483647
        %v6267 = vand.u32 %v6266, 65535
        %v6268 = vshra.s32 %v6266, 16
        %v6269 = vcvt.s32.f32 %v6267
        %v6270 = vcvt.s32.f32 %v6268
        %6271 = vmin.xlane.f32.xlu0 %v6270
        %v6272 = vpop.xlane.xlu0 %6271
        %vm6273 = vcmp.eq.f32.partialorder %v6270, %v6272
        %v6274 = vsel %vm6273, %v6269, inf
        %6275 = vmin.xlane.f32.xlu0 %v6274
        %v6276 = vpop.xlane.xlu0 %6275
        %v6277 = vcvt.f32.s32 %v6276
        %v6278 = vcvt.f32.s32 %v6272
        %v6279 = vshll.u32 %v6278, 16
        %v6280 = vadd.s32 %v6279, %v6277
        %v6281 = vsel %vm1065, %v6249, 2147483647
        %v6282 = vand.u32 %v6281, 65535
        %v6283 = vshra.s32 %v6281, 16
        %v6284 = vcvt.s32.f32 %v6282
        %v6285 = vcvt.s32.f32 %v6283
        %6286 = vmin.xlane.f32.xlu0 %v6285
        %v6287 = vpop.xlane.xlu0 %6286
        %vm6288 = vcmp.eq.f32.partialorder %v6285, %v6287
        %v6289 = vsel %vm6288, %v6284, inf
        %6290 = vmin.xlane.f32.xlu0 %v6289
        %v6291 = vpop.xlane.xlu0 %6290
        %v6292 = vcvt.f32.s32 %v6291
        %v6293 = vcvt.f32.s32 %v6287
        %v6294 = vshll.u32 %v6293, 16
        %v6295 = vadd.s32 %v6294, %v6292
        %v6296 = vsel %vm1065, %v6250, 2147483647
        %v6297 = vand.u32 %v6296, 65535
        %v6298 = vshra.s32 %v6296, 16
        %v6299 = vcvt.s32.f32 %v6297
        %v6300 = vcvt.s32.f32 %v6298
        %6301 = vmin.xlane.f32.xlu0 %v6300
        %v6302 = vpop.xlane.xlu0 %6301
        %vm6303 = vcmp.eq.f32.partialorder %v6300, %v6302
        %v6304 = vsel %vm6303, %v6299, inf
        %6305 = vmin.xlane.f32.xlu0 %v6304
        %v6306 = vpop.xlane.xlu0 %6305
        %v6307 = vcvt.f32.s32 %v6306
        %v6308 = vcvt.f32.s32 %v6302
        %v6309 = vshll.u32 %v6308, 16
        %v6310 = vadd.s32 %v6309, %v6307
        %vm6311 = vcmp.eq.s32.totalorder %v1064, %v6265
        %vm6312 = vcmp.eq.s32.totalorder %v1064, %v6280
        %vm6313 = vcmp.eq.s32.totalorder %v1064, %v6295
        %vm6314 = vcmp.eq.s32.totalorder %v1064, %v6310
        %v6315 = vsel %vm6311, 1, 0
        %v6316 = vsel %vm6312, 1, 0
        %v6317 = vsel %vm6313, 1, 0
        %v6318 = vsel %vm6314, 1, 0
        %v6319 = vcvt.s32.f32 %v6315
        %v6320 = vcvt.s32.f32 %v6316
        %v6321 = vcvt.s32.f32 %v6317
        %v6322 = vcvt.s32.f32 %v6318
        %v6324 = vsel %vm1065, %v6319, 0
        %v6327 = vsel %vm1065, %v6320, 0
        %v6330 = vsel %vm1065, %v6321, 0
        %v6333 = vsel %vm1065, %v6322, 0
        %6335 = vmatprep.subr.mxu0 0.0
        %6336 = vmatpush1.msra.mxu0 0.0
        %6337 = vmatprep.subr.mxu0 0.0
        %6338 = vmatpush1.msra.mxu0 0.0
        %6339 = vmatprep.subr.mxu0 0.0
        %6340 = vmatpush1.msra.mxu0 0.0
        %6341 = vmatprep.subr.mxu0 0.0
        %6342 = vmatpush1.msra.mxu0 0.0
        %6343 = vmatprep.subr.mxu0 0.0
        %6344 = vmatpush1.msra.mxu0 0.0
        %6345 = vmatprep.subr.mxu0 0.0
        %6346 = vmatpush1.msra.mxu0 0.0
        %6347 = vmatprep.subr.mxu0 0.0
        %6348 = vmatpush1.msra.mxu0 0.0
        %6349 = vmatprep.subr.mxu0 0.0
        %6350 = vmatpush1.msra.mxu0 0.0
        %6351 = vmatprep.subr.mxu0 0.0
        %6352 = vmatpush1.msra.mxu0 0.0
        %6353 = vmatprep.subr.mxu0 0.0
        %6354 = vmatpush1.msra.mxu0 0.0
        %6355 = vmatprep.subr.mxu0 0.0
        %6356 = vmatpush1.msra.mxu0 0.0
        %6357 = vmatprep.subr.mxu0 0.0
        %6358 = vmatpush1.msra.mxu0 0.0
        %6359 = vmatprep.subr.mxu0 0.0
        %6360 = vmatpush1.msra.mxu0 %v6032
        %6361 = vmatprep.subr.mxu0 0.0
        %6362 = vmatpush1.msra.mxu0 %v6030
        %6363 = vmatprep.subr.mxu0 0.0
        %6364 = vmatpush1.msra.mxu0 %v6028
        %6365 = vmatprep.subr.mxu0 0.0
        %6366 = vmatpush1.msra.mxu0 %v6026
        %6367 = vmatprep.subr.mxu0 0.0
        %6368 = vmatpush2.msra.mxu0 0.0
        %6369 = vmatprep.subr.mxu0 0.0
        %6370 = vmatpush2.msra.mxu0 0.0
        %6371 = vmatprep.subr.mxu0 0.0
        %6372 = vmatpush2.msra.mxu0 0.0
        %6373 = vmatprep.subr.mxu0 0.0
        %6374 = vmatpush2.msra.mxu0 0.0
        %6375 = vmatprep.subr.mxu0 0.0
        %6376 = vmatpush2.msra.mxu0 0.0
        %6377 = vmatprep.subr.mxu0 0.0
        %6378 = vmatpush2.msra.mxu0 0.0
        %6379 = vmatprep.subr.mxu0 0.0
        %6380 = vmatpush2.msra.mxu0 0.0
        %6381 = vmatprep.subr.mxu0 0.0
        %6382 = vmatpush2.msra.mxu0 0.0
        %6383 = vmatprep.subr.mxu0 0.0
        %6384 = vmatpush2.msra.mxu0 0.0
        %6385 = vmatprep.subr.mxu0 0.0
        %6386 = vmatpush2.msra.mxu0 0.0
        %6387 = vmatprep.subr.mxu0 0.0
        %6388 = vmatpush2.msra.mxu0 0.0
        %6389 = vmatprep.subr.mxu0 0.0
        %6390 = vmatpush2.msra.mxu0 0.0
        %6391 = vmatprep.subr.mxu0 0.0
        %6392 = vmatpush2.msra.mxu0 0.0
        %6393 = vmatprep.subr.mxu0 0.0
        %6394 = vmatpush2.msra.mxu0 0.0
        %6395 = vmatprep.subr.mxu0 0.0
        %6396 = vmatpush2.msra.mxu0 0.0
        %6397 = vmatprep.subr.mxu0 0.0
        %6398 = vmatpush2.msra.mxu0 0.0
        %6399 = vmatprep.mubr.f32.mxu0 0.0
        %6400 = vmatmul.mubr.f32.gmra.mxu0 %v6324
        %v6401 = vpop.f32.mrf.mxu0
        %v6402 = vadd.f32 0.0, %v6401
        %v6403 = vpop.f32.mrf.mxu0
        %6404 = vmatprep.mubr.f32.mxu0 0.0
        %6405 = vmatmul.mubr.f32.gmra.mxu0 %v6327
        %v6406 = vpop.f32.mrf.mxu0
        %v6407 = vadd.f32 0.0, %v6406
        %v6408 = vpop.f32.mrf.mxu0
        %6409 = vmatprep.mubr.f32.mxu0 0.0
        %6410 = vmatmul.mubr.f32.gmra.mxu0 %v6330
        %v6411 = vpop.f32.mrf.mxu0
        %v6412 = vadd.f32 0.0, %v6411
        %v6413 = vpop.f32.mrf.mxu0
        %6414 = vmatprep.mubr.f32.mxu0 0.0
        %6415 = vmatmul.mubr.f32.gmra.mxu0 %v6333
        %v6416 = vpop.f32.mrf.mxu0
        %v6417 = vadd.f32 0.0, %v6416
        %v6418 = vpop.f32.mrf.mxu0
        %6419 = vdwg.mxu0
        %v6420 = vadd.f32 %v5925, %v6402
        %v6421 = vadd.f32 %v5926, %v6407
        %v6422 = vadd.f32 %v5927, %v6412
        %v6423 = vadd.f32 %v5928, %v6417
        %v6424 = vmax.f32 %v6420, 0.0
        %v6425 = vmax.f32 %v6421, 0.0
        %v6426 = vmax.f32 %v6422, 0.0
        %v6427 = vmax.f32 %v6423, 0.0
        %v6428 = vpack.c.bf16 %v6425, %v6424
        %v6429 = vpack.c.bf16 %v6427, %v6426
        %v6431 = vsel %vm1305, %v6428, 0
        %v6434 = vsel %vm1305, %v6429, 0
        %6436 = vmatprep.subr.bf16.mxu0 0
        %6437 = vmatpush1.bf16.msra.mxu0 0
        %6438 = vmatprep.subr.bf16.mxu0 0
        %6439 = vmatpush1.bf16.msra.mxu0 0
        %6440 = vmatprep.subr.bf16.mxu0 0
        %6441 = vmatpush1.bf16.msra.mxu0 0
        %6442 = vmatprep.subr.bf16.mxu0 0
        %6443 = vmatpush1.bf16.msra.mxu0 0
        %6444 = vmatprep.subr.bf16.mxu0 0
        %6445 = vmatpush1.bf16.msra.mxu0 %v6163
        %6446 = vmatprep.subr.bf16.mxu0 0
        %6447 = vmatpush1.bf16.msra.mxu0 %v6162
        %6448 = vmatprep.subr.bf16.mxu0 0
        %6449 = vmatpush1.bf16.msra.mxu0 %v6161
        %6450 = vmatprep.subr.bf16.mxu0 0
        %6451 = vmatpush1.bf16.msra.mxu0 %v6160
        %6452 = vmatprep.subr.bf16.mxu0 0
        %6453 = vmatpush2.bf16.msra.mxu0 0
        %6454 = vmatprep.subr.bf16.mxu0 0
        %6455 = vmatpush2.bf16.msra.mxu0 0
        %6456 = vmatprep.subr.bf16.mxu0 0
        %6457 = vmatpush2.bf16.msra.mxu0 0
        %6458 = vmatprep.subr.bf16.mxu0 0
        %6459 = vmatpush2.bf16.msra.mxu0 0
        %6460 = vmatprep.subr.bf16.mxu0 0
        %6461 = vmatpush2.bf16.msra.mxu0 0
        %6462 = vmatprep.subr.bf16.mxu0 0
        %6463 = vmatpush2.bf16.msra.mxu0 0
        %6464 = vmatprep.subr.bf16.mxu0 0
        %6465 = vmatpush2.bf16.msra.mxu0 0
        %6466 = vmatprep.subr.bf16.mxu0 0
        %6467 = vmatpush2.bf16.msra.mxu0 0
        %6468 = vmatprep.mubr.bf16.mxu0 0
        %6469 = vmatmul.mubr.bf16.gmra.mxu0 %v6431
        %v6470 = vpop.f32.mrf.mxu0
        %v6471 = vadd.f32 0.0, %v6470
        %v6472 = vpop.f32.mrf.mxu0
        %v6473 = vpop.f32.mrf.mxu0
        %v6474 = vadd.f32 0.0, %v6473
        %v6475 = vpop.f32.mrf.mxu0
        %6476 = vmatprep.mubr.bf16.mxu0 0
        %6477 = vmatmul.mubr.bf16.gmra.mxu0 %v6434
        %v6478 = vpop.f32.mrf.mxu0
        %v6479 = vadd.f32 0.0, %v6478
        %v6480 = vpop.f32.mrf.mxu0
        %v6481 = vpop.f32.mrf.mxu0
        %v6482 = vadd.f32 0.0, %v6481
        %v6483 = vpop.f32.mrf.mxu0
        %6484 = vdwg.mxu0
        %v6485 = vmax.f32 %v6223, %v6471
        %v6486 = vmax.f32 %v6224, %v6474
        %v6487 = vmax.f32 %v6225, %v6479
        %v6488 = vmax.f32 %v6226, %v6482
        %v6489 = vsel %vm6311, 1e+30, %v6227
        %v6490 = vsel %vm6312, 1e+30, %v6228
        %v6491 = vsel %vm6313, 1e+30, %v6229
        %v6492 = vsel %vm6314, 1e+30, %v6230
        %v6493 = vsel %vm1065, %v6489, inf
        %6494 = vmin.xlane.f32.xlu0 %v6493
        %v6495 = vpop.xlane.xlu0 %6494
        %v6496 = vsel %vm1065, %v6490, inf
        %6497 = vmin.xlane.f32.xlu0 %v6496
        %v6498 = vpop.xlane.xlu0 %6497
        %v6499 = vsel %vm1065, %v6491, inf
        %6500 = vmin.xlane.f32.xlu0 %v6499
        %v6501 = vpop.xlane.xlu0 %6500
        %v6502 = vsel %vm1065, %v6492, inf
        %6503 = vmin.xlane.f32.xlu0 %v6502
        %v6504 = vpop.xlane.xlu0 %6503
        %vm6505 = vcmp.le.f32.partialorder %v6489, %v6495
        %vm6506 = vcmp.le.f32.partialorder %v6490, %v6498
        %vm6507 = vcmp.le.f32.partialorder %v6491, %v6501
        %vm6508 = vcmp.le.f32.partialorder %v6492, %v6504
        %v6509 = vsel %vm6505, %v1064, 32
        %v6510 = vsel %vm6506, %v1064, 32
        %v6511 = vsel %vm6507, %v1064, 32
        %v6512 = vsel %vm6508, %v1064, 32
        %v6513 = vsel %vm1065, %v6509, 2147483647
        %v6514 = vand.u32 %v6513, 65535
        %v6515 = vshra.s32 %v6513, 16
        %v6516 = vcvt.s32.f32 %v6514
        %v6517 = vcvt.s32.f32 %v6515
        %6518 = vmin.xlane.f32.xlu0 %v6517
        %v6519 = vpop.xlane.xlu0 %6518
        %vm6520 = vcmp.eq.f32.partialorder %v6517, %v6519
        %v6521 = vsel %vm6520, %v6516, inf
        %6522 = vmin.xlane.f32.xlu0 %v6521
        %v6523 = vpop.xlane.xlu0 %6522
        %v6524 = vcvt.f32.s32 %v6523
        %v6525 = vcvt.f32.s32 %v6519
        %v6526 = vshll.u32 %v6525, 16
        %v6527 = vadd.s32 %v6526, %v6524
        %v6528 = vsel %vm1065, %v6510, 2147483647
        %v6529 = vand.u32 %v6528, 65535
        %v6530 = vshra.s32 %v6528, 16
        %v6531 = vcvt.s32.f32 %v6529
        %v6532 = vcvt.s32.f32 %v6530
        %6533 = vmin.xlane.f32.xlu0 %v6532
        %v6534 = vpop.xlane.xlu0 %6533
        %vm6535 = vcmp.eq.f32.partialorder %v6532, %v6534
        %v6536 = vsel %vm6535, %v6531, inf
        %6537 = vmin.xlane.f32.xlu0 %v6536
        %v6538 = vpop.xlane.xlu0 %6537
        %v6539 = vcvt.f32.s32 %v6538
        %v6540 = vcvt.f32.s32 %v6534
        %v6541 = vshll.u32 %v6540, 16
        %v6542 = vadd.s32 %v6541, %v6539
        %v6543 = vsel %vm1065, %v6511, 2147483647
        %v6544 = vand.u32 %v6543, 65535
        %v6545 = vshra.s32 %v6543, 16
        %v6546 = vcvt.s32.f32 %v6544
        %v6547 = vcvt.s32.f32 %v6545
        %6548 = vmin.xlane.f32.xlu0 %v6547
        %v6549 = vpop.xlane.xlu0 %6548
        %vm6550 = vcmp.eq.f32.partialorder %v6547, %v6549
        %v6551 = vsel %vm6550, %v6546, inf
        %6552 = vmin.xlane.f32.xlu0 %v6551
        %v6553 = vpop.xlane.xlu0 %6552
        %v6554 = vcvt.f32.s32 %v6553
        %v6555 = vcvt.f32.s32 %v6549
        %v6556 = vshll.u32 %v6555, 16
        %v6557 = vadd.s32 %v6556, %v6554
        %v6558 = vsel %vm1065, %v6512, 2147483647
        %v6559 = vand.u32 %v6558, 65535
        %v6560 = vshra.s32 %v6558, 16
        %v6561 = vcvt.s32.f32 %v6559
        %v6562 = vcvt.s32.f32 %v6560
        %6563 = vmin.xlane.f32.xlu0 %v6562
        %v6564 = vpop.xlane.xlu0 %6563
        %vm6565 = vcmp.eq.f32.partialorder %v6562, %v6564
        %v6566 = vsel %vm6565, %v6561, inf
        %6567 = vmin.xlane.f32.xlu0 %v6566
        %v6568 = vpop.xlane.xlu0 %6567
        %v6569 = vcvt.f32.s32 %v6568
        %v6570 = vcvt.f32.s32 %v6564
        %v6571 = vshll.u32 %v6570, 16
        %v6572 = vadd.s32 %v6571, %v6569
        %vm6573 = vcmp.eq.s32.totalorder %v1064, %v6527
        %vm6574 = vcmp.eq.s32.totalorder %v1064, %v6542
        %vm6575 = vcmp.eq.s32.totalorder %v1064, %v6557
        %vm6576 = vcmp.eq.s32.totalorder %v1064, %v6572
        %v6577 = vsel %vm6573, 1, 0
        %v6578 = vsel %vm6574, 1, 0
        %v6579 = vsel %vm6575, 1, 0
        %v6580 = vsel %vm6576, 1, 0
        %v6581 = vcvt.s32.f32 %v6577
        %v6582 = vcvt.s32.f32 %v6578
        %v6583 = vcvt.s32.f32 %v6579
        %v6584 = vcvt.s32.f32 %v6580
        %v6586 = vsel %vm1065, %v6581, 0
        %v6589 = vsel %vm1065, %v6582, 0
        %v6592 = vsel %vm1065, %v6583, 0
        %v6595 = vsel %vm1065, %v6584, 0
        %6597 = vmatprep.subr.mxu0 0.0
        %6598 = vmatpush1.msra.mxu0 0.0
        %6599 = vmatprep.subr.mxu0 0.0
        %6600 = vmatpush1.msra.mxu0 0.0
        %6601 = vmatprep.subr.mxu0 0.0
        %6602 = vmatpush1.msra.mxu0 0.0
        %6603 = vmatprep.subr.mxu0 0.0
        %6604 = vmatpush1.msra.mxu0 0.0
        %6605 = vmatprep.subr.mxu0 0.0
        %6606 = vmatpush1.msra.mxu0 0.0
        %6607 = vmatprep.subr.mxu0 0.0
        %6608 = vmatpush1.msra.mxu0 0.0
        %6609 = vmatprep.subr.mxu0 0.0
        %6610 = vmatpush1.msra.mxu0 0.0
        %6611 = vmatprep.subr.mxu0 0.0
        %6612 = vmatpush1.msra.mxu0 0.0
        %6613 = vmatprep.subr.mxu0 0.0
        %6614 = vmatpush1.msra.mxu0 0.0
        %6615 = vmatprep.subr.mxu0 0.0
        %6616 = vmatpush1.msra.mxu0 0.0
        %6617 = vmatprep.subr.mxu0 0.0
        %6618 = vmatpush1.msra.mxu0 0.0
        %6619 = vmatprep.subr.mxu0 0.0
        %6620 = vmatpush1.msra.mxu0 0.0
        %6621 = vmatprep.subr.mxu0 0.0
        %6622 = vmatpush1.msra.mxu0 %v6032
        %6623 = vmatprep.subr.mxu0 0.0
        %6624 = vmatpush1.msra.mxu0 %v6030
        %6625 = vmatprep.subr.mxu0 0.0
        %6626 = vmatpush1.msra.mxu0 %v6028
        %6627 = vmatprep.subr.mxu0 0.0
        %6628 = vmatpush1.msra.mxu0 %v6026
        %6629 = vmatprep.subr.mxu0 0.0
        %6630 = vmatpush2.msra.mxu0 0.0
        %6631 = vmatprep.subr.mxu0 0.0
        %6632 = vmatpush2.msra.mxu0 0.0
        %6633 = vmatprep.subr.mxu0 0.0
        %6634 = vmatpush2.msra.mxu0 0.0
        %6635 = vmatprep.subr.mxu0 0.0
        %6636 = vmatpush2.msra.mxu0 0.0
        %6637 = vmatprep.subr.mxu0 0.0
        %6638 = vmatpush2.msra.mxu0 0.0
        %6639 = vmatprep.subr.mxu0 0.0
        %6640 = vmatpush2.msra.mxu0 0.0
        %6641 = vmatprep.subr.mxu0 0.0
        %6642 = vmatpush2.msra.mxu0 0.0
        %6643 = vmatprep.subr.mxu0 0.0
        %6644 = vmatpush2.msra.mxu0 0.0
        %6645 = vmatprep.subr.mxu0 0.0
        %6646 = vmatpush2.msra.mxu0 0.0
        %6647 = vmatprep.subr.mxu0 0.0
        %6648 = vmatpush2.msra.mxu0 0.0
        %6649 = vmatprep.subr.mxu0 0.0
        %6650 = vmatpush2.msra.mxu0 0.0
        %6651 = vmatprep.subr.mxu0 0.0
        %6652 = vmatpush2.msra.mxu0 0.0
        %6653 = vmatprep.subr.mxu0 0.0
        %6654 = vmatpush2.msra.mxu0 0.0
        %6655 = vmatprep.subr.mxu0 0.0
        %6656 = vmatpush2.msra.mxu0 0.0
        %6657 = vmatprep.subr.mxu0 0.0
        %6658 = vmatpush2.msra.mxu0 0.0
        %6659 = vmatprep.subr.mxu0 0.0
        %6660 = vmatpush2.msra.mxu0 0.0
        %6661 = vmatprep.mubr.f32.mxu0 0.0
        %6662 = vmatmul.mubr.f32.gmra.mxu0 %v6586
        %v6663 = vpop.f32.mrf.mxu0
        %v6664 = vadd.f32 0.0, %v6663
        %v6665 = vpop.f32.mrf.mxu0
        %6666 = vmatprep.mubr.f32.mxu0 0.0
        %6667 = vmatmul.mubr.f32.gmra.mxu0 %v6589
        %v6668 = vpop.f32.mrf.mxu0
        %v6669 = vadd.f32 0.0, %v6668
        %v6670 = vpop.f32.mrf.mxu0
        %6671 = vmatprep.mubr.f32.mxu0 0.0
        %6672 = vmatmul.mubr.f32.gmra.mxu0 %v6592
        %v6673 = vpop.f32.mrf.mxu0
        %v6674 = vadd.f32 0.0, %v6673
        %v6675 = vpop.f32.mrf.mxu0
        %6676 = vmatprep.mubr.f32.mxu0 0.0
        %6677 = vmatmul.mubr.f32.gmra.mxu0 %v6595
        %v6678 = vpop.f32.mrf.mxu0
        %v6679 = vadd.f32 0.0, %v6678
        %v6680 = vpop.f32.mrf.mxu0
        %6681 = vdwg.mxu0
        %v6682 = vadd.f32 %v5925, %v6664
        %v6683 = vadd.f32 %v5926, %v6669
        %v6684 = vadd.f32 %v5927, %v6674
        %v6685 = vadd.f32 %v5928, %v6679
        %v6686 = vmax.f32 %v6682, 0.0
        %v6687 = vmax.f32 %v6683, 0.0
        %v6688 = vmax.f32 %v6684, 0.0
        %v6689 = vmax.f32 %v6685, 0.0
        %v6690 = vpack.c.bf16 %v6687, %v6686
        %v6691 = vpack.c.bf16 %v6689, %v6688
        %v6693 = vsel %vm1305, %v6690, 0
        %v6696 = vsel %vm1305, %v6691, 0
        %6698 = vmatprep.subr.bf16.mxu0 0
        %6699 = vmatpush1.bf16.msra.mxu0 0
        %6700 = vmatprep.subr.bf16.mxu0 0
        %6701 = vmatpush1.bf16.msra.mxu0 0
        %6702 = vmatprep.subr.bf16.mxu0 0
        %6703 = vmatpush1.bf16.msra.mxu0 0
        %6704 = vmatprep.subr.bf16.mxu0 0
        %6705 = vmatpush1.bf16.msra.mxu0 0
        %6706 = vmatprep.subr.bf16.mxu0 0
        %6707 = vmatpush1.bf16.msra.mxu0 %v6163
        %6708 = vmatprep.subr.bf16.mxu0 0
        %6709 = vmatpush1.bf16.msra.mxu0 %v6162
        %6710 = vmatprep.subr.bf16.mxu0 0
        %6711 = vmatpush1.bf16.msra.mxu0 %v6161
        %6712 = vmatprep.subr.bf16.mxu0 0
        %6713 = vmatpush1.bf16.msra.mxu0 %v6160
        %6714 = vmatprep.subr.bf16.mxu0 0
        %6715 = vmatpush2.bf16.msra.mxu0 0
        %6716 = vmatprep.subr.bf16.mxu0 0
        %6717 = vmatpush2.bf16.msra.mxu0 0
        %6718 = vmatprep.subr.bf16.mxu0 0
        %6719 = vmatpush2.bf16.msra.mxu0 0
        %6720 = vmatprep.subr.bf16.mxu0 0
        %6721 = vmatpush2.bf16.msra.mxu0 0
        %6722 = vmatprep.subr.bf16.mxu0 0
        %6723 = vmatpush2.bf16.msra.mxu0 0
        %6724 = vmatprep.subr.bf16.mxu0 0
        %6725 = vmatpush2.bf16.msra.mxu0 0
        %6726 = vmatprep.subr.bf16.mxu0 0
        %6727 = vmatpush2.bf16.msra.mxu0 0
        %6728 = vmatprep.subr.bf16.mxu0 0
        %6729 = vmatpush2.bf16.msra.mxu0 0
        %6730 = vmatprep.mubr.bf16.mxu0 0
        %6731 = vmatmul.mubr.bf16.gmra.mxu0 %v6693
        %v6732 = vpop.f32.mrf.mxu0
        %v6733 = vadd.f32 0.0, %v6732
        %v6734 = vpop.f32.mrf.mxu0
        %v6735 = vpop.f32.mrf.mxu0
        %v6736 = vadd.f32 0.0, %v6735
        %v6737 = vpop.f32.mrf.mxu0
        %6738 = vmatprep.mubr.bf16.mxu0 0
        %6739 = vmatmul.mubr.bf16.gmra.mxu0 %v6696
        %v6740 = vpop.f32.mrf.mxu0
        %v6741 = vadd.f32 0.0, %v6740
        %v6742 = vpop.f32.mrf.mxu0
        %v6743 = vpop.f32.mrf.mxu0
        %v6744 = vadd.f32 0.0, %v6743
        %v6745 = vpop.f32.mrf.mxu0
        %6746 = vdwg.mxu0
        %v6747 = vmax.f32 %v6485, %v6733
        %v6748 = vmax.f32 %v6486, %v6736
        %v6749 = vmax.f32 %v6487, %v6741
        %v6750 = vmax.f32 %v6488, %v6744
        %v6751 = vsel %vm6573, 1e+30, %v6489
        %v6752 = vsel %vm6574, 1e+30, %v6490
        %v6753 = vsel %vm6575, 1e+30, %v6491
        %v6754 = vsel %vm6576, 1e+30, %v6492
        %v6755 = vsel %vm1065, %v6751, inf
        %6756 = vmin.xlane.f32.xlu0 %v6755
        %v6757 = vpop.xlane.xlu0 %6756
        %v6758 = vsel %vm1065, %v6752, inf
        %6759 = vmin.xlane.f32.xlu0 %v6758
        %v6760 = vpop.xlane.xlu0 %6759
        %v6761 = vsel %vm1065, %v6753, inf
        %6762 = vmin.xlane.f32.xlu0 %v6761
        %v6763 = vpop.xlane.xlu0 %6762
        %v6764 = vsel %vm1065, %v6754, inf
        %6765 = vmin.xlane.f32.xlu0 %v6764
        %v6766 = vpop.xlane.xlu0 %6765
        %vm6767 = vcmp.le.f32.partialorder %v6751, %v6757
        %vm6768 = vcmp.le.f32.partialorder %v6752, %v6760
        %vm6769 = vcmp.le.f32.partialorder %v6753, %v6763
        %vm6770 = vcmp.le.f32.partialorder %v6754, %v6766
        %v6771 = vsel %vm6767, %v1064, 32
        %v6772 = vsel %vm6768, %v1064, 32
        %v6773 = vsel %vm6769, %v1064, 32
        %v6774 = vsel %vm6770, %v1064, 32
        %v6775 = vsel %vm1065, %v6771, 2147483647
        %v6776 = vand.u32 %v6775, 65535
        %v6777 = vshra.s32 %v6775, 16
        %v6778 = vcvt.s32.f32 %v6776
        %v6779 = vcvt.s32.f32 %v6777
        %6780 = vmin.xlane.f32.xlu0 %v6779
        %v6781 = vpop.xlane.xlu0 %6780
        %vm6782 = vcmp.eq.f32.partialorder %v6779, %v6781
        %v6783 = vsel %vm6782, %v6778, inf
        %6784 = vmin.xlane.f32.xlu0 %v6783
        %v6785 = vpop.xlane.xlu0 %6784
        %v6786 = vcvt.f32.s32 %v6785
        %v6787 = vcvt.f32.s32 %v6781
        %v6788 = vshll.u32 %v6787, 16
        %v6789 = vadd.s32 %v6788, %v6786
        %v6790 = vsel %vm1065, %v6772, 2147483647
        %v6791 = vand.u32 %v6790, 65535
        %v6792 = vshra.s32 %v6790, 16
        %v6793 = vcvt.s32.f32 %v6791
        %v6794 = vcvt.s32.f32 %v6792
        %6795 = vmin.xlane.f32.xlu0 %v6794
        %v6796 = vpop.xlane.xlu0 %6795
        %vm6797 = vcmp.eq.f32.partialorder %v6794, %v6796
        %v6798 = vsel %vm6797, %v6793, inf
        %6799 = vmin.xlane.f32.xlu0 %v6798
        %v6800 = vpop.xlane.xlu0 %6799
        %v6801 = vcvt.f32.s32 %v6800
        %v6802 = vcvt.f32.s32 %v6796
        %v6803 = vshll.u32 %v6802, 16
        %v6804 = vadd.s32 %v6803, %v6801
        %v6805 = vsel %vm1065, %v6773, 2147483647
        %v6806 = vand.u32 %v6805, 65535
        %v6807 = vshra.s32 %v6805, 16
        %v6808 = vcvt.s32.f32 %v6806
        %v6809 = vcvt.s32.f32 %v6807
        %6810 = vmin.xlane.f32.xlu0 %v6809
        %v6811 = vpop.xlane.xlu0 %6810
        %vm6812 = vcmp.eq.f32.partialorder %v6809, %v6811
        %v6813 = vsel %vm6812, %v6808, inf
        %6814 = vmin.xlane.f32.xlu0 %v6813
        %v6815 = vpop.xlane.xlu0 %6814
        %v6816 = vcvt.f32.s32 %v6815
        %v6817 = vcvt.f32.s32 %v6811
        %v6818 = vshll.u32 %v6817, 16
        %v6819 = vadd.s32 %v6818, %v6816
        %v6820 = vsel %vm1065, %v6774, 2147483647
        %v6821 = vand.u32 %v6820, 65535
        %v6822 = vshra.s32 %v6820, 16
        %v6823 = vcvt.s32.f32 %v6821
        %v6824 = vcvt.s32.f32 %v6822
        %6825 = vmin.xlane.f32.xlu0 %v6824
        %v6826 = vpop.xlane.xlu0 %6825
        %vm6827 = vcmp.eq.f32.partialorder %v6824, %v6826
        %v6828 = vsel %vm6827, %v6823, inf
        %6829 = vmin.xlane.f32.xlu0 %v6828
        %v6830 = vpop.xlane.xlu0 %6829
        %v6831 = vcvt.f32.s32 %v6830
        %v6832 = vcvt.f32.s32 %v6826
        %v6833 = vshll.u32 %v6832, 16
        %v6834 = vadd.s32 %v6833, %v6831
        %vm6835 = vcmp.eq.s32.totalorder %v1064, %v6789
        %vm6836 = vcmp.eq.s32.totalorder %v1064, %v6804
        %vm6837 = vcmp.eq.s32.totalorder %v1064, %v6819
        %vm6838 = vcmp.eq.s32.totalorder %v1064, %v6834
        %v6839 = vsel %vm6835, 1, 0
        %v6840 = vsel %vm6836, 1, 0
        %v6841 = vsel %vm6837, 1, 0
        %v6842 = vsel %vm6838, 1, 0
        %v6843 = vcvt.s32.f32 %v6839
        %v6844 = vcvt.s32.f32 %v6840
        %v6845 = vcvt.s32.f32 %v6841
        %v6846 = vcvt.s32.f32 %v6842
        %v6848 = vsel %vm1065, %v6843, 0
        %v6851 = vsel %vm1065, %v6844, 0
        %v6854 = vsel %vm1065, %v6845, 0
        %v6857 = vsel %vm1065, %v6846, 0
        %6859 = vmatprep.subr.mxu0 0.0
        %6860 = vmatpush1.msra.mxu0 0.0
        %6861 = vmatprep.subr.mxu0 0.0
        %6862 = vmatpush1.msra.mxu0 0.0
        %6863 = vmatprep.subr.mxu0 0.0
        %6864 = vmatpush1.msra.mxu0 0.0
        %6865 = vmatprep.subr.mxu0 0.0
        %6866 = vmatpush1.msra.mxu0 0.0
        %6867 = vmatprep.subr.mxu0 0.0
        %6868 = vmatpush1.msra.mxu0 0.0
        %6869 = vmatprep.subr.mxu0 0.0
        %6870 = vmatpush1.msra.mxu0 0.0
        %6871 = vmatprep.subr.mxu0 0.0
        %6872 = vmatpush1.msra.mxu0 0.0
        %6873 = vmatprep.subr.mxu0 0.0
        %6874 = vmatpush1.msra.mxu0 0.0
        %6875 = vmatprep.subr.mxu0 0.0
        %6876 = vmatpush1.msra.mxu0 0.0
        %6877 = vmatprep.subr.mxu0 0.0
        %6878 = vmatpush1.msra.mxu0 0.0
        %6879 = vmatprep.subr.mxu0 0.0
        %6880 = vmatpush1.msra.mxu0 0.0
        %6881 = vmatprep.subr.mxu0 0.0
        %6882 = vmatpush1.msra.mxu0 0.0
        %6883 = vmatprep.subr.mxu0 0.0
        %6884 = vmatpush1.msra.mxu0 %v6032
        %6885 = vmatprep.subr.mxu0 0.0
        %6886 = vmatpush1.msra.mxu0 %v6030
        %6887 = vmatprep.subr.mxu0 0.0
        %6888 = vmatpush1.msra.mxu0 %v6028
        %6889 = vmatprep.subr.mxu0 0.0
        %6890 = vmatpush1.msra.mxu0 %v6026
        %6891 = vmatprep.subr.mxu0 0.0
        %6892 = vmatpush2.msra.mxu0 0.0
        %6893 = vmatprep.subr.mxu0 0.0
        %6894 = vmatpush2.msra.mxu0 0.0
        %6895 = vmatprep.subr.mxu0 0.0
        %6896 = vmatpush2.msra.mxu0 0.0
        %6897 = vmatprep.subr.mxu0 0.0
        %6898 = vmatpush2.msra.mxu0 0.0
        %6899 = vmatprep.subr.mxu0 0.0
        %6900 = vmatpush2.msra.mxu0 0.0
        %6901 = vmatprep.subr.mxu0 0.0
        %6902 = vmatpush2.msra.mxu0 0.0
        %6903 = vmatprep.subr.mxu0 0.0
        %6904 = vmatpush2.msra.mxu0 0.0
        %6905 = vmatprep.subr.mxu0 0.0
        %6906 = vmatpush2.msra.mxu0 0.0
        %6907 = vmatprep.subr.mxu0 0.0
        %6908 = vmatpush2.msra.mxu0 0.0
        %6909 = vmatprep.subr.mxu0 0.0
        %6910 = vmatpush2.msra.mxu0 0.0
        %6911 = vmatprep.subr.mxu0 0.0
        %6912 = vmatpush2.msra.mxu0 0.0
        %6913 = vmatprep.subr.mxu0 0.0
        %6914 = vmatpush2.msra.mxu0 0.0
        %6915 = vmatprep.subr.mxu0 0.0
        %6916 = vmatpush2.msra.mxu0 0.0
        %6917 = vmatprep.subr.mxu0 0.0
        %6918 = vmatpush2.msra.mxu0 0.0
        %6919 = vmatprep.subr.mxu0 0.0
        %6920 = vmatpush2.msra.mxu0 0.0
        %6921 = vmatprep.subr.mxu0 0.0
        %6922 = vmatpush2.msra.mxu0 0.0
        %6923 = vmatprep.mubr.f32.mxu0 0.0
        %6924 = vmatmul.mubr.f32.gmra.mxu0 %v6848
        %v6925 = vpop.f32.mrf.mxu0
        %v6926 = vadd.f32 0.0, %v6925
        %v6927 = vpop.f32.mrf.mxu0
        %6928 = vmatprep.mubr.f32.mxu0 0.0
        %6929 = vmatmul.mubr.f32.gmra.mxu0 %v6851
        %v6930 = vpop.f32.mrf.mxu0
        %v6931 = vadd.f32 0.0, %v6930
        %v6932 = vpop.f32.mrf.mxu0
        %6933 = vmatprep.mubr.f32.mxu0 0.0
        %6934 = vmatmul.mubr.f32.gmra.mxu0 %v6854
        %v6935 = vpop.f32.mrf.mxu0
        %v6936 = vadd.f32 0.0, %v6935
        %v6937 = vpop.f32.mrf.mxu0
        %6938 = vmatprep.mubr.f32.mxu0 0.0
        %6939 = vmatmul.mubr.f32.gmra.mxu0 %v6857
        %v6940 = vpop.f32.mrf.mxu0
        %v6941 = vadd.f32 0.0, %v6940
        %v6942 = vpop.f32.mrf.mxu0
        %6943 = vdwg.mxu0
        %v6944 = vadd.f32 %v5925, %v6926
        %v6945 = vadd.f32 %v5926, %v6931
        %v6946 = vadd.f32 %v5927, %v6936
        %v6947 = vadd.f32 %v5928, %v6941
        %v6948 = vmax.f32 %v6944, 0.0
        %v6949 = vmax.f32 %v6945, 0.0
        %v6950 = vmax.f32 %v6946, 0.0
        %v6951 = vmax.f32 %v6947, 0.0
        %v6952 = vpack.c.bf16 %v6949, %v6948
        %v6953 = vpack.c.bf16 %v6951, %v6950
        %v6955 = vsel %vm1305, %v6952, 0
        %v6958 = vsel %vm1305, %v6953, 0
        %6960 = vmatprep.subr.bf16.mxu0 0
        %6961 = vmatpush1.bf16.msra.mxu0 0
        %6962 = vmatprep.subr.bf16.mxu0 0
        %6963 = vmatpush1.bf16.msra.mxu0 0
        %6964 = vmatprep.subr.bf16.mxu0 0
        %6965 = vmatpush1.bf16.msra.mxu0 0
        %6966 = vmatprep.subr.bf16.mxu0 0
        %6967 = vmatpush1.bf16.msra.mxu0 0
        %6968 = vmatprep.subr.bf16.mxu0 0
        %6969 = vmatpush1.bf16.msra.mxu0 %v6163
        %6970 = vmatprep.subr.bf16.mxu0 0
        %6971 = vmatpush1.bf16.msra.mxu0 %v6162
        %6972 = vmatprep.subr.bf16.mxu0 0
        %6973 = vmatpush1.bf16.msra.mxu0 %v6161
        %6974 = vmatprep.subr.bf16.mxu0 0
        %6975 = vmatpush1.bf16.msra.mxu0 %v6160
        %6976 = vmatprep.subr.bf16.mxu0 0
        %6977 = vmatpush2.bf16.msra.mxu0 0
        %6978 = vmatprep.subr.bf16.mxu0 0
        %6979 = vmatpush2.bf16.msra.mxu0 0
        %6980 = vmatprep.subr.bf16.mxu0 0
        %6981 = vmatpush2.bf16.msra.mxu0 0
        %6982 = vmatprep.subr.bf16.mxu0 0
        %6983 = vmatpush2.bf16.msra.mxu0 0
        %6984 = vmatprep.subr.bf16.mxu0 0
        %6985 = vmatpush2.bf16.msra.mxu0 0
        %6986 = vmatprep.subr.bf16.mxu0 0
        %6987 = vmatpush2.bf16.msra.mxu0 0
        %6988 = vmatprep.subr.bf16.mxu0 0
        %6989 = vmatpush2.bf16.msra.mxu0 0
        %6990 = vmatprep.subr.bf16.mxu0 0
        %6991 = vmatpush2.bf16.msra.mxu0 0
        %6992 = vmatprep.mubr.bf16.mxu0 0
        %6993 = vmatmul.mubr.bf16.gmra.mxu0 %v6955
        %v6994 = vpop.f32.mrf.mxu0
        %v6995 = vadd.f32 0.0, %v6994
        %v6996 = vpop.f32.mrf.mxu0
        %v6997 = vpop.f32.mrf.mxu0
        %v6998 = vadd.f32 0.0, %v6997
        %v6999 = vpop.f32.mrf.mxu0
        %7000 = vmatprep.mubr.bf16.mxu0 0
        %7001 = vmatmul.mubr.bf16.gmra.mxu0 %v6958
        %v7002 = vpop.f32.mrf.mxu0
        %v7003 = vadd.f32 0.0, %v7002
        %v7004 = vpop.f32.mrf.mxu0
        %v7005 = vpop.f32.mrf.mxu0
        %v7006 = vadd.f32 0.0, %v7005
        %v7007 = vpop.f32.mrf.mxu0
        %7008 = vdwg.mxu0
        %v7009 = vmax.f32 %v6747, %v6995
        %v7010 = vmax.f32 %v6748, %v6998
        %v7011 = vmax.f32 %v6749, %v7003
        %v7012 = vmax.f32 %v6750, %v7006
        %v7013 = vsel %vm6835, 1e+30, %v6751
        %v7014 = vsel %vm6836, 1e+30, %v6752
        %v7015 = vsel %vm6837, 1e+30, %v6753
        %v7016 = vsel %vm6838, 1e+30, %v6754
        %v7017 = vsel %vm1065, %v7013, inf
        %7018 = vmin.xlane.f32.xlu0 %v7017
        %v7019 = vpop.xlane.xlu0 %7018
        %v7020 = vsel %vm1065, %v7014, inf
        %7021 = vmin.xlane.f32.xlu0 %v7020
        %v7022 = vpop.xlane.xlu0 %7021
        %v7023 = vsel %vm1065, %v7015, inf
        %7024 = vmin.xlane.f32.xlu0 %v7023
        %v7025 = vpop.xlane.xlu0 %7024
        %v7026 = vsel %vm1065, %v7016, inf
        %7027 = vmin.xlane.f32.xlu0 %v7026
        %v7028 = vpop.xlane.xlu0 %7027
        %vm7029 = vcmp.le.f32.partialorder %v7013, %v7019
        %vm7030 = vcmp.le.f32.partialorder %v7014, %v7022
        %vm7031 = vcmp.le.f32.partialorder %v7015, %v7025
        %vm7032 = vcmp.le.f32.partialorder %v7016, %v7028
        %v7033 = vsel %vm7029, %v1064, 32
        %v7034 = vsel %vm7030, %v1064, 32
        %v7035 = vsel %vm7031, %v1064, 32
        %v7036 = vsel %vm7032, %v1064, 32
        %v7037 = vsel %vm1065, %v7033, 2147483647
        %v7038 = vand.u32 %v7037, 65535
        %v7039 = vshra.s32 %v7037, 16
        %v7040 = vcvt.s32.f32 %v7038
        %v7041 = vcvt.s32.f32 %v7039
        %7042 = vmin.xlane.f32.xlu0 %v7041
        %v7043 = vpop.xlane.xlu0 %7042
        %vm7044 = vcmp.eq.f32.partialorder %v7041, %v7043
        %v7045 = vsel %vm7044, %v7040, inf
        %7046 = vmin.xlane.f32.xlu0 %v7045
        %v7047 = vpop.xlane.xlu0 %7046
        %v7048 = vcvt.f32.s32 %v7047
        %v7049 = vcvt.f32.s32 %v7043
        %v7050 = vshll.u32 %v7049, 16
        %v7051 = vadd.s32 %v7050, %v7048
        %v7052 = vsel %vm1065, %v7034, 2147483647
        %v7053 = vand.u32 %v7052, 65535
        %v7054 = vshra.s32 %v7052, 16
        %v7055 = vcvt.s32.f32 %v7053
        %v7056 = vcvt.s32.f32 %v7054
        %7057 = vmin.xlane.f32.xlu0 %v7056
        %v7058 = vpop.xlane.xlu0 %7057
        %vm7059 = vcmp.eq.f32.partialorder %v7056, %v7058
        %v7060 = vsel %vm7059, %v7055, inf
        %7061 = vmin.xlane.f32.xlu0 %v7060
        %v7062 = vpop.xlane.xlu0 %7061
        %v7063 = vcvt.f32.s32 %v7062
        %v7064 = vcvt.f32.s32 %v7058
        %v7065 = vshll.u32 %v7064, 16
        %v7066 = vadd.s32 %v7065, %v7063
        %v7067 = vsel %vm1065, %v7035, 2147483647
        %v7068 = vand.u32 %v7067, 65535
        %v7069 = vshra.s32 %v7067, 16
        %v7070 = vcvt.s32.f32 %v7068
        %v7071 = vcvt.s32.f32 %v7069
        %7072 = vmin.xlane.f32.xlu0 %v7071
        %v7073 = vpop.xlane.xlu0 %7072
        %vm7074 = vcmp.eq.f32.partialorder %v7071, %v7073
        %v7075 = vsel %vm7074, %v7070, inf
        %7076 = vmin.xlane.f32.xlu0 %v7075
        %v7077 = vpop.xlane.xlu0 %7076
        %v7078 = vcvt.f32.s32 %v7077
        %v7079 = vcvt.f32.s32 %v7073
        %v7080 = vshll.u32 %v7079, 16
        %v7081 = vadd.s32 %v7080, %v7078
        %v7082 = vsel %vm1065, %v7036, 2147483647
        %v7083 = vand.u32 %v7082, 65535
        %v7084 = vshra.s32 %v7082, 16
        %v7085 = vcvt.s32.f32 %v7083
        %v7086 = vcvt.s32.f32 %v7084
        %7087 = vmin.xlane.f32.xlu0 %v7086
        %v7088 = vpop.xlane.xlu0 %7087
        %vm7089 = vcmp.eq.f32.partialorder %v7086, %v7088
        %v7090 = vsel %vm7089, %v7085, inf
        %7091 = vmin.xlane.f32.xlu0 %v7090
        %v7092 = vpop.xlane.xlu0 %7091
        %v7093 = vcvt.f32.s32 %v7092
        %v7094 = vcvt.f32.s32 %v7088
        %v7095 = vshll.u32 %v7094, 16
        %v7096 = vadd.s32 %v7095, %v7093
        %vm7097 = vcmp.eq.s32.totalorder %v1064, %v7051
        %vm7098 = vcmp.eq.s32.totalorder %v1064, %v7066
        %vm7099 = vcmp.eq.s32.totalorder %v1064, %v7081
        %vm7100 = vcmp.eq.s32.totalorder %v1064, %v7096
        %v7101 = vsel %vm7097, 1, 0
        %v7102 = vsel %vm7098, 1, 0
        %v7103 = vsel %vm7099, 1, 0
        %v7104 = vsel %vm7100, 1, 0
        %v7105 = vcvt.s32.f32 %v7101
        %v7106 = vcvt.s32.f32 %v7102
        %v7107 = vcvt.s32.f32 %v7103
        %v7108 = vcvt.s32.f32 %v7104
        %v7110 = vsel %vm1065, %v7105, 0
        %v7113 = vsel %vm1065, %v7106, 0
        %v7116 = vsel %vm1065, %v7107, 0
        %v7119 = vsel %vm1065, %v7108, 0
        %7121 = vmatprep.subr.mxu0 0.0
        %7122 = vmatpush1.msra.mxu0 0.0
        %7123 = vmatprep.subr.mxu0 0.0
        %7124 = vmatpush1.msra.mxu0 0.0
        %7125 = vmatprep.subr.mxu0 0.0
        %7126 = vmatpush1.msra.mxu0 0.0
        %7127 = vmatprep.subr.mxu0 0.0
        %7128 = vmatpush1.msra.mxu0 0.0
        %7129 = vmatprep.subr.mxu0 0.0
        %7130 = vmatpush1.msra.mxu0 0.0
        %7131 = vmatprep.subr.mxu0 0.0
        %7132 = vmatpush1.msra.mxu0 0.0
        %7133 = vmatprep.subr.mxu0 0.0
        %7134 = vmatpush1.msra.mxu0 0.0
        %7135 = vmatprep.subr.mxu0 0.0
        %7136 = vmatpush1.msra.mxu0 0.0
        %7137 = vmatprep.subr.mxu0 0.0
        %7138 = vmatpush1.msra.mxu0 0.0
        %7139 = vmatprep.subr.mxu0 0.0
        %7140 = vmatpush1.msra.mxu0 0.0
        %7141 = vmatprep.subr.mxu0 0.0
        %7142 = vmatpush1.msra.mxu0 0.0
        %7143 = vmatprep.subr.mxu0 0.0
        %7144 = vmatpush1.msra.mxu0 0.0
        %7145 = vmatprep.subr.mxu0 0.0
        %7146 = vmatpush1.msra.mxu0 %v6032
        %7147 = vmatprep.subr.mxu0 0.0
        %7148 = vmatpush1.msra.mxu0 %v6030
        %7149 = vmatprep.subr.mxu0 0.0
        %7150 = vmatpush1.msra.mxu0 %v6028
        %7151 = vmatprep.subr.mxu0 0.0
        %7152 = vmatpush1.msra.mxu0 %v6026
        %7153 = vmatprep.subr.mxu0 0.0
        %7154 = vmatpush2.msra.mxu0 0.0
        %7155 = vmatprep.subr.mxu0 0.0
        %7156 = vmatpush2.msra.mxu0 0.0
        %7157 = vmatprep.subr.mxu0 0.0
        %7158 = vmatpush2.msra.mxu0 0.0
        %7159 = vmatprep.subr.mxu0 0.0
        %7160 = vmatpush2.msra.mxu0 0.0
        %7161 = vmatprep.subr.mxu0 0.0
        %7162 = vmatpush2.msra.mxu0 0.0
        %7163 = vmatprep.subr.mxu0 0.0
        %7164 = vmatpush2.msra.mxu0 0.0
        %7165 = vmatprep.subr.mxu0 0.0
        %7166 = vmatpush2.msra.mxu0 0.0
        %7167 = vmatprep.subr.mxu0 0.0
        %7168 = vmatpush2.msra.mxu0 0.0
        %7169 = vmatprep.subr.mxu0 0.0
        %7170 = vmatpush2.msra.mxu0 0.0
        %7171 = vmatprep.subr.mxu0 0.0
        %7172 = vmatpush2.msra.mxu0 0.0
        %7173 = vmatprep.subr.mxu0 0.0
        %7174 = vmatpush2.msra.mxu0 0.0
        %7175 = vmatprep.subr.mxu0 0.0
        %7176 = vmatpush2.msra.mxu0 0.0
        %7177 = vmatprep.subr.mxu0 0.0
        %7178 = vmatpush2.msra.mxu0 0.0
        %7179 = vmatprep.subr.mxu0 0.0
        %7180 = vmatpush2.msra.mxu0 0.0
        %7181 = vmatprep.subr.mxu0 0.0
        %7182 = vmatpush2.msra.mxu0 0.0
        %7183 = vmatprep.subr.mxu0 0.0
        %7184 = vmatpush2.msra.mxu0 0.0
        %7185 = vmatprep.mubr.f32.mxu0 0.0
        %7186 = vmatmul.mubr.f32.gmra.mxu0 %v7110
        %v7187 = vpop.f32.mrf.mxu0
        %v7188 = vadd.f32 0.0, %v7187
        %v7189 = vpop.f32.mrf.mxu0
        %7190 = vmatprep.mubr.f32.mxu0 0.0
        %7191 = vmatmul.mubr.f32.gmra.mxu0 %v7113
        %v7192 = vpop.f32.mrf.mxu0
        %v7193 = vadd.f32 0.0, %v7192
        %v7194 = vpop.f32.mrf.mxu0
        %7195 = vmatprep.mubr.f32.mxu0 0.0
        %7196 = vmatmul.mubr.f32.gmra.mxu0 %v7116
        %v7197 = vpop.f32.mrf.mxu0
        %v7198 = vadd.f32 0.0, %v7197
        %v7199 = vpop.f32.mrf.mxu0
        %7200 = vmatprep.mubr.f32.mxu0 0.0
        %7201 = vmatmul.mubr.f32.gmra.mxu0 %v7119
        %v7202 = vpop.f32.mrf.mxu0
        %v7203 = vadd.f32 0.0, %v7202
        %v7204 = vpop.f32.mrf.mxu0
        %7205 = vdwg.mxu0
        %v7206 = vadd.f32 %v5925, %v7188
        %v7207 = vadd.f32 %v5926, %v7193
        %v7208 = vadd.f32 %v5927, %v7198
        %v7209 = vadd.f32 %v5928, %v7203
        %v7210 = vmax.f32 %v7206, 0.0
        %v7211 = vmax.f32 %v7207, 0.0
        %v7212 = vmax.f32 %v7208, 0.0
        %v7213 = vmax.f32 %v7209, 0.0
        %v7214 = vpack.c.bf16 %v7211, %v7210
        %v7215 = vpack.c.bf16 %v7213, %v7212
        %v7217 = vsel %vm1305, %v7214, 0
        %v7220 = vsel %vm1305, %v7215, 0
        %7222 = vmatprep.subr.bf16.mxu0 0
        %7223 = vmatpush1.bf16.msra.mxu0 0
        %7224 = vmatprep.subr.bf16.mxu0 0
        %7225 = vmatpush1.bf16.msra.mxu0 0
        %7226 = vmatprep.subr.bf16.mxu0 0
        %7227 = vmatpush1.bf16.msra.mxu0 0
        %7228 = vmatprep.subr.bf16.mxu0 0
        %7229 = vmatpush1.bf16.msra.mxu0 0
        %7230 = vmatprep.subr.bf16.mxu0 0
        %7231 = vmatpush1.bf16.msra.mxu0 %v6163
        %7232 = vmatprep.subr.bf16.mxu0 0
        %7233 = vmatpush1.bf16.msra.mxu0 %v6162
        %7234 = vmatprep.subr.bf16.mxu0 0
        %7235 = vmatpush1.bf16.msra.mxu0 %v6161
        %7236 = vmatprep.subr.bf16.mxu0 0
        %7237 = vmatpush1.bf16.msra.mxu0 %v6160
        %7238 = vmatprep.subr.bf16.mxu0 0
        %7239 = vmatpush2.bf16.msra.mxu0 0
        %7240 = vmatprep.subr.bf16.mxu0 0
        %7241 = vmatpush2.bf16.msra.mxu0 0
        %7242 = vmatprep.subr.bf16.mxu0 0
        %7243 = vmatpush2.bf16.msra.mxu0 0
        %7244 = vmatprep.subr.bf16.mxu0 0
        %7245 = vmatpush2.bf16.msra.mxu0 0
        %7246 = vmatprep.subr.bf16.mxu0 0
        %7247 = vmatpush2.bf16.msra.mxu0 0
        %7248 = vmatprep.subr.bf16.mxu0 0
        %7249 = vmatpush2.bf16.msra.mxu0 0
        %7250 = vmatprep.subr.bf16.mxu0 0
        %7251 = vmatpush2.bf16.msra.mxu0 0
        %7252 = vmatprep.subr.bf16.mxu0 0
        %7253 = vmatpush2.bf16.msra.mxu0 0
        %7254 = vmatprep.mubr.bf16.mxu0 0
        %7255 = vmatmul.mubr.bf16.gmra.mxu0 %v7217
        %v7256 = vpop.f32.mrf.mxu0
        %v7257 = vadd.f32 0.0, %v7256
        %v7258 = vpop.f32.mrf.mxu0
        %v7259 = vpop.f32.mrf.mxu0
        %v7260 = vadd.f32 0.0, %v7259
        %v7261 = vpop.f32.mrf.mxu0
        %7262 = vmatprep.mubr.bf16.mxu0 0
        %7263 = vmatmul.mubr.bf16.gmra.mxu0 %v7220
        %v7264 = vpop.f32.mrf.mxu0
        %v7265 = vadd.f32 0.0, %v7264
        %v7266 = vpop.f32.mrf.mxu0
        %v7267 = vpop.f32.mrf.mxu0
        %v7268 = vadd.f32 0.0, %v7267
        %v7269 = vpop.f32.mrf.mxu0
        %7270 = vdwg.mxu0
        %v7271 = vmax.f32 %v7009, %v7257
        %v7272 = vmax.f32 %v7010, %v7260
        %v7273 = vmax.f32 %v7011, %v7265
        %v7274 = vmax.f32 %v7012, %v7268
        %v7275 = vsel %vm7097, 1e+30, %v7013
        %v7276 = vsel %vm7098, 1e+30, %v7014
        %v7277 = vsel %vm7099, 1e+30, %v7015
        %v7278 = vsel %vm7100, 1e+30, %v7016
        %v7279 = vsel %vm1065, %v7275, inf
        %7280 = vmin.xlane.f32.xlu0 %v7279
        %v7281 = vpop.xlane.xlu0 %7280
        %v7282 = vsel %vm1065, %v7276, inf
        %7283 = vmin.xlane.f32.xlu0 %v7282
        %v7284 = vpop.xlane.xlu0 %7283
        %v7285 = vsel %vm1065, %v7277, inf
        %7286 = vmin.xlane.f32.xlu0 %v7285
        %v7287 = vpop.xlane.xlu0 %7286
        %v7288 = vsel %vm1065, %v7278, inf
        %7289 = vmin.xlane.f32.xlu0 %v7288
        %v7290 = vpop.xlane.xlu0 %7289
        %vm7291 = vcmp.le.f32.partialorder %v7275, %v7281
        %vm7292 = vcmp.le.f32.partialorder %v7276, %v7284
        %vm7293 = vcmp.le.f32.partialorder %v7277, %v7287
        %vm7294 = vcmp.le.f32.partialorder %v7278, %v7290
        %v7295 = vsel %vm7291, %v1064, 32
        %v7296 = vsel %vm7292, %v1064, 32
        %v7297 = vsel %vm7293, %v1064, 32
        %v7298 = vsel %vm7294, %v1064, 32
        %v7299 = vsel %vm1065, %v7295, 2147483647
        %v7300 = vand.u32 %v7299, 65535
        %v7301 = vshra.s32 %v7299, 16
        %v7302 = vcvt.s32.f32 %v7300
        %v7303 = vcvt.s32.f32 %v7301
        %7304 = vmin.xlane.f32.xlu0 %v7303
        %v7305 = vpop.xlane.xlu0 %7304
        %vm7306 = vcmp.eq.f32.partialorder %v7303, %v7305
        %v7307 = vsel %vm7306, %v7302, inf
        %7308 = vmin.xlane.f32.xlu0 %v7307
        %v7309 = vpop.xlane.xlu0 %7308
        %v7310 = vcvt.f32.s32 %v7309
        %v7311 = vcvt.f32.s32 %v7305
        %v7312 = vshll.u32 %v7311, 16
        %v7313 = vadd.s32 %v7312, %v7310
        %v7314 = vsel %vm1065, %v7296, 2147483647
        %v7315 = vand.u32 %v7314, 65535
        %v7316 = vshra.s32 %v7314, 16
        %v7317 = vcvt.s32.f32 %v7315
        %v7318 = vcvt.s32.f32 %v7316
        %7319 = vmin.xlane.f32.xlu0 %v7318
        %v7320 = vpop.xlane.xlu0 %7319
        %vm7321 = vcmp.eq.f32.partialorder %v7318, %v7320
        %v7322 = vsel %vm7321, %v7317, inf
        %7323 = vmin.xlane.f32.xlu0 %v7322
        %v7324 = vpop.xlane.xlu0 %7323
        %v7325 = vcvt.f32.s32 %v7324
        %v7326 = vcvt.f32.s32 %v7320
        %v7327 = vshll.u32 %v7326, 16
        %v7328 = vadd.s32 %v7327, %v7325
        %v7329 = vsel %vm1065, %v7297, 2147483647
        %v7330 = vand.u32 %v7329, 65535
        %v7331 = vshra.s32 %v7329, 16
        %v7332 = vcvt.s32.f32 %v7330
        %v7333 = vcvt.s32.f32 %v7331
        %7334 = vmin.xlane.f32.xlu0 %v7333
        %v7335 = vpop.xlane.xlu0 %7334
        %vm7336 = vcmp.eq.f32.partialorder %v7333, %v7335
        %v7337 = vsel %vm7336, %v7332, inf
        %7338 = vmin.xlane.f32.xlu0 %v7337
        %v7339 = vpop.xlane.xlu0 %7338
        %v7340 = vcvt.f32.s32 %v7339
        %v7341 = vcvt.f32.s32 %v7335
        %v7342 = vshll.u32 %v7341, 16
        %v7343 = vadd.s32 %v7342, %v7340
        %v7344 = vsel %vm1065, %v7298, 2147483647
        %v7345 = vand.u32 %v7344, 65535
        %v7346 = vshra.s32 %v7344, 16
        %v7347 = vcvt.s32.f32 %v7345
        %v7348 = vcvt.s32.f32 %v7346
        %7349 = vmin.xlane.f32.xlu0 %v7348
        %v7350 = vpop.xlane.xlu0 %7349
        %vm7351 = vcmp.eq.f32.partialorder %v7348, %v7350
        %v7352 = vsel %vm7351, %v7347, inf
        %7353 = vmin.xlane.f32.xlu0 %v7352
        %v7354 = vpop.xlane.xlu0 %7353
        %v7355 = vcvt.f32.s32 %v7354
        %v7356 = vcvt.f32.s32 %v7350
        %v7357 = vshll.u32 %v7356, 16
        %v7358 = vadd.s32 %v7357, %v7355
        %vm7359 = vcmp.eq.s32.totalorder %v1064, %v7313
        %vm7360 = vcmp.eq.s32.totalorder %v1064, %v7328
        %vm7361 = vcmp.eq.s32.totalorder %v1064, %v7343
        %vm7362 = vcmp.eq.s32.totalorder %v1064, %v7358
        %v7363 = vsel %vm7359, 1, 0
        %v7364 = vsel %vm7360, 1, 0
        %v7365 = vsel %vm7361, 1, 0
        %v7366 = vsel %vm7362, 1, 0
        %v7367 = vcvt.s32.f32 %v7363
        %v7368 = vcvt.s32.f32 %v7364
        %v7369 = vcvt.s32.f32 %v7365
        %v7370 = vcvt.s32.f32 %v7366
        %v7372 = vsel %vm1065, %v7367, 0
        %v7375 = vsel %vm1065, %v7368, 0
        %v7378 = vsel %vm1065, %v7369, 0
        %v7381 = vsel %vm1065, %v7370, 0
        %7383 = vmatprep.subr.mxu0 0.0
        %7384 = vmatpush1.msra.mxu0 0.0
        %7385 = vmatprep.subr.mxu0 0.0
        %7386 = vmatpush1.msra.mxu0 0.0
        %7387 = vmatprep.subr.mxu0 0.0
        %7388 = vmatpush1.msra.mxu0 0.0
        %7389 = vmatprep.subr.mxu0 0.0
        %7390 = vmatpush1.msra.mxu0 0.0
        %7391 = vmatprep.subr.mxu0 0.0
        %7392 = vmatpush1.msra.mxu0 0.0
        %7393 = vmatprep.subr.mxu0 0.0
        %7394 = vmatpush1.msra.mxu0 0.0
        %7395 = vmatprep.subr.mxu0 0.0
        %7396 = vmatpush1.msra.mxu0 0.0
        %7397 = vmatprep.subr.mxu0 0.0
        %7398 = vmatpush1.msra.mxu0 0.0
        %7399 = vmatprep.subr.mxu0 0.0
        %7400 = vmatpush1.msra.mxu0 0.0
        %7401 = vmatprep.subr.mxu0 0.0
        %7402 = vmatpush1.msra.mxu0 0.0
        %7403 = vmatprep.subr.mxu0 0.0
        %7404 = vmatpush1.msra.mxu0 0.0
        %7405 = vmatprep.subr.mxu0 0.0
        %7406 = vmatpush1.msra.mxu0 0.0
        %7407 = vmatprep.subr.mxu0 0.0
        %7408 = vmatpush1.msra.mxu0 %v6032
        %7409 = vmatprep.subr.mxu0 0.0
        %7410 = vmatpush1.msra.mxu0 %v6030
        %7411 = vmatprep.subr.mxu0 0.0
        %7412 = vmatpush1.msra.mxu0 %v6028
        %7413 = vmatprep.subr.mxu0 0.0
        %7414 = vmatpush1.msra.mxu0 %v6026
        %7415 = vmatprep.subr.mxu0 0.0
        %7416 = vmatpush2.msra.mxu0 0.0
        %7417 = vmatprep.subr.mxu0 0.0
        %7418 = vmatpush2.msra.mxu0 0.0
        %7419 = vmatprep.subr.mxu0 0.0
        %7420 = vmatpush2.msra.mxu0 0.0
        %7421 = vmatprep.subr.mxu0 0.0
        %7422 = vmatpush2.msra.mxu0 0.0
        %7423 = vmatprep.subr.mxu0 0.0
        %7424 = vmatpush2.msra.mxu0 0.0
        %7425 = vmatprep.subr.mxu0 0.0
        %7426 = vmatpush2.msra.mxu0 0.0
        %7427 = vmatprep.subr.mxu0 0.0
        %7428 = vmatpush2.msra.mxu0 0.0
        %7429 = vmatprep.subr.mxu0 0.0
        %7430 = vmatpush2.msra.mxu0 0.0
        %7431 = vmatprep.subr.mxu0 0.0
        %7432 = vmatpush2.msra.mxu0 0.0
        %7433 = vmatprep.subr.mxu0 0.0
        %7434 = vmatpush2.msra.mxu0 0.0
        %7435 = vmatprep.subr.mxu0 0.0
        %7436 = vmatpush2.msra.mxu0 0.0
        %7437 = vmatprep.subr.mxu0 0.0
        %7438 = vmatpush2.msra.mxu0 0.0
        %7439 = vmatprep.subr.mxu0 0.0
        %7440 = vmatpush2.msra.mxu0 0.0
        %7441 = vmatprep.subr.mxu0 0.0
        %7442 = vmatpush2.msra.mxu0 0.0
        %7443 = vmatprep.subr.mxu0 0.0
        %7444 = vmatpush2.msra.mxu0 0.0
        %7445 = vmatprep.subr.mxu0 0.0
        %7446 = vmatpush2.msra.mxu0 0.0
        %7447 = vmatprep.mubr.f32.mxu0 0.0
        %7448 = vmatmul.mubr.f32.gmra.mxu0 %v7372
        %v7449 = vpop.f32.mrf.mxu0
        %v7450 = vadd.f32 0.0, %v7449
        %v7451 = vpop.f32.mrf.mxu0
        %7452 = vmatprep.mubr.f32.mxu0 0.0
        %7453 = vmatmul.mubr.f32.gmra.mxu0 %v7375
        %v7454 = vpop.f32.mrf.mxu0
        %v7455 = vadd.f32 0.0, %v7454
        %v7456 = vpop.f32.mrf.mxu0
        %7457 = vmatprep.mubr.f32.mxu0 0.0
        %7458 = vmatmul.mubr.f32.gmra.mxu0 %v7378
        %v7459 = vpop.f32.mrf.mxu0
        %v7460 = vadd.f32 0.0, %v7459
        %v7461 = vpop.f32.mrf.mxu0
        %7462 = vmatprep.mubr.f32.mxu0 0.0
        %7463 = vmatmul.mubr.f32.gmra.mxu0 %v7381
        %v7464 = vpop.f32.mrf.mxu0
        %v7465 = vadd.f32 0.0, %v7464
        %v7466 = vpop.f32.mrf.mxu0
        %7467 = vdwg.mxu0
        %v7468 = vadd.f32 %v5925, %v7450
        %v7469 = vadd.f32 %v5926, %v7455
        %v7470 = vadd.f32 %v5927, %v7460
        %v7471 = vadd.f32 %v5928, %v7465
        %v7472 = vmax.f32 %v7468, 0.0
        %v7473 = vmax.f32 %v7469, 0.0
        %v7474 = vmax.f32 %v7470, 0.0
        %v7475 = vmax.f32 %v7471, 0.0
        %v7476 = vpack.c.bf16 %v7473, %v7472
        %v7477 = vpack.c.bf16 %v7475, %v7474
        %v7479 = vsel %vm1305, %v7476, 0
        %v7482 = vsel %vm1305, %v7477, 0
        %7484 = vmatprep.subr.bf16.mxu0 0
        %7485 = vmatpush1.bf16.msra.mxu0 0
        %7486 = vmatprep.subr.bf16.mxu0 0
        %7487 = vmatpush1.bf16.msra.mxu0 0
        %7488 = vmatprep.subr.bf16.mxu0 0
        %7489 = vmatpush1.bf16.msra.mxu0 0
        %7490 = vmatprep.subr.bf16.mxu0 0
        %7491 = vmatpush1.bf16.msra.mxu0 0
        %7492 = vmatprep.subr.bf16.mxu0 0
        %7493 = vmatpush1.bf16.msra.mxu0 %v6163
        %7494 = vmatprep.subr.bf16.mxu0 0
        %7495 = vmatpush1.bf16.msra.mxu0 %v6162
        %7496 = vmatprep.subr.bf16.mxu0 0
        %7497 = vmatpush1.bf16.msra.mxu0 %v6161
        %7498 = vmatprep.subr.bf16.mxu0 0
        %7499 = vmatpush1.bf16.msra.mxu0 %v6160
        %7500 = vmatprep.subr.bf16.mxu0 0
        %7501 = vmatpush2.bf16.msra.mxu0 0
        %7502 = vmatprep.subr.bf16.mxu0 0
        %7503 = vmatpush2.bf16.msra.mxu0 0
        %7504 = vmatprep.subr.bf16.mxu0 0
        %7505 = vmatpush2.bf16.msra.mxu0 0
        %7506 = vmatprep.subr.bf16.mxu0 0
        %7507 = vmatpush2.bf16.msra.mxu0 0
        %7508 = vmatprep.subr.bf16.mxu0 0
        %7509 = vmatpush2.bf16.msra.mxu0 0
        %7510 = vmatprep.subr.bf16.mxu0 0
        %7511 = vmatpush2.bf16.msra.mxu0 0
        %7512 = vmatprep.subr.bf16.mxu0 0
        %7513 = vmatpush2.bf16.msra.mxu0 0
        %7514 = vmatprep.subr.bf16.mxu0 0
        %7515 = vmatpush2.bf16.msra.mxu0 0
        %7516 = vmatprep.mubr.bf16.mxu0 0
        %7517 = vmatmul.mubr.bf16.gmra.mxu0 %v7479
        %v7518 = vpop.f32.mrf.mxu0
        %v7519 = vadd.f32 0.0, %v7518
        %v7520 = vpop.f32.mrf.mxu0
        %v7521 = vpop.f32.mrf.mxu0
        %v7522 = vadd.f32 0.0, %v7521
        %v7523 = vpop.f32.mrf.mxu0
        %7524 = vmatprep.mubr.bf16.mxu0 0
        %7525 = vmatmul.mubr.bf16.gmra.mxu0 %v7482
        %v7526 = vpop.f32.mrf.mxu0
        %v7527 = vadd.f32 0.0, %v7526
        %v7528 = vpop.f32.mrf.mxu0
        %v7529 = vpop.f32.mrf.mxu0
        %v7530 = vadd.f32 0.0, %v7529
        %v7531 = vpop.f32.mrf.mxu0
        %7532 = vdwg.mxu0
        %v7533 = vmax.f32 %v7271, %v7519
        %v7534 = vmax.f32 %v7272, %v7522
        %v7535 = vmax.f32 %v7273, %v7527
        %v7536 = vmax.f32 %v7274, %v7530
        %v7537 = vsel %vm7359, 1e+30, %v7275
        %v7538 = vsel %vm7360, 1e+30, %v7276
        %v7539 = vsel %vm7361, 1e+30, %v7277
        %v7540 = vsel %vm7362, 1e+30, %v7278
        %v7541 = vsel %vm1065, %v7537, inf
        %7542 = vmin.xlane.f32.xlu0 %v7541
        %v7543 = vpop.xlane.xlu0 %7542
        %v7544 = vsel %vm1065, %v7538, inf
        %7545 = vmin.xlane.f32.xlu0 %v7544
        %v7546 = vpop.xlane.xlu0 %7545
        %v7547 = vsel %vm1065, %v7539, inf
        %7548 = vmin.xlane.f32.xlu0 %v7547
        %v7549 = vpop.xlane.xlu0 %7548
        %v7550 = vsel %vm1065, %v7540, inf
        %7551 = vmin.xlane.f32.xlu0 %v7550
        %v7552 = vpop.xlane.xlu0 %7551
        %vm7553 = vcmp.le.f32.partialorder %v7537, %v7543
        %vm7554 = vcmp.le.f32.partialorder %v7538, %v7546
        %vm7555 = vcmp.le.f32.partialorder %v7539, %v7549
        %vm7556 = vcmp.le.f32.partialorder %v7540, %v7552
        %v7557 = vsel %vm7553, %v1064, 32
        %v7558 = vsel %vm7554, %v1064, 32
        %v7559 = vsel %vm7555, %v1064, 32
        %v7560 = vsel %vm7556, %v1064, 32
        %v7561 = vsel %vm1065, %v7557, 2147483647
        %v7562 = vand.u32 %v7561, 65535
        %v7563 = vshra.s32 %v7561, 16
        %v7564 = vcvt.s32.f32 %v7562
        %v7565 = vcvt.s32.f32 %v7563
        %7566 = vmin.xlane.f32.xlu0 %v7565
        %v7567 = vpop.xlane.xlu0 %7566
        %vm7568 = vcmp.eq.f32.partialorder %v7565, %v7567
        %v7569 = vsel %vm7568, %v7564, inf
        %7570 = vmin.xlane.f32.xlu0 %v7569
        %v7571 = vpop.xlane.xlu0 %7570
        %v7572 = vcvt.f32.s32 %v7571
        %v7573 = vcvt.f32.s32 %v7567
        %v7574 = vshll.u32 %v7573, 16
        %v7575 = vadd.s32 %v7574, %v7572
        %v7576 = vsel %vm1065, %v7558, 2147483647
        %v7577 = vand.u32 %v7576, 65535
        %v7578 = vshra.s32 %v7576, 16
        %v7579 = vcvt.s32.f32 %v7577
        %v7580 = vcvt.s32.f32 %v7578
        %7581 = vmin.xlane.f32.xlu0 %v7580
        %v7582 = vpop.xlane.xlu0 %7581
        %vm7583 = vcmp.eq.f32.partialorder %v7580, %v7582
        %v7584 = vsel %vm7583, %v7579, inf
        %7585 = vmin.xlane.f32.xlu0 %v7584
        %v7586 = vpop.xlane.xlu0 %7585
        %v7587 = vcvt.f32.s32 %v7586
        %v7588 = vcvt.f32.s32 %v7582
        %v7589 = vshll.u32 %v7588, 16
        %v7590 = vadd.s32 %v7589, %v7587
        %v7591 = vsel %vm1065, %v7559, 2147483647
        %v7592 = vand.u32 %v7591, 65535
        %v7593 = vshra.s32 %v7591, 16
        %v7594 = vcvt.s32.f32 %v7592
        %v7595 = vcvt.s32.f32 %v7593
        %7596 = vmin.xlane.f32.xlu0 %v7595
        %v7597 = vpop.xlane.xlu0 %7596
        %vm7598 = vcmp.eq.f32.partialorder %v7595, %v7597
        %v7599 = vsel %vm7598, %v7594, inf
        %7600 = vmin.xlane.f32.xlu0 %v7599
        %v7601 = vpop.xlane.xlu0 %7600
        %v7602 = vcvt.f32.s32 %v7601
        %v7603 = vcvt.f32.s32 %v7597
        %v7604 = vshll.u32 %v7603, 16
        %v7605 = vadd.s32 %v7604, %v7602
        %v7606 = vsel %vm1065, %v7560, 2147483647
        %v7607 = vand.u32 %v7606, 65535
        %v7608 = vshra.s32 %v7606, 16
        %v7609 = vcvt.s32.f32 %v7607
        %v7610 = vcvt.s32.f32 %v7608
        %7611 = vmin.xlane.f32.xlu0 %v7610
        %v7612 = vpop.xlane.xlu0 %7611
        %vm7613 = vcmp.eq.f32.partialorder %v7610, %v7612
        %v7614 = vsel %vm7613, %v7609, inf
        %7615 = vmin.xlane.f32.xlu0 %v7614
        %v7616 = vpop.xlane.xlu0 %7615
        %v7617 = vcvt.f32.s32 %v7616
        %v7618 = vcvt.f32.s32 %v7612
        %v7619 = vshll.u32 %v7618, 16
        %v7620 = vadd.s32 %v7619, %v7617
        %vm7621 = vcmp.eq.s32.totalorder %v1064, %v7575
        %vm7622 = vcmp.eq.s32.totalorder %v1064, %v7590
        %vm7623 = vcmp.eq.s32.totalorder %v1064, %v7605
        %vm7624 = vcmp.eq.s32.totalorder %v1064, %v7620
        %v7625 = vsel %vm7621, 1, 0
        %v7626 = vsel %vm7622, 1, 0
        %v7627 = vsel %vm7623, 1, 0
        %v7628 = vsel %vm7624, 1, 0
        %v7629 = vcvt.s32.f32 %v7625
        %v7630 = vcvt.s32.f32 %v7626
        %v7631 = vcvt.s32.f32 %v7627
        %v7632 = vcvt.s32.f32 %v7628
        %v7634 = vsel %vm1065, %v7629, 0
        %v7637 = vsel %vm1065, %v7630, 0
        %v7640 = vsel %vm1065, %v7631, 0
        %v7643 = vsel %vm1065, %v7632, 0
        %7645 = vmatprep.subr.mxu0 0.0
        %7646 = vmatpush1.msra.mxu0 0.0
        %7647 = vmatprep.subr.mxu0 0.0
        %7648 = vmatpush1.msra.mxu0 0.0
        %7649 = vmatprep.subr.mxu0 0.0
        %7650 = vmatpush1.msra.mxu0 0.0
        %7651 = vmatprep.subr.mxu0 0.0
        %7652 = vmatpush1.msra.mxu0 0.0
        %7653 = vmatprep.subr.mxu0 0.0
        %7654 = vmatpush1.msra.mxu0 0.0
        %7655 = vmatprep.subr.mxu0 0.0
        %7656 = vmatpush1.msra.mxu0 0.0
        %7657 = vmatprep.subr.mxu0 0.0
        %7658 = vmatpush1.msra.mxu0 0.0
        %7659 = vmatprep.subr.mxu0 0.0
        %7660 = vmatpush1.msra.mxu0 0.0
        %7661 = vmatprep.subr.mxu0 0.0
        %7662 = vmatpush1.msra.mxu0 0.0
        %7663 = vmatprep.subr.mxu0 0.0
        %7664 = vmatpush1.msra.mxu0 0.0
        %7665 = vmatprep.subr.mxu0 0.0
        %7666 = vmatpush1.msra.mxu0 0.0
        %7667 = vmatprep.subr.mxu0 0.0
        %7668 = vmatpush1.msra.mxu0 0.0
        %7669 = vmatprep.subr.mxu0 0.0
        %7670 = vmatpush1.msra.mxu0 %v6032
        %7671 = vmatprep.subr.mxu0 0.0
        %7672 = vmatpush1.msra.mxu0 %v6030
        %7673 = vmatprep.subr.mxu0 0.0
        %7674 = vmatpush1.msra.mxu0 %v6028
        %7675 = vmatprep.subr.mxu0 0.0
        %7676 = vmatpush1.msra.mxu0 %v6026
        %7677 = vmatprep.subr.mxu0 0.0
        %7678 = vmatpush2.msra.mxu0 0.0
        %7679 = vmatprep.subr.mxu0 0.0
        %7680 = vmatpush2.msra.mxu0 0.0
        %7681 = vmatprep.subr.mxu0 0.0
        %7682 = vmatpush2.msra.mxu0 0.0
        %7683 = vmatprep.subr.mxu0 0.0
        %7684 = vmatpush2.msra.mxu0 0.0
        %7685 = vmatprep.subr.mxu0 0.0
        %7686 = vmatpush2.msra.mxu0 0.0
        %7687 = vmatprep.subr.mxu0 0.0
        %7688 = vmatpush2.msra.mxu0 0.0
        %7689 = vmatprep.subr.mxu0 0.0
        %7690 = vmatpush2.msra.mxu0 0.0
        %7691 = vmatprep.subr.mxu0 0.0
        %7692 = vmatpush2.msra.mxu0 0.0
        %7693 = vmatprep.subr.mxu0 0.0
        %7694 = vmatpush2.msra.mxu0 0.0
        %7695 = vmatprep.subr.mxu0 0.0
        %7696 = vmatpush2.msra.mxu0 0.0
        %7697 = vmatprep.subr.mxu0 0.0
        %7698 = vmatpush2.msra.mxu0 0.0
        %7699 = vmatprep.subr.mxu0 0.0
        %7700 = vmatpush2.msra.mxu0 0.0
        %7701 = vmatprep.subr.mxu0 0.0
        %7702 = vmatpush2.msra.mxu0 0.0
        %7703 = vmatprep.subr.mxu0 0.0
        %7704 = vmatpush2.msra.mxu0 0.0
        %7705 = vmatprep.subr.mxu0 0.0
        %7706 = vmatpush2.msra.mxu0 0.0
        %7707 = vmatprep.subr.mxu0 0.0
        %7708 = vmatpush2.msra.mxu0 0.0
        %7709 = vmatprep.mubr.f32.mxu0 0.0
        %7710 = vmatmul.mubr.f32.gmra.mxu0 %v7634
        %v7711 = vpop.f32.mrf.mxu0
        %v7712 = vadd.f32 0.0, %v7711
        %v7713 = vpop.f32.mrf.mxu0
        %7714 = vmatprep.mubr.f32.mxu0 0.0
        %7715 = vmatmul.mubr.f32.gmra.mxu0 %v7637
        %v7716 = vpop.f32.mrf.mxu0
        %v7717 = vadd.f32 0.0, %v7716
        %v7718 = vpop.f32.mrf.mxu0
        %7719 = vmatprep.mubr.f32.mxu0 0.0
        %7720 = vmatmul.mubr.f32.gmra.mxu0 %v7640
        %v7721 = vpop.f32.mrf.mxu0
        %v7722 = vadd.f32 0.0, %v7721
        %v7723 = vpop.f32.mrf.mxu0
        %7724 = vmatprep.mubr.f32.mxu0 0.0
        %7725 = vmatmul.mubr.f32.gmra.mxu0 %v7643
        %v7726 = vpop.f32.mrf.mxu0
        %v7727 = vadd.f32 0.0, %v7726
        %v7728 = vpop.f32.mrf.mxu0
        %7729 = vdwg.mxu0
        %v7730 = vadd.f32 %v5925, %v7712
        %v7731 = vadd.f32 %v5926, %v7717
        %v7732 = vadd.f32 %v5927, %v7722
        %v7733 = vadd.f32 %v5928, %v7727
        %v7734 = vmax.f32 %v7730, 0.0
        %v7735 = vmax.f32 %v7731, 0.0
        %v7736 = vmax.f32 %v7732, 0.0
        %v7737 = vmax.f32 %v7733, 0.0
        %v7738 = vpack.c.bf16 %v7735, %v7734
        %v7739 = vpack.c.bf16 %v7737, %v7736
        %v7741 = vsel %vm1305, %v7738, 0
        %v7744 = vsel %vm1305, %v7739, 0
        %7746 = vmatprep.subr.bf16.mxu0 0
        %7747 = vmatpush1.bf16.msra.mxu0 0
        %7748 = vmatprep.subr.bf16.mxu0 0
        %7749 = vmatpush1.bf16.msra.mxu0 0
        %7750 = vmatprep.subr.bf16.mxu0 0
        %7751 = vmatpush1.bf16.msra.mxu0 0
        %7752 = vmatprep.subr.bf16.mxu0 0
        %7753 = vmatpush1.bf16.msra.mxu0 0
        %7754 = vmatprep.subr.bf16.mxu0 0
        %7755 = vmatpush1.bf16.msra.mxu0 %v6163
        %7756 = vmatprep.subr.bf16.mxu0 0
        %7757 = vmatpush1.bf16.msra.mxu0 %v6162
        %7758 = vmatprep.subr.bf16.mxu0 0
        %7759 = vmatpush1.bf16.msra.mxu0 %v6161
        %7760 = vmatprep.subr.bf16.mxu0 0
        %7761 = vmatpush1.bf16.msra.mxu0 %v6160
        %7762 = vmatprep.subr.bf16.mxu0 0
        %7763 = vmatpush2.bf16.msra.mxu0 0
        %7764 = vmatprep.subr.bf16.mxu0 0
        %7765 = vmatpush2.bf16.msra.mxu0 0
        %7766 = vmatprep.subr.bf16.mxu0 0
        %7767 = vmatpush2.bf16.msra.mxu0 0
        %7768 = vmatprep.subr.bf16.mxu0 0
        %7769 = vmatpush2.bf16.msra.mxu0 0
        %7770 = vmatprep.subr.bf16.mxu0 0
        %7771 = vmatpush2.bf16.msra.mxu0 0
        %7772 = vmatprep.subr.bf16.mxu0 0
        %7773 = vmatpush2.bf16.msra.mxu0 0
        %7774 = vmatprep.subr.bf16.mxu0 0
        %7775 = vmatpush2.bf16.msra.mxu0 0
        %7776 = vmatprep.subr.bf16.mxu0 0
        %7777 = vmatpush2.bf16.msra.mxu0 0
        %7778 = vmatprep.mubr.bf16.mxu0 0
        %7779 = vmatmul.mubr.bf16.gmra.mxu0 %v7741
        %v7780 = vpop.f32.mrf.mxu0
        %v7781 = vadd.f32 0.0, %v7780
        %v7782 = vpop.f32.mrf.mxu0
        %v7783 = vpop.f32.mrf.mxu0
        %v7784 = vadd.f32 0.0, %v7783
        %v7785 = vpop.f32.mrf.mxu0
        %7786 = vmatprep.mubr.bf16.mxu0 0
        %7787 = vmatmul.mubr.bf16.gmra.mxu0 %v7744
        %v7788 = vpop.f32.mrf.mxu0
        %v7789 = vadd.f32 0.0, %v7788
        %v7790 = vpop.f32.mrf.mxu0
        %v7791 = vpop.f32.mrf.mxu0
        %v7792 = vadd.f32 0.0, %v7791
        %v7793 = vpop.f32.mrf.mxu0
        %7794 = vdwg.mxu0
        %v7795 = vmax.f32 %v7533, %v7781
        %v7796 = vmax.f32 %v7534, %v7784
        %v7797 = vmax.f32 %v7535, %v7789
        %v7798 = vmax.f32 %v7536, %v7792
        %v7799 = vsel %vm7621, 1e+30, %v7537
        %v7800 = vsel %vm7622, 1e+30, %v7538
        %v7801 = vsel %vm7623, 1e+30, %v7539
        %v7802 = vsel %vm7624, 1e+30, %v7540
        %v7803 = vsel %vm1065, %v7799, inf
        %7804 = vmin.xlane.f32.xlu0 %v7803
        %v7805 = vpop.xlane.xlu0 %7804
        %v7806 = vsel %vm1065, %v7800, inf
        %7807 = vmin.xlane.f32.xlu0 %v7806
        %v7808 = vpop.xlane.xlu0 %7807
        %v7809 = vsel %vm1065, %v7801, inf
        %7810 = vmin.xlane.f32.xlu0 %v7809
        %v7811 = vpop.xlane.xlu0 %7810
        %v7812 = vsel %vm1065, %v7802, inf
        %7813 = vmin.xlane.f32.xlu0 %v7812
        %v7814 = vpop.xlane.xlu0 %7813
        %vm7815 = vcmp.le.f32.partialorder %v7799, %v7805
        %vm7816 = vcmp.le.f32.partialorder %v7800, %v7808
        %vm7817 = vcmp.le.f32.partialorder %v7801, %v7811
        %vm7818 = vcmp.le.f32.partialorder %v7802, %v7814
        %v7819 = vsel %vm7815, %v1064, 32
        %v7820 = vsel %vm7816, %v1064, 32
        %v7821 = vsel %vm7817, %v1064, 32
        %v7822 = vsel %vm7818, %v1064, 32
        %v7823 = vsel %vm1065, %v7819, 2147483647
        %v7824 = vand.u32 %v7823, 65535
        %v7825 = vshra.s32 %v7823, 16
        %v7826 = vcvt.s32.f32 %v7824
        %v7827 = vcvt.s32.f32 %v7825
        %7828 = vmin.xlane.f32.xlu0 %v7827
        %v7829 = vpop.xlane.xlu0 %7828
        %vm7830 = vcmp.eq.f32.partialorder %v7827, %v7829
        %v7831 = vsel %vm7830, %v7826, inf
        %7832 = vmin.xlane.f32.xlu0 %v7831
        %v7833 = vpop.xlane.xlu0 %7832
        %v7834 = vcvt.f32.s32 %v7833
        %v7835 = vcvt.f32.s32 %v7829
        %v7836 = vshll.u32 %v7835, 16
        %v7837 = vadd.s32 %v7836, %v7834
        %v7838 = vsel %vm1065, %v7820, 2147483647
        %v7839 = vand.u32 %v7838, 65535
        %v7840 = vshra.s32 %v7838, 16
        %v7841 = vcvt.s32.f32 %v7839
        %v7842 = vcvt.s32.f32 %v7840
        %7843 = vmin.xlane.f32.xlu0 %v7842
        %v7844 = vpop.xlane.xlu0 %7843
        %vm7845 = vcmp.eq.f32.partialorder %v7842, %v7844
        %v7846 = vsel %vm7845, %v7841, inf
        %7847 = vmin.xlane.f32.xlu0 %v7846
        %v7848 = vpop.xlane.xlu0 %7847
        %v7849 = vcvt.f32.s32 %v7848
        %v7850 = vcvt.f32.s32 %v7844
        %v7851 = vshll.u32 %v7850, 16
        %v7852 = vadd.s32 %v7851, %v7849
        %v7853 = vsel %vm1065, %v7821, 2147483647
        %v7854 = vand.u32 %v7853, 65535
        %v7855 = vshra.s32 %v7853, 16
        %v7856 = vcvt.s32.f32 %v7854
        %v7857 = vcvt.s32.f32 %v7855
        %7858 = vmin.xlane.f32.xlu0 %v7857
        %v7859 = vpop.xlane.xlu0 %7858
        %vm7860 = vcmp.eq.f32.partialorder %v7857, %v7859
        %v7861 = vsel %vm7860, %v7856, inf
        %7862 = vmin.xlane.f32.xlu0 %v7861
        %v7863 = vpop.xlane.xlu0 %7862
        %v7864 = vcvt.f32.s32 %v7863
        %v7865 = vcvt.f32.s32 %v7859
        %v7866 = vshll.u32 %v7865, 16
        %v7867 = vadd.s32 %v7866, %v7864
        %v7868 = vsel %vm1065, %v7822, 2147483647
        %v7869 = vand.u32 %v7868, 65535
        %v7870 = vshra.s32 %v7868, 16
        %v7871 = vcvt.s32.f32 %v7869
        %v7872 = vcvt.s32.f32 %v7870
        %7873 = vmin.xlane.f32.xlu0 %v7872
        %v7874 = vpop.xlane.xlu0 %7873
        %vm7875 = vcmp.eq.f32.partialorder %v7872, %v7874
        %v7876 = vsel %vm7875, %v7871, inf
        %7877 = vmin.xlane.f32.xlu0 %v7876
        %v7878 = vpop.xlane.xlu0 %7877
        %v7879 = vcvt.f32.s32 %v7878
        %v7880 = vcvt.f32.s32 %v7874
        %v7881 = vshll.u32 %v7880, 16
        %v7882 = vadd.s32 %v7881, %v7879
        %vm7883 = vcmp.eq.s32.totalorder %v1064, %v7837
        %vm7884 = vcmp.eq.s32.totalorder %v1064, %v7852
        %vm7885 = vcmp.eq.s32.totalorder %v1064, %v7867
        %vm7886 = vcmp.eq.s32.totalorder %v1064, %v7882
        %v7887 = vsel %vm7883, 1, 0
        %v7888 = vsel %vm7884, 1, 0
        %v7889 = vsel %vm7885, 1, 0
        %v7890 = vsel %vm7886, 1, 0
        %v7891 = vcvt.s32.f32 %v7887
        %v7892 = vcvt.s32.f32 %v7888
        %v7893 = vcvt.s32.f32 %v7889
        %v7894 = vcvt.s32.f32 %v7890
        %v7896 = vsel %vm1065, %v7891, 0
        %v7899 = vsel %vm1065, %v7892, 0
        %v7902 = vsel %vm1065, %v7893, 0
        %v7905 = vsel %vm1065, %v7894, 0
        %7907 = vmatprep.subr.mxu0 0.0
        %7908 = vmatpush1.msra.mxu0 0.0
        %7909 = vmatprep.subr.mxu0 0.0
        %7910 = vmatpush1.msra.mxu0 0.0
        %7911 = vmatprep.subr.mxu0 0.0
        %7912 = vmatpush1.msra.mxu0 0.0
        %7913 = vmatprep.subr.mxu0 0.0
        %7914 = vmatpush1.msra.mxu0 0.0
        %7915 = vmatprep.subr.mxu0 0.0
        %7916 = vmatpush1.msra.mxu0 0.0
        %7917 = vmatprep.subr.mxu0 0.0
        %7918 = vmatpush1.msra.mxu0 0.0
        %7919 = vmatprep.subr.mxu0 0.0
        %7920 = vmatpush1.msra.mxu0 0.0
        %7921 = vmatprep.subr.mxu0 0.0
        %7922 = vmatpush1.msra.mxu0 0.0
        %7923 = vmatprep.subr.mxu0 0.0
        %7924 = vmatpush1.msra.mxu0 0.0
        %7925 = vmatprep.subr.mxu0 0.0
        %7926 = vmatpush1.msra.mxu0 0.0
        %7927 = vmatprep.subr.mxu0 0.0
        %7928 = vmatpush1.msra.mxu0 0.0
        %7929 = vmatprep.subr.mxu0 0.0
        %7930 = vmatpush1.msra.mxu0 0.0
        %7931 = vmatprep.subr.mxu0 0.0
        %7932 = vmatpush1.msra.mxu0 %v6032
        %7933 = vmatprep.subr.mxu0 0.0
        %7934 = vmatpush1.msra.mxu0 %v6030
        %7935 = vmatprep.subr.mxu0 0.0
        %7936 = vmatpush1.msra.mxu0 %v6028
        %7937 = vmatprep.subr.mxu0 0.0
        %7938 = vmatpush1.msra.mxu0 %v6026
        %7939 = vmatprep.subr.mxu0 0.0
        %7940 = vmatpush2.msra.mxu0 0.0
        %7941 = vmatprep.subr.mxu0 0.0
        %7942 = vmatpush2.msra.mxu0 0.0
        %7943 = vmatprep.subr.mxu0 0.0
        %7944 = vmatpush2.msra.mxu0 0.0
        %7945 = vmatprep.subr.mxu0 0.0
        %7946 = vmatpush2.msra.mxu0 0.0
        %7947 = vmatprep.subr.mxu0 0.0
        %7948 = vmatpush2.msra.mxu0 0.0
        %7949 = vmatprep.subr.mxu0 0.0
        %7950 = vmatpush2.msra.mxu0 0.0
        %7951 = vmatprep.subr.mxu0 0.0
        %7952 = vmatpush2.msra.mxu0 0.0
        %7953 = vmatprep.subr.mxu0 0.0
        %7954 = vmatpush2.msra.mxu0 0.0
        %7955 = vmatprep.subr.mxu0 0.0
        %7956 = vmatpush2.msra.mxu0 0.0
        %7957 = vmatprep.subr.mxu0 0.0
        %7958 = vmatpush2.msra.mxu0 0.0
        %7959 = vmatprep.subr.mxu0 0.0
        %7960 = vmatpush2.msra.mxu0 0.0
        %7961 = vmatprep.subr.mxu0 0.0
        %7962 = vmatpush2.msra.mxu0 0.0
        %7963 = vmatprep.subr.mxu0 0.0
        %7964 = vmatpush2.msra.mxu0 0.0
        %7965 = vmatprep.subr.mxu0 0.0
        %7966 = vmatpush2.msra.mxu0 0.0
        %7967 = vmatprep.subr.mxu0 0.0
        %7968 = vmatpush2.msra.mxu0 0.0
        %7969 = vmatprep.subr.mxu0 0.0
        %7970 = vmatpush2.msra.mxu0 0.0
        %7971 = vmatprep.mubr.f32.mxu0 0.0
        %7972 = vmatmul.mubr.f32.gmra.mxu0 %v7896
        %v7973 = vpop.f32.mrf.mxu0
        %v7974 = vadd.f32 0.0, %v7973
        %v7975 = vpop.f32.mrf.mxu0
        %7976 = vmatprep.mubr.f32.mxu0 0.0
        %7977 = vmatmul.mubr.f32.gmra.mxu0 %v7899
        %v7978 = vpop.f32.mrf.mxu0
        %v7979 = vadd.f32 0.0, %v7978
        %v7980 = vpop.f32.mrf.mxu0
        %7981 = vmatprep.mubr.f32.mxu0 0.0
        %7982 = vmatmul.mubr.f32.gmra.mxu0 %v7902
        %v7983 = vpop.f32.mrf.mxu0
        %v7984 = vadd.f32 0.0, %v7983
        %v7985 = vpop.f32.mrf.mxu0
        %7986 = vmatprep.mubr.f32.mxu0 0.0
        %7987 = vmatmul.mubr.f32.gmra.mxu0 %v7905
        %v7988 = vpop.f32.mrf.mxu0
        %v7989 = vadd.f32 0.0, %v7988
        %v7990 = vpop.f32.mrf.mxu0
        %7991 = vdwg.mxu0
        %v7992 = vadd.f32 %v5925, %v7974
        %v7993 = vadd.f32 %v5926, %v7979
        %v7994 = vadd.f32 %v5927, %v7984
        %v7995 = vadd.f32 %v5928, %v7989
        %v7996 = vmax.f32 %v7992, 0.0
        %v7997 = vmax.f32 %v7993, 0.0
        %v7998 = vmax.f32 %v7994, 0.0
        %v7999 = vmax.f32 %v7995, 0.0
        %v8000 = vpack.c.bf16 %v7997, %v7996
        %v8001 = vpack.c.bf16 %v7999, %v7998
        %v8003 = vsel %vm1305, %v8000, 0
        %v8006 = vsel %vm1305, %v8001, 0
        %8008 = vmatprep.subr.bf16.mxu0 0
        %8009 = vmatpush1.bf16.msra.mxu0 0
        %8010 = vmatprep.subr.bf16.mxu0 0
        %8011 = vmatpush1.bf16.msra.mxu0 0
        %8012 = vmatprep.subr.bf16.mxu0 0
        %8013 = vmatpush1.bf16.msra.mxu0 0
        %8014 = vmatprep.subr.bf16.mxu0 0
        %8015 = vmatpush1.bf16.msra.mxu0 0
        %8016 = vmatprep.subr.bf16.mxu0 0
        %8017 = vmatpush1.bf16.msra.mxu0 %v6163
        %8018 = vmatprep.subr.bf16.mxu0 0
        %8019 = vmatpush1.bf16.msra.mxu0 %v6162
        %8020 = vmatprep.subr.bf16.mxu0 0
        %8021 = vmatpush1.bf16.msra.mxu0 %v6161
        %8022 = vmatprep.subr.bf16.mxu0 0
        %8023 = vmatpush1.bf16.msra.mxu0 %v6160
        %8024 = vmatprep.subr.bf16.mxu0 0
        %8025 = vmatpush2.bf16.msra.mxu0 0
        %8026 = vmatprep.subr.bf16.mxu0 0
        %8027 = vmatpush2.bf16.msra.mxu0 0
        %8028 = vmatprep.subr.bf16.mxu0 0
        %8029 = vmatpush2.bf16.msra.mxu0 0
        %8030 = vmatprep.subr.bf16.mxu0 0
        %8031 = vmatpush2.bf16.msra.mxu0 0
        %8032 = vmatprep.subr.bf16.mxu0 0
        %8033 = vmatpush2.bf16.msra.mxu0 0
        %8034 = vmatprep.subr.bf16.mxu0 0
        %8035 = vmatpush2.bf16.msra.mxu0 0
        %8036 = vmatprep.subr.bf16.mxu0 0
        %8037 = vmatpush2.bf16.msra.mxu0 0
        %8038 = vmatprep.subr.bf16.mxu0 0
        %8039 = vmatpush2.bf16.msra.mxu0 0
        %8040 = vmatprep.mubr.bf16.mxu0 0
        %8041 = vmatmul.mubr.bf16.gmra.mxu0 %v8003
        %v8042 = vpop.f32.mrf.mxu0
        %v8043 = vadd.f32 0.0, %v8042
        %v8044 = vpop.f32.mrf.mxu0
        %v8045 = vpop.f32.mrf.mxu0
        %v8046 = vadd.f32 0.0, %v8045
        %v8047 = vpop.f32.mrf.mxu0
        %8048 = vmatprep.mubr.bf16.mxu0 0
        %8049 = vmatmul.mubr.bf16.gmra.mxu0 %v8006
        %v8050 = vpop.f32.mrf.mxu0
        %v8051 = vadd.f32 0.0, %v8050
        %v8052 = vpop.f32.mrf.mxu0
        %v8053 = vpop.f32.mrf.mxu0
        %v8054 = vadd.f32 0.0, %v8053
        %v8055 = vpop.f32.mrf.mxu0
        %8056 = vdwg.mxu0
        %v8057 = vmax.f32 %v7795, %v8043
        %v8058 = vmax.f32 %v7796, %v8046
        %v8059 = vmax.f32 %v7797, %v8051
        %v8060 = vmax.f32 %v7798, %v8054
        %v8062 = vlaneseq
        %v8063 = vshrl.u32 %v8062, 7
        %v8064 = vsub.s32 0, %v8063
        %v8065 = vrot.slane %v5671, %v8064
        %v8067 = vadd.f32 %v8057, %v8065
        %v8068 = vadd.f32 %v8058, %v8065
        %v8069 = vadd.f32 %v8059, %v8065
        %v8070 = vadd.f32 %v8060, %v8065
        %v8071 = vmax.f32 %v8067, 0.0
        %v8072 = vmax.f32 %v8068, 0.0
        %v8073 = vmax.f32 %v8069, 0.0
        %v8074 = vmax.f32 %v8070, 0.0
        %v8076 = vlaneseq
        %v8077 = vshrl.u32 %v8076, 7
        %v8078 = vsub.s32 0, %v8077
        %v8079 = vrot.slane %v5672, %v8078
        %v8081 = vadd.f32 %v8071, %v8079
        %v8082 = vadd.f32 %v8072, %v8079
        %v8083 = vadd.f32 %v8073, %v8079
        %v8084 = vadd.f32 %v8074, %v8079
        %v8085 = vpack.c.bf16 %v3220, %v3219
        %v8086 = vpack.c.bf16 %v3222, %v3221
        %v8087 = vld [vmem:[#allocation22] sm:$0xff]
        %v8088 = vld [vmem:[#allocation22 + $0x8] sm:$0xff]
        %v8089 = vld [vmem:[#allocation22 + $0x10] sm:$0xff]
        %v8090 = vld [vmem:[#allocation22 + $0x18] sm:$0xff]
        %v8091 = vld [vmem:[#allocation22 + $0x20] sm:$0xff]
        %v8092 = vld [vmem:[#allocation22 + $0x28] sm:$0xff]
        %v8093 = vld [vmem:[#allocation22 + $0x30] sm:$0xff]
        %v8094 = vld [vmem:[#allocation22 + $0x38] sm:$0xff]
        %v8095 = vld [vmem:[#allocation22 + $0x40] sm:$0xff]
        %v8096 = vld [vmem:[#allocation22 + $0x48] sm:$0xff]
        %v8097 = vld [vmem:[#allocation22 + $0x50] sm:$0xff]
        %v8098 = vld [vmem:[#allocation22 + $0x58] sm:$0xff]
        %v8099 = vld [vmem:[#allocation22 + $0x60] sm:$0xff]
        %v8100 = vld [vmem:[#allocation22 + $0x68] sm:$0xff]
        %v8101 = vld [vmem:[#allocation22 + $0x70] sm:$0xff]
        %v8102 = vld [vmem:[#allocation22 + $0x78] sm:$0xff]
        %v8103 = vld [vmem:[#allocation22 + $0x80] sm:$0xff]
        %v8104 = vld [vmem:[#allocation22 + $0x88] sm:$0xff]
        %v8105 = vld [vmem:[#allocation22 + $0x90] sm:$0xff]
        %v8106 = vld [vmem:[#allocation22 + $0x98] sm:$0xff]
        %v8107 = vld [vmem:[#allocation22 + $0xa0] sm:$0xff]
        %v8108 = vld [vmem:[#allocation22 + $0xa8] sm:$0xff]
        %v8109 = vld [vmem:[#allocation22 + $0xb0] sm:$0xff]
        %v8110 = vld [vmem:[#allocation22 + $0xb8] sm:$0xff]
        %v8111 = vld [vmem:[#allocation22 + $0xc0] sm:$0xff]
        %v8112 = vld [vmem:[#allocation22 + $0xc8] sm:$0xff]
        %v8113 = vld [vmem:[#allocation22 + $0xd0] sm:$0xff]
        %v8114 = vld [vmem:[#allocation22 + $0xd8] sm:$0xff]
        %v8115 = vld [vmem:[#allocation22 + $0xe0] sm:$0xff]
        %v8116 = vld [vmem:[#allocation22 + $0xe8] sm:$0xff]
        %v8117 = vld [vmem:[#allocation22 + $0xf0] sm:$0xff]
        %v8118 = vld [vmem:[#allocation22 + $0xf8] sm:$0xff]
        %v8119 = vpack.c.bf16 %v5651, %v5650
        %v8120 = vpack.c.bf16 %v5653, %v5652
        %v8121 = vld [vmem:[#allocation22 + $0x100] sm:$0xff]
        %v8122 = vld [vmem:[#allocation22 + $0x108] sm:$0xff]
        %v8123 = vld [vmem:[#allocation22 + $0x110] sm:$0xff]
        %v8124 = vld [vmem:[#allocation22 + $0x118] sm:$0xff]
        %v8125 = vld [vmem:[#allocation22 + $0x120] sm:$0xff]
        %v8126 = vld [vmem:[#allocation22 + $0x128] sm:$0xff]
        %v8127 = vld [vmem:[#allocation22 + $0x130] sm:$0xff]
        %v8128 = vld [vmem:[#allocation22 + $0x138] sm:$0xff]
        %v8129 = vld [vmem:[#allocation22 + $0x140] sm:$0xff]
        %v8130 = vld [vmem:[#allocation22 + $0x148] sm:$0xff]
        %v8131 = vld [vmem:[#allocation22 + $0x150] sm:$0xff]
        %v8132 = vld [vmem:[#allocation22 + $0x158] sm:$0xff]
        %v8133 = vld [vmem:[#allocation22 + $0x160] sm:$0xff]
        %v8134 = vld [vmem:[#allocation22 + $0x168] sm:$0xff]
        %v8135 = vld [vmem:[#allocation22 + $0x170] sm:$0xff]
        %v8136 = vld [vmem:[#allocation22 + $0x178] sm:$0xff]
        %v8137 = vld [vmem:[#allocation22 + $0x180] sm:$0xff]
        %v8138 = vld [vmem:[#allocation22 + $0x188] sm:$0xff]
        %v8139 = vld [vmem:[#allocation22 + $0x190] sm:$0xff]
        %v8140 = vld [vmem:[#allocation22 + $0x198] sm:$0xff]
        %v8141 = vld [vmem:[#allocation22 + $0x1a0] sm:$0xff]
        %v8142 = vld [vmem:[#allocation22 + $0x1a8] sm:$0xff]
        %v8143 = vld [vmem:[#allocation22 + $0x1b0] sm:$0xff]
        %v8144 = vld [vmem:[#allocation22 + $0x1b8] sm:$0xff]
        %v8145 = vld [vmem:[#allocation22 + $0x1c0] sm:$0xff]
        %v8146 = vld [vmem:[#allocation22 + $0x1c8] sm:$0xff]
        %v8147 = vld [vmem:[#allocation22 + $0x1d0] sm:$0xff]
        %v8148 = vld [vmem:[#allocation22 + $0x1d8] sm:$0xff]
        %v8149 = vld [vmem:[#allocation22 + $0x1e0] sm:$0xff]
        %v8150 = vld [vmem:[#allocation22 + $0x1e8] sm:$0xff]
        %v8151 = vld [vmem:[#allocation22 + $0x1f0] sm:$0xff]
        %v8152 = vld [vmem:[#allocation22 + $0x1f8] sm:$0xff]
        %v8185 = vunpack.c.l.b16 %v8121
        %v8186 = vunpack.c.h.b16 %v8121
        %v8187 = vunpack.c.l.b16 %v8122
        %v8188 = vunpack.c.h.b16 %v8122
        %v8189 = vunpack.c.l.b16 %v8123
        %v8190 = vunpack.c.h.b16 %v8123
        %v8191 = vunpack.c.l.b16 %v8124
        %v8192 = vunpack.c.h.b16 %v8124
        %v8193 = vunpack.c.l.b16 %v8125
        %v8194 = vunpack.c.h.b16 %v8125
        %v8195 = vunpack.c.l.b16 %v8126
        %v8196 = vunpack.c.h.b16 %v8126
        %v8197 = vunpack.c.l.b16 %v8127
        %v8198 = vunpack.c.h.b16 %v8127
        %v8199 = vunpack.c.l.b16 %v8128
        %v8200 = vunpack.c.h.b16 %v8128
        %v8201 = vunpack.c.l.b16 %v8129
        %v8202 = vunpack.c.h.b16 %v8129
        %v8203 = vunpack.c.l.b16 %v8130
        %v8204 = vunpack.c.h.b16 %v8130
        %v8205 = vunpack.c.l.b16 %v8131
        %v8206 = vunpack.c.h.b16 %v8131
        %v8207 = vunpack.c.l.b16 %v8132
        %v8208 = vunpack.c.h.b16 %v8132
        %v8209 = vunpack.c.l.b16 %v8133
        %v8210 = vunpack.c.h.b16 %v8133
        %v8211 = vunpack.c.l.b16 %v8134
        %v8212 = vunpack.c.h.b16 %v8134
        %v8213 = vunpack.c.l.b16 %v8135
        %v8214 = vunpack.c.h.b16 %v8135
        %v8215 = vunpack.c.l.b16 %v8136
        %v8216 = vunpack.c.h.b16 %v8136
        %v8217 = vunpack.c.l.b16 %v8137
        %v8218 = vunpack.c.h.b16 %v8137
        %v8219 = vunpack.c.l.b16 %v8138
        %v8220 = vunpack.c.h.b16 %v8138
        %v8221 = vunpack.c.l.b16 %v8139
        %v8222 = vunpack.c.h.b16 %v8139
        %v8223 = vunpack.c.l.b16 %v8140
        %v8224 = vunpack.c.h.b16 %v8140
        %v8225 = vunpack.c.l.b16 %v8141
        %v8226 = vunpack.c.h.b16 %v8141
        %v8227 = vunpack.c.l.b16 %v8142
        %v8228 = vunpack.c.h.b16 %v8142
        %v8229 = vunpack.c.l.b16 %v8143
        %v8230 = vunpack.c.h.b16 %v8143
        %v8231 = vunpack.c.l.b16 %v8144
        %v8232 = vunpack.c.h.b16 %v8144
        %v8233 = vunpack.c.l.b16 %v8145
        %v8234 = vunpack.c.h.b16 %v8145
        %v8235 = vunpack.c.l.b16 %v8146
        %v8236 = vunpack.c.h.b16 %v8146
        %v8237 = vunpack.c.l.b16 %v8147
        %v8238 = vunpack.c.h.b16 %v8147
        %v8239 = vunpack.c.l.b16 %v8148
        %v8240 = vunpack.c.h.b16 %v8148
        %v8241 = vunpack.c.l.b16 %v8149
        %v8242 = vunpack.c.h.b16 %v8149
        %v8243 = vunpack.c.l.b16 %v8150
        %v8244 = vunpack.c.h.b16 %v8150
        %v8245 = vunpack.c.l.b16 %v8151
        %v8246 = vunpack.c.h.b16 %v8151
        %v8247 = vunpack.c.l.b16 %v8152
        %v8248 = vunpack.c.h.b16 %v8152
        %v8249 = vpack.c.b16 %v8193, %v8185
        %v8250 = vpack.c.b16 %v8194, %v8186
        %v8251 = vpack.c.b16 %v8195, %v8187
        %v8252 = vpack.c.b16 %v8196, %v8188
        %v8253 = vpack.c.b16 %v8197, %v8189
        %v8254 = vpack.c.b16 %v8198, %v8190
        %v8255 = vpack.c.b16 %v8199, %v8191
        %v8256 = vpack.c.b16 %v8200, %v8192
        %v8257 = vpack.c.b16 %v8209, %v8201
        %v8258 = vpack.c.b16 %v8210, %v8202
        %v8259 = vpack.c.b16 %v8211, %v8203
        %v8260 = vpack.c.b16 %v8212, %v8204
        %v8261 = vpack.c.b16 %v8213, %v8205
        %v8262 = vpack.c.b16 %v8214, %v8206
        %v8263 = vpack.c.b16 %v8215, %v8207
        %v8264 = vpack.c.b16 %v8216, %v8208
        %v8265 = vpack.c.b16 %v8225, %v8217
        %v8266 = vpack.c.b16 %v8226, %v8218
        %v8267 = vpack.c.b16 %v8227, %v8219
        %v8268 = vpack.c.b16 %v8228, %v8220
        %v8269 = vpack.c.b16 %v8229, %v8221
        %v8270 = vpack.c.b16 %v8230, %v8222
        %v8271 = vpack.c.b16 %v8231, %v8223
        %v8272 = vpack.c.b16 %v8232, %v8224
        %v8273 = vpack.c.b16 %v8241, %v8233
        %v8274 = vpack.c.b16 %v8242, %v8234
        %v8275 = vpack.c.b16 %v8243, %v8235
        %v8276 = vpack.c.b16 %v8244, %v8236
        %v8277 = vpack.c.b16 %v8245, %v8237
        %v8278 = vpack.c.b16 %v8246, %v8238
        %v8279 = vpack.c.b16 %v8247, %v8239
        %v8280 = vpack.c.b16 %v8248, %v8240
        %v8314 = vsel %vm1305, %v8119, 0
        %v8317 = vsel %vm1305, %v8120, 0
        %8319 = vmatprep.subr.bf16.mxu0 0
        %8320 = vmatpush1.bf16.msra.mxu0 0
        %8321 = vmatprep.subr.bf16.mxu0 0
        %8322 = vmatpush1.bf16.msra.mxu0 0
        %8323 = vmatprep.subr.bf16.mxu0 0
        %8324 = vmatpush1.bf16.msra.mxu0 0
        %8325 = vmatprep.subr.bf16.mxu0 0
        %8326 = vmatpush1.bf16.msra.mxu0 0
        %8327 = vmatprep.subr.bf16.mxu0 %v8274
        %8328 = vmatpush1.bf16.msra.mxu0 %v8273
        %8329 = vmatprep.subr.bf16.mxu0 %v8266
        %8330 = vmatpush1.bf16.msra.mxu0 %v8265
        %8331 = vmatprep.subr.bf16.mxu0 %v8258
        %8332 = vmatpush1.bf16.msra.mxu0 %v8257
        %8333 = vmatprep.subr.bf16.mxu0 %v8250
        %8334 = vmatpush1.bf16.msra.mxu0 %v8249
        %8335 = vmatprep.subr.bf16.mxu0 0
        %8336 = vmatpush2.bf16.msra.mxu0 0
        %8337 = vmatprep.subr.bf16.mxu0 0
        %8338 = vmatpush2.bf16.msra.mxu0 0
        %8339 = vmatprep.subr.bf16.mxu0 0
        %8340 = vmatpush2.bf16.msra.mxu0 0
        %8341 = vmatprep.subr.bf16.mxu0 0
        %8342 = vmatpush2.bf16.msra.mxu0 0
        %8343 = vmatprep.subr.bf16.mxu0 0
        %8344 = vmatpush2.bf16.msra.mxu0 0
        %8345 = vmatprep.subr.bf16.mxu0 0
        %8346 = vmatpush2.bf16.msra.mxu0 0
        %8347 = vmatprep.subr.bf16.mxu0 0
        %8348 = vmatpush2.bf16.msra.mxu0 0
        %8349 = vmatprep.subr.bf16.mxu0 0
        %8350 = vmatpush2.bf16.msra.mxu0 0
        %8351 = vmatprep.mubr.bf16.mxu0 0
        %8352 = vmatmul.mubr.bf16.gmra.mxu0 %v8314
        %v8353 = vpop.f32.mrf.mxu0
        %v8354 = vadd.f32 0.0, %v8353
        %v8355 = vpop.f32.mrf.mxu0
        %v8356 = vadd.f32 0.0, %v8355
        %v8357 = vpop.f32.mrf.mxu0
        %v8358 = vadd.f32 0.0, %v8357
        %v8359 = vpop.f32.mrf.mxu0
        %v8360 = vadd.f32 0.0, %v8359
        %8361 = vmatprep.mubr.bf16.mxu0 0
        %8362 = vmatmul.mubr.bf16.gmra.mxu0 %v8317
        %v8363 = vpop.f32.mrf.mxu0
        %v8364 = vadd.f32 0.0, %v8363
        %v8365 = vpop.f32.mrf.mxu0
        %v8366 = vadd.f32 0.0, %v8365
        %v8367 = vpop.f32.mrf.mxu0
        %v8368 = vadd.f32 0.0, %v8367
        %v8369 = vpop.f32.mrf.mxu0
        %v8370 = vadd.f32 0.0, %v8369
        %8371 = vdwg.mxu0
        %8372 = vmatprep.subr.bf16.mxu0 0
        %8373 = vmatpush1.bf16.msra.mxu0 0
        %8374 = vmatprep.subr.bf16.mxu0 0
        %8375 = vmatpush1.bf16.msra.mxu0 0
        %8376 = vmatprep.subr.bf16.mxu0 0
        %8377 = vmatpush1.bf16.msra.mxu0 0
        %8378 = vmatprep.subr.bf16.mxu0 0
        %8379 = vmatpush1.bf16.msra.mxu0 0
        %8380 = vmatprep.subr.bf16.mxu0 %v8276
        %8381 = vmatpush1.bf16.msra.mxu0 %v8275
        %8382 = vmatprep.subr.bf16.mxu0 %v8268
        %8383 = vmatpush1.bf16.msra.mxu0 %v8267
        %8384 = vmatprep.subr.bf16.mxu0 %v8260
        %8385 = vmatpush1.bf16.msra.mxu0 %v8259
        %8386 = vmatprep.subr.bf16.mxu0 %v8252
        %8387 = vmatpush1.bf16.msra.mxu0 %v8251
        %8388 = vmatprep.subr.bf16.mxu0 0
        %8389 = vmatpush2.bf16.msra.mxu0 0
        %8390 = vmatprep.subr.bf16.mxu0 0
        %8391 = vmatpush2.bf16.msra.mxu0 0
        %8392 = vmatprep.subr.bf16.mxu0 0
        %8393 = vmatpush2.bf16.msra.mxu0 0
        %8394 = vmatprep.subr.bf16.mxu0 0
        %8395 = vmatpush2.bf16.msra.mxu0 0
        %8396 = vmatprep.subr.bf16.mxu0 0
        %8397 = vmatpush2.bf16.msra.mxu0 0
        %8398 = vmatprep.subr.bf16.mxu0 0
        %8399 = vmatpush2.bf16.msra.mxu0 0
        %8400 = vmatprep.subr.bf16.mxu0 0
        %8401 = vmatpush2.bf16.msra.mxu0 0
        %8402 = vmatprep.subr.bf16.mxu0 0
        %8403 = vmatpush2.bf16.msra.mxu0 0
        %8404 = vmatprep.mubr.bf16.mxu0 0
        %8405 = vmatmul.mubr.bf16.gmra.mxu0 %v8314
        %v8406 = vpop.f32.mrf.mxu0
        %v8407 = vadd.f32 0.0, %v8406
        %v8408 = vpop.f32.mrf.mxu0
        %v8409 = vadd.f32 0.0, %v8408
        %v8410 = vpop.f32.mrf.mxu0
        %v8411 = vadd.f32 0.0, %v8410
        %v8412 = vpop.f32.mrf.mxu0
        %v8413 = vadd.f32 0.0, %v8412
        %8414 = vmatprep.mubr.bf16.mxu0 0
        %8415 = vmatmul.mubr.bf16.gmra.mxu0 %v8317
        %v8416 = vpop.f32.mrf.mxu0
        %v8417 = vadd.f32 0.0, %v8416
        %v8418 = vpop.f32.mrf.mxu0
        %v8419 = vadd.f32 0.0, %v8418
        %v8420 = vpop.f32.mrf.mxu0
        %v8421 = vadd.f32 0.0, %v8420
        %v8422 = vpop.f32.mrf.mxu0
        %v8423 = vadd.f32 0.0, %v8422
        %8424 = vdwg.mxu0
        %8425 = vmatprep.subr.bf16.mxu0 0
        %8426 = vmatpush1.bf16.msra.mxu0 0
        %8427 = vmatprep.subr.bf16.mxu0 0
        %8428 = vmatpush1.bf16.msra.mxu0 0
        %8429 = vmatprep.subr.bf16.mxu0 0
        %8430 = vmatpush1.bf16.msra.mxu0 0
        %8431 = vmatprep.subr.bf16.mxu0 0
        %8432 = vmatpush1.bf16.msra.mxu0 0
        %8433 = vmatprep.subr.bf16.mxu0 %v8278
        %8434 = vmatpush1.bf16.msra.mxu0 %v8277
        %8435 = vmatprep.subr.bf16.mxu0 %v8270
        %8436 = vmatpush1.bf16.msra.mxu0 %v8269
        %8437 = vmatprep.subr.bf16.mxu0 %v8262
        %8438 = vmatpush1.bf16.msra.mxu0 %v8261
        %8439 = vmatprep.subr.bf16.mxu0 %v8254
        %8440 = vmatpush1.bf16.msra.mxu0 %v8253
        %8441 = vmatprep.subr.bf16.mxu0 0
        %8442 = vmatpush2.bf16.msra.mxu0 0
        %8443 = vmatprep.subr.bf16.mxu0 0
        %8444 = vmatpush2.bf16.msra.mxu0 0
        %8445 = vmatprep.subr.bf16.mxu0 0
        %8446 = vmatpush2.bf16.msra.mxu0 0
        %8447 = vmatprep.subr.bf16.mxu0 0
        %8448 = vmatpush2.bf16.msra.mxu0 0
        %8449 = vmatprep.subr.bf16.mxu0 0
        %8450 = vmatpush2.bf16.msra.mxu0 0
        %8451 = vmatprep.subr.bf16.mxu0 0
        %8452 = vmatpush2.bf16.msra.mxu0 0
        %8453 = vmatprep.subr.bf16.mxu0 0
        %8454 = vmatpush2.bf16.msra.mxu0 0
        %8455 = vmatprep.subr.bf16.mxu0 0
        %8456 = vmatpush2.bf16.msra.mxu0 0
        %8457 = vmatprep.mubr.bf16.mxu0 0
        %8458 = vmatmul.mubr.bf16.gmra.mxu0 %v8314
        %v8459 = vpop.f32.mrf.mxu0
        %v8460 = vadd.f32 0.0, %v8459
        %v8461 = vpop.f32.mrf.mxu0
        %v8462 = vadd.f32 0.0, %v8461
        %v8463 = vpop.f32.mrf.mxu0
        %v8464 = vadd.f32 0.0, %v8463
        %v8465 = vpop.f32.mrf.mxu0
        %v8466 = vadd.f32 0.0, %v8465
        %8467 = vmatprep.mubr.bf16.mxu0 0
        %8468 = vmatmul.mubr.bf16.gmra.mxu0 %v8317
        %v8469 = vpop.f32.mrf.mxu0
        %v8470 = vadd.f32 0.0, %v8469
        %v8471 = vpop.f32.mrf.mxu0
        %v8472 = vadd.f32 0.0, %v8471
        %v8473 = vpop.f32.mrf.mxu0
        %v8474 = vadd.f32 0.0, %v8473
        %v8475 = vpop.f32.mrf.mxu0
        %v8476 = vadd.f32 0.0, %v8475
        %8477 = vdwg.mxu0
        %8478 = vmatprep.subr.bf16.mxu0 0
        %8479 = vmatpush1.bf16.msra.mxu0 0
        %8480 = vmatprep.subr.bf16.mxu0 0
        %8481 = vmatpush1.bf16.msra.mxu0 0
        %8482 = vmatprep.subr.bf16.mxu0 0
        %8483 = vmatpush1.bf16.msra.mxu0 0
        %8484 = vmatprep.subr.bf16.mxu0 0
        %8485 = vmatpush1.bf16.msra.mxu0 0
        %8486 = vmatprep.subr.bf16.mxu0 %v8280
        %8487 = vmatpush1.bf16.msra.mxu0 %v8279
        %8488 = vmatprep.subr.bf16.mxu0 %v8272
        %8489 = vmatpush1.bf16.msra.mxu0 %v8271
        %8490 = vmatprep.subr.bf16.mxu0 %v8264
        %8491 = vmatpush1.bf16.msra.mxu0 %v8263
        %8492 = vmatprep.subr.bf16.mxu0 %v8256
        %8493 = vmatpush1.bf16.msra.mxu0 %v8255
        %8494 = vmatprep.subr.bf16.mxu0 0
        %8495 = vmatpush2.bf16.msra.mxu0 0
        %8496 = vmatprep.subr.bf16.mxu0 0
        %8497 = vmatpush2.bf16.msra.mxu0 0
        %8498 = vmatprep.subr.bf16.mxu0 0
        %8499 = vmatpush2.bf16.msra.mxu0 0
        %8500 = vmatprep.subr.bf16.mxu0 0
        %8501 = vmatpush2.bf16.msra.mxu0 0
        %8502 = vmatprep.subr.bf16.mxu0 0
        %8503 = vmatpush2.bf16.msra.mxu0 0
        %8504 = vmatprep.subr.bf16.mxu0 0
        %8505 = vmatpush2.bf16.msra.mxu0 0
        %8506 = vmatprep.subr.bf16.mxu0 0
        %8507 = vmatpush2.bf16.msra.mxu0 0
        %8508 = vmatprep.subr.bf16.mxu0 0
        %8509 = vmatpush2.bf16.msra.mxu0 0
        %8510 = vmatprep.mubr.bf16.mxu0 0
        %8511 = vmatmul.mubr.bf16.gmra.mxu0 %v8314
        %v8512 = vpop.f32.mrf.mxu0
        %v8513 = vadd.f32 0.0, %v8512
        %v8514 = vpop.f32.mrf.mxu0
        %v8515 = vadd.f32 0.0, %v8514
        %v8516 = vpop.f32.mrf.mxu0
        %v8517 = vadd.f32 0.0, %v8516
        %v8518 = vpop.f32.mrf.mxu0
        %v8519 = vadd.f32 0.0, %v8518
        %8520 = vmatprep.mubr.bf16.mxu0 0
        %8521 = vmatmul.mubr.bf16.gmra.mxu0 %v8317
        %v8522 = vpop.f32.mrf.mxu0
        %v8523 = vadd.f32 0.0, %v8522
        %v8524 = vpop.f32.mrf.mxu0
        %v8525 = vadd.f32 0.0, %v8524
        %v8526 = vpop.f32.mrf.mxu0
        %v8527 = vadd.f32 0.0, %v8526
        %v8528 = vpop.f32.mrf.mxu0
        %v8529 = vadd.f32 0.0, %v8528
        %8530 = vdwg.mxu0
        %v8563 = vunpack.c.l.b16 %v8087
        %v8564 = vunpack.c.h.b16 %v8087
        %v8565 = vunpack.c.l.b16 %v8088
        %v8566 = vunpack.c.h.b16 %v8088
        %v8567 = vunpack.c.l.b16 %v8089
        %v8568 = vunpack.c.h.b16 %v8089
        %v8569 = vunpack.c.l.b16 %v8090
        %v8570 = vunpack.c.h.b16 %v8090
        %v8571 = vunpack.c.l.b16 %v8091
        %v8572 = vunpack.c.h.b16 %v8091
        %v8573 = vunpack.c.l.b16 %v8092
        %v8574 = vunpack.c.h.b16 %v8092
        %v8575 = vunpack.c.l.b16 %v8093
        %v8576 = vunpack.c.h.b16 %v8093
        %v8577 = vunpack.c.l.b16 %v8094
        %v8578 = vunpack.c.h.b16 %v8094
        %v8579 = vunpack.c.l.b16 %v8095
        %v8580 = vunpack.c.h.b16 %v8095
        %v8581 = vunpack.c.l.b16 %v8096
        %v8582 = vunpack.c.h.b16 %v8096
        %v8583 = vunpack.c.l.b16 %v8097
        %v8584 = vunpack.c.h.b16 %v8097
        %v8585 = vunpack.c.l.b16 %v8098
        %v8586 = vunpack.c.h.b16 %v8098
        %v8587 = vunpack.c.l.b16 %v8099
        %v8588 = vunpack.c.h.b16 %v8099
        %v8589 = vunpack.c.l.b16 %v8100
        %v8590 = vunpack.c.h.b16 %v8100
        %v8591 = vunpack.c.l.b16 %v8101
        %v8592 = vunpack.c.h.b16 %v8101
        %v8593 = vunpack.c.l.b16 %v8102
        %v8594 = vunpack.c.h.b16 %v8102
        %v8595 = vunpack.c.l.b16 %v8103
        %v8596 = vunpack.c.h.b16 %v8103
        %v8597 = vunpack.c.l.b16 %v8104
        %v8598 = vunpack.c.h.b16 %v8104
        %v8599 = vunpack.c.l.b16 %v8105
        %v8600 = vunpack.c.h.b16 %v8105
        %v8601 = vunpack.c.l.b16 %v8106
        %v8602 = vunpack.c.h.b16 %v8106
        %v8603 = vunpack.c.l.b16 %v8107
        %v8604 = vunpack.c.h.b16 %v8107
        %v8605 = vunpack.c.l.b16 %v8108
        %v8606 = vunpack.c.h.b16 %v8108
        %v8607 = vunpack.c.l.b16 %v8109
        %v8608 = vunpack.c.h.b16 %v8109
        %v8609 = vunpack.c.l.b16 %v8110
        %v8610 = vunpack.c.h.b16 %v8110
        %v8611 = vunpack.c.l.b16 %v8111
        %v8612 = vunpack.c.h.b16 %v8111
        %v8613 = vunpack.c.l.b16 %v8112
        %v8614 = vunpack.c.h.b16 %v8112
        %v8615 = vunpack.c.l.b16 %v8113
        %v8616 = vunpack.c.h.b16 %v8113
        %v8617 = vunpack.c.l.b16 %v8114
        %v8618 = vunpack.c.h.b16 %v8114
        %v8619 = vunpack.c.l.b16 %v8115
        %v8620 = vunpack.c.h.b16 %v8115
        %v8621 = vunpack.c.l.b16 %v8116
        %v8622 = vunpack.c.h.b16 %v8116
        %v8623 = vunpack.c.l.b16 %v8117
        %v8624 = vunpack.c.h.b16 %v8117
        %v8625 = vunpack.c.l.b16 %v8118
        %v8626 = vunpack.c.h.b16 %v8118
        %v8627 = vpack.c.b16 %v8571, %v8563
        %v8628 = vpack.c.b16 %v8572, %v8564
        %v8629 = vpack.c.b16 %v8573, %v8565
        %v8630 = vpack.c.b16 %v8574, %v8566
        %v8631 = vpack.c.b16 %v8575, %v8567
        %v8632 = vpack.c.b16 %v8576, %v8568
        %v8633 = vpack.c.b16 %v8577, %v8569
        %v8634 = vpack.c.b16 %v8578, %v8570
        %v8635 = vpack.c.b16 %v8587, %v8579
        %v8636 = vpack.c.b16 %v8588, %v8580
        %v8637 = vpack.c.b16 %v8589, %v8581
        %v8638 = vpack.c.b16 %v8590, %v8582
        %v8639 = vpack.c.b16 %v8591, %v8583
        %v8640 = vpack.c.b16 %v8592, %v8584
        %v8641 = vpack.c.b16 %v8593, %v8585
        %v8642 = vpack.c.b16 %v8594, %v8586
        %v8643 = vpack.c.b16 %v8603, %v8595
        %v8644 = vpack.c.b16 %v8604, %v8596
        %v8645 = vpack.c.b16 %v8605, %v8597
        %v8646 = vpack.c.b16 %v8606, %v8598
        %v8647 = vpack.c.b16 %v8607, %v8599
        %v8648 = vpack.c.b16 %v8608, %v8600
        %v8649 = vpack.c.b16 %v8609, %v8601
        %v8650 = vpack.c.b16 %v8610, %v8602
        %v8651 = vpack.c.b16 %v8619, %v8611
        %v8652 = vpack.c.b16 %v8620, %v8612
        %v8653 = vpack.c.b16 %v8621, %v8613
        %v8654 = vpack.c.b16 %v8622, %v8614
        %v8655 = vpack.c.b16 %v8623, %v8615
        %v8656 = vpack.c.b16 %v8624, %v8616
        %v8657 = vpack.c.b16 %v8625, %v8617
        %v8658 = vpack.c.b16 %v8626, %v8618
        %v8692 = vsel %vm1305, %v8085, 0
        %v8695 = vsel %vm1305, %v8086, 0
        %8697 = vmatprep.subr.bf16.mxu0 0
        %8698 = vmatpush1.bf16.msra.mxu0 0
        %8699 = vmatprep.subr.bf16.mxu0 0
        %8700 = vmatpush1.bf16.msra.mxu0 0
        %8701 = vmatprep.subr.bf16.mxu0 0
        %8702 = vmatpush1.bf16.msra.mxu0 0
        %8703 = vmatprep.subr.bf16.mxu0 0
        %8704 = vmatpush1.bf16.msra.mxu0 0
        %8705 = vmatprep.subr.bf16.mxu0 %v8652
        %8706 = vmatpush1.bf16.msra.mxu0 %v8651
        %8707 = vmatprep.subr.bf16.mxu0 %v8644
        %8708 = vmatpush1.bf16.msra.mxu0 %v8643
        %8709 = vmatprep.subr.bf16.mxu0 %v8636
        %8710 = vmatpush1.bf16.msra.mxu0 %v8635
        %8711 = vmatprep.subr.bf16.mxu0 %v8628
        %8712 = vmatpush1.bf16.msra.mxu0 %v8627
        %8713 = vmatprep.subr.bf16.mxu0 0
        %8714 = vmatpush2.bf16.msra.mxu0 0
        %8715 = vmatprep.subr.bf16.mxu0 0
        %8716 = vmatpush2.bf16.msra.mxu0 0
        %8717 = vmatprep.subr.bf16.mxu0 0
        %8718 = vmatpush2.bf16.msra.mxu0 0
        %8719 = vmatprep.subr.bf16.mxu0 0
        %8720 = vmatpush2.bf16.msra.mxu0 0
        %8721 = vmatprep.subr.bf16.mxu0 0
        %8722 = vmatpush2.bf16.msra.mxu0 0
        %8723 = vmatprep.subr.bf16.mxu0 0
        %8724 = vmatpush2.bf16.msra.mxu0 0
        %8725 = vmatprep.subr.bf16.mxu0 0
        %8726 = vmatpush2.bf16.msra.mxu0 0
        %8727 = vmatprep.subr.bf16.mxu0 0
        %8728 = vmatpush2.bf16.msra.mxu0 0
        %8729 = vmatprep.mubr.bf16.mxu0 0
        %8730 = vmatmul.mubr.bf16.gmra.mxu0 %v8692
        %v8731 = vpop.f32.mrf.mxu0
        %v8732 = vadd.f32 %v8354, %v8731
        %v8733 = vpop.f32.mrf.mxu0
        %v8734 = vadd.f32 %v8356, %v8733
        %v8735 = vpop.f32.mrf.mxu0
        %v8736 = vadd.f32 %v8358, %v8735
        %v8737 = vpop.f32.mrf.mxu0
        %v8738 = vadd.f32 %v8360, %v8737
        %8739 = vmatprep.mubr.bf16.mxu0 0
        %8740 = vmatmul.mubr.bf16.gmra.mxu0 %v8695
        %v8741 = vpop.f32.mrf.mxu0
        %v8742 = vadd.f32 %v8364, %v8741
        %v8743 = vpop.f32.mrf.mxu0
        %v8744 = vadd.f32 %v8366, %v8743
        %v8745 = vpop.f32.mrf.mxu0
        %v8746 = vadd.f32 %v8368, %v8745
        %v8747 = vpop.f32.mrf.mxu0
        %v8748 = vadd.f32 %v8370, %v8747
        %8749 = vdwg.mxu0
        %8750 = vmatprep.subr.bf16.mxu0 0
        %8751 = vmatpush1.bf16.msra.mxu0 0
        %8752 = vmatprep.subr.bf16.mxu0 0
        %8753 = vmatpush1.bf16.msra.mxu0 0
        %8754 = vmatprep.subr.bf16.mxu0 0
        %8755 = vmatpush1.bf16.msra.mxu0 0
        %8756 = vmatprep.subr.bf16.mxu0 0
        %8757 = vmatpush1.bf16.msra.mxu0 0
        %8758 = vmatprep.subr.bf16.mxu0 %v8654
        %8759 = vmatpush1.bf16.msra.mxu0 %v8653
        %8760 = vmatprep.subr.bf16.mxu0 %v8646
        %8761 = vmatpush1.bf16.msra.mxu0 %v8645
        %8762 = vmatprep.subr.bf16.mxu0 %v8638
        %8763 = vmatpush1.bf16.msra.mxu0 %v8637
        %8764 = vmatprep.subr.bf16.mxu0 %v8630
        %8765 = vmatpush1.bf16.msra.mxu0 %v8629
        %8766 = vmatprep.subr.bf16.mxu0 0
        %8767 = vmatpush2.bf16.msra.mxu0 0
        %8768 = vmatprep.subr.bf16.mxu0 0
        %8769 = vmatpush2.bf16.msra.mxu0 0
        %8770 = vmatprep.subr.bf16.mxu0 0
        %8771 = vmatpush2.bf16.msra.mxu0 0
        %8772 = vmatprep.subr.bf16.mxu0 0
        %8773 = vmatpush2.bf16.msra.mxu0 0
        %8774 = vmatprep.subr.bf16.mxu0 0
        %8775 = vmatpush2.bf16.msra.mxu0 0
        %8776 = vmatprep.subr.bf16.mxu0 0
        %8777 = vmatpush2.bf16.msra.mxu0 0
        %8778 = vmatprep.subr.bf16.mxu0 0
        %8779 = vmatpush2.bf16.msra.mxu0 0
        %8780 = vmatprep.subr.bf16.mxu0 0
        %8781 = vmatpush2.bf16.msra.mxu0 0
        %8782 = vmatprep.mubr.bf16.mxu0 0
        %8783 = vmatmul.mubr.bf16.gmra.mxu0 %v8692
        %v8784 = vpop.f32.mrf.mxu0
        %v8785 = vadd.f32 %v8407, %v8784
        %v8786 = vpop.f32.mrf.mxu0
        %v8787 = vadd.f32 %v8409, %v8786
        %v8788 = vpop.f32.mrf.mxu0
        %v8789 = vadd.f32 %v8411, %v8788
        %v8790 = vpop.f32.mrf.mxu0
        %v8791 = vadd.f32 %v8413, %v8790
        %8792 = vmatprep.mubr.bf16.mxu0 0
        %8793 = vmatmul.mubr.bf16.gmra.mxu0 %v8695
        %v8794 = vpop.f32.mrf.mxu0
        %v8795 = vadd.f32 %v8417, %v8794
        %v8796 = vpop.f32.mrf.mxu0
        %v8797 = vadd.f32 %v8419, %v8796
        %v8798 = vpop.f32.mrf.mxu0
        %v8799 = vadd.f32 %v8421, %v8798
        %v8800 = vpop.f32.mrf.mxu0
        %v8801 = vadd.f32 %v8423, %v8800
        %8802 = vdwg.mxu0
        %8803 = vmatprep.subr.bf16.mxu0 0
        %8804 = vmatpush1.bf16.msra.mxu0 0
        %8805 = vmatprep.subr.bf16.mxu0 0
        %8806 = vmatpush1.bf16.msra.mxu0 0
        %8807 = vmatprep.subr.bf16.mxu0 0
        %8808 = vmatpush1.bf16.msra.mxu0 0
        %8809 = vmatprep.subr.bf16.mxu0 0
        %8810 = vmatpush1.bf16.msra.mxu0 0
        %8811 = vmatprep.subr.bf16.mxu0 %v8656
        %8812 = vmatpush1.bf16.msra.mxu0 %v8655
        %8813 = vmatprep.subr.bf16.mxu0 %v8648
        %8814 = vmatpush1.bf16.msra.mxu0 %v8647
        %8815 = vmatprep.subr.bf16.mxu0 %v8640
        %8816 = vmatpush1.bf16.msra.mxu0 %v8639
        %8817 = vmatprep.subr.bf16.mxu0 %v8632
        %8818 = vmatpush1.bf16.msra.mxu0 %v8631
        %8819 = vmatprep.subr.bf16.mxu0 0
        %8820 = vmatpush2.bf16.msra.mxu0 0
        %8821 = vmatprep.subr.bf16.mxu0 0
        %8822 = vmatpush2.bf16.msra.mxu0 0
        %8823 = vmatprep.subr.bf16.mxu0 0
        %8824 = vmatpush2.bf16.msra.mxu0 0
        %8825 = vmatprep.subr.bf16.mxu0 0
        %8826 = vmatpush2.bf16.msra.mxu0 0
        %8827 = vmatprep.subr.bf16.mxu0 0
        %8828 = vmatpush2.bf16.msra.mxu0 0
        %8829 = vmatprep.subr.bf16.mxu0 0
        %8830 = vmatpush2.bf16.msra.mxu0 0
        %8831 = vmatprep.subr.bf16.mxu0 0
        %8832 = vmatpush2.bf16.msra.mxu0 0
        %8833 = vmatprep.subr.bf16.mxu0 0
        %8834 = vmatpush2.bf16.msra.mxu0 0
        %8835 = vmatprep.mubr.bf16.mxu0 0
        %8836 = vmatmul.mubr.bf16.gmra.mxu0 %v8692
        %v8837 = vpop.f32.mrf.mxu0
        %v8838 = vadd.f32 %v8460, %v8837
        %v8839 = vpop.f32.mrf.mxu0
        %v8840 = vadd.f32 %v8462, %v8839
        %v8841 = vpop.f32.mrf.mxu0
        %v8842 = vadd.f32 %v8464, %v8841
        %v8843 = vpop.f32.mrf.mxu0
        %v8844 = vadd.f32 %v8466, %v8843
        %8845 = vmatprep.mubr.bf16.mxu0 0
        %8846 = vmatmul.mubr.bf16.gmra.mxu0 %v8695
        %v8847 = vpop.f32.mrf.mxu0
        %v8848 = vadd.f32 %v8470, %v8847
        %v8849 = vpop.f32.mrf.mxu0
        %v8850 = vadd.f32 %v8472, %v8849
        %v8851 = vpop.f32.mrf.mxu0
        %v8852 = vadd.f32 %v8474, %v8851
        %v8853 = vpop.f32.mrf.mxu0
        %v8854 = vadd.f32 %v8476, %v8853
        %8855 = vdwg.mxu0
        %8856 = vmatprep.subr.bf16.mxu0 0
        %8857 = vmatpush1.bf16.msra.mxu0 0
        %8858 = vmatprep.subr.bf16.mxu0 0
        %8859 = vmatpush1.bf16.msra.mxu0 0
        %8860 = vmatprep.subr.bf16.mxu0 0
        %8861 = vmatpush1.bf16.msra.mxu0 0
        %8862 = vmatprep.subr.bf16.mxu0 0
        %8863 = vmatpush1.bf16.msra.mxu0 0
        %8864 = vmatprep.subr.bf16.mxu0 %v8658
        %8865 = vmatpush1.bf16.msra.mxu0 %v8657
        %8866 = vmatprep.subr.bf16.mxu0 %v8650
        %8867 = vmatpush1.bf16.msra.mxu0 %v8649
        %8868 = vmatprep.subr.bf16.mxu0 %v8642
        %8869 = vmatpush1.bf16.msra.mxu0 %v8641
        %8870 = vmatprep.subr.bf16.mxu0 %v8634
        %8871 = vmatpush1.bf16.msra.mxu0 %v8633
        %8872 = vmatprep.subr.bf16.mxu0 0
        %8873 = vmatpush2.bf16.msra.mxu0 0
        %8874 = vmatprep.subr.bf16.mxu0 0
        %8875 = vmatpush2.bf16.msra.mxu0 0
        %8876 = vmatprep.subr.bf16.mxu0 0
        %8877 = vmatpush2.bf16.msra.mxu0 0
        %8878 = vmatprep.subr.bf16.mxu0 0
        %8879 = vmatpush2.bf16.msra.mxu0 0
        %8880 = vmatprep.subr.bf16.mxu0 0
        %8881 = vmatpush2.bf16.msra.mxu0 0
        %8882 = vmatprep.subr.bf16.mxu0 0
        %8883 = vmatpush2.bf16.msra.mxu0 0
        %8884 = vmatprep.subr.bf16.mxu0 0
        %8885 = vmatpush2.bf16.msra.mxu0 0
        %8886 = vmatprep.subr.bf16.mxu0 0
        %8887 = vmatpush2.bf16.msra.mxu0 0
        %8888 = vmatprep.mubr.bf16.mxu0 0
        %8889 = vmatmul.mubr.bf16.gmra.mxu0 %v8692
        %v8890 = vpop.f32.mrf.mxu0
        %v8891 = vadd.f32 %v8513, %v8890
        %v8892 = vpop.f32.mrf.mxu0
        %v8893 = vadd.f32 %v8515, %v8892
        %v8894 = vpop.f32.mrf.mxu0
        %v8895 = vadd.f32 %v8517, %v8894
        %v8896 = vpop.f32.mrf.mxu0
        %v8897 = vadd.f32 %v8519, %v8896
        %8898 = vmatprep.mubr.bf16.mxu0 0
        %8899 = vmatmul.mubr.bf16.gmra.mxu0 %v8695
        %v8900 = vpop.f32.mrf.mxu0
        %v8901 = vadd.f32 %v8523, %v8900
        %v8902 = vpop.f32.mrf.mxu0
        %v8903 = vadd.f32 %v8525, %v8902
        %v8904 = vpop.f32.mrf.mxu0
        %v8905 = vadd.f32 %v8527, %v8904
        %v8906 = vpop.f32.mrf.mxu0
        %v8907 = vadd.f32 %v8529, %v8906
        %8908 = vdwg.mxu0
        %v8909 = vpack.c.bf16 %v8082, %v8081
        %v8910 = vpack.c.bf16 %v8084, %v8083
        %v8911 = vld [vmem:[#allocation22 + $0x200] sm:$0xff]
        %v8912 = vld [vmem:[#allocation22 + $0x208] sm:$0xff]
        %v8913 = vld [vmem:[#allocation22 + $0x210] sm:$0xff]
        %v8914 = vld [vmem:[#allocation22 + $0x218] sm:$0xff]
        %v8915 = vld [vmem:[#allocation22 + $0x220] sm:$0xff]
        %v8916 = vld [vmem:[#allocation22 + $0x228] sm:$0xff]
        %v8917 = vld [vmem:[#allocation22 + $0x230] sm:$0xff]
        %v8918 = vld [vmem:[#allocation22 + $0x238] sm:$0xff]
        %v8919 = vld [vmem:[#allocation22 + $0x240] sm:$0xff]
        %v8920 = vld [vmem:[#allocation22 + $0x248] sm:$0xff]
        %v8921 = vld [vmem:[#allocation22 + $0x250] sm:$0xff]
        %v8922 = vld [vmem:[#allocation22 + $0x258] sm:$0xff]
        %v8923 = vld [vmem:[#allocation22 + $0x260] sm:$0xff]
        %v8924 = vld [vmem:[#allocation22 + $0x268] sm:$0xff]
        %v8925 = vld [vmem:[#allocation22 + $0x270] sm:$0xff]
        %v8926 = vld [vmem:[#allocation22 + $0x278] sm:$0xff]
        %v8927 = vld [vmem:[#allocation22 + $0x280] sm:$0xff]
        %v8928 = vld [vmem:[#allocation22 + $0x288] sm:$0xff]
        %v8929 = vld [vmem:[#allocation22 + $0x290] sm:$0xff]
        %v8930 = vld [vmem:[#allocation22 + $0x298] sm:$0xff]
        %v8931 = vld [vmem:[#allocation22 + $0x2a0] sm:$0xff]
        %v8932 = vld [vmem:[#allocation22 + $0x2a8] sm:$0xff]
        %v8933 = vld [vmem:[#allocation22 + $0x2b0] sm:$0xff]
        %v8934 = vld [vmem:[#allocation22 + $0x2b8] sm:$0xff]
        %v8935 = vld [vmem:[#allocation22 + $0x2c0] sm:$0xff]
        %v8936 = vld [vmem:[#allocation22 + $0x2c8] sm:$0xff]
        %v8937 = vld [vmem:[#allocation22 + $0x2d0] sm:$0xff]
        %v8938 = vld [vmem:[#allocation22 + $0x2d8] sm:$0xff]
        %v8939 = vld [vmem:[#allocation22 + $0x2e0] sm:$0xff]
        %v8940 = vld [vmem:[#allocation22 + $0x2e8] sm:$0xff]
        %v8941 = vld [vmem:[#allocation22 + $0x2f0] sm:$0xff]
        %v8942 = vld [vmem:[#allocation22 + $0x2f8] sm:$0xff]
        %v8975 = vunpack.c.l.b16 %v8911
        %v8976 = vunpack.c.h.b16 %v8911
        %v8977 = vunpack.c.l.b16 %v8912
        %v8978 = vunpack.c.h.b16 %v8912
        %v8979 = vunpack.c.l.b16 %v8913
        %v8980 = vunpack.c.h.b16 %v8913
        %v8981 = vunpack.c.l.b16 %v8914
        %v8982 = vunpack.c.h.b16 %v8914
        %v8983 = vunpack.c.l.b16 %v8915
        %v8984 = vunpack.c.h.b16 %v8915
        %v8985 = vunpack.c.l.b16 %v8916
        %v8986 = vunpack.c.h.b16 %v8916
        %v8987 = vunpack.c.l.b16 %v8917
        %v8988 = vunpack.c.h.b16 %v8917
        %v8989 = vunpack.c.l.b16 %v8918
        %v8990 = vunpack.c.h.b16 %v8918
        %v8991 = vunpack.c.l.b16 %v8919
        %v8992 = vunpack.c.h.b16 %v8919
        %v8993 = vunpack.c.l.b16 %v8920
        %v8994 = vunpack.c.h.b16 %v8920
        %v8995 = vunpack.c.l.b16 %v8921
        %v8996 = vunpack.c.h.b16 %v8921
        %v8997 = vunpack.c.l.b16 %v8922
        %v8998 = vunpack.c.h.b16 %v8922
        %v8999 = vunpack.c.l.b16 %v8923
        %v9000 = vunpack.c.h.b16 %v8923
        %v9001 = vunpack.c.l.b16 %v8924
        %v9002 = vunpack.c.h.b16 %v8924
        %v9003 = vunpack.c.l.b16 %v8925
        %v9004 = vunpack.c.h.b16 %v8925
        %v9005 = vunpack.c.l.b16 %v8926
        %v9006 = vunpack.c.h.b16 %v8926
        %v9007 = vunpack.c.l.b16 %v8927
        %v9008 = vunpack.c.h.b16 %v8927
        %v9009 = vunpack.c.l.b16 %v8928
        %v9010 = vunpack.c.h.b16 %v8928
        %v9011 = vunpack.c.l.b16 %v8929
        %v9012 = vunpack.c.h.b16 %v8929
        %v9013 = vunpack.c.l.b16 %v8930
        %v9014 = vunpack.c.h.b16 %v8930
        %v9015 = vunpack.c.l.b16 %v8931
        %v9016 = vunpack.c.h.b16 %v8931
        %v9017 = vunpack.c.l.b16 %v8932
        %v9018 = vunpack.c.h.b16 %v8932
        %v9019 = vunpack.c.l.b16 %v8933
        %v9020 = vunpack.c.h.b16 %v8933
        %v9021 = vunpack.c.l.b16 %v8934
        %v9022 = vunpack.c.h.b16 %v8934
        %v9023 = vunpack.c.l.b16 %v8935
        %v9024 = vunpack.c.h.b16 %v8935
        %v9025 = vunpack.c.l.b16 %v8936
        %v9026 = vunpack.c.h.b16 %v8936
        %v9027 = vunpack.c.l.b16 %v8937
        %v9028 = vunpack.c.h.b16 %v8937
        %v9029 = vunpack.c.l.b16 %v8938
        %v9030 = vunpack.c.h.b16 %v8938
        %v9031 = vunpack.c.l.b16 %v8939
        %v9032 = vunpack.c.h.b16 %v8939
        %v9033 = vunpack.c.l.b16 %v8940
        %v9034 = vunpack.c.h.b16 %v8940
        %v9035 = vunpack.c.l.b16 %v8941
        %v9036 = vunpack.c.h.b16 %v8941
        %v9037 = vunpack.c.l.b16 %v8942
        %v9038 = vunpack.c.h.b16 %v8942
        %v9039 = vpack.c.b16 %v8983, %v8975
        %v9040 = vpack.c.b16 %v8984, %v8976
        %v9041 = vpack.c.b16 %v8985, %v8977
        %v9042 = vpack.c.b16 %v8986, %v8978
        %v9043 = vpack.c.b16 %v8987, %v8979
        %v9044 = vpack.c.b16 %v8988, %v8980
        %v9045 = vpack.c.b16 %v8989, %v8981
        %v9046 = vpack.c.b16 %v8990, %v8982
        %v9047 = vpack.c.b16 %v8999, %v8991
        %v9048 = vpack.c.b16 %v9000, %v8992
        %v9049 = vpack.c.b16 %v9001, %v8993
        %v9050 = vpack.c.b16 %v9002, %v8994
        %v9051 = vpack.c.b16 %v9003, %v8995
        %v9052 = vpack.c.b16 %v9004, %v8996
        %v9053 = vpack.c.b16 %v9005, %v8997
        %v9054 = vpack.c.b16 %v9006, %v8998
        %v9055 = vpack.c.b16 %v9015, %v9007
        %v9056 = vpack.c.b16 %v9016, %v9008
        %v9057 = vpack.c.b16 %v9017, %v9009
        %v9058 = vpack.c.b16 %v9018, %v9010
        %v9059 = vpack.c.b16 %v9019, %v9011
        %v9060 = vpack.c.b16 %v9020, %v9012
        %v9061 = vpack.c.b16 %v9021, %v9013
        %v9062 = vpack.c.b16 %v9022, %v9014
        %v9063 = vpack.c.b16 %v9031, %v9023
        %v9064 = vpack.c.b16 %v9032, %v9024
        %v9065 = vpack.c.b16 %v9033, %v9025
        %v9066 = vpack.c.b16 %v9034, %v9026
        %v9067 = vpack.c.b16 %v9035, %v9027
        %v9068 = vpack.c.b16 %v9036, %v9028
        %v9069 = vpack.c.b16 %v9037, %v9029
        %v9070 = vpack.c.b16 %v9038, %v9030
        %v9104 = vsel %vm1305, %v8909, 0
        %v9107 = vsel %vm1305, %v8910, 0
        %9109 = vmatprep.subr.bf16.mxu0 0
        %9110 = vmatpush1.bf16.msra.mxu0 0
        %9111 = vmatprep.subr.bf16.mxu0 0
        %9112 = vmatpush1.bf16.msra.mxu0 0
        %9113 = vmatprep.subr.bf16.mxu0 0
        %9114 = vmatpush1.bf16.msra.mxu0 0
        %9115 = vmatprep.subr.bf16.mxu0 0
        %9116 = vmatpush1.bf16.msra.mxu0 0
        %9117 = vmatprep.subr.bf16.mxu0 %v9064
        %9118 = vmatpush1.bf16.msra.mxu0 %v9063
        %9119 = vmatprep.subr.bf16.mxu0 %v9056
        %9120 = vmatpush1.bf16.msra.mxu0 %v9055
        %9121 = vmatprep.subr.bf16.mxu0 %v9048
        %9122 = vmatpush1.bf16.msra.mxu0 %v9047
        %9123 = vmatprep.subr.bf16.mxu0 %v9040
        %9124 = vmatpush1.bf16.msra.mxu0 %v9039
        %9125 = vmatprep.subr.bf16.mxu0 0
        %9126 = vmatpush2.bf16.msra.mxu0 0
        %9127 = vmatprep.subr.bf16.mxu0 0
        %9128 = vmatpush2.bf16.msra.mxu0 0
        %9129 = vmatprep.subr.bf16.mxu0 0
        %9130 = vmatpush2.bf16.msra.mxu0 0
        %9131 = vmatprep.subr.bf16.mxu0 0
        %9132 = vmatpush2.bf16.msra.mxu0 0
        %9133 = vmatprep.subr.bf16.mxu0 0
        %9134 = vmatpush2.bf16.msra.mxu0 0
        %9135 = vmatprep.subr.bf16.mxu0 0
        %9136 = vmatpush2.bf16.msra.mxu0 0
        %9137 = vmatprep.subr.bf16.mxu0 0
        %9138 = vmatpush2.bf16.msra.mxu0 0
        %9139 = vmatprep.subr.bf16.mxu0 0
        %9140 = vmatpush2.bf16.msra.mxu0 0
        %9141 = vmatprep.mubr.bf16.mxu0 0
        %9142 = vmatmul.mubr.bf16.gmra.mxu0 %v9104
        %v9143 = vpop.f32.mrf.mxu0
        %v9144 = vadd.f32 0.0, %v9143
        %v9145 = vpop.f32.mrf.mxu0
        %v9146 = vadd.f32 0.0, %v9145
        %v9147 = vpop.f32.mrf.mxu0
        %v9148 = vadd.f32 0.0, %v9147
        %v9149 = vpop.f32.mrf.mxu0
        %v9150 = vadd.f32 0.0, %v9149
        %9151 = vmatprep.mubr.bf16.mxu0 0
        %9152 = vmatmul.mubr.bf16.gmra.mxu0 %v9107
        %v9153 = vpop.f32.mrf.mxu0
        %v9154 = vadd.f32 0.0, %v9153
        %v9155 = vpop.f32.mrf.mxu0
        %v9156 = vadd.f32 0.0, %v9155
        %v9157 = vpop.f32.mrf.mxu0
        %v9158 = vadd.f32 0.0, %v9157
        %v9159 = vpop.f32.mrf.mxu0
        %v9160 = vadd.f32 0.0, %v9159
        %9161 = vdwg.mxu0
        %9162 = vmatprep.subr.bf16.mxu0 0
        %9163 = vmatpush1.bf16.msra.mxu0 0
        %9164 = vmatprep.subr.bf16.mxu0 0
        %9165 = vmatpush1.bf16.msra.mxu0 0
        %9166 = vmatprep.subr.bf16.mxu0 0
        %9167 = vmatpush1.bf16.msra.mxu0 0
        %9168 = vmatprep.subr.bf16.mxu0 0
        %9169 = vmatpush1.bf16.msra.mxu0 0
        %9170 = vmatprep.subr.bf16.mxu0 %v9066
        %9171 = vmatpush1.bf16.msra.mxu0 %v9065
        %9172 = vmatprep.subr.bf16.mxu0 %v9058
        %9173 = vmatpush1.bf16.msra.mxu0 %v9057
        %9174 = vmatprep.subr.bf16.mxu0 %v9050
        %9175 = vmatpush1.bf16.msra.mxu0 %v9049
        %9176 = vmatprep.subr.bf16.mxu0 %v9042
        %9177 = vmatpush1.bf16.msra.mxu0 %v9041
        %9178 = vmatprep.subr.bf16.mxu0 0
        %9179 = vmatpush2.bf16.msra.mxu0 0
        %9180 = vmatprep.subr.bf16.mxu0 0
        %9181 = vmatpush2.bf16.msra.mxu0 0
        %9182 = vmatprep.subr.bf16.mxu0 0
        %9183 = vmatpush2.bf16.msra.mxu0 0
        %9184 = vmatprep.subr.bf16.mxu0 0
        %9185 = vmatpush2.bf16.msra.mxu0 0
        %9186 = vmatprep.subr.bf16.mxu0 0
        %9187 = vmatpush2.bf16.msra.mxu0 0
        %9188 = vmatprep.subr.bf16.mxu0 0
        %9189 = vmatpush2.bf16.msra.mxu0 0
        %9190 = vmatprep.subr.bf16.mxu0 0
        %9191 = vmatpush2.bf16.msra.mxu0 0
        %9192 = vmatprep.subr.bf16.mxu0 0
        %9193 = vmatpush2.bf16.msra.mxu0 0
        %9194 = vmatprep.mubr.bf16.mxu0 0
        %9195 = vmatmul.mubr.bf16.gmra.mxu0 %v9104
        %v9196 = vpop.f32.mrf.mxu0
        %v9197 = vadd.f32 0.0, %v9196
        %v9198 = vpop.f32.mrf.mxu0
        %v9199 = vadd.f32 0.0, %v9198
        %v9200 = vpop.f32.mrf.mxu0
        %v9201 = vadd.f32 0.0, %v9200
        %v9202 = vpop.f32.mrf.mxu0
        %v9203 = vadd.f32 0.0, %v9202
        %9204 = vmatprep.mubr.bf16.mxu0 0
        %9205 = vmatmul.mubr.bf16.gmra.mxu0 %v9107
        %v9206 = vpop.f32.mrf.mxu0
        %v9207 = vadd.f32 0.0, %v9206
        %v9208 = vpop.f32.mrf.mxu0
        %v9209 = vadd.f32 0.0, %v9208
        %v9210 = vpop.f32.mrf.mxu0
        %v9211 = vadd.f32 0.0, %v9210
        %v9212 = vpop.f32.mrf.mxu0
        %v9213 = vadd.f32 0.0, %v9212
        %9214 = vdwg.mxu0
        %9215 = vmatprep.subr.bf16.mxu0 0
        %9216 = vmatpush1.bf16.msra.mxu0 0
        %9217 = vmatprep.subr.bf16.mxu0 0
        %9218 = vmatpush1.bf16.msra.mxu0 0
        %9219 = vmatprep.subr.bf16.mxu0 0
        %9220 = vmatpush1.bf16.msra.mxu0 0
        %9221 = vmatprep.subr.bf16.mxu0 0
        %9222 = vmatpush1.bf16.msra.mxu0 0
        %9223 = vmatprep.subr.bf16.mxu0 %v9068
        %9224 = vmatpush1.bf16.msra.mxu0 %v9067
        %9225 = vmatprep.subr.bf16.mxu0 %v9060
        %9226 = vmatpush1.bf16.msra.mxu0 %v9059
        %9227 = vmatprep.subr.bf16.mxu0 %v9052
        %9228 = vmatpush1.bf16.msra.mxu0 %v9051
        %9229 = vmatprep.subr.bf16.mxu0 %v9044
        %9230 = vmatpush1.bf16.msra.mxu0 %v9043
        %9231 = vmatprep.subr.bf16.mxu0 0
        %9232 = vmatpush2.bf16.msra.mxu0 0
        %9233 = vmatprep.subr.bf16.mxu0 0
        %9234 = vmatpush2.bf16.msra.mxu0 0
        %9235 = vmatprep.subr.bf16.mxu0 0
        %9236 = vmatpush2.bf16.msra.mxu0 0
        %9237 = vmatprep.subr.bf16.mxu0 0
        %9238 = vmatpush2.bf16.msra.mxu0 0
        %9239 = vmatprep.subr.bf16.mxu0 0
        %9240 = vmatpush2.bf16.msra.mxu0 0
        %9241 = vmatprep.subr.bf16.mxu0 0
        %9242 = vmatpush2.bf16.msra.mxu0 0
        %9243 = vmatprep.subr.bf16.mxu0 0
        %9244 = vmatpush2.bf16.msra.mxu0 0
        %9245 = vmatprep.subr.bf16.mxu0 0
        %9246 = vmatpush2.bf16.msra.mxu0 0
        %9247 = vmatprep.mubr.bf16.mxu0 0
        %9248 = vmatmul.mubr.bf16.gmra.mxu0 %v9104
        %v9249 = vpop.f32.mrf.mxu0
        %v9250 = vadd.f32 0.0, %v9249
        %v9251 = vpop.f32.mrf.mxu0
        %v9252 = vadd.f32 0.0, %v9251
        %v9253 = vpop.f32.mrf.mxu0
        %v9254 = vadd.f32 0.0, %v9253
        %v9255 = vpop.f32.mrf.mxu0
        %v9256 = vadd.f32 0.0, %v9255
        %9257 = vmatprep.mubr.bf16.mxu0 0
        %9258 = vmatmul.mubr.bf16.gmra.mxu0 %v9107
        %v9259 = vpop.f32.mrf.mxu0
        %v9260 = vadd.f32 0.0, %v9259
        %v9261 = vpop.f32.mrf.mxu0
        %v9262 = vadd.f32 0.0, %v9261
        %v9263 = vpop.f32.mrf.mxu0
        %v9264 = vadd.f32 0.0, %v9263
        %v9265 = vpop.f32.mrf.mxu0
        %v9266 = vadd.f32 0.0, %v9265
        %9267 = vdwg.mxu0
        %9268 = vmatprep.subr.bf16.mxu0 0
        %9269 = vmatpush1.bf16.msra.mxu0 0
        %9270 = vmatprep.subr.bf16.mxu0 0
        %9271 = vmatpush1.bf16.msra.mxu0 0
        %9272 = vmatprep.subr.bf16.mxu0 0
        %9273 = vmatpush1.bf16.msra.mxu0 0
        %9274 = vmatprep.subr.bf16.mxu0 0
        %9275 = vmatpush1.bf16.msra.mxu0 0
        %9276 = vmatprep.subr.bf16.mxu0 %v9070
        %9277 = vmatpush1.bf16.msra.mxu0 %v9069
        %9278 = vmatprep.subr.bf16.mxu0 %v9062
        %9279 = vmatpush1.bf16.msra.mxu0 %v9061
        %9280 = vmatprep.subr.bf16.mxu0 %v9054
        %9281 = vmatpush1.bf16.msra.mxu0 %v9053
        %9282 = vmatprep.subr.bf16.mxu0 %v9046
        %9283 = vmatpush1.bf16.msra.mxu0 %v9045
        %9284 = vmatprep.subr.bf16.mxu0 0
        %9285 = vmatpush2.bf16.msra.mxu0 0
        %9286 = vmatprep.subr.bf16.mxu0 0
        %9287 = vmatpush2.bf16.msra.mxu0 0
        %9288 = vmatprep.subr.bf16.mxu0 0
        %9289 = vmatpush2.bf16.msra.mxu0 0
        %9290 = vmatprep.subr.bf16.mxu0 0
        %9291 = vmatpush2.bf16.msra.mxu0 0
        %9292 = vmatprep.subr.bf16.mxu0 0
        %9293 = vmatpush2.bf16.msra.mxu0 0
        %9294 = vmatprep.subr.bf16.mxu0 0
        %9295 = vmatpush2.bf16.msra.mxu0 0
        %9296 = vmatprep.subr.bf16.mxu0 0
        %9297 = vmatpush2.bf16.msra.mxu0 0
        %9298 = vmatprep.subr.bf16.mxu0 0
        %9299 = vmatpush2.bf16.msra.mxu0 0
        %9300 = vmatprep.mubr.bf16.mxu0 0
        %9301 = vmatmul.mubr.bf16.gmra.mxu0 %v9104
        %v9302 = vpop.f32.mrf.mxu0
        %v9303 = vadd.f32 0.0, %v9302
        %v9304 = vpop.f32.mrf.mxu0
        %v9305 = vadd.f32 0.0, %v9304
        %v9306 = vpop.f32.mrf.mxu0
        %v9307 = vadd.f32 0.0, %v9306
        %v9308 = vpop.f32.mrf.mxu0
        %v9309 = vadd.f32 0.0, %v9308
        %9310 = vmatprep.mubr.bf16.mxu0 0
        %9311 = vmatmul.mubr.bf16.gmra.mxu0 %v9107
        %v9312 = vpop.f32.mrf.mxu0
        %v9313 = vadd.f32 0.0, %v9312
        %v9314 = vpop.f32.mrf.mxu0
        %v9315 = vadd.f32 0.0, %v9314
        %v9316 = vpop.f32.mrf.mxu0
        %v9317 = vadd.f32 0.0, %v9316
        %v9318 = vpop.f32.mrf.mxu0
        %v9319 = vadd.f32 0.0, %v9318
        %9320 = vdwg.mxu0
        %v9321 = vadd.f32 %v8732, %v9144
        %v9322 = vadd.f32 %v8734, %v9146
        %v9323 = vadd.f32 %v8785, %v9197
        %v9324 = vadd.f32 %v8787, %v9199
        %v9325 = vadd.f32 %v8838, %v9250
        %v9326 = vadd.f32 %v8840, %v9252
        %v9327 = vadd.f32 %v8891, %v9303
        %v9328 = vadd.f32 %v8893, %v9305
        %v9329 = vadd.f32 %v8736, %v9148
        %v9330 = vadd.f32 %v8738, %v9150
        %v9331 = vadd.f32 %v8789, %v9201
        %v9332 = vadd.f32 %v8791, %v9203
        %v9333 = vadd.f32 %v8842, %v9254
        %v9334 = vadd.f32 %v8844, %v9256
        %v9335 = vadd.f32 %v8895, %v9307
        %v9336 = vadd.f32 %v8897, %v9309
        %v9337 = vadd.f32 %v8742, %v9154
        %v9338 = vadd.f32 %v8744, %v9156
        %v9339 = vadd.f32 %v8795, %v9207
        %v9340 = vadd.f32 %v8797, %v9209
        %v9341 = vadd.f32 %v8848, %v9260
        %v9342 = vadd.f32 %v8850, %v9262
        %v9343 = vadd.f32 %v8901, %v9313
        %v9344 = vadd.f32 %v8903, %v9315
        %v9345 = vadd.f32 %v8746, %v9158
        %v9346 = vadd.f32 %v8748, %v9160
        %v9347 = vadd.f32 %v8799, %v9211
        %v9348 = vadd.f32 %v8801, %v9213
        %v9349 = vadd.f32 %v8852, %v9264
        %v9350 = vadd.f32 %v8854, %v9266
        %v9351 = vadd.f32 %v8905, %v9317
        %v9352 = vadd.f32 %v8907, %v9319
        %v9353 = vld [vmem:[%s17] sm:$0xff]
        %v9355 = vlaneseq
        %v9356 = vshrl.u32 %v9355, 7
        %v9357 = vsub.s32 0, %v9356
        %v9358 = vrot.slane %v9353, %v9357
        %v9359 = vlaneseq
        %v9360 = vshrl.u32 %v9359, 7
        %v9361 = vsub.s32 1, %v9360
        %v9362 = vrot.slane %v9353, %v9361
        %v9363 = vlaneseq
        %v9364 = vshrl.u32 %v9363, 7
        %v9365 = vsub.s32 2, %v9364
        %v9366 = vrot.slane %v9353, %v9365
        %v9367 = vlaneseq
        %v9368 = vshrl.u32 %v9367, 7
        %v9369 = vsub.s32 3, %v9368
        %v9370 = vrot.slane %v9353, %v9369
        %v9371 = vlaneseq
        %v9372 = vshrl.u32 %v9371, 7
        %v9373 = vsub.s32 4, %v9372
        %v9374 = vrot.slane %v9353, %v9373
        %v9375 = vlaneseq
        %v9376 = vshrl.u32 %v9375, 7
        %v9377 = vsub.s32 5, %v9376
        %v9378 = vrot.slane %v9353, %v9377
        %v9379 = vlaneseq
        %v9380 = vshrl.u32 %v9379, 7
        %v9381 = vsub.s32 6, %v9380
        %v9382 = vrot.slane %v9353, %v9381
        %v9383 = vlaneseq
        %v9384 = vshrl.u32 %v9383, 7
        %v9385 = vsub.s32 7, %v9384
        %v9386 = vrot.slane %v9353, %v9385
        %v9395 = vadd.f32 %v9321, %v9358
        %v9396 = vadd.f32 %v9322, %v9362
        %v9397 = vadd.f32 %v9323, %v9366
        %v9398 = vadd.f32 %v9324, %v9370
        %v9399 = vadd.f32 %v9325, %v9374
        %v9400 = vadd.f32 %v9326, %v9378
        %v9401 = vadd.f32 %v9327, %v9382
        %v9402 = vadd.f32 %v9328, %v9386
        %v9403 = vadd.f32 %v9329, %v9358
        %v9404 = vadd.f32 %v9330, %v9362
        %v9405 = vadd.f32 %v9331, %v9366
        %v9406 = vadd.f32 %v9332, %v9370
        %v9407 = vadd.f32 %v9333, %v9374
        %v9408 = vadd.f32 %v9334, %v9378
        %v9409 = vadd.f32 %v9335, %v9382
        %v9410 = vadd.f32 %v9336, %v9386
        %v9411 = vadd.f32 %v9337, %v9358
        %v9412 = vadd.f32 %v9338, %v9362
        %v9413 = vadd.f32 %v9339, %v9366
        %v9414 = vadd.f32 %v9340, %v9370
        %v9415 = vadd.f32 %v9341, %v9374
        %v9416 = vadd.f32 %v9342, %v9378
        %v9417 = vadd.f32 %v9343, %v9382
        %v9418 = vadd.f32 %v9344, %v9386
        %v9419 = vadd.f32 %v9345, %v9358
        %v9420 = vadd.f32 %v9346, %v9362
        %v9421 = vadd.f32 %v9347, %v9366
        %v9422 = vadd.f32 %v9348, %v9370
        %v9423 = vadd.f32 %v9349, %v9374
        %v9424 = vadd.f32 %v9350, %v9378
        %v9425 = vadd.f32 %v9351, %v9382
        %v9426 = vadd.f32 %v9352, %v9386
        %v9427 = vmax.f32 %v9395, 0.0
        %v9428 = vmax.f32 %v9396, 0.0
        %v9429 = vmax.f32 %v9397, 0.0
        %v9430 = vmax.f32 %v9398, 0.0
        %v9431 = vmax.f32 %v9399, 0.0
        %v9432 = vmax.f32 %v9400, 0.0
        %v9433 = vmax.f32 %v9401, 0.0
        %v9434 = vmax.f32 %v9402, 0.0
        %v9435 = vmax.f32 %v9403, 0.0
        %v9436 = vmax.f32 %v9404, 0.0
        %v9437 = vmax.f32 %v9405, 0.0
        %v9438 = vmax.f32 %v9406, 0.0
        %v9439 = vmax.f32 %v9407, 0.0
        %v9440 = vmax.f32 %v9408, 0.0
        %v9441 = vmax.f32 %v9409, 0.0
        %v9442 = vmax.f32 %v9410, 0.0
        %v9443 = vmax.f32 %v9411, 0.0
        %v9444 = vmax.f32 %v9412, 0.0
        %v9445 = vmax.f32 %v9413, 0.0
        %v9446 = vmax.f32 %v9414, 0.0
        %v9447 = vmax.f32 %v9415, 0.0
        %v9448 = vmax.f32 %v9416, 0.0
        %v9449 = vmax.f32 %v9417, 0.0
        %v9450 = vmax.f32 %v9418, 0.0
        %v9451 = vmax.f32 %v9419, 0.0
        %v9452 = vmax.f32 %v9420, 0.0
        %v9453 = vmax.f32 %v9421, 0.0
        %v9454 = vmax.f32 %v9422, 0.0
        %v9455 = vmax.f32 %v9423, 0.0
        %v9456 = vmax.f32 %v9424, 0.0
        %v9457 = vmax.f32 %v9425, 0.0
        %v9458 = vmax.f32 %v9426, 0.0
        %v9459 = vld [vmem:[#allocation23] sm:$0xff]
        %v9461 = vlaneseq
        %v9462 = vshrl.u32 %v9461, 7
        %v9463 = vsub.s32 0, %v9462
        %v9464 = vrot.slane %v9459, %v9463
        %v9465 = vlaneseq
        %v9466 = vshrl.u32 %v9465, 7
        %v9467 = vsub.s32 1, %v9466
        %v9468 = vrot.slane %v9459, %v9467
        %v9469 = vlaneseq
        %v9470 = vshrl.u32 %v9469, 7
        %v9471 = vsub.s32 2, %v9470
        %v9472 = vrot.slane %v9459, %v9471
        %v9473 = vlaneseq
        %v9474 = vshrl.u32 %v9473, 7
        %v9475 = vsub.s32 3, %v9474
        %v9476 = vrot.slane %v9459, %v9475
        %v9477 = vlaneseq
        %v9478 = vshrl.u32 %v9477, 7
        %v9479 = vsub.s32 4, %v9478
        %v9480 = vrot.slane %v9459, %v9479
        %v9481 = vlaneseq
        %v9482 = vshrl.u32 %v9481, 7
        %v9483 = vsub.s32 5, %v9482
        %v9484 = vrot.slane %v9459, %v9483
        %v9485 = vlaneseq
        %v9486 = vshrl.u32 %v9485, 7
        %v9487 = vsub.s32 6, %v9486
        %v9488 = vrot.slane %v9459, %v9487
        %v9489 = vlaneseq
        %v9490 = vshrl.u32 %v9489, 7
        %v9491 = vsub.s32 7, %v9490
        %v9492 = vrot.slane %v9459, %v9491
        %v9501 = vadd.f32 %v9427, %v9464
        %v9502 = vadd.f32 %v9428, %v9468
        %v9503 = vadd.f32 %v9429, %v9472
        %v9504 = vadd.f32 %v9430, %v9476
        %v9505 = vadd.f32 %v9431, %v9480
        %v9506 = vadd.f32 %v9432, %v9484
        %v9507 = vadd.f32 %v9433, %v9488
        %v9508 = vadd.f32 %v9434, %v9492
        %v9509 = vadd.f32 %v9435, %v9464
        %v9510 = vadd.f32 %v9436, %v9468
        %v9511 = vadd.f32 %v9437, %v9472
        %v9512 = vadd.f32 %v9438, %v9476
        %v9513 = vadd.f32 %v9439, %v9480
        %v9514 = vadd.f32 %v9440, %v9484
        %v9515 = vadd.f32 %v9441, %v9488
        %v9516 = vadd.f32 %v9442, %v9492
        %v9517 = vadd.f32 %v9443, %v9464
        %v9518 = vadd.f32 %v9444, %v9468
        %v9519 = vadd.f32 %v9445, %v9472
        %v9520 = vadd.f32 %v9446, %v9476
        %v9521 = vadd.f32 %v9447, %v9480
        %v9522 = vadd.f32 %v9448, %v9484
        %v9523 = vadd.f32 %v9449, %v9488
        %v9524 = vadd.f32 %v9450, %v9492
        %v9525 = vadd.f32 %v9451, %v9464
        %v9526 = vadd.f32 %v9452, %v9468
        %v9527 = vadd.f32 %v9453, %v9472
        %v9528 = vadd.f32 %v9454, %v9476
        %v9529 = vadd.f32 %v9455, %v9480
        %v9530 = vadd.f32 %v9456, %v9484
        %v9531 = vadd.f32 %v9457, %v9488
        %v9532 = vadd.f32 %v9458, %v9492
        %9533 = vst [vmem:[%s779] sm:$0xff] %v9501
        %9534 = vst [vmem:[%s779 + $0x8] sm:$0xff] %v9502
        %9535 = vst [vmem:[%s779 + $0x10] sm:$0xff] %v9503
        %9536 = vst [vmem:[%s779 + $0x18] sm:$0xff] %v9504
        %9537 = vst [vmem:[%s779 + $0x20] sm:$0xff] %v9505
        %9538 = vst [vmem:[%s779 + $0x28] sm:$0xff] %v9506
        %9539 = vst [vmem:[%s779 + $0x30] sm:$0xff] %v9507
        %9540 = vst [vmem:[%s779 + $0x38] sm:$0xff] %v9508
        %9541 = vst [vmem:[%s779 + $0x40] sm:$0xff] %v9509
        %9542 = vst [vmem:[%s779 + $0x48] sm:$0xff] %v9510
        %9543 = vst [vmem:[%s779 + $0x50] sm:$0xff] %v9511
        %9544 = vst [vmem:[%s779 + $0x58] sm:$0xff] %v9512
        %9545 = vst [vmem:[%s779 + $0x60] sm:$0xff] %v9513
        %9546 = vst [vmem:[%s779 + $0x68] sm:$0xff] %v9514
        %9547 = vst [vmem:[%s779 + $0x70] sm:$0xff] %v9515
        %9548 = vst [vmem:[%s779 + $0x78] sm:$0xff] %v9516
        %9549 = vst [vmem:[%s779 + $0x80] sm:$0xff] %v9517
        %9550 = vst [vmem:[%s779 + $0x88] sm:$0xff] %v9518
        %9551 = vst [vmem:[%s779 + $0x90] sm:$0xff] %v9519
        %9552 = vst [vmem:[%s779 + $0x98] sm:$0xff] %v9520
        %9553 = vst [vmem:[%s779 + $0xa0] sm:$0xff] %v9521
        %9554 = vst [vmem:[%s779 + $0xa8] sm:$0xff] %v9522
        %9555 = vst [vmem:[%s779 + $0xb0] sm:$0xff] %v9523
        %9556 = vst [vmem:[%s779 + $0xb8] sm:$0xff] %v9524
        %9557 = vst [vmem:[%s779 + $0xc0] sm:$0xff] %v9525
        %9558 = vst [vmem:[%s779 + $0xc8] sm:$0xff] %v9526
        %9559 = vst [vmem:[%s779 + $0xd0] sm:$0xff] %v9527
        %9560 = vst [vmem:[%s779 + $0xd8] sm:$0xff] %v9528
        %9561 = vst [vmem:[%s779 + $0xe0] sm:$0xff] %v9529
        %9562 = vst [vmem:[%s779 + $0xe8] sm:$0xff] %v9530
        %9563 = vst [vmem:[%s779 + $0xf0] sm:$0xff] %v9531
        %9564 = vst [vmem:[%s779 + $0xf8] sm:$0xff] %v9532
        %s9565 = sand.u32 %s453, 1
        %s9566 = scalar_lea.sflag [#allocation4], %s9565
        %s9567 = sand.u32 %s453, 1
        %s9568 = smul.addr %s9567, 256
        %s9569 = scalar_lea.vmem [#allocation25], %s9568
        // Predicated region
        $region153: #{tpu_custom_call.1} parent=95 // pred_check
          %p9570 = pneg %p463
        $region154: #{tpu_custom_call.1} parent=95 // pred_check_branch
          %9572 = sbr.rel (%p9570) target = $region156
        $region155: #{tpu_custom_call.1} parent=95 // pred_region
          %s9574 = ssub.s32 4096, 4096
          %9575 = vsyncadd %s9566, %s9574
          %s9576 = smul.addr %s41, 32
          %s9577 = smul.addr %s9576, 128
          %s9578 = scalar_lea.hbm %s19, %s9577
          %s9579 = sshll.u32 %s9569, 4
          %s9580 = int_to_ptr.vmem [resolvable:$true] %s9579
          %9585 = dma.vmem_to_hbm [thread:$0]  %s9580, 4096, %s9578, %s9566, 1024, 1024, 64
        $region156: #{tpu_custom_call.1} parent=95 // pred_fallthru
          _
      $region96: #{tpu_custom_call.1} parent=5 // pred_fallthru
        _
      %p9586 = scmp.le.s32.totalorder 2, %s36
      // Predicated region
      $region157: #{tpu_custom_call.1} parent=5 // pred_check
        %p9587 = pneg %p9586
      $region158: #{tpu_custom_call.1} parent=5 // pred_check_branch
        %9589 = sbr.rel (%p9587) target = $region160
      $region159: #{tpu_custom_call.1} parent=5 // pred_region
        %s9590 = ssub.s32 %s36, 2
        // Predicated region
        $region161: #{tpu_custom_call.1} parent=159 // pred_check
          %p9591 = pneg %p469
        $region162: #{tpu_custom_call.1} parent=159 // pred_check_branch
          %9593 = sbr.rel (%p9591) target = $region164
        $region163: #{tpu_custom_call.1} parent=159 // pred_region
          %s9594 = sand.u32 %s454, 1
          %s9595 = scalar_lea.sflag [#allocation4], %s9594
          %s9596 = sand.u32 %s454, 1
          %s9597 = smul.addr %s9596, 256
          %s9598 = scalar_lea.vmem [#allocation25], %s9597
          %9599 = dma.done %s9595, 4096
        $region164: #{tpu_custom_call.1} parent=159 // pred_fallthru
          _
      $region160: #{tpu_custom_call.1} parent=5 // pred_fallthru
        _
    $region6: #{tpu_custom_call.1} parent=1 // loop_footer
      %s40 = sadd.s32 1, %s36
    $region7: #{tpu_custom_call.1} parent=1 // loop_footer_branch
      %35 = sbr.rel target = $region3
    $region8: #{tpu_custom_call.1} parent=1 // loop_exit
      _
    %9600 = vsyncpa [#allocation3], 1
    %s9601 = scalar_lea.sflag [#allocation3], 1
    %9602 = vsyncpa %s9601, 1
    %9603 = vsyncpa [#allocation6], 1
    %9604 = vsyncpa [#allocation9], 1
    %9605 = vsyncpa [#allocation12], 1
    %9606 = vsyncpa [#allocation15], 1
    %9607 = vsyncpa [#allocation18], 1
    %9608 = vsyncpa [#allocation21], 1
    %9609 = vsyncpa [#allocation24], 1
    %9610 = vsyncpa [#allocation4], 1
    %s9611 = scalar_lea.sflag [#allocation4], 1
    %9612 = vsyncpa %s9611, 1

</llo_original>
